<compile_context>
chip_gen: v5e
topology: v5e:2x2
jax: 0.10.0
libtpu: 0.0.40
codegen_flags: <defaults>
</compile_context>

<pallas_src>
from functools import partial

import jax
import jax.numpy as jnp
from jax import lax
from jax.experimental import pallas as pl
from jax.experimental.pallas import tpu as pltpu

_GAMMA_RELU = 1.7139588594436646  # _nonlin_gamma['relu']
_LANES = 128


def _round_up(v, m):
    return ((v + m - 1) // m) * m


# ----------------------------- Pallas kernel ------------------------------- #
def _basic_block_kernel(xm_ref, xh_ref, w_ref, o_ref, slab_ref, *,
                        alpha, beta, width, wp, h_tile):
    # xm_ref : (h_tile*wp, Cp) fp32  this tile's rows of x (flattened, col 0 and
    #                                cols >= width+1 are zero pad)
    # xh_ref : (4*wp, Cp)      fp32  2 rows above + 2 rows below the tile
    # w_ref  : (18, Cp, Cp)    bf16  scaled-std weights, tap t = ky*3+kx
    #                                (taps 0..8 = conv1, 9..17 = conv2)
    # o_ref  : (h_tile*wp, Cp) fp32
    # slab   : ((h_tile+6)*wp, Cp) bf16 scratch shared by both convs
    rows1 = h_tile + 2            # conv1 output rows (1-row halo each side)
    lo = h_tile * wp              # flat rows of the output tile
    l1 = rows1 * wp               # flat rows of conv1 output / conv2 input
    a0 = wp                       # one leading spare row keeps tap starts >= 0
    cp = o_ref.shape[-1]
    h = pl.program_id(1)
    n_h = pl.num_programs(1)

    gb = _GAMMA_RELU * beta

    def act1(v):                  # relu(x) * gamma_relu * beta  (fp32 -> bf16)
        return (jnp.maximum(v, 0.0) * gb).astype(slab_ref.dtype)

    # ---- stage conv1 input slab: act1(x) rows [-2, h_tile+2) of this tile ----
    xh = xh_ref[...]
    slab_ref[pl.ds(a0, 2 * wp), :] = act1(xh[:2 * wp])                  # top halo
    slab_ref[pl.ds(a0 + 2 * wp, lo), :] = act1(xm_ref[...])             # interior
    slab_ref[pl.ds(a0 + (h_tile + 2) * wp, 2 * wp), :] = act1(xh[2 * wp:])  # bottom

    def conv3x3(length, w_base):
        # 3x3 conv as 9 MXU matmuls over the flattened slab; tap (ky,kx) is the
        # same buffer read at a *static* flat offset -- no strided window copies.
        # Wrap-around / garbage values land only in discarded pad columns.
        acc = None
        for ky in range(3):
            for kx in range(3):
                start = a0 + ky * wp + kx - 1
                lhs = slab_ref[pl.ds(start, length), :]
                part = jnp.dot(lhs, w_ref[w_base + ky * 3 + kx],
                               preferred_element_type=jnp.float32)
                # TODO(synk): on v7x this 9-tap sum could stay in the MRB via
                # matmul_push_rhs/acc_lhs/pop; left to Mosaic here.
                acc = part if acc is None else acc + part
        return acc

    out1 = conv3x3(l1, 0)                                   # (l1, Cp) fp32

    # ---- act2 + restage as conv2 input ---------------------------------------
    # Pad / garbage columns must become conv2's zero padding: one vectorized
    # select.  wp % 8 == 0 keeps the (l1,Cp)<->(rows1,wp,Cp) reshapes aligned.
    col = lax.broadcasted_iota(jnp.int32, (wp, cp), 0)
    col_keep = jnp.logical_and(col >= 1, col <= width)[None, :, :]
    out1_3d = out1.reshape(rows1, wp, cp)
    b_val = jnp.where(col_keep, jnp.maximum(out1_3d, 0.0) * _GAMMA_RELU, 0.0)
    slab_ref[pl.ds(a0, l1), :] = b_val.astype(slab_ref.dtype).reshape(l1, cp)

    # At the image top/bottom the halo row of conv1's output must act as
    # conv2's zero padding, not as computed data (only fires on boundary tiles).
    @pl.when(h == 0)
    def _():
        slab_ref[pl.ds(a0, wp), :] = jnp.zeros((wp, cp), slab_ref.dtype)

    @pl.when(h == n_h - 1)
    def _():
        slab_ref[pl.ds(a0 + (rows1 - 1) * wp, wp), :] = jnp.zeros(
            (wp, cp), slab_ref.dtype)

    out2 = conv3x3(lo, 9)                                    # (lo, Cp) fp32

    # out = alpha * conv2 + identity  (x re-read here: no fp32 tile kept live
    # across the 18 matmuls; downsample=None, stride=1)
    # TODO(synk): downsample branch / stride>1 not implemented (module default).
    o_ref[...] = (alpha * out2 + xm_ref[...]).astype(o_ref.dtype)


# ------------------------- parameter preprocessing ------------------------- #
def _scaled_std_weight(w, gain, eps=1e-5, gamma=1.0):
    """ScaledStdConv2d.get_weight(): w (Cout, Cin, 3, 3), gain (Cout,1,1,1)."""
    fan_in = w.shape[1] * w.shape[2] * w.shape[3]
    scale = gamma * fan_in ** (-0.5)
    mean = jnp.mean(w, axis=(1, 2, 3), keepdims=True)
    std = jnp.sqrt(jnp.mean((w - mean) ** 2, axis=(1, 2, 3), keepdims=True))
    w_std = scale * (w - mean) / (std + eps)
    return w_std * gain


def _pack_and_pad_weight(w_std, cp):
    """(Cout, Cin, 3, 3) -> (9, Cp, Cp) bf16; tap t = ky*3+kx is (Cin, Cout)."""
    cout, cin = w_std.shape[0], w_std.shape[1]
    packed = jnp.transpose(w_std, (2, 3, 1, 0)).reshape(9, cin, cout)
    packed = jnp.pad(packed, ((0, 0), (0, cp - cin), (0, cp - cout)))
    return packed.astype(jnp.bfloat16)


def _pick_h_tile(H, Wp, target_rows=2048):
    divs = [d for d in range(1, H + 1) if H % d == 0]
    fitting = [d for d in divs if d * Wp <= target_rows]
    return max(fitting) if fitting else divs[0]


# --------------------------------- wrappers -------------------------------- #
def basic_block_forward_nhwc(x_nhwc, w1, gain1, w2, gain2,
                             alpha=0.2, beta=1.0, h_tile=None):
    """NHWC entry point (preferred: no layout transposes)."""
    N, H, W, C = x_nhwc.shape
    assert w1.shape == (C, C, 3, 3) and w2.shape == (C, C, 3, 3), \
        "residual add requires inplanes == planes (downsample=None)"

    Cp = _round_up(max(C, _LANES), _LANES)        # lane-dense channels
    Wp = _round_up(W + 2, 8)                      # 1-col conv pad, 8-aligned rows
    if h_tile is None:
        h_tile = _pick_h_tile(H, Wp)
    assert H % h_tile == 0, "H must be divisible by h_tile"
    n_h = H // h_tile
    lo = h_tile * Wp
    l1 = (h_tile + 2) * Wp

    w1p = _pack_and_pad_weight(_scaled_std_weight(w1, gain1), Cp)
    w2p = _pack_and_pad_weight(_scaled_std_weight(w2, gain2), Cp)
    wpk = jnp.concatenate([w1p, w2p], axis=0)     # (18, Cp, Cp) bf16

    xf = x_nhwc.astype(jnp.float32)
    # TODO(synk): for strictly memory-bound stages (v5e) the x/out HBM stream
    # could be carried as bf16; kept fp32 so the residual add stays fp32.
    x_pad = jnp.pad(xf, ((0, 0), (2, 2), (1, Wp - W - 1), (0, Cp - C)))
    x_main = x_pad[:, 2:2 + H].reshape(N, n_h, lo, Cp)
    # 4 halo rows per tile (2 above + 2 below): two chained 3x3 convs need a
    # 2-row input halo; tiny array, auto-pipelined like everything else.
    hidx = (jnp.arange(n_h)[:, None] * h_tile
            + jnp.array([0, 1, h_tile + 2, h_tile + 3])[None, :]).reshape(-1)
    x_halo = x_pad[:, hidx].reshape(N, n_h, 4 * Wp, Cp)

    kernel = partial(_basic_block_kernel, alpha=float(alpha), beta=float(beta),
                     width=W, wp=Wp, h_tile=h_tile)

    # Generation-aware scoped-VMEM limit.
    try:
        cap = int(pltpu.get_tpu_info().vmem_capacity_bytes)
    except Exception:
        cap = 64 * 1024 * 1024
    need = (2 * lo * Cp * 4                 # x_main blocks (double-buffered)
            + 2 * 4 * Wp * Cp * 4           # halo blocks
            + 2 * lo * Cp * 4               # out blocks
            + 2 * 18 * Cp * Cp * 2          # weights (worst case: double-buffered)
            + (h_tile + 6) * Wp * Cp * 2    # shared slab scratch
            + 3 * l1 * Cp * 4)              # fp32 accumulator / temporaries
    vmem_limit = max(32 * 1024 * 1024, int(1.25 * need))
    vmem_limit = int(min(vmem_limit, int(0.75 * cap)))

    cost = pl.CostEstimate(
        flops=int(2 * 2 * 9 * N * H * Wp * Cp * Cp),
        transcendentals=0,
        bytes_accessed=int((x_main.size + x_halo.size) * 4 + wpk.size * 2
                           + N * n_h * lo * Cp * 4))

    def run(weights_resident):
        if weights_resident:
            # Whole-array VMEM residency: no dead second buffer for the weights.
            w_spec = pl.BlockSpec(memory_space=pltpu.MemorySpace.VMEM)
        else:
            w_spec = pl.BlockSpec((18, Cp, Cp), lambda b, h: (0, 0, 0))
        return pl.pallas_call(
            kernel,
            out_shape=jax.ShapeDtypeStruct((N, n_h, lo, Cp), jnp.float32),
            grid=(N, n_h),
            in_specs=[
                pl.BlockSpec((None, None, lo, Cp), lambda b, h: (b, h, 0, 0)),
                pl.BlockSpec((None, None, 4 * Wp, Cp), lambda b, h: (b, h, 0, 0)),
                w_spec,
            ],
            out_specs=pl.BlockSpec((None, None, lo, Cp), lambda b, h: (b, h, 0, 0)),
            scratch_shapes=[pltpu.VMEM(((h_tile + 6) * Wp, Cp), jnp.bfloat16)],
            compiler_params=pltpu.CompilerParams(
                dimension_semantics=("parallel", "parallel"),
                vmem_limit_bytes=vmem_limit),
            cost_estimate=cost,
        )(x_main, x_halo, wpk)

    try:
        out = run(True)
    except Exception:
        out = run(False)

    # One combined un-pad slice.  In a fully padded-layout model this slice
    # would be done once at the model boundary instead of per block.
    return out.reshape(N, H, Wp, Cp)[:, :, 1:W + 1, :C]


def basic_block_forward(x_nchw, w1, gain1, w2, gain2,
                        alpha=0.2, beta=1.0, h_tile=None):
    """PyTorch-layout (NCHW) wrapper; prefer the NHWC entry point inside an
    NHWC model to avoid the two layout transposes."""
    x_nhwc = jnp.transpose(x_nchw, (0, 2, 3, 1))
    out_nhwc = basic_block_forward_nhwc(x_nhwc, w1, gain1, w2, gain2,
                                        alpha, beta, h_tile)
    return jnp.transpose(out_nhwc, (0, 3, 1, 2))


# ---------------------------- pure-JAX reference ---------------------------- #
def _reference_forward(x, w1, gain1, w2, gain2, alpha=0.2, beta=1.0):
    def conv(inp, w, gain):
        wstd = _scaled_std_weight(w, gain)
        return lax.conv_general_dilated(
            inp, wstd, window_strides=(1, 1), padding=((1, 1), (1, 1)),
            dimension_numbers=('NCHW', 'OIHW', 'NCHW'))

    out = jnp.maximum(x, 0.0) * _GAMMA_RELU * beta
    out = conv(out, w1, gain1)
    out = jnp.maximum(out, 0.0) * _GAMMA_RELU
    out = conv(out, w2, gain2)
    return alpha * out + x


# ----------------------------------- main ----------------------------------- #
if __name__ == "__main__":
    key = jax.random.PRNGKey(0)
    kx_, kw1, kw2 = jax.random.split(key, 3)

    N, C, H, W = 2, 4, 16, 16     # inplanes = planes = 4, stride = 1
    x = jax.random.normal(kx_, (N, C, H, W), dtype=jnp.float32)
    w1 = 0.1 * jax.random.normal(kw1, (C, C, 3, 3), dtype=jnp.float32)
    w2 = 0.1 * jax.random.normal(kw2, (C, C, 3, 3), dtype=jnp.float32)
    gain1 = jnp.ones((C, 1, 1, 1), dtype=jnp.float32)
    gain2 = jnp.ones((C, 1, 1, 1), dtype=jnp.float32)

    ref = _reference_forward(x, w1, gain1, w2, gain2, alpha=0.2, beta=1.0)

    # h_tile=4 exercises top/interior/bottom H-tiles; None = auto (single tile).
    for ht in (4, None):
        out = basic_block_forward(x, w1, gain1, w2, gain2,
                                  alpha=0.2, beta=1.0, h_tile=ht)
        out = jax.block_until_ready(out)
        assert out.shape == (N, C, H, W)
        max_err = float(jnp.max(jnp.abs(out - ref)))
        # bf16 MXU operands with fp32 accumulation: small quantization error.
        assert jnp.allclose(out, ref, atol=5e-2, rtol=5e-2), \
            f"h_tile={ht}: max abs err {max_err}"

    print("KERNEL_OK")
</pallas_src>

<mosaic_0001>
module attributes {stable_mosaic.version = 11 : i64} {
  func.func @_basic_block_kernel(%arg0: i32, %arg1: i32, %arg2: memref<1x1x96x128xf32, #tpu.memory_space<vmem>>, %arg3: memref<1x1x96x128xf32, #tpu.memory_space<vmem>>, %arg4: memref<18x128x128xbf16, #tpu.memory_space<vmem>>, %arg5: memref<1x1x96x128xf32, #tpu.memory_space<vmem>>, %arg6: memref<240x128xbf16, #tpu.memory_space<vmem>>) attributes {dimension_semantics = [#tpu.dimension_semantics<parallel>, #tpu.dimension_semantics<parallel>], iteration_bounds = array<i64: 2, 4>, scalar_prefetch = 0 : i64, scratch_operands = 1 : i64, tpu.core_type = #tpu.core_type<tc>, window_params = [{transform_indices = @transform_0, window_bounds = array<i64: 1, 1, 96, 128>}, {transform_indices = @transform_1, window_bounds = array<i64: 1, 1, 96, 128>}, {pipeline_mode = #tpu.pipeline_mode<synchronous>, transform_indices = @transform_2, window_bounds = array<i64: 18, 128, 128>}, {transform_indices = @transform_3, window_bounds = array<i64: 1, 1, 96, 128>}]} {
    %c0 = arith.constant 0 : index
    %c0_0 = arith.constant 0 : index
    %c0_1 = arith.constant 0 : index
    %c0_2 = arith.constant 0 : index
    %0 = vector.load %arg3[%c0, %c0_0, %c0_1, %c0_2] : memref<1x1x96x128xf32, #tpu.memory_space<vmem>>, vector<1x1x96x128xf32>
    %1 = vector.shape_cast %0 : vector<1x1x96x128xf32> to vector<96x128xf32>
    %2 = vector.extract_strided_slice %1 {offsets = [0, 0], sizes = [48, 128], strides = [1, 1]} : vector<96x128xf32> to vector<48x128xf32>
    %cst = arith.constant 0.000000e+00 : f32
    %3 = vector.broadcast %cst : f32 to vector<48x128xf32>
    %4 = arith.maximumf %2, %3 : vector<48x128xf32>
    %cst_3 = arith.constant 1.71395886 : f32
    %5 = vector.broadcast %cst_3 : f32 to vector<48x128xf32>
    %6 = arith.mulf %4, %5 : vector<48x128xf32>
    %7 = arith.truncf %6 : vector<48x128xf32> to vector<48x128xbf16>
    %c24 = arith.constant 24 : index
    %c0_4 = arith.constant 0 : index
    %8 = vector.load %arg6[%c24, %c0_4] : memref<240x128xbf16, #tpu.memory_space<vmem>>, vector<48x128xbf16>
    tpu.vector_store %arg6[%c24, %c0_4], %7 {strides = array<i32>} : memref<240x128xbf16, #tpu.memory_space<vmem>>, vector<48x128xbf16>,
    %c0_5 = arith.constant 0 : index
    %c0_6 = arith.constant 0 : index
    %c0_7 = arith.constant 0 : index
    %c0_8 = arith.constant 0 : index
    %9 = vector.load %arg2[%c0_5, %c0_6, %c0_7, %c0_8] : memref<1x1x96x128xf32, #tpu.memory_space<vmem>>, vector<1x1x96x128xf32>
    %10 = vector.shape_cast %9 : vector<1x1x96x128xf32> to vector<96x128xf32>
    %cst_9 = arith.constant 0.000000e+00 : f32
    %11 = vector.broadcast %cst_9 : f32 to vector<96x128xf32>
    %12 = arith.maximumf %10, %11 : vector<96x128xf32>
    %cst_10 = arith.constant 1.71395886 : f32
    %13 = vector.broadcast %cst_10 : f32 to vector<96x128xf32>
    %14 = arith.mulf %12, %13 : vector<96x128xf32>
    %15 = arith.truncf %14 : vector<96x128xf32> to vector<96x128xbf16>
    %c72 = arith.constant 72 : index
    %c0_11 = arith.constant 0 : index
    %16 = vector.load %arg6[%c72, %c0_11] : memref<240x128xbf16, #tpu.memory_space<vmem>>, vector<96x128xbf16>
    tpu.vector_store %arg6[%c72, %c0_11], %15 {strides = array<i32>} : memref<240x128xbf16, #tpu.memory_space<vmem>>, vector<96x128xbf16>,
    %17 = vector.extract_strided_slice %1 {offsets = [48, 0], sizes = [48, 128], strides = [1, 1]} : vector<96x128xf32> to vector<48x128xf32>
    %cst_12 = arith.constant 0.000000e+00 : f32
    %18 = vector.broadcast %cst_12 : f32 to vector<48x128xf32>
    %19 = arith.maximumf %17, %18 : vector<48x128xf32>
    %cst_13 = arith.constant 1.71395886 : f32
    %20 = vector.broadcast %cst_13 : f32 to vector<48x128xf32>
    %21 = arith.mulf %19, %20 : vector<48x128xf32>
    %22 = arith.truncf %21 : vector<48x128xf32> to vector<48x128xbf16>
    %c168 = arith.constant 168 : index
    %c0_14 = arith.constant 0 : index
    %23 = vector.load %arg6[%c168, %c0_14] : memref<240x128xbf16, #tpu.memory_space<vmem>>, vector<48x128xbf16>
    tpu.vector_store %arg6[%c168, %c0_14], %22 {strides = array<i32>} : memref<240x128xbf16, #tpu.memory_space<vmem>>, vector<48x128xbf16>,
    %c23 = arith.constant 23 : index
    %c0_15 = arith.constant 0 : index
    %24 = vector.load %arg6[%c23, %c0_15] : memref<240x128xbf16, #tpu.memory_space<vmem>>, vector<144x128xbf16>
    %c0_16 = arith.constant 0 : index
    %c0_17 = arith.constant 0 : index
    %c0_18 = arith.constant 0 : index
    %25 = vector.load %arg4[%c0_16, %c0_17, %c0_18] : memref<18x128x128xbf16, #tpu.memory_space<vmem>>, vector<1x128x128xbf16>
    %26 = vector.shape_cast %25 : vector<1x128x128xbf16> to vector<128x128xbf16>
    %cst_19 = arith.constant dense<0.000000e+00> : vector<144x128xf32>
    %27 = tpu.matmul %24, %26, %cst_19 {dimension_numbers = #tpu.dot_dimension_numbers<[1], [0], [0], [1], [0, 0, 1, 1], [], []>} : vector<144x128xbf16>, vector<128x128xbf16>, vector<144x128xf32> -> vector<144x128xf32>
    %c24_20 = arith.constant 24 : index
    %c0_21 = arith.constant 0 : index
    %28 = vector.load %arg6[%c24_20, %c0_21] : memref<240x128xbf16, #tpu.memory_space<vmem>>, vector<144x128xbf16>
    %c1 = arith.constant 1 : index
    %c0_22 = arith.constant 0 : index
    %c0_23 = arith.constant 0 : index
    %29 = vector.load %arg4[%c1, %c0_22, %c0_23] : memref<18x128x128xbf16, #tpu.memory_space<vmem>>, vector<1x128x128xbf16>
    %30 = vector.shape_cast %29 : vector<1x128x128xbf16> to vector<128x128xbf16>
    %cst_24 = arith.constant dense<0.000000e+00> : vector<144x128xf32>
    %31 = tpu.matmul %28, %30, %cst_24 {dimension_numbers = #tpu.dot_dimension_numbers<[1], [0], [0], [1], [0, 0, 1, 1], [], []>} : vector<144x128xbf16>, vector<128x128xbf16>, vector<144x128xf32> -> vector<144x128xf32>
    %32 = arith.addf %27, %31 : vector<144x128xf32>
    %c25 = arith.constant 25 : index
    %c0_25 = arith.constant 0 : index
    %33 = vector.load %arg6[%c25, %c0_25] : memref<240x128xbf16, #tpu.memory_space<vmem>>, vector<144x128xbf16>
    %c2 = arith.constant 2 : index
    %c0_26 = arith.constant 0 : index
    %c0_27 = arith.constant 0 : index
    %34 = vector.load %arg4[%c2, %c0_26, %c0_27] : memref<18x128x128xbf16, #tpu.memory_space<vmem>>, vector<1x128x128xbf16>
    %35 = vector.shape_cast %34 : vector<1x128x128xbf16> to vector<128x128xbf16>
    %cst_28 = arith.constant dense<0.000000e+00> : vector<144x128xf32>
    %36 = tpu.matmul %33, %35, %cst_28 {dimension_numbers = #tpu.dot_dimension_numbers<[1], [0], [0], [1], [0, 0, 1, 1], [], []>} : vector<144x128xbf16>, vector<128x128xbf16>, vector<144x128xf32> -> vector<144x128xf32>
    %37 = arith.addf %32, %36 : vector<144x128xf32>
    %c47 = arith.constant 47 : index
    %c0_29 = arith.constant 0 : index
    %38 = vector.load %arg6[%c47, %c0_29] : memref<240x128xbf16, #tpu.memory_space<vmem>>, vector<144x128xbf16>
    %c3 = arith.constant 3 : index
    %c0_30 = arith.constant 0 : index
    %c0_31 = arith.constant 0 : index
    %39 = vector.load %arg4[%c3, %c0_30, %c0_31] : memref<18x128x128xbf16, #tpu.memory_space<vmem>>, vector<1x128x128xbf16>
    %40 = vector.shape_cast %39 : vector<1x128x128xbf16> to vector<128x128xbf16>
    %cst_32 = arith.constant dense<0.000000e+00> : vector<144x128xf32>
    %41 = tpu.matmul %38, %40, %cst_32 {dimension_numbers = #tpu.dot_dimension_numbers<[1], [0], [0], [1], [0, 0, 1, 1], [], []>} : vector<144x128xbf16>, vector<128x128xbf16>, vector<144x128xf32> -> vector<144x128xf32>
    %42 = arith.addf %37, %41 : vector<144x128xf32>
    %c48 = arith.constant 48 : index
    %c0_33 = arith.constant 0 : index
    %43 = vector.load %arg6[%c48, %c0_33] : memref<240x128xbf16, #tpu.memory_space<vmem>>, vector<144x128xbf16>
    %c4 = arith.constant 4 : index
    %c0_34 = arith.constant 0 : index
    %c0_35 = arith.constant 0 : index
    %44 = vector.load %arg4[%c4, %c0_34, %c0_35] : memref<18x128x128xbf16, #tpu.memory_space<vmem>>, vector<1x128x128xbf16>
    %45 = vector.shape_cast %44 : vector<1x128x128xbf16> to vector<128x128xbf16>
    %cst_36 = arith.constant dense<0.000000e+00> : vector<144x128xf32>
    %46 = tpu.matmul %43, %45, %cst_36 {dimension_numbers = #tpu.dot_dimension_numbers<[1], [0], [0], [1], [0, 0, 1, 1], [], []>} : vector<144x128xbf16>, vector<128x128xbf16>, vector<144x128xf32> -> vector<144x128xf32>
    %47 = arith.addf %42, %46 : vector<144x128xf32>
    %c49 = arith.constant 49 : index
    %c0_37 = arith.constant 0 : index
    %48 = vector.load %arg6[%c49, %c0_37] : memref<240x128xbf16, #tpu.memory_space<vmem>>, vector<144x128xbf16>
    %c5 = arith.constant 5 : index
    %c0_38 = arith.constant 0 : index
    %c0_39 = arith.constant 0 : index
    %49 = vector.load %arg4[%c5, %c0_38, %c0_39] : memref<18x128x128xbf16, #tpu.memory_space<vmem>>, vector<1x128x128xbf16>
    %50 = vector.shape_cast %49 : vector<1x128x128xbf16> to vector<128x128xbf16>
    %cst_40 = arith.constant dense<0.000000e+00> : vector<144x128xf32>
    %51 = tpu.matmul %48, %50, %cst_40 {dimension_numbers = #tpu.dot_dimension_numbers<[1], [0], [0], [1], [0, 0, 1, 1], [], []>} : vector<144x128xbf16>, vector<128x128xbf16>, vector<144x128xf32> -> vector<144x128xf32>
    %52 = arith.addf %47, %51 : vector<144x128xf32>
    %c71 = arith.constant 71 : index
    %c0_41 = arith.constant 0 : index
    %53 = vector.load %arg6[%c71, %c0_41] : memref<240x128xbf16, #tpu.memory_space<vmem>>, vector<144x128xbf16>
    %c6 = arith.constant 6 : index
    %c0_42 = arith.constant 0 : index
    %c0_43 = arith.constant 0 : index
    %54 = vector.load %arg4[%c6, %c0_42, %c0_43] : memref<18x128x128xbf16, #tpu.memory_space<vmem>>, vector<1x128x128xbf16>
    %55 = vector.shape_cast %54 : vector<1x128x128xbf16> to vector<128x128xbf16>
    %cst_44 = arith.constant dense<0.000000e+00> : vector<144x128xf32>
    %56 = tpu.matmul %53, %55, %cst_44 {dimension_numbers = #tpu.dot_dimension_numbers<[1], [0], [0], [1], [0, 0, 1, 1], [], []>} : vector<144x128xbf16>, vector<128x128xbf16>, vector<144x128xf32> -> vector<144x128xf32>
    %57 = arith.addf %52, %56 : vector<144x128xf32>
    %c72_45 = arith.constant 72 : index
    %c0_46 = arith.constant 0 : index
    %58 = vector.load %arg6[%c72_45, %c0_46] : memref<240x128xbf16, #tpu.memory_space<vmem>>, vector<144x128xbf16>
    %c7 = arith.constant 7 : index
    %c0_47 = arith.constant 0 : index
    %c0_48 = arith.constant 0 : index
    %59 = vector.load %arg4[%c7, %c0_47, %c0_48] : memref<18x128x128xbf16, #tpu.memory_space<vmem>>, vector<1x128x128xbf16>
    %60 = vector.shape_cast %59 : vector<1x128x128xbf16> to vector<128x128xbf16>
    %cst_49 = arith.constant dense<0.000000e+00> : vector<144x128xf32>
    %61 = tpu.matmul %58, %60, %cst_49 {dimension_numbers = #tpu.dot_dimension_numbers<[1], [0], [0], [1], [0, 0, 1, 1], [], []>} : vector<144x128xbf16>, vector<128x128xbf16>, vector<144x128xf32> -> vector<144x128xf32>
    %62 = arith.addf %57, %61 : vector<144x128xf32>
    %c73 = arith.constant 73 : index
    %c0_50 = arith.constant 0 : index
    %63 = vector.load %arg6[%c73, %c0_50] : memref<240x128xbf16, #tpu.memory_space<vmem>>, vector<144x128xbf16>
    %c8 = arith.constant 8 : index
    %c0_51 = arith.constant 0 : index
    %c0_52 = arith.constant 0 : index
    %64 = vector.load %arg4[%c8, %c0_51, %c0_52] : memref<18x128x128xbf16, #tpu.memory_space<vmem>>, vector<1x128x128xbf16>
    %65 = vector.shape_cast %64 : vector<1x128x128xbf16> to vector<128x128xbf16>
    %cst_53 = arith.constant dense<0.000000e+00> : vector<144x128xf32>
    %66 = tpu.matmul %63, %65, %cst_53 {dimension_numbers = #tpu.dot_dimension_numbers<[1], [0], [0], [1], [0, 0, 1, 1], [], []>} : vector<144x128xbf16>, vector<128x128xbf16>, vector<144x128xf32> -> vector<144x128xf32>
    %67 = arith.addf %62, %66 : vector<144x128xf32>
    %68 = tpu.iota {dimensions = array<i32: 0>} : vector<24x128xi32>
    %c1_i32 = arith.constant 1 : i32
    %69 = vector.broadcast %c1_i32 : i32 to vector<24x128xi32>
    %70 = arith.cmpi sge, %68, %69 : vector<24x128xi32>
    %c16_i32 = arith.constant 16 : i32
    %71 = vector.broadcast %c16_i32 : i32 to vector<24x128xi32>
    %72 = arith.cmpi sle, %68, %71 : vector<24x128xi32>
    %73 = arith.andi %70, %72 : vector<24x128xi1>
    %74 = vector.shape_cast %73 : vector<24x128xi1> to vector<1x24x128xi1>
    %75 = vector.shape_cast %67 : vector<144x128xf32> to vector<6x24x128xf32>
    %cst_54 = arith.constant 0.000000e+00 : f32
    %76 = vector.broadcast %cst_54 : f32 to vector<6x24x128xf32>
    %77 = arith.maximumf %75, %76 : vector<6x24x128xf32>
    %cst_55 = arith.constant 1.71395886 : f32
    %78 = vector.broadcast %cst_55 : f32 to vector<6x24x128xf32>
    %79 = arith.mulf %77, %78 : vector<6x24x128xf32>
    %cst_56 = arith.constant 0.000000e+00 : f32
    %80 = vector.shape_cast %74 : vector<1x24x128xi1> to vector<1x24x128xi1>
    %81 = vector.broadcast %80 : vector<1x24x128xi1> to vector<6x24x128xi1>
    %82 = vector.broadcast %cst_56 : f32 to vector<6x24x128xf32>
    %83 = arith.select %81, %79, %82 : vector<6x24x128xi1>, vector<6x24x128xf32>
    %84 = arith.truncf %83 : vector<6x24x128xf32> to vector<6x24x128xbf16>
    %85 = vector.shape_cast %84 : vector<6x24x128xbf16> to vector<144x128xbf16>
    %c24_57 = arith.constant 24 : index
    %c0_58 = arith.constant 0 : index
    %86 = vector.load %arg6[%c24_57, %c0_58] : memref<240x128xbf16, #tpu.memory_space<vmem>>, vector<144x128xbf16>
    tpu.vector_store %arg6[%c24_57, %c0_58], %85 {strides = array<i32>} : memref<240x128xbf16, #tpu.memory_space<vmem>>, vector<144x128xbf16>,
    %c0_i32 = arith.constant 0 : i32
    %87 = arith.cmpi eq, %arg1, %c0_i32 : i32
    %88 = arith.extui %87 : i1 to i32
    %c0_i32_59 = arith.constant 0 : i32
    %89 = arith.cmpi ne, %88, %c0_i32_59 : i32
    scf.if %89 {
      %cst_115 = arith.constant 0.000000e+00 : bf16
      %145 = vector.broadcast %cst_115 : bf16 to vector<24x128xbf16>
      %c24_116 = arith.constant 24 : index
      %c0_117 = arith.constant 0 : index
      %146 = vector.load %arg6[%c24_116, %c0_117] : memref<240x128xbf16, #tpu.memory_space<vmem>>, vector<24x128xbf16>
      tpu.vector_store %arg6[%c24_116, %c0_117], %145 {strides = array<i32>} : memref<240x128xbf16, #tpu.memory_space<vmem>>, vector<24x128xbf16>,
    } else {
    }
    %c3_i32 = arith.constant 3 : i32
    %90 = arith.cmpi eq, %arg1, %c3_i32 : i32
    %91 = arith.extui %90 : i1 to i32
    %c0_i32_60 = arith.constant 0 : i32
    %92 = arith.cmpi ne, %91, %c0_i32_60 : i32
    scf.if %92 {
      %cst_115 = arith.constant 0.000000e+00 : bf16
      %145 = vector.broadcast %cst_115 : bf16 to vector<24x128xbf16>
      %c144 = arith.constant 144 : index
      %c0_116 = arith.constant 0 : index
      %146 = vector.load %arg6[%c144, %c0_116] : memref<240x128xbf16, #tpu.memory_space<vmem>>, vector<24x128xbf16>
      tpu.vector_store %arg6[%c144, %c0_116], %145 {strides = array<i32>} : memref<240x128xbf16, #tpu.memory_space<vmem>>, vector<24x128xbf16>,
    } else {
    }
    %c23_61 = arith.constant 23 : index
    %c0_62 = arith.constant 0 : index
    %93 = vector.load %arg6[%c23_61, %c0_62] : memref<240x128xbf16, #tpu.memory_space<vmem>>, vector<96x128xbf16>
    %c9 = arith.constant 9 : index
    %c0_63 = arith.constant 0 : index
    %c0_64 = arith.constant 0 : index
    %94 = vector.load %arg4[%c9, %c0_63, %c0_64] : memref<18x128x128xbf16, #tpu.memory_space<vmem>>, vector<1x128x128xbf16>
    %95 = vector.shape_cast %94 : vector<1x128x128xbf16> to vector<128x128xbf16>
    %cst_65 = arith.constant dense<0.000000e+00> : vector<96x128xf32>
    %96 = tpu.matmul %93, %95, %cst_65 {dimension_numbers = #tpu.dot_dimension_numbers<[1], [0], [0], [1], [0, 0, 1, 1], [], []>} : vector<96x128xbf16>, vector<128x128xbf16>, vector<96x128xf32> -> vector<96x128xf32>
    %c24_66 = arith.constant 24 : index
    %c0_67 = arith.constant 0 : index
    %97 = vector.load %arg6[%c24_66, %c0_67] : memref<240x128xbf16, #tpu.memory_space<vmem>>, vector<96x128xbf16>
    %c10 = arith.constant 10 : index
    %c0_68 = arith.constant 0 : index
    %c0_69 = arith.constant 0 : index
    %98 = vector.load %arg4[%c10, %c0_68, %c0_69] : memref<18x128x128xbf16, #tpu.memory_space<vmem>>, vector<1x128x128xbf16>
    %99 = vector.shape_cast %98 : vector<1x128x128xbf16> to vector<128x128xbf16>
    %cst_70 = arith.constant dense<0.000000e+00> : vector<96x128xf32>
    %100 = tpu.matmul %97, %99, %cst_70 {dimension_numbers = #tpu.dot_dimension_numbers<[1], [0], [0], [1], [0, 0, 1, 1], [], []>} : vector<96x128xbf16>, vector<128x128xbf16>, vector<96x128xf32> -> vector<96x128xf32>
    %101 = arith.addf %96, %100 : vector<96x128xf32>
    %c25_71 = arith.constant 25 : index
    %c0_72 = arith.constant 0 : index
    %102 = vector.load %arg6[%c25_71, %c0_72] : memref<240x128xbf16, #tpu.memory_space<vmem>>, vector<96x128xbf16>
    %c11 = arith.constant 11 : index
    %c0_73 = arith.constant 0 : index
    %c0_74 = arith.constant 0 : index
    %103 = vector.load %arg4[%c11, %c0_73, %c0_74] : memref<18x128x128xbf16, #tpu.memory_space<vmem>>, vector<1x128x128xbf16>
    %104 = vector.shape_cast %103 : vector<1x128x128xbf16> to vector<128x128xbf16>
    %cst_75 = arith.constant dense<0.000000e+00> : vector<96x128xf32>
    %105 = tpu.matmul %102, %104, %cst_75 {dimension_numbers = #tpu.dot_dimension_numbers<[1], [0], [0], [1], [0, 0, 1, 1], [], []>} : vector<96x128xbf16>, vector<128x128xbf16>, vector<96x128xf32> -> vector<96x128xf32>
    %106 = arith.addf %101, %105 : vector<96x128xf32>
    %c47_76 = arith.constant 47 : index
    %c0_77 = arith.constant 0 : index
    %107 = vector.load %arg6[%c47_76, %c0_77] : memref<240x128xbf16, #tpu.memory_space<vmem>>, vector<96x128xbf16>
    %c12 = arith.constant 12 : index
    %c0_78 = arith.constant 0 : index
    %c0_79 = arith.constant 0 : index
    %108 = vector.load %arg4[%c12, %c0_78, %c0_79] : memref<18x128x128xbf16, #tpu.memory_space<vmem>>, vector<1x128x128xbf16>
    %109 = vector.shape_cast %108 : vector<1x128x128xbf16> to vector<128x128xbf16>
    %cst_80 = arith.constant dense<0.000000e+00> : vector<96x128xf32>
    %110 = tpu.matmul %107, %109, %cst_80 {dimension_numbers = #tpu.dot_dimension_numbers<[1], [0], [0], [1], [0, 0, 1, 1], [], []>} : vector<96x128xbf16>, vector<128x128xbf16>, vector<96x128xf32> -> vector<96x128xf32>
    %111 = arith.addf %106, %110 : vector<96x128xf32>
    %c48_81 = arith.constant 48 : index
    %c0_82 = arith.constant 0 : index
    %112 = vector.load %arg6[%c48_81, %c0_82] : memref<240x128xbf16, #tpu.memory_space<vmem>>, vector<96x128xbf16>
    %c13 = arith.constant 13 : index
    %c0_83 = arith.constant 0 : index
    %c0_84 = arith.constant 0 : index
    %113 = vector.load %arg4[%c13, %c0_83, %c0_84] : memref<18x128x128xbf16, #tpu.memory_space<vmem>>, vector<1x128x128xbf16>
    %114 = vector.shape_cast %113 : vector<1x128x128xbf16> to vector<128x128xbf16>
    %cst_85 = arith.constant dense<0.000000e+00> : vector<96x128xf32>
    %115 = tpu.matmul %112, %114, %cst_85 {dimension_numbers = #tpu.dot_dimension_numbers<[1], [0], [0], [1], [0, 0, 1, 1], [], []>} : vector<96x128xbf16>, vector<128x128xbf16>, vector<96x128xf32> -> vector<96x128xf32>
    %116 = arith.addf %111, %115 : vector<96x128xf32>
    %c49_86 = arith.constant 49 : index
    %c0_87 = arith.constant 0 : index
    %117 = vector.load %arg6[%c49_86, %c0_87] : memref<240x128xbf16, #tpu.memory_space<vmem>>, vector<96x128xbf16>
    %c14 = arith.constant 14 : index
    %c0_88 = arith.constant 0 : index
    %c0_89 = arith.constant 0 : index
    %118 = vector.load %arg4[%c14, %c0_88, %c0_89] : memref<18x128x128xbf16, #tpu.memory_space<vmem>>, vector<1x128x128xbf16>
    %119 = vector.shape_cast %118 : vector<1x128x128xbf16> to vector<128x128xbf16>
    %cst_90 = arith.constant dense<0.000000e+00> : vector<96x128xf32>
    %120 = tpu.matmul %117, %119, %cst_90 {dimension_numbers = #tpu.dot_dimension_numbers<[1], [0], [0], [1], [0, 0, 1, 1], [], []>} : vector<96x128xbf16>, vector<128x128xbf16>, vector<96x128xf32> -> vector<96x128xf32>
    %121 = arith.addf %116, %120 : vector<96x128xf32>
    %c71_91 = arith.constant 71 : index
    %c0_92 = arith.constant 0 : index
    %122 = vector.load %arg6[%c71_91, %c0_92] : memref<240x128xbf16, #tpu.memory_space<vmem>>, vector<96x128xbf16>
    %c15 = arith.constant 15 : index
    %c0_93 = arith.constant 0 : index
    %c0_94 = arith.constant 0 : index
    %123 = vector.load %arg4[%c15, %c0_93, %c0_94] : memref<18x128x128xbf16, #tpu.memory_space<vmem>>, vector<1x128x128xbf16>
    %124 = vector.shape_cast %123 : vector<1x128x128xbf16> to vector<128x128xbf16>
    %cst_95 = arith.constant dense<0.000000e+00> : vector<96x128xf32>
    %125 = tpu.matmul %122, %124, %cst_95 {dimension_numbers = #tpu.dot_dimension_numbers<[1], [0], [0], [1], [0, 0, 1, 1], [], []>} : vector<96x128xbf16>, vector<128x128xbf16>, vector<96x128xf32> -> vector<96x128xf32>
    %126 = arith.addf %121, %125 : vector<96x128xf32>
    %c72_96 = arith.constant 72 : index
    %c0_97 = arith.constant 0 : index
    %127 = vector.load %arg6[%c72_96, %c0_97] : memref<240x128xbf16, #tpu.memory_space<vmem>>, vector<96x128xbf16>
    %c16 = arith.constant 16 : index
    %c0_98 = arith.constant 0 : index
    %c0_99 = arith.constant 0 : index
    %128 = vector.load %arg4[%c16, %c0_98, %c0_99] : memref<18x128x128xbf16, #tpu.memory_space<vmem>>, vector<1x128x128xbf16>
    %129 = vector.shape_cast %128 : vector<1x128x128xbf16> to vector<128x128xbf16>
    %cst_100 = arith.constant dense<0.000000e+00> : vector<96x128xf32>
    %130 = tpu.matmul %127, %129, %cst_100 {dimension_numbers = #tpu.dot_dimension_numbers<[1], [0], [0], [1], [0, 0, 1, 1], [], []>} : vector<96x128xbf16>, vector<128x128xbf16>, vector<96x128xf32> -> vector<96x128xf32>
    %131 = arith.addf %126, %130 : vector<96x128xf32>
    %c73_101 = arith.constant 73 : index
    %c0_102 = arith.constant 0 : index
    %132 = vector.load %arg6[%c73_101, %c0_102] : memref<240x128xbf16, #tpu.memory_space<vmem>>, vector<96x128xbf16>
    %c17 = arith.constant 17 : index
    %c0_103 = arith.constant 0 : index
    %c0_104 = arith.constant 0 : index
    %133 = vector.load %arg4[%c17, %c0_103, %c0_104] : memref<18x128x128xbf16, #tpu.memory_space<vmem>>, vector<1x128x128xbf16>
    %134 = vector.shape_cast %133 : vector<1x128x128xbf16> to vector<128x128xbf16>
    %cst_105 = arith.constant dense<0.000000e+00> : vector<96x128xf32>
    %135 = tpu.matmul %132, %134, %cst_105 {dimension_numbers = #tpu.dot_dimension_numbers<[1], [0], [0], [1], [0, 0, 1, 1], [], []>} : vector<96x128xbf16>, vector<128x128xbf16>, vector<96x128xf32> -> vector<96x128xf32>
    %136 = arith.addf %131, %135 : vector<96x128xf32>
    %cst_106 = arith.constant 2.000000e-01 : f32
    %137 = vector.broadcast %cst_106 : f32 to vector<96x128xf32>
    %138 = arith.mulf %137, %136 : vector<96x128xf32>
    %c0_107 = arith.constant 0 : index
    %c0_108 = arith.constant 0 : index
    %c0_109 = arith.constant 0 : index
    %c0_110 = arith.constant 0 : index
    %139 = vector.load %arg2[%c0_107, %c0_108, %c0_109, %c0_110] : memref<1x1x96x128xf32, #tpu.memory_space<vmem>>, vector<1x1x96x128xf32>
    %140 = vector.shape_cast %139 : vector<1x1x96x128xf32> to vector<96x128xf32>
    %141 = arith.addf %138, %140 : vector<96x128xf32>
    %c0_111 = arith.constant 0 : index
    %c0_112 = arith.constant 0 : index
    %c0_113 = arith.constant 0 : index
    %c0_114 = arith.constant 0 : index
    %142 = vector.load %arg5[%c0_111, %c0_112, %c0_113, %c0_114] : memref<1x1x96x128xf32, #tpu.memory_space<vmem>>, vector<1x1x96x128xf32>
    %143 = vector.shape_cast %142 : vector<1x1x96x128xf32> to vector<96x128xf32>
    %144 = vector.shape_cast %141 : vector<96x128xf32> to vector<1x1x96x128xf32>
    tpu.vector_store %arg5[%c0_111, %c0_112, %c0_113, %c0_114], %144 {strides = array<i32>} : memref<1x1x96x128xf32, #tpu.memory_space<vmem>>, vector<1x1x96x128xf32>,
    return
  }
  func.func @transform_0(%arg0: i32, %arg1: i32) -> (i32, i32, i32, i32) {
    %c0_i32 = arith.constant 0 : i32
    %c0_i32_0 = arith.constant 0 : i32
    %c0_i32_1 = arith.constant 0 : i32
    return %arg0, %arg1, %c0_i32, %c0_i32_0 : i32, i32, i32, i32
  }
  func.func @transform_1(%arg0: i32, %arg1: i32) -> (i32, i32, i32, i32) {
    %c0_i32 = arith.constant 0 : i32
    %c0_i32_0 = arith.constant 0 : i32
    %c0_i32_1 = arith.constant 0 : i32
    return %arg0, %arg1, %c0_i32, %c0_i32_0 : i32, i32, i32, i32
  }
  func.func @transform_2(%arg0: i32, %arg1: i32) -> (i32, i32, i32) {
    %c0_i32 = arith.constant 0 : i32
    %c0_i32_0 = arith.constant 0 : i32
    %c0_i32_1 = arith.constant 0 : i32
    %c0_i32_2 = arith.constant 0 : i32
    return %c0_i32, %c0_i32_0, %c0_i32_1 : i32, i32, i32
  }
  func.func @transform_3(%arg0: i32, %arg1: i32) -> (i32, i32, i32, i32) {
    %c0_i32 = arith.constant 0 : i32
    %c0_i32_0 = arith.constant 0 : i32
    %c0_i32_1 = arith.constant 0 : i32
    return %arg0, %arg1, %c0_i32, %c0_i32_0 : i32, i32, i32, i32
  }
}

module attributes {stable_mosaic.version = 11 : i64} {
  func.func @_basic_block_kernel(%arg0: i32, %arg1: i32, %arg2: memref<1x1x96x128xf32, #tpu.memory_space<vmem>>, %arg3: memref<1x1x96x128xf32, #tpu.memory_space<vmem>>, %arg4: memref<18x128x128xbf16, #tpu.memory_space<vmem>>, %arg5: memref<1x1x96x128xf32, #tpu.memory_space<vmem>>, %arg6: memref<240x128xbf16, #tpu.memory_space<vmem>>) attributes {dimension_semantics = [#tpu.dimension_semantics<parallel>, #tpu.dimension_semantics<parallel>], iteration_bounds = array<i64: 2, 4>, scalar_prefetch = 0 : i64, scratch_operands = 1 : i64, tpu.core_type = #tpu.core_type<tc>, window_params = [{transform_indices = @transform_0, window_bounds = array<i64: 1, 1, 96, 128>}, {transform_indices = @transform_1, window_bounds = array<i64: 1, 1, 96, 128>}, {pipeline_mode = #tpu.pipeline_mode<synchronous>, transform_indices = @transform_2, window_bounds = array<i64: 18, 128, 128>}, {transform_indices = @transform_3, window_bounds = array<i64: 1, 1, 96, 128>}]} {
    %c0 = arith.constant 0 : index
    %c0_0 = arith.constant 0 : index
    %c0_1 = arith.constant 0 : index
    %c0_2 = arith.constant 0 : index
    %0 = vector.load %arg3[%c0, %c0_0, %c0_1, %c0_2] : memref<1x1x96x128xf32, #tpu.memory_space<vmem>>, vector<1x1x96x128xf32>
    %1 = vector.shape_cast %0 : vector<1x1x96x128xf32> to vector<96x128xf32>
    %2 = vector.extract_strided_slice %1 {offsets = [0, 0], sizes = [48, 128], strides = [1, 1]} : vector<96x128xf32> to vector<48x128xf32>
    %cst = arith.constant 0.000000e+00 : f32
    %3 = vector.broadcast %cst : f32 to vector<48x128xf32>
    %4 = arith.maximumf %2, %3 : vector<48x128xf32>
    %cst_3 = arith.constant 1.71395886 : f32
    %5 = vector.broadcast %cst_3 : f32 to vector<48x128xf32>
    %6 = arith.mulf %4, %5 : vector<48x128xf32>
    %7 = arith.truncf %6 : vector<48x128xf32> to vector<48x128xbf16>
    %c24 = arith.constant 24 : index
    %c0_4 = arith.constant 0 : index
    %8 = vector.load %arg6[%c24, %c0_4] : memref<240x128xbf16, #tpu.memory_space<vmem>>, vector<48x128xbf16>
    tpu.vector_store %arg6[%c24, %c0_4], %7 {strides = array<i32>} : memref<240x128xbf16, #tpu.memory_space<vmem>>, vector<48x128xbf16>,
    %c0_5 = arith.constant 0 : index
    %c0_6 = arith.constant 0 : index
    %c0_7 = arith.constant 0 : index
    %c0_8 = arith.constant 0 : index
    %9 = vector.load %arg2[%c0_5, %c0_6, %c0_7, %c0_8] : memref<1x1x96x128xf32, #tpu.memory_space<vmem>>, vector<1x1x96x128xf32>
    %10 = vector.shape_cast %9 : vector<1x1x96x128xf32> to vector<96x128xf32>
    %cst_9 = arith.constant 0.000000e+00 : f32
    %11 = vector.broadcast %cst_9 : f32 to vector<96x128xf32>
    %12 = arith.maximumf %10, %11 : vector<96x128xf32>
    %cst_10 = arith.constant 1.71395886 : f32
    %13 = vector.broadcast %cst_10 : f32 to vector<96x128xf32>
    %14 = arith.mulf %12, %13 : vector<96x128xf32>
    %15 = arith.truncf %14 : vector<96x128xf32> to vector<96x128xbf16>
    %c72 = arith.constant 72 : index
    %c0_11 = arith.constant 0 : index
    %16 = vector.load %arg6[%c72, %c0_11] : memref<240x128xbf16, #tpu.memory_space<vmem>>, vector<96x128xbf16>
    tpu.vector_store %arg6[%c72, %c0_11], %15 {strides = array<i32>} : memref<240x128xbf16, #tpu.memory_space<vmem>>, vector<96x128xbf16>,
    %17 = vector.extract_strided_slice %1 {offsets = [48, 0], sizes = [48, 128], strides = [1, 1]} : vector<96x128xf32> to vector<48x128xf32>
    %cst_12 = arith.constant 0.000000e+00 : f32
    %18 = vector.broadcast %cst_12 : f32 to vector<48x128xf32>
    %19 = arith.maximumf %17, %18 : vector<48x128xf32>
    %cst_13 = arith.constant 1.71395886 : f32
    %20 = vector.broadcast %cst_13 : f32 to vector<48x128xf32>
    %21 = arith.mulf %19, %20 : vector<48x128xf32>
    %22 = arith.truncf %21 : vector<48x128xf32> to vector<48x128xbf16>
    %c168 = arith.constant 168 : index
    %c0_14 = arith.constant 0 : index
    %23 = vector.load %arg6[%c168, %c0_14] : memref<240x128xbf16, #tpu.memory_space<vmem>>, vector<48x128xbf16>
    tpu.vector_store %arg6[%c168, %c0_14], %22 {strides = array<i32>} : memref<240x128xbf16, #tpu.memory_space<vmem>>, vector<48x128xbf16>,
    %c23 = arith.constant 23 : index
    %c0_15 = arith.constant 0 : index
    %24 = vector.load %arg6[%c23, %c0_15] : memref<240x128xbf16, #tpu.memory_space<vmem>>, vector<144x128xbf16>
    %c0_16 = arith.constant 0 : index
    %c0_17 = arith.constant 0 : index
    %c0_18 = arith.constant 0 : index
    %25 = vector.load %arg4[%c0_16, %c0_17, %c0_18] : memref<18x128x128xbf16, #tpu.memory_space<vmem>>, vector<1x128x128xbf16>
    %26 = vector.shape_cast %25 : vector<1x128x128xbf16> to vector<128x128xbf16>
    %cst_19 = arith.constant dense<0.000000e+00> : vector<144x128xf32>
    %27 = tpu.matmul %24, %26, %cst_19 {dimension_numbers = #tpu.dot_dimension_numbers<[1], [0], [0], [1], [0, 0, 1, 1], [], []>} : vector<144x128xbf16>, vector<128x128xbf16>, vector<144x128xf32> -> vector<144x128xf32>
    %c24_20 = arith.constant 24 : index
    %c0_21 = arith.constant 0 : index
    %28 = vector.load %arg6[%c24_20, %c0_21] : memref<240x128xbf16, #tpu.memory_space<vmem>>, vector<144x128xbf16>
    %c1 = arith.constant 1 : index
    %c0_22 = arith.constant 0 : index
    %c0_23 = arith.constant 0 : index
    %29 = vector.load %arg4[%c1, %c0_22, %c0_23] : memref<18x128x128xbf16, #tpu.memory_space<vmem>>, vector<1x128x128xbf16>
    %30 = vector.shape_cast %29 : vector<1x128x128xbf16> to vector<128x128xbf16>
    %cst_24 = arith.constant dense<0.000000e+00> : vector<144x128xf32>
    %31 = tpu.matmul %28, %30, %cst_24 {dimension_numbers = #tpu.dot_dimension_numbers<[1], [0], [0], [1], [0, 0, 1, 1], [], []>} : vector<144x128xbf16>, vector<128x128xbf16>, vector<144x128xf32> -> vector<144x128xf32>
    %32 = arith.addf %27, %31 : vector<144x128xf32>
    %c25 = arith.constant 25 : index
    %c0_25 = arith.constant 0 : index
    %33 = vector.load %arg6[%c25, %c0_25] : memref<240x128xbf16, #tpu.memory_space<vmem>>, vector<144x128xbf16>
    %c2 = arith.constant 2 : index
    %c0_26 = arith.constant 0 : index
    %c0_27 = arith.constant 0 : index
    %34 = vector.load %arg4[%c2, %c0_26, %c0_27] : memref<18x128x128xbf16, #tpu.memory_space<vmem>>, vector<1x128x128xbf16>
    %35 = vector.shape_cast %34 : vector<1x128x128xbf16> to vector<128x128xbf16>
    %cst_28 = arith.constant dense<0.000000e+00> : vector<144x128xf32>
    %36 = tpu.matmul %33, %35, %cst_28 {dimension_numbers = #tpu.dot_dimension_numbers<[1], [0], [0], [1], [0, 0, 1, 1], [], []>} : vector<144x128xbf16>, vector<128x128xbf16>, vector<144x128xf32> -> vector<144x128xf32>
    %37 = arith.addf %32, %36 : vector<144x128xf32>
    %c47 = arith.constant 47 : index
    %c0_29 = arith.constant 0 : index
    %38 = vector.load %arg6[%c47, %c0_29] : memref<240x128xbf16, #tpu.memory_space<vmem>>, vector<144x128xbf16>
    %c3 = arith.constant 3 : index
    %c0_30 = arith.constant 0 : index
    %c0_31 = arith.constant 0 : index
    %39 = vector.load %arg4[%c3, %c0_30, %c0_31] : memref<18x128x128xbf16, #tpu.memory_space<vmem>>, vector<1x128x128xbf16>
    %40 = vector.shape_cast %39 : vector<1x128x128xbf16> to vector<128x128xbf16>
    %cst_32 = arith.constant dense<0.000000e+00> : vector<144x128xf32>
    %41 = tpu.matmul %38, %40, %cst_32 {dimension_numbers = #tpu.dot_dimension_numbers<[1], [0], [0], [1], [0, 0, 1, 1], [], []>} : vector<144x128xbf16>, vector<128x128xbf16>, vector<144x128xf32> -> vector<144x128xf32>
    %42 = arith.addf %37, %41 : vector<144x128xf32>
    %c48 = arith.constant 48 : index
    %c0_33 = arith.constant 0 : index
    %43 = vector.load %arg6[%c48, %c0_33] : memref<240x128xbf16, #tpu.memory_space<vmem>>, vector<144x128xbf16>
    %c4 = arith.constant 4 : index
    %c0_34 = arith.constant 0 : index
    %c0_35 = arith.constant 0 : index
    %44 = vector.load %arg4[%c4, %c0_34, %c0_35] : memref<18x128x128xbf16, #tpu.memory_space<vmem>>, vector<1x128x128xbf16>
    %45 = vector.shape_cast %44 : vector<1x128x128xbf16> to vector<128x128xbf16>
    %cst_36 = arith.constant dense<0.000000e+00> : vector<144x128xf32>
    %46 = tpu.matmul %43, %45, %cst_36 {dimension_numbers = #tpu.dot_dimension_numbers<[1], [0], [0], [1], [0, 0, 1, 1], [], []>} : vector<144x128xbf16>, vector<128x128xbf16>, vector<144x128xf32> -> vector<144x128xf32>
    %47 = arith.addf %42, %46 : vector<144x128xf32>
    %c49 = arith.constant 49 : index
    %c0_37 = arith.constant 0 : index
    %48 = vector.load %arg6[%c49, %c0_37] : memref<240x128xbf16, #tpu.memory_space<vmem>>, vector<144x128xbf16>
    %c5 = arith.constant 5 : index
    %c0_38 = arith.constant 0 : index
    %c0_39 = arith.constant 0 : index
    %49 = vector.load %arg4[%c5, %c0_38, %c0_39] : memref<18x128x128xbf16, #tpu.memory_space<vmem>>, vector<1x128x128xbf16>
    %50 = vector.shape_cast %49 : vector<1x128x128xbf16> to vector<128x128xbf16>
    %cst_40 = arith.constant dense<0.000000e+00> : vector<144x128xf32>
    %51 = tpu.matmul %48, %50, %cst_40 {dimension_numbers = #tpu.dot_dimension_numbers<[1], [0], [0], [1], [0, 0, 1, 1], [], []>} : vector<144x128xbf16>, vector<128x128xbf16>, vector<144x128xf32> -> vector<144x128xf32>
    %52 = arith.addf %47, %51 : vector<144x128xf32>
    %c71 = arith.constant 71 : index
    %c0_41 = arith.constant 0 : index
    %53 = vector.load %arg6[%c71, %c0_41] : memref<240x128xbf16, #tpu.memory_space<vmem>>, vector<144x128xbf16>
    %c6 = arith.constant 6 : index
    %c0_42 = arith.constant 0 : index
    %c0_43 = arith.constant 0 : index
    %54 = vector.load %arg4[%c6, %c0_42, %c0_43] : memref<18x128x128xbf16, #tpu.memory_space<vmem>>, vector<1x128x128xbf16>
    %55 = vector.shape_cast %54 : vector<1x128x128xbf16> to vector<128x128xbf16>
    %cst_44 = arith.constant dense<0.000000e+00> : vector<144x128xf32>
    %56 = tpu.matmul %53, %55, %cst_44 {dimension_numbers = #tpu.dot_dimension_numbers<[1], [0], [0], [1], [0, 0, 1, 1], [], []>} : vector<144x128xbf16>, vector<128x128xbf16>, vector<144x128xf32> -> vector<144x128xf32>
    %57 = arith.addf %52, %56 : vector<144x128xf32>
    %c72_45 = arith.constant 72 : index
    %c0_46 = arith.constant 0 : index
    %58 = vector.load %arg6[%c72_45, %c0_46] : memref<240x128xbf16, #tpu.memory_space<vmem>>, vector<144x128xbf16>
    %c7 = arith.constant 7 : index
    %c0_47 = arith.constant 0 : index
    %c0_48 = arith.constant 0 : index
    %59 = vector.load %arg4[%c7, %c0_47, %c0_48] : memref<18x128x128xbf16, #tpu.memory_space<vmem>>, vector<1x128x128xbf16>
    %60 = vector.shape_cast %59 : vector<1x128x128xbf16> to vector<128x128xbf16>
    %cst_49 = arith.constant dense<0.000000e+00> : vector<144x128xf32>
    %61 = tpu.matmul %58, %60, %cst_49 {dimension_numbers = #tpu.dot_dimension_numbers<[1], [0], [0], [1], [0, 0, 1, 1], [], []>} : vector<144x128xbf16>, vector<128x128xbf16>, vector<144x128xf32> -> vector<144x128xf32>
    %62 = arith.addf %57, %61 : vector<144x128xf32>
    %c73 = arith.constant 73 : index
    %c0_50 = arith.constant 0 : index
    %63 = vector.load %arg6[%c73, %c0_50] : memref<240x128xbf16, #tpu.memory_space<vmem>>, vector<144x128xbf16>
    %c8 = arith.constant 8 : index
    %c0_51 = arith.constant 0 : index
    %c0_52 = arith.constant 0 : index
    %64 = vector.load %arg4[%c8, %c0_51, %c0_52] : memref<18x128x128xbf16, #tpu.memory_space<vmem>>, vector<1x128x128xbf16>
    %65 = vector.shape_cast %64 : vector<1x128x128xbf16> to vector<128x128xbf16>
    %cst_53 = arith.constant dense<0.000000e+00> : vector<144x128xf32>
    %66 = tpu.matmul %63, %65, %cst_53 {dimension_numbers = #tpu.dot_dimension_numbers<[1], [0], [0], [1], [0, 0, 1, 1], [], []>} : vector<144x128xbf16>, vector<128x128xbf16>, vector<144x128xf32> -> vector<144x128xf32>
    %67 = arith.addf %62, %66 : vector<144x128xf32>
    %68 = tpu.iota {dimensions = array<i32: 0>} : vector<24x128xi32>
    %c1_i32 = arith.constant 1 : i32
    %69 = vector.broadcast %c1_i32 : i32 to vector<24x128xi32>
    %70 = arith.cmpi sge, %68, %69 : vector<24x128xi32>
    %c16_i32 = arith.constant 16 : i32
    %71 = vector.broadcast %c16_i32 : i32 to vector<24x128xi32>
    %72 = arith.cmpi sle, %68, %71 : vector<24x128xi32>
    %73 = arith.andi %70, %72 : vector<24x128xi1>
    %74 = vector.shape_cast %73 : vector<24x128xi1> to vector<1x24x128xi1>
    %75 = vector.shape_cast %67 : vector<144x128xf32> to vector<6x24x128xf32>
    %cst_54 = arith.constant 0.000000e+00 : f32
    %76 = vector.broadcast %cst_54 : f32 to vector<6x24x128xf32>
    %77 = arith.maximumf %75, %76 : vector<6x24x128xf32>
    %cst_55 = arith.constant 1.71395886 : f32
    %78 = vector.broadcast %cst_55 : f32 to vector<6x24x128xf32>
    %79 = arith.mulf %77, %78 : vector<6x24x128xf32>
    %cst_56 = arith.constant 0.000000e+00 : f32
    %80 = vector.shape_cast %74 : vector<1x24x128xi1> to vector<1x24x128xi1>
    %81 = vector.broadcast %80 : vector<1x24x128xi1> to vector<6x24x128xi1>
    %82 = vector.broadcast %cst_56 : f32 to vector<6x24x128xf32>
    %83 = arith.select %81, %79, %82 : vector<6x24x128xi1>, vector<6x24x128xf32>
    %84 = arith.truncf %83 : vector<6x24x128xf32> to vector<6x24x128xbf16>
    %85 = vector.shape_cast %84 : vector<6x24x128xbf16> to vector<144x128xbf16>
    %c24_57 = arith.constant 24 : index
    %c0_58 = arith.constant 0 : index
    %86 = vector.load %arg6[%c24_57, %c0_58] : memref<240x128xbf16, #tpu.memory_space<vmem>>, vector<144x128xbf16>
    tpu.vector_store %arg6[%c24_57, %c0_58], %85 {strides = array<i32>} : memref<240x128xbf16, #tpu.memory_space<vmem>>, vector<144x128xbf16>,
    %c0_i32 = arith.constant 0 : i32
    %87 = arith.cmpi eq, %arg1, %c0_i32 : i32
    %88 = arith.extui %87 : i1 to i32
    %c0_i32_59 = arith.constant 0 : i32
    %89 = arith.cmpi ne, %88, %c0_i32_59 : i32
    scf.if %89 {
      %cst_115 = arith.constant 0.000000e+00 : bf16
      %145 = vector.broadcast %cst_115 : bf16 to vector<24x128xbf16>
      %c24_116 = arith.constant 24 : index
      %c0_117 = arith.constant 0 : index
      %146 = vector.load %arg6[%c24_116, %c0_117] : memref<240x128xbf16, #tpu.memory_space<vmem>>, vector<24x128xbf16>
      tpu.vector_store %arg6[%c24_116, %c0_117], %145 {strides = array<i32>} : memref<240x128xbf16, #tpu.memory_space<vmem>>, vector<24x128xbf16>,
    } else {
    }
    %c3_i32 = arith.constant 3 : i32
    %90 = arith.cmpi eq, %arg1, %c3_i32 : i32
    %91 = arith.extui %90 : i1 to i32
    %c0_i32_60 = arith.constant 0 : i32
    %92 = arith.cmpi ne, %91, %c0_i32_60 : i32
    scf.if %92 {
      %cst_115 = arith.constant 0.000000e+00 : bf16
      %145 = vector.broadcast %cst_115 : bf16 to vector<24x128xbf16>
      %c144 = arith.constant 144 : index
      %c0_116 = arith.constant 0 : index
      %146 = vector.load %arg6[%c144, %c0_116] : memref<240x128xbf16, #tpu.memory_space<vmem>>, vector<24x128xbf16>
      tpu.vector_store %arg6[%c144, %c0_116], %145 {strides = array<i32>} : memref<240x128xbf16, #tpu.memory_space<vmem>>, vector<24x128xbf16>,
    } else {
    }
    %c23_61 = arith.constant 23 : index
    %c0_62 = arith.constant 0 : index
    %93 = vector.load %arg6[%c23_61, %c0_62] : memref<240x128xbf16, #tpu.memory_space<vmem>>, vector<96x128xbf16>
    %c9 = arith.constant 9 : index
    %c0_63 = arith.constant 0 : index
    %c0_64 = arith.constant 0 : index
    %94 = vector.load %arg4[%c9, %c0_63, %c0_64] : memref<18x128x128xbf16, #tpu.memory_space<vmem>>, vector<1x128x128xbf16>
    %95 = vector.shape_cast %94 : vector<1x128x128xbf16> to vector<128x128xbf16>
    %cst_65 = arith.constant dense<0.000000e+00> : vector<96x128xf32>
    %96 = tpu.matmul %93, %95, %cst_65 {dimension_numbers = #tpu.dot_dimension_numbers<[1], [0], [0], [1], [0, 0, 1, 1], [], []>} : vector<96x128xbf16>, vector<128x128xbf16>, vector<96x128xf32> -> vector<96x128xf32>
    %c24_66 = arith.constant 24 : index
    %c0_67 = arith.constant 0 : index
    %97 = vector.load %arg6[%c24_66, %c0_67] : memref<240x128xbf16, #tpu.memory_space<vmem>>, vector<96x128xbf16>
    %c10 = arith.constant 10 : index
    %c0_68 = arith.constant 0 : index
    %c0_69 = arith.constant 0 : index
    %98 = vector.load %arg4[%c10, %c0_68, %c0_69] : memref<18x128x128xbf16, #tpu.memory_space<vmem>>, vector<1x128x128xbf16>
    %99 = vector.shape_cast %98 : vector<1x128x128xbf16> to vector<128x128xbf16>
    %cst_70 = arith.constant dense<0.000000e+00> : vector<96x128xf32>
    %100 = tpu.matmul %97, %99, %cst_70 {dimension_numbers = #tpu.dot_dimension_numbers<[1], [0], [0], [1], [0, 0, 1, 1], [], []>} : vector<96x128xbf16>, vector<128x128xbf16>, vector<96x128xf32> -> vector<96x128xf32>
    %101 = arith.addf %96, %100 : vector<96x128xf32>
    %c25_71 = arith.constant 25 : index
    %c0_72 = arith.constant 0 : index
    %102 = vector.load %arg6[%c25_71, %c0_72] : memref<240x128xbf16, #tpu.memory_space<vmem>>, vector<96x128xbf16>
    %c11 = arith.constant 11 : index
    %c0_73 = arith.constant 0 : index
    %c0_74 = arith.constant 0 : index
    %103 = vector.load %arg4[%c11, %c0_73, %c0_74] : memref<18x128x128xbf16, #tpu.memory_space<vmem>>, vector<1x128x128xbf16>
    %104 = vector.shape_cast %103 : vector<1x128x128xbf16> to vector<128x128xbf16>
    %cst_75 = arith.constant dense<0.000000e+00> : vector<96x128xf32>
    %105 = tpu.matmul %102, %104, %cst_75 {dimension_numbers = #tpu.dot_dimension_numbers<[1], [0], [0], [1], [0, 0, 1, 1], [], []>} : vector<96x128xbf16>, vector<128x128xbf16>, vector<96x128xf32> -> vector<96x128xf32>
    %106 = arith.addf %101, %105 : vector<96x128xf32>
    %c47_76 = arith.constant 47 : index
    %c0_77 = arith.constant 0 : index
    %107 = vector.load %arg6[%c47_76, %c0_77] : memref<240x128xbf16, #tpu.memory_space<vmem>>, vector<96x128xbf16>
    %c12 = arith.constant 12 : index
    %c0_78 = arith.constant 0 : index
    %c0_79 = arith.constant 0 : index
    %108 = vector.load %arg4[%c12, %c0_78, %c0_79] : memref<18x128x128xbf16, #tpu.memory_space<vmem>>, vector<1x128x128xbf16>
    %109 = vector.shape_cast %108 : vector<1x128x128xbf16> to vector<128x128xbf16>
    %cst_80 = arith.constant dense<0.000000e+00> : vector<96x128xf32>
    %110 = tpu.matmul %107, %109, %cst_80 {dimension_numbers = #tpu.dot_dimension_numbers<[1], [0], [0], [1], [0, 0, 1, 1], [], []>} : vector<96x128xbf16>, vector<128x128xbf16>, vector<96x128xf32> -> vector<96x128xf32>
    %111 = arith.addf %106, %110 : vector<96x128xf32>
    %c48_81 = arith.constant 48 : index
    %c0_82 = arith.constant 0 : index
    %112 = vector.load %arg6[%c48_81, %c0_82] : memref<240x128xbf16, #tpu.memory_space<vmem>>, vector<96x128xbf16>
    %c13 = arith.constant 13 : index
    %c0_83 = arith.constant 0 : index
    %c0_84 = arith.constant 0 : index
    %113 = vector.load %arg4[%c13, %c0_83, %c0_84] : memref<18x128x128xbf16, #tpu.memory_space<vmem>>, vector<1x128x128xbf16>
    %114 = vector.shape_cast %113 : vector<1x128x128xbf16> to vector<128x128xbf16>
    %cst_85 = arith.constant dense<0.000000e+00> : vector<96x128xf32>
    %115 = tpu.matmul %112, %114, %cst_85 {dimension_numbers = #tpu.dot_dimension_numbers<[1], [0], [0], [1], [0, 0, 1, 1], [], []>} : vector<96x128xbf16>, vector<128x128xbf16>, vector<96x128xf32> -> vector<96x128xf32>
    %116 = arith.addf %111, %115 : vector<96x128xf32>
    %c49_86 = arith.constant 49 : index
    %c0_87 = arith.constant 0 : index
    %117 = vector.load %arg6[%c49_86, %c0_87] : memref<240x128xbf16, #tpu.memory_space<vmem>>, vector<96x128xbf16>
    %c14 = arith.constant 14 : index
    %c0_88 = arith.constant 0 : index
    %c0_89 = arith.constant 0 : index
    %118 = vector.load %arg4[%c14, %c0_88, %c0_89] : memref<18x128x128xbf16, #tpu.memory_space<vmem>>, vector<1x128x128xbf16>
    %119 = vector.shape_cast %118 : vector<1x128x128xbf16> to vector<128x128xbf16>
    %cst_90 = arith.constant dense<0.000000e+00> : vector<96x128xf32>
    %120 = tpu.matmul %117, %119, %cst_90 {dimension_numbers = #tpu.dot_dimension_numbers<[1], [0], [0], [1], [0, 0, 1, 1], [], []>} : vector<96x128xbf16>, vector<128x128xbf16>, vector<96x128xf32> -> vector<96x128xf32>
    %121 = arith.addf %116, %120 : vector<96x128xf32>
    %c71_91 = arith.constant 71 : index
    %c0_92 = arith.constant 0 : index
    %122 = vector.load %arg6[%c71_91, %c0_92] : memref<240x128xbf16, #tpu.memory_space<vmem>>, vector<96x128xbf16>
    %c15 = arith.constant 15 : index
    %c0_93 = arith.constant 0 : index
    %c0_94 = arith.constant 0 : index
    %123 = vector.load %arg4[%c15, %c0_93, %c0_94] : memref<18x128x128xbf16, #tpu.memory_space<vmem>>, vector<1x128x128xbf16>
    %124 = vector.shape_cast %123 : vector<1x128x128xbf16> to vector<128x128xbf16>
    %cst_95 = arith.constant dense<0.000000e+00> : vector<96x128xf32>
    %125 = tpu.matmul %122, %124, %cst_95 {dimension_numbers = #tpu.dot_dimension_numbers<[1], [0], [0], [1], [0, 0, 1, 1], [], []>} : vector<96x128xbf16>, vector<128x128xbf16>, vector<96x128xf32> -> vector<96x128xf32>
    %126 = arith.addf %121, %125 : vector<96x128xf32>
    %c72_96 = arith.constant 72 : index
    %c0_97 = arith.constant 0 : index
    %127 = vector.load %arg6[%c72_96, %c0_97] : memref<240x128xbf16, #tpu.memory_space<vmem>>, vector<96x128xbf16>
    %c16 = arith.constant 16 : index
    %c0_98 = arith.constant 0 : index
    %c0_99 = arith.constant 0 : index
    %128 = vector.load %arg4[%c16, %c0_98, %c0_99] : memref<18x128x128xbf16, #tpu.memory_space<vmem>>, vector<1x128x128xbf16>
    %129 = vector.shape_cast %128 : vector<1x128x128xbf16> to vector<128x128xbf16>
    %cst_100 = arith.constant dense<0.000000e+00> : vector<96x128xf32>
    %130 = tpu.matmul %127, %129, %cst_100 {dimension_numbers = #tpu.dot_dimension_numbers<[1], [0], [0], [1], [0, 0, 1, 1], [], []>} : vector<96x128xbf16>, vector<128x128xbf16>, vector<96x128xf32> -> vector<96x128xf32>
    %131 = arith.addf %126, %130 : vector<96x128xf32>
    %c73_101 = arith.constant 73 : index
    %c0_102 = arith.constant 0 : index
    %132 = vector.load %arg6[%c73_101, %c0_102] : memref<240x128xbf16, #tpu.memory_space<vmem>>, vector<96x128xbf16>
    %c17 = arith.constant 17 : index
    %c0_103 = arith.constant 0 : index
    %c0_104 = arith.constant 0 : index
    %133 = vector.load %arg4[%c17, %c0_103, %c0_104] : memref<18x128x128xbf16, #tpu.memory_space<vmem>>, vector<1x128x128xbf16>
    %134 = vector.shape_cast %133 : vector<1x128x128xbf16> to vector<128x128xbf16>
    %cst_105 = arith.constant dense<0.000000e+00> : vector<96x128xf32>
    %135 = tpu.matmul %132, %134, %cst_105 {dimension_numbers = #tpu.dot_dimension_numbers<[1], [0], [0], [1], [0, 0, 1, 1], [], []>} : vector<96x128xbf16>, vector<128x128xbf16>, vector<96x128xf32> -> vector<96x128xf32>
    %136 = arith.addf %131, %135 : vector<96x128xf32>
    %cst_106 = arith.constant 2.000000e-01 : f32
    %137 = vector.broadcast %cst_106 : f32 to vector<96x128xf32>
    %138 = arith.mulf %137, %136 : vector<96x128xf32>
    %c0_107 = arith.constant 0 : index
    %c0_108 = arith.constant 0 : index
    %c0_109 = arith.constant 0 : index
    %c0_110 = arith.constant 0 : index
    %139 = vector.load %arg2[%c0_107, %c0_108, %c0_109, %c0_110] : memref<1x1x96x128xf32, #tpu.memory_space<vmem>>, vector<1x1x96x128xf32>
    %140 = vector.shape_cast %139 : vector<1x1x96x128xf32> to vector<96x128xf32>
    %141 = arith.addf %138, %140 : vector<96x128xf32>
    %c0_111 = arith.constant 0 : index
    %c0_112 = arith.constant 0 : index
    %c0_113 = arith.constant 0 : index
    %c0_114 = arith.constant 0 : index
    %142 = vector.load %arg5[%c0_111, %c0_112, %c0_113, %c0_114] : memref<1x1x96x128xf32, #tpu.memory_space<vmem>>, vector<1x1x96x128xf32>
    %143 = vector.shape_cast %142 : vector<1x1x96x128xf32> to vector<96x128xf32>
    %144 = vector.shape_cast %141 : vector<96x128xf32> to vector<1x1x96x128xf32>
    tpu.vector_store %arg5[%c0_111, %c0_112, %c0_113, %c0_114], %144 {strides = array<i32>} : memref<1x1x96x128xf32, #tpu.memory_space<vmem>>, vector<1x1x96x128xf32>,
    return
  }
  func.func @transform_0(%arg0: i32, %arg1: i32) -> (i32, i32, i32, i32) {
    %c0_i32 = arith.constant 0 : i32
    %c0_i32_0 = arith.constant 0 : i32
    %c0_i32_1 = arith.constant 0 : i32
    return %arg0, %arg1, %c0_i32, %c0_i32_0 : i32, i32, i32, i32
  }
  func.func @transform_1(%arg0: i32, %arg1: i32) -> (i32, i32, i32, i32) {
    %c0_i32 = arith.constant 0 : i32
    %c0_i32_0 = arith.constant 0 : i32
    %c0_i32_1 = arith.constant 0 : i32
    return %arg0, %arg1, %c0_i32, %c0_i32_0 : i32, i32, i32, i32
  }
  func.func @transform_2(%arg0: i32, %arg1: i32) -> (i32, i32, i32) {
    %c0_i32 = arith.constant 0 : i32
    %c0_i32_0 = arith.constant 0 : i32
    %c0_i32_1 = arith.constant 0 : i32
    %c0_i32_2 = arith.constant 0 : i32
    return %c0_i32, %c0_i32_0, %c0_i32_1 : i32, i32, i32
  }
  func.func @transform_3(%arg0: i32, %arg1: i32) -> (i32, i32, i32, i32) {
    %c0_i32 = arith.constant 0 : i32
    %c0_i32_0 = arith.constant 0 : i32
    %c0_i32_1 = arith.constant 0 : i32
    return %arg0, %arg1, %c0_i32, %c0_i32_0 : i32, i32, i32, i32
  }
}

</mosaic_0001>

<llo_original>
// kernel: tpu_custom_call.1
$region0: #{tpu_custom_call.1}
  #allocation0 [shape = 'u32[]', space=smem, size = 0x4, offset = 0x4, fixed_abs, tag = 'smem constant byte address 0x4 - core index']
  #allocation1 [shape = 'u32[72,128]{1,0:T(1,128)}', space=vmem, size = 0x9000, scoped, tag = 'internal scratch']
  #allocation2 [shape = 'bf16[240,128]{1,0:T(8,128)(2,1)}', space=vmem, size = 0xf000, scoped, tag = 'scratch operand']
  %s0 = inlined_call_operand.hbm [shape: f32[2,4,96,128], index: 0, kind: input, shape index: {}]
  %s1 = inlined_call_operand.hbm [shape: f32[2,4,96,128], index: 1, kind: input, shape index: {}]
  %s2 = inlined_call_operand.hbm [shape: bf16[18,128,128], index: 2, kind: input, shape index: {}]
  %s3 = inlined_call_operand.hbm [shape: f32[2,4,96,128], index: 3, kind: output, shape index: {}]
  %s4 = sld [smem:[#allocation0]]
  $region65: #{tpu_custom_call.1} parent=0
    _
  %s6 = ssub.s32 1, %s4
  %s7 = scalar_select 0, %s6, %s4
  $region1: #{tpu_custom_call.1} parent=0
    #allocation3 [shape = 'u8[98304]{0}', space=vmem, size = 0x18000, scoped, tag = 'input window, operand 0']
    #allocation4 [shape = 's32[2]{0}', space=sflag, size = 0x8, scoped, tag = 'scoped memory for tpu_custom_call.1']
    #allocation5 [shape = 's32[2]{0}', space=sflag, size = 0x8, scoped, tag = 'scoped memory for tpu_custom_call.1']
    #allocation6 [shape = 'u8[98304]{0}', space=vmem, size = 0x18000, scoped, tag = 'input window, operand 1']
    #allocation7 [shape = 's32[2]{0}', space=sflag, size = 0x8, scoped, tag = 'scoped memory for tpu_custom_call.1']
    #allocation8 [shape = 'u8[589824]{0}', space=vmem, size = 0x90000, scoped, tag = 'input window, operand 2, single buffered']
    #allocation9 [shape = 'u8[98304]{0}', space=vmem, size = 0x18000, scoped, tag = 'output window, operand 0']
    %8 = vsyncpa [#allocation4], 0
    %s9 = scalar_lea.sflag [#allocation4], 1
    %10 = vsyncpa %s9, 0
    %11 = vsyncpa [#allocation7], 0
    %s12 = scalar_lea.sflag [#allocation7], 1
    %13 = vsyncpa %s12, 0
    %14 = vsyncpa [#allocation5], 0
    %s15 = scalar_lea.sflag [#allocation5], 1
    %16 = vsyncpa %s15, 0
    loop: start=0, step=1, limit=10
    $region2: #{tpu_custom_call.1} parent=1 // loop_pre_header
      _
    $region3: #{tpu_custom_call.1} parent=1 // loop_header
      %s18 = sphi 0, %s22
      %p19 = scmp.ge.s32.totalorder %s18, 10
      %s25 = sphi 0, %s37
      %s26 = sphi 0, %s33
      %s27 = sphi 0, %s25
      %s28 = sphi 0, %s26
      %s29 = sphi 0, %s27
      %s30 = sphi 0, %s28
      %s42 = sphi 0, %s44
      %s45 = sphi 0, %s42
      %s46 = sphi 0, %s45
      %s62 = sphi 0, %s46
      %s70 = sphi 0, %s72
      %s73 = sphi 0, %s70
      %s74 = sphi 0, %s73
      %s90 = sphi 0, %s74
      %s94 = sphi 0, %s94
      %s96 = sphi 0, %s94
      %s97 = sphi 0, %s96
      %s111 = sphi 0, %s97
      %s119 = sphi 0, %s121
      %s122 = sphi 0, %s119
      %s123 = sphi 0, %s122
      %s139 = sphi 0, %s123
    $region4: #{tpu_custom_call.1} parent=1 // loop_header_branch
      %21 = sbr.rel (%p19) target = $region8
    $region5: #{tpu_custom_call.1} parent=1 // loop_body
      %s23 = ssub.s32 %s18, 1
      %s24 = ssub.s32 %s18, 2
      %s31 = sadd.s32 1, %s26
      %p32 = scmp.ge.s32.totalorder %s31, 4
      %s33 = scalar_select %p32, 0, %s31
      %s34 = sadd.s32 1, %s25
      %s35 = scalar_select %p32, %s34, %s25
      %p36 = scmp.ge.s32.totalorder %s35, 2
      %s37 = scalar_select %p36, 0, %s35
      %s38 = ssub.s32 %s25, %s37
      %s39 = ssub.s32 %s26, %s33
      %s40 = sor.u32 %s38, %s39
      %p41 = scmp.eq.s32.totalorder %s40, 0
      %s43 = sadd.s32 %s42, 1
      %s44 = scalar_select %p41, %s42, %s43
      %p47 = pneg %p41
      %p48 = scmp.eq.s32.totalorder %s18, 7
      %p49 = por %p47, %p48
      %p50 = scmp.ne.s32.totalorder %s42, %s45
      %p51 = scmp.eq.s32.totalorder %s18, 0
      %p52 = por %p50, %p51
      %p53 = scmp.ne.s32.totalorder %s42, %s45
      %p54 = scmp.eq.s32.totalorder %s23, 7
      %p55 = por %p53, %p54
      %p56 = scmp.ne.s32.totalorder %s45, %s46
      %p57 = scmp.eq.s32.totalorder %s23, 0
      %p58 = por %p56, %p57
      %p59 = scmp.ne.s32.totalorder %s45, %s46
      %p60 = scmp.eq.s32.totalorder %s24, 7
      %p61 = por %p59, %p60
      %p63 = scmp.ne.s32.totalorder %s46, %s62
      %p64 = scmp.eq.s32.totalorder %s24, 0
      %p65 = por %p63, %p64
      %s66 = ssub.s32 %s25, %s37
      %s67 = ssub.s32 %s26, %s33
      %s68 = sor.u32 %s66, %s67
      %p69 = scmp.eq.s32.totalorder %s68, 0
      %s71 = sadd.s32 %s70, 1
      %s72 = scalar_select %p69, %s70, %s71
      %p75 = pneg %p69
      %p76 = scmp.eq.s32.totalorder %s18, 7
      %p77 = por %p75, %p76
      %p78 = scmp.ne.s32.totalorder %s70, %s73
      %p79 = scmp.eq.s32.totalorder %s18, 0
      %p80 = por %p78, %p79
      %p81 = scmp.ne.s32.totalorder %s70, %s73
      %p82 = scmp.eq.s32.totalorder %s23, 7
      %p83 = por %p81, %p82
      %p84 = scmp.ne.s32.totalorder %s73, %s74
      %p85 = scmp.eq.s32.totalorder %s23, 0
      %p86 = por %p84, %p85
      %p87 = scmp.ne.s32.totalorder %s73, %s74
      %p88 = scmp.eq.s32.totalorder %s24, 7
      %p89 = por %p87, %p88
      %p91 = scmp.ne.s32.totalorder %s74, %s90
      %p92 = scmp.eq.s32.totalorder %s24, 0
      %p93 = por %p91, %p92
      %s95 = sadd.s32 %s94, 1
      %p98 = scmp.eq.s32.totalorder %s18, 7
      %p99 = scmp.ne.s32.totalorder %s94, %s96
      %p100 = scmp.eq.s32.totalorder %s18, 0
      %p101 = por %p99, %p100
      %p102 = scmp.ne.s32.totalorder %s94, %s96
      %p103 = scmp.eq.s32.totalorder %s23, 7
      %p104 = por %p102, %p103
      %p105 = scmp.ne.s32.totalorder %s96, %s97
      %p106 = scmp.eq.s32.totalorder %s23, 0
      %p107 = por %p105, %p106
      %p108 = scmp.ne.s32.totalorder %s96, %s97
      %p109 = scmp.eq.s32.totalorder %s24, 7
      %p110 = por %p108, %p109
      %p112 = scmp.ne.s32.totalorder %s97, %s111
      %p113 = scmp.eq.s32.totalorder %s24, 0
      %p114 = por %p112, %p113
      %s115 = ssub.s32 %s25, %s37
      %s116 = ssub.s32 %s26, %s33
      %s117 = sor.u32 %s115, %s116
      %p118 = scmp.eq.s32.totalorder %s117, 0
      %s120 = sadd.s32 %s119, 1
      %s121 = scalar_select %p118, %s119, %s120
      %p124 = pneg %p118
      %p125 = scmp.eq.s32.totalorder %s18, 7
      %p126 = por %p124, %p125
      %p127 = scmp.ne.s32.totalorder %s119, %s122
      %p128 = scmp.eq.s32.totalorder %s18, 0
      %p129 = por %p127, %p128
      %p130 = scmp.ne.s32.totalorder %s119, %s122
      %p131 = scmp.eq.s32.totalorder %s23, 7
      %p132 = por %p130, %p131
      %p133 = scmp.ne.s32.totalorder %s122, %s123
      %p134 = scmp.eq.s32.totalorder %s23, 0
      %p135 = por %p133, %p134
      %p136 = scmp.ne.s32.totalorder %s122, %s123
      %p137 = scmp.eq.s32.totalorder %s24, 7
      %p138 = por %p136, %p137
      %p140 = scmp.ne.s32.totalorder %s123, %s139
      %p141 = scmp.eq.s32.totalorder %s24, 0
      %p142 = por %p140, %p141
      %p143 = scmp.le.s32.totalorder 1, %s18
      %p144 = scmp.lt.s32.totalorder %s18, 9
      %p145 = pnand %p143, %p144
      %p146 = pneg %p145
      // Predicated region
      $region9: #{tpu_custom_call.1} parent=5 // pred_check
        _
      $region10: #{tpu_custom_call.1} parent=5 // pred_check_branch
        %148 = sbr.rel (%p145) target = $region12
      $region11: #{tpu_custom_call.1} parent=5 // pred_region
        %s149 = ssub.s32 %s18, 1
        // Predicated region
        $region13: #{tpu_custom_call.1} parent=11 // pred_check
          %p150 = pneg %p107
        $region14: #{tpu_custom_call.1} parent=11 // pred_check_branch
          %152 = sbr.rel (%p150) target = $region16
        $region15: #{tpu_custom_call.1} parent=11 // pred_region
          %154 = vsyncadd [#allocation7], 0
          %s155 = sshll.u32 %s2, 4
          %s156 = int_to_ptr.hbm [resolvable:$true] %s155
          %s157 = sshll.u32 [#allocation8], 4
          %s158 = int_to_ptr.vmem [resolvable:$true] %s157
          %163 = dma.hbm_to_vmem [thread:$0]  %s156, 18432, %s158, [#allocation7], 64, 64, 4
        $region16: #{tpu_custom_call.1} parent=11 // pred_fallthru
          _
      $region12: #{tpu_custom_call.1} parent=5 // pred_fallthru
        _
      %p164 = scmp.lt.s32.totalorder %s18, 8
      // Predicated region
      $region17: #{tpu_custom_call.1} parent=5 // pred_check
        %p165 = pneg %p164
      $region18: #{tpu_custom_call.1} parent=5 // pred_check_branch
        %167 = sbr.rel (%p165) target = $region20
      $region19: #{tpu_custom_call.1} parent=5 // pred_region
        // Predicated region
        $region21: #{tpu_custom_call.1} parent=19 // pred_check
          %p168 = pneg %p52
        $region22: #{tpu_custom_call.1} parent=19 // pred_check_branch
          %170 = sbr.rel (%p168) target = $region24
        $region23: #{tpu_custom_call.1} parent=19 // pred_region
          %s171 = sand.u32 %s42, 1
          %s172 = scalar_lea.sflag [#allocation4], %s171
          %s173 = sand.u32 %s42, 1
          %s174 = smul.addr %s173, 96
          %s175 = scalar_lea.vmem [#allocation3], %s174
          %177 = vsyncadd %s172, 0
          %s178 = smul.addr %s26, 12
          %s179 = smul.addr %s25, 48
          %s180 = sadd.s32 %s178, %s179
          %s181 = smul.addr %s180, 8
          %s182 = scalar_lea.hbm %s0, %s181
          %s183 = sshll.u32 %s182, 4
          %s184 = int_to_ptr.hbm [resolvable:$true] %s183
          %s185 = sshll.u32 %s175, 4
          %s186 = int_to_ptr.vmem [resolvable:$true] %s185
          %191 = dma.hbm_to_vmem [thread:$0]  %s184, 1536, %s186, %s172, 128, 128, 8
        $region24: #{tpu_custom_call.1} parent=19 // pred_fallthru
          _
        // Predicated region
        $region25: #{tpu_custom_call.1} parent=19 // pred_check
          %p192 = pneg %p80
        $region26: #{tpu_custom_call.1} parent=19 // pred_check_branch
          %194 = sbr.rel (%p192) target = $region28
        $region27: #{tpu_custom_call.1} parent=19 // pred_region
          %s195 = sand.u32 %s18, 1
          %s196 = scalar_lea.sflag [#allocation7], %s195
          %s197 = sand.u32 %s70, 1
          %s198 = smul.addr %s197, 96
          %s199 = scalar_lea.vmem [#allocation6], %s198
          %201 = vsyncadd %s196, 0
          %s202 = smul.addr %s26, 12
          %s203 = smul.addr %s25, 48
          %s204 = sadd.s32 %s202, %s203
          %s205 = smul.addr %s204, 8
          %s206 = scalar_lea.hbm %s1, %s205
          %s207 = sshll.u32 %s206, 4
          %s208 = int_to_ptr.hbm [resolvable:$true] %s207
          %s209 = sshll.u32 %s199, 4
          %s210 = int_to_ptr.vmem [resolvable:$true] %s209
          %215 = dma.hbm_to_vmem [thread:$0]  %s208, 1536, %s210, %s196, 128, 128, 8
        $region28: #{tpu_custom_call.1} parent=19 // pred_fallthru
          _
      $region20: #{tpu_custom_call.1} parent=5 // pred_fallthru
        _
      %p216 = scmp.le.s32.totalorder 1, %s18
      %p217 = scmp.lt.s32.totalorder %s18, 9
      %p218 = pnand %p216, %p217
      %p219 = pneg %p218
      // Predicated region
      $region29: #{tpu_custom_call.1} parent=5 // pred_check
        _
      $region30: #{tpu_custom_call.1} parent=5 // pred_check_branch
        %221 = sbr.rel (%p218) target = $region32
      $region31: #{tpu_custom_call.1} parent=5 // pred_region
        %s222 = ssub.s32 %s18, 1
        %s223 = sand.u32 %s45, 1
        %s224 = scalar_lea.sflag [#allocation4], %s223
        %s225 = sand.u32 %s45, 1
        %s226 = smul.addr %s225, 96
        %s227 = scalar_lea.vmem [#allocation3], %s226
        // Predicated region
        $region33: #{tpu_custom_call.1} parent=31 // pred_check
          %p228 = pneg %p58
        $region34: #{tpu_custom_call.1} parent=31 // pred_check_branch
          %230 = sbr.rel (%p228) target = $region36
        $region35: #{tpu_custom_call.1} parent=31 // pred_region
          %232 = dma.done %s224, 1536
        $region36: #{tpu_custom_call.1} parent=31 // pred_fallthru
          _
        %s233 = sand.u32 %s23, 1
        %s234 = scalar_lea.sflag [#allocation7], %s233
        %s235 = sand.u32 %s73, 1
        %s236 = smul.addr %s235, 96
        %s237 = scalar_lea.vmem [#allocation6], %s236
        // Predicated region
        $region37: #{tpu_custom_call.1} parent=31 // pred_check
          %p238 = pneg %p86
        $region38: #{tpu_custom_call.1} parent=31 // pred_check_branch
          %240 = sbr.rel (%p238) target = $region40
        $region39: #{tpu_custom_call.1} parent=31 // pred_region
          %242 = dma.done %s234, 1536
        $region40: #{tpu_custom_call.1} parent=31 // pred_fallthru
          _
        // Predicated region
        $region41: #{tpu_custom_call.1} parent=31 // pred_check
          %p243 = pneg %p107
        $region42: #{tpu_custom_call.1} parent=31 // pred_check_branch
          %245 = sbr.rel (%p243) target = $region44
        $region43: #{tpu_custom_call.1} parent=31 // pred_region
          %247 = dma.done [#allocation7], 18432
        $region44: #{tpu_custom_call.1} parent=31 // pred_fallthru
          _
        %s248 = sand.u32 %s45, 1
        %s249 = scalar_lea.sflag [#allocation4], %s248
        %s250 = sand.u32 %s45, 1
        %s251 = smul.addr %s250, 96
        %s252 = scalar_lea.vmem [#allocation3], %s251
        %p253 = pneg %p58
        %p254 = pneg %p55
        %s255 = sand.u32 %s23, 1
        %s256 = scalar_lea.sflag [#allocation7], %s255
        %s257 = sand.u32 %s73, 1
        %s258 = smul.addr %s257, 96
        %s259 = scalar_lea.vmem [#allocation6], %s258
        %p260 = pneg %p86
        %p261 = pneg %p83
        %p262 = pneg %p107
        %p263 = pneg %p104
        %p264 = pneg %p135
        %p265 = pneg %p132
        %s266 = sand.u32 %s122, 1
        %s267 = scalar_lea.sflag [#allocation5], %s266
        %s268 = sand.u32 %s122, 1
        %s269 = smul.addr %s268, 96
        %s270 = scalar_lea.vmem [#allocation9], %s269
        %v272 = vld [vmem:[%s237] sm:$0xff]
        %v273 = vld [vmem:[%s237 + $0x8] sm:$0xff]
        %v274 = vld [vmem:[%s237 + $0x10] sm:$0xff]
        %v275 = vld [vmem:[%s237 + $0x18] sm:$0xff]
        %v276 = vld [vmem:[%s237 + $0x20] sm:$0xff]
        %v277 = vld [vmem:[%s237 + $0x28] sm:$0xff]
        %v278 = vld [vmem:[%s237 + $0x30] sm:$0xff]
        %v279 = vld [vmem:[%s237 + $0x38] sm:$0xff]
        %v280 = vld [vmem:[%s237 + $0x40] sm:$0xff]
        %v281 = vld [vmem:[%s237 + $0x48] sm:$0xff]
        %v282 = vld [vmem:[%s237 + $0x50] sm:$0xff]
        %v283 = vld [vmem:[%s237 + $0x58] sm:$0xff]
        %v284 = vmax.f32 %v272, 0.0
        %v285 = vmax.f32 %v273, 0.0
        %v286 = vmax.f32 %v274, 0.0
        %v287 = vmax.f32 %v275, 0.0
        %v288 = vmax.f32 %v276, 0.0
        %v289 = vmax.f32 %v277, 0.0
        %v290 = vmul.f32 %v284, 1.7139589
        %v291 = vmul.f32 %v285, 1.7139589
        %v292 = vmul.f32 %v286, 1.7139589
        %v293 = vmul.f32 %v287, 1.7139589
        %v294 = vmul.f32 %v288, 1.7139589
        %v295 = vmul.f32 %v289, 1.7139589
        %v296 = vpack.c.bf16 %v290, %v290
        %v297 = vpack.c.bf16 %v291, %v291
        %v298 = vpack.c.bf16 %v292, %v292
        %v299 = vpack.c.bf16 %v293, %v293
        %v300 = vpack.c.bf16 %v294, %v294
        %v301 = vpack.c.bf16 %v295, %v295
        %302 = vst [vmem:[#allocation2 + $0xc] sm:$0xf] %v296
        %303 = vst [vmem:[#allocation2 + $0x10] sm:$0xf] %v297
        %304 = vst [vmem:[#allocation2 + $0x14] sm:$0xf] %v298
        %305 = vst [vmem:[#allocation2 + $0x18] sm:$0xf] %v299
        %306 = vst [vmem:[#allocation2 + $0x1c] sm:$0xf] %v300
        %307 = vst [vmem:[#allocation2 + $0x20] sm:$0xf] %v301
        %v308 = vld [vmem:[%s227] sm:$0xff]
        %v309 = vld [vmem:[%s227 + $0x8] sm:$0xff]
        %v310 = vld [vmem:[%s227 + $0x10] sm:$0xff]
        %v311 = vld [vmem:[%s227 + $0x18] sm:$0xff]
        %v312 = vld [vmem:[%s227 + $0x20] sm:$0xff]
        %v313 = vld [vmem:[%s227 + $0x28] sm:$0xff]
        %v314 = vld [vmem:[%s227 + $0x30] sm:$0xff]
        %v315 = vld [vmem:[%s227 + $0x38] sm:$0xff]
        %v316 = vld [vmem:[%s227 + $0x40] sm:$0xff]
        %v317 = vld [vmem:[%s227 + $0x48] sm:$0xff]
        %v318 = vld [vmem:[%s227 + $0x50] sm:$0xff]
        %v319 = vld [vmem:[%s227 + $0x58] sm:$0xff]
        %v320 = vmax.f32 %v308, 0.0
        %v321 = vmax.f32 %v309, 0.0
        %v322 = vmax.f32 %v310, 0.0
        %v323 = vmax.f32 %v311, 0.0
        %v324 = vmax.f32 %v312, 0.0
        %v325 = vmax.f32 %v313, 0.0
        %v326 = vmax.f32 %v314, 0.0
        %v327 = vmax.f32 %v315, 0.0
        %v328 = vmax.f32 %v316, 0.0
        %v329 = vmax.f32 %v317, 0.0
        %v330 = vmax.f32 %v318, 0.0
        %v331 = vmax.f32 %v319, 0.0
        %v332 = vmul.f32 %v320, 1.7139589
        %v333 = vmul.f32 %v321, 1.7139589
        %v334 = vmul.f32 %v322, 1.7139589
        %v335 = vmul.f32 %v323, 1.7139589
        %v336 = vmul.f32 %v324, 1.7139589
        %v337 = vmul.f32 %v325, 1.7139589
        %v338 = vmul.f32 %v326, 1.7139589
        %v339 = vmul.f32 %v327, 1.7139589
        %v340 = vmul.f32 %v328, 1.7139589
        %v341 = vmul.f32 %v329, 1.7139589
        %v342 = vmul.f32 %v330, 1.7139589
        %v343 = vmul.f32 %v331, 1.7139589
        %v344 = vpack.c.bf16 %v332, %v332
        %v345 = vpack.c.bf16 %v333, %v333
        %v346 = vpack.c.bf16 %v334, %v334
        %v347 = vpack.c.bf16 %v335, %v335
        %v348 = vpack.c.bf16 %v336, %v336
        %v349 = vpack.c.bf16 %v337, %v337
        %v350 = vpack.c.bf16 %v338, %v338
        %v351 = vpack.c.bf16 %v339, %v339
        %v352 = vpack.c.bf16 %v340, %v340
        %v353 = vpack.c.bf16 %v341, %v341
        %v354 = vpack.c.bf16 %v342, %v342
        %v355 = vpack.c.bf16 %v343, %v343
        %356 = vst [vmem:[#allocation2 + $0x24] sm:$0xf] %v344
        %357 = vst [vmem:[#allocation2 + $0x28] sm:$0xf] %v345
        %358 = vst [vmem:[#allocation2 + $0x2c] sm:$0xf] %v346
        %359 = vst [vmem:[#allocation2 + $0x30] sm:$0xf] %v347
        %360 = vst [vmem:[#allocation2 + $0x34] sm:$0xf] %v348
        %361 = vst [vmem:[#allocation2 + $0x38] sm:$0xf] %v349
        %362 = vst [vmem:[#allocation2 + $0x3c] sm:$0xf] %v350
        %363 = vst [vmem:[#allocation2 + $0x40] sm:$0xf] %v351
        %364 = vst [vmem:[#allocation2 + $0x44] sm:$0xf] %v352
        %365 = vst [vmem:[#allocation2 + $0x48] sm:$0xf] %v353
        %366 = vst [vmem:[#allocation2 + $0x4c] sm:$0xf] %v354
        %367 = vst [vmem:[#allocation2 + $0x50] sm:$0xf] %v355
        %v368 = vmax.f32 %v278, 0.0
        %v369 = vmax.f32 %v279, 0.0
        %v370 = vmax.f32 %v280, 0.0
        %v371 = vmax.f32 %v281, 0.0
        %v372 = vmax.f32 %v282, 0.0
        %v373 = vmax.f32 %v283, 0.0
        %v374 = vmul.f32 %v368, 1.7139589
        %v375 = vmul.f32 %v369, 1.7139589
        %v376 = vmul.f32 %v370, 1.7139589
        %v377 = vmul.f32 %v371, 1.7139589
        %v378 = vmul.f32 %v372, 1.7139589
        %v379 = vmul.f32 %v373, 1.7139589
        %v380 = vpack.c.bf16 %v374, %v374
        %v381 = vpack.c.bf16 %v375, %v375
        %v382 = vpack.c.bf16 %v376, %v376
        %v383 = vpack.c.bf16 %v377, %v377
        %v384 = vpack.c.bf16 %v378, %v378
        %v385 = vpack.c.bf16 %v379, %v379
        %386 = vst [vmem:[#allocation2 + $0x54] sm:$0xf] %v380
        %387 = vst [vmem:[#allocation2 + $0x58] sm:$0xf] %v381
        %388 = vst [vmem:[#allocation2 + $0x5c] sm:$0xf] %v382
        %389 = vst [vmem:[#allocation2 + $0x60] sm:$0xf] %v383
        %390 = vst [vmem:[#allocation2 + $0x64] sm:$0xf] %v384
        %391 = vst [vmem:[#allocation2 + $0x68] sm:$0xf] %v385
        %v392 = vld [vmem:[#allocation2 + $0x8] sm:$0x8]
        %v393 = vld [vmem:[#allocation2 + $0xc] sm:$0xf]
        %v394 = vld [vmem:[#allocation2 + $0x10] sm:$0xf]
        %v395 = vld [vmem:[#allocation2 + $0x14] sm:$0xf]
        %v396 = vld [vmem:[#allocation2 + $0x18] sm:$0xf]
        %v397 = vld [vmem:[#allocation2 + $0x1c] sm:$0xf]
        %v398 = vld [vmem:[#allocation2 + $0x20] sm:$0xf]
        %v399 = vld [vmem:[#allocation2 + $0x24] sm:$0xf]
        %v400 = vld [vmem:[#allocation2 + $0x28] sm:$0xf]
        %v401 = vld [vmem:[#allocation2 + $0x2c] sm:$0xf]
        %v402 = vld [vmem:[#allocation2 + $0x30] sm:$0xf]
        %v403 = vld [vmem:[#allocation2 + $0x34] sm:$0xf]
        %v404 = vld [vmem:[#allocation2 + $0x38] sm:$0xf]
        %v405 = vld [vmem:[#allocation2 + $0x3c] sm:$0xf]
        %v406 = vld [vmem:[#allocation2 + $0x40] sm:$0xf]
        %v407 = vld [vmem:[#allocation2 + $0x44] sm:$0xf]
        %v408 = vld [vmem:[#allocation2 + $0x48] sm:$0xf]
        %v409 = vld [vmem:[#allocation2 + $0x4c] sm:$0xf]
        %v410 = vld [vmem:[#allocation2 + $0x50] sm:$0xf]
        %v411 = vld [vmem:[#allocation8] sm:$0xf]
        %v412 = vld [vmem:[#allocation8 + $0x4] sm:$0xf]
        %v413 = vld [vmem:[#allocation8 + $0x8] sm:$0xf]
        %v414 = vld [vmem:[#allocation8 + $0xc] sm:$0xf]
        %v415 = vld [vmem:[#allocation8 + $0x10] sm:$0xf]
        %v416 = vld [vmem:[#allocation8 + $0x14] sm:$0xf]
        %v417 = vld [vmem:[#allocation8 + $0x18] sm:$0xf]
        %v418 = vld [vmem:[#allocation8 + $0x1c] sm:$0xf]
        %v419 = vld [vmem:[#allocation8 + $0x20] sm:$0xf]
        %v420 = vld [vmem:[#allocation8 + $0x24] sm:$0xf]
        %v421 = vld [vmem:[#allocation8 + $0x28] sm:$0xf]
        %v422 = vld [vmem:[#allocation8 + $0x2c] sm:$0xf]
        %v423 = vld [vmem:[#allocation8 + $0x30] sm:$0xf]
        %v424 = vld [vmem:[#allocation8 + $0x34] sm:$0xf]
        %v425 = vld [vmem:[#allocation8 + $0x38] sm:$0xf]
        %v426 = vld [vmem:[#allocation8 + $0x3c] sm:$0xf]
        %s427 = scalar_lea.vmem [#allocation8], 64
        %v428 = vld [vmem:[%s427] sm:$0xf]
        %v429 = vld [vmem:[%s427 + $0x4] sm:$0xf]
        %v430 = vld [vmem:[%s427 + $0x8] sm:$0xf]
        %v431 = vld [vmem:[%s427 + $0xc] sm:$0xf]
        %v432 = vld [vmem:[%s427 + $0x10] sm:$0xf]
        %v433 = vld [vmem:[%s427 + $0x14] sm:$0xf]
        %v434 = vld [vmem:[%s427 + $0x18] sm:$0xf]
        %v435 = vld [vmem:[%s427 + $0x1c] sm:$0xf]
        %v436 = vld [vmem:[%s427 + $0x20] sm:$0xf]
        %v437 = vld [vmem:[%s427 + $0x24] sm:$0xf]
        %v438 = vld [vmem:[%s427 + $0x28] sm:$0xf]
        %v439 = vld [vmem:[%s427 + $0x2c] sm:$0xf]
        %v440 = vld [vmem:[%s427 + $0x30] sm:$0xf]
        %v441 = vld [vmem:[%s427 + $0x34] sm:$0xf]
        %v442 = vld [vmem:[%s427 + $0x38] sm:$0xf]
        %v443 = vld [vmem:[%s427 + $0x3c] sm:$0xf]
        %v462 = vunpack.c.l.b16 %v393
        %v463 = vunpack.c.l.b16 %v394
        %v464 = vunpack.c.l.b16 %v395
        %v465 = vunpack.c.l.b16 %v396
        %v466 = vunpack.c.l.b16 %v397
        %v467 = vunpack.c.l.b16 %v398
        %v468 = vunpack.c.l.b16 %v399
        %v469 = vunpack.c.l.b16 %v400
        %v470 = vunpack.c.l.b16 %v401
        %v471 = vunpack.c.l.b16 %v402
        %v472 = vunpack.c.l.b16 %v403
        %v473 = vunpack.c.l.b16 %v404
        %v474 = vunpack.c.l.b16 %v405
        %v475 = vunpack.c.l.b16 %v406
        %v476 = vunpack.c.l.b16 %v407
        %v477 = vunpack.c.l.b16 %v408
        %v478 = vunpack.c.l.b16 %v409
        %v479 = vunpack.c.l.b16 %v410
        %v480 = vpack.c.b16 %v463, %v462
        %v481 = vpack.c.b16 %v465, %v464
        %v482 = vpack.c.b16 %v467, %v466
        %v483 = vpack.c.b16 %v469, %v468
        %v484 = vpack.c.b16 %v471, %v470
        %v485 = vpack.c.b16 %v473, %v472
        %v486 = vpack.c.b16 %v475, %v474
        %v487 = vpack.c.b16 %v477, %v476
        %v488 = vpack.c.b16 %v479, %v478
        %v514 = vunpack.c.l.b16 %v428
        %v515 = vunpack.c.l.b16 %v429
        %v516 = vunpack.c.l.b16 %v430
        %v517 = vunpack.c.l.b16 %v431
        %v518 = vunpack.c.l.b16 %v432
        %v519 = vunpack.c.l.b16 %v433
        %v520 = vunpack.c.l.b16 %v434
        %v521 = vunpack.c.l.b16 %v435
        %v522 = vunpack.c.l.b16 %v436
        %v523 = vunpack.c.l.b16 %v437
        %v524 = vunpack.c.l.b16 %v438
        %v525 = vunpack.c.l.b16 %v439
        %v526 = vunpack.c.l.b16 %v440
        %v527 = vunpack.c.l.b16 %v441
        %v528 = vunpack.c.l.b16 %v442
        %v529 = vunpack.c.l.b16 %v443
        %v530 = vpack.c.b16 %v515, %v514
        %v531 = vpack.c.b16 %v517, %v516
        %v532 = vpack.c.b16 %v519, %v518
        %v533 = vpack.c.b16 %v521, %v520
        %v534 = vpack.c.b16 %v523, %v522
        %v535 = vpack.c.b16 %v525, %v524
        %v536 = vpack.c.b16 %v527, %v526
        %v537 = vpack.c.b16 %v529, %v528
        %546 = vmatpush.bf16.msra.mxu0 %v537
        %547 = vmatpush.bf16.msra.mxu0 %v536
        %548 = vmatpush.bf16.msra.mxu0 %v535
        %549 = vmatpush.bf16.msra.mxu0 %v534
        %550 = vmatpush.bf16.msra.mxu0 %v533
        %551 = vmatpush.bf16.msra.mxu0 %v532
        %552 = vmatpush.bf16.msra.mxu0 %v531
        %553 = vmatpush.bf16.msra.mxu0 %v530
        %554 = vmatmul.bf16.gmra.mxu0 %v480
        %v555 = vpop.f32.mrf.mxu0
        %v556 = vadd.f32 0.0, %v555
        %v557 = vpop.f32.mrf.mxu0
        %v558 = vadd.f32 0.0, %v557
        %559 = vmatmul.bf16.gmra.mxu0 %v481
        %v560 = vpop.f32.mrf.mxu0
        %v561 = vadd.f32 0.0, %v560
        %v562 = vpop.f32.mrf.mxu0
        %v563 = vadd.f32 0.0, %v562
        %564 = vmatmul.bf16.gmra.mxu0 %v482
        %v565 = vpop.f32.mrf.mxu0
        %v566 = vadd.f32 0.0, %v565
        %v567 = vpop.f32.mrf.mxu0
        %v568 = vadd.f32 0.0, %v567
        %569 = vmatmul.bf16.gmra.mxu0 %v483
        %v570 = vpop.f32.mrf.mxu0
        %v571 = vadd.f32 0.0, %v570
        %v572 = vpop.f32.mrf.mxu0
        %v573 = vadd.f32 0.0, %v572
        %574 = vmatmul.bf16.gmra.mxu0 %v484
        %v575 = vpop.f32.mrf.mxu0
        %v576 = vadd.f32 0.0, %v575
        %v577 = vpop.f32.mrf.mxu0
        %v578 = vadd.f32 0.0, %v577
        %579 = vmatmul.bf16.gmra.mxu0 %v485
        %v580 = vpop.f32.mrf.mxu0
        %v581 = vadd.f32 0.0, %v580
        %v582 = vpop.f32.mrf.mxu0
        %v583 = vadd.f32 0.0, %v582
        %584 = vmatmul.bf16.gmra.mxu0 %v486
        %v585 = vpop.f32.mrf.mxu0
        %v586 = vadd.f32 0.0, %v585
        %v587 = vpop.f32.mrf.mxu0
        %v588 = vadd.f32 0.0, %v587
        %589 = vmatmul.bf16.gmra.mxu0 %v487
        %v590 = vpop.f32.mrf.mxu0
        %v591 = vadd.f32 0.0, %v590
        %v592 = vpop.f32.mrf.mxu0
        %v593 = vadd.f32 0.0, %v592
        %594 = vmatmul.bf16.gmra.mxu0 %v488
        %v595 = vpop.f32.mrf.mxu0
        %v596 = vadd.f32 0.0, %v595
        %v597 = vpop.f32.mrf.mxu0
        %v598 = vadd.f32 0.0, %v597
        %599 = vdwg.mxu0
        %v601 = vunpack.c.l.b16 %v392
        %v602 = vpack.c.b16 %v462, %v601
        %v603 = vpack.c.b16 %v464, %v463
        %v604 = vpack.c.b16 %v466, %v465
        %v605 = vpack.c.b16 %v468, %v467
        %v606 = vpack.c.b16 %v470, %v469
        %v607 = vpack.c.b16 %v472, %v471
        %v608 = vpack.c.b16 %v474, %v473
        %v609 = vpack.c.b16 %v476, %v475
        %v610 = vpack.c.b16 %v478, %v477
        %v611 = vpack.c.b16 %v479, %v479
        %vm612 = vsmask.f32 4352
        %v614 = vshrl.u32 %v602, 16
        %v616 = vrot.slane %v614, 3
        %v617 = vshll.u32 %v602, 16
        %v619 = vrot.slane %v617, 4
        %v620 = vor.u32 %v616, %v619
        %v622 = vshrl.u32 %v603, 16
        %v624 = vrot.slane %v622, 3
        %v625 = vshll.u32 %v603, 16
        %v627 = vrot.slane %v625, 4
        %v628 = vor.u32 %v624, %v627
        %v629 = vsel %vm612, %v620, %v628
        %v631 = vshrl.u32 %v604, 16
        %v633 = vrot.slane %v631, 3
        %v634 = vshll.u32 %v604, 16
        %v636 = vrot.slane %v634, 4
        %v637 = vor.u32 %v633, %v636
        %v638 = vsel %vm612, %v628, %v637
        %v640 = vshrl.u32 %v605, 16
        %v642 = vrot.slane %v640, 3
        %v643 = vshll.u32 %v605, 16
        %v645 = vrot.slane %v643, 4
        %v646 = vor.u32 %v642, %v645
        %v647 = vsel %vm612, %v637, %v646
        %v649 = vshrl.u32 %v606, 16
        %v651 = vrot.slane %v649, 3
        %v652 = vshll.u32 %v606, 16
        %v654 = vrot.slane %v652, 4
        %v655 = vor.u32 %v651, %v654
        %v656 = vsel %vm612, %v646, %v655
        %v658 = vshrl.u32 %v607, 16
        %v660 = vrot.slane %v658, 3
        %v661 = vshll.u32 %v607, 16
        %v663 = vrot.slane %v661, 4
        %v664 = vor.u32 %v660, %v663
        %v665 = vsel %vm612, %v655, %v664
        %v667 = vshrl.u32 %v608, 16
        %v669 = vrot.slane %v667, 3
        %v670 = vshll.u32 %v608, 16
        %v672 = vrot.slane %v670, 4
        %v673 = vor.u32 %v669, %v672
        %v674 = vsel %vm612, %v664, %v673
        %v676 = vshrl.u32 %v609, 16
        %v678 = vrot.slane %v676, 3
        %v679 = vshll.u32 %v609, 16
        %v681 = vrot.slane %v679, 4
        %v682 = vor.u32 %v678, %v681
        %v683 = vsel %vm612, %v673, %v682
        %v685 = vshrl.u32 %v610, 16
        %v687 = vrot.slane %v685, 3
        %v688 = vshll.u32 %v610, 16
        %v690 = vrot.slane %v688, 4
        %v691 = vor.u32 %v687, %v690
        %v692 = vsel %vm612, %v682, %v691
        %v694 = vshrl.u32 %v611, 16
        %v696 = vrot.slane %v694, 3
        %v697 = vshll.u32 %v611, 16
        %v699 = vrot.slane %v697, 4
        %v700 = vor.u32 %v696, %v699
        %v701 = vsel %vm612, %v691, %v700
        %v727 = vunpack.c.l.b16 %v411
        %v728 = vunpack.c.l.b16 %v412
        %v729 = vunpack.c.l.b16 %v413
        %v730 = vunpack.c.l.b16 %v414
        %v731 = vunpack.c.l.b16 %v415
        %v732 = vunpack.c.l.b16 %v416
        %v733 = vunpack.c.l.b16 %v417
        %v734 = vunpack.c.l.b16 %v418
        %v735 = vunpack.c.l.b16 %v419
        %v736 = vunpack.c.l.b16 %v420
        %v737 = vunpack.c.l.b16 %v421
        %v738 = vunpack.c.l.b16 %v422
        %v739 = vunpack.c.l.b16 %v423
        %v740 = vunpack.c.l.b16 %v424
        %v741 = vunpack.c.l.b16 %v425
        %v742 = vunpack.c.l.b16 %v426
        %v743 = vpack.c.b16 %v728, %v727
        %v744 = vpack.c.b16 %v730, %v729
        %v745 = vpack.c.b16 %v732, %v731
        %v746 = vpack.c.b16 %v734, %v733
        %v747 = vpack.c.b16 %v736, %v735
        %v748 = vpack.c.b16 %v738, %v737
        %v749 = vpack.c.b16 %v740, %v739
        %v750 = vpack.c.b16 %v742, %v741
        %759 = vmatpush.bf16.msra.mxu0 %v750
        %760 = vmatpush.bf16.msra.mxu0 %v749
        %761 = vmatpush.bf16.msra.mxu0 %v748
        %762 = vmatpush.bf16.msra.mxu0 %v747
        %763 = vmatpush.bf16.msra.mxu0 %v746
        %764 = vmatpush.bf16.msra.mxu0 %v745
        %765 = vmatpush.bf16.msra.mxu0 %v744
        %766 = vmatpush.bf16.msra.mxu0 %v743
        %767 = vmatmul.bf16.gmra.mxu0 %v629
        %v768 = vpop.f32.mrf.mxu0
        %v769 = vadd.f32 %v556, %v768
        %v770 = vpop.f32.mrf.mxu0
        %v771 = vadd.f32 %v558, %v770
        %772 = vmatmul.bf16.gmra.mxu0 %v638
        %v773 = vpop.f32.mrf.mxu0
        %v774 = vadd.f32 %v561, %v773
        %v775 = vpop.f32.mrf.mxu0
        %v776 = vadd.f32 %v563, %v775
        %777 = vmatmul.bf16.gmra.mxu0 %v647
        %v778 = vpop.f32.mrf.mxu0
        %v779 = vadd.f32 %v566, %v778
        %v780 = vpop.f32.mrf.mxu0
        %v781 = vadd.f32 %v568, %v780
        %782 = vmatmul.bf16.gmra.mxu0 %v656
        %v783 = vpop.f32.mrf.mxu0
        %v784 = vadd.f32 %v571, %v783
        %v785 = vpop.f32.mrf.mxu0
        %v786 = vadd.f32 %v573, %v785
        %787 = vmatmul.bf16.gmra.mxu0 %v665
        %v788 = vpop.f32.mrf.mxu0
        %v789 = vadd.f32 %v576, %v788
        %v790 = vpop.f32.mrf.mxu0
        %v791 = vadd.f32 %v578, %v790
        %792 = vmatmul.bf16.gmra.mxu0 %v674
        %v793 = vpop.f32.mrf.mxu0
        %v794 = vadd.f32 %v581, %v793
        %v795 = vpop.f32.mrf.mxu0
        %v796 = vadd.f32 %v583, %v795
        %797 = vmatmul.bf16.gmra.mxu0 %v683
        %v798 = vpop.f32.mrf.mxu0
        %v799 = vadd.f32 %v586, %v798
        %v800 = vpop.f32.mrf.mxu0
        %v801 = vadd.f32 %v588, %v800
        %802 = vmatmul.bf16.gmra.mxu0 %v692
        %v803 = vpop.f32.mrf.mxu0
        %v804 = vadd.f32 %v591, %v803
        %v805 = vpop.f32.mrf.mxu0
        %v806 = vadd.f32 %v593, %v805
        %807 = vmatmul.bf16.gmra.mxu0 %v701
        %v808 = vpop.f32.mrf.mxu0
        %v809 = vadd.f32 %v596, %v808
        %v810 = vpop.f32.mrf.mxu0
        %v811 = vadd.f32 %v598, %v810
        %812 = vdwg.mxu0
        %v813 = vld [vmem:[#allocation2 + $0xc] sm:$0xf]
        %v814 = vld [vmem:[#allocation2 + $0x10] sm:$0xf]
        %v815 = vld [vmem:[#allocation2 + $0x14] sm:$0xf]
        %v816 = vld [vmem:[#allocation2 + $0x18] sm:$0xf]
        %v817 = vld [vmem:[#allocation2 + $0x1c] sm:$0xf]
        %v818 = vld [vmem:[#allocation2 + $0x20] sm:$0xf]
        %v819 = vld [vmem:[#allocation2 + $0x24] sm:$0xf]
        %v820 = vld [vmem:[#allocation2 + $0x28] sm:$0xf]
        %v821 = vld [vmem:[#allocation2 + $0x2c] sm:$0xf]
        %v822 = vld [vmem:[#allocation2 + $0x30] sm:$0xf]
        %v823 = vld [vmem:[#allocation2 + $0x34] sm:$0xf]
        %v824 = vld [vmem:[#allocation2 + $0x38] sm:$0xf]
        %v825 = vld [vmem:[#allocation2 + $0x3c] sm:$0xf]
        %v826 = vld [vmem:[#allocation2 + $0x40] sm:$0xf]
        %v827 = vld [vmem:[#allocation2 + $0x44] sm:$0xf]
        %v828 = vld [vmem:[#allocation2 + $0x48] sm:$0xf]
        %v829 = vld [vmem:[#allocation2 + $0x4c] sm:$0xf]
        %v830 = vld [vmem:[#allocation2 + $0x50] sm:$0xf]
        %v831 = vld [vmem:[#allocation2 + $0x54] sm:$0x1]
        %s832 = scalar_lea.vmem [#allocation8], 128
        %v833 = vld [vmem:[%s832] sm:$0xf]
        %v834 = vld [vmem:[%s832 + $0x4] sm:$0xf]
        %v835 = vld [vmem:[%s832 + $0x8] sm:$0xf]
        %v836 = vld [vmem:[%s832 + $0xc] sm:$0xf]
        %v837 = vld [vmem:[%s832 + $0x10] sm:$0xf]
        %v838 = vld [vmem:[%s832 + $0x14] sm:$0xf]
        %v839 = vld [vmem:[%s832 + $0x18] sm:$0xf]
        %v840 = vld [vmem:[%s832 + $0x1c] sm:$0xf]
        %v841 = vld [vmem:[%s832 + $0x20] sm:$0xf]
        %v842 = vld [vmem:[%s832 + $0x24] sm:$0xf]
        %v843 = vld [vmem:[%s832 + $0x28] sm:$0xf]
        %v844 = vld [vmem:[%s832 + $0x2c] sm:$0xf]
        %v845 = vld [vmem:[%s832 + $0x30] sm:$0xf]
        %v846 = vld [vmem:[%s832 + $0x34] sm:$0xf]
        %v847 = vld [vmem:[%s832 + $0x38] sm:$0xf]
        %v848 = vld [vmem:[%s832 + $0x3c] sm:$0xf]
        %v868 = vunpack.c.l.b16 %v813
        %v869 = vunpack.c.l.b16 %v814
        %v870 = vunpack.c.l.b16 %v815
        %v871 = vunpack.c.l.b16 %v816
        %v872 = vunpack.c.l.b16 %v817
        %v873 = vunpack.c.l.b16 %v818
        %v874 = vunpack.c.l.b16 %v819
        %v875 = vunpack.c.l.b16 %v820
        %v876 = vunpack.c.l.b16 %v821
        %v877 = vunpack.c.l.b16 %v822
        %v878 = vunpack.c.l.b16 %v823
        %v879 = vunpack.c.l.b16 %v824
        %v880 = vunpack.c.l.b16 %v825
        %v881 = vunpack.c.l.b16 %v826
        %v882 = vunpack.c.l.b16 %v827
        %v883 = vunpack.c.l.b16 %v828
        %v884 = vunpack.c.l.b16 %v829
        %v885 = vunpack.c.l.b16 %v830
        %v886 = vunpack.c.l.b16 %v831
        %v887 = vpack.c.b16 %v869, %v868
        %v888 = vpack.c.b16 %v871, %v870
        %v889 = vpack.c.b16 %v873, %v872
        %v890 = vpack.c.b16 %v875, %v874
        %v891 = vpack.c.b16 %v877, %v876
        %v892 = vpack.c.b16 %v879, %v878
        %v893 = vpack.c.b16 %v881, %v880
        %v894 = vpack.c.b16 %v883, %v882
        %v895 = vpack.c.b16 %v885, %v884
        %v896 = vpack.c.b16 %v886, %v886
        %vm897 = vsmask.f32 7424
        %v899 = vshrl.u32 %v887, 16
        %v901 = vshll.u32 %v887, 16
        %v903 = vrot.slane %v901, 1
        %v904 = vor.u32 %v899, %v903
        %v906 = vshll.u32 %v888, 16
        %v908 = vrot.slane %v906, 1
        %v909 = vsel %vm897, %v904, %v908
        %v910 = vshrl.u32 %v888, 16
        %v912 = vor.u32 %v910, %v908
        %v914 = vshll.u32 %v889, 16
        %v916 = vrot.slane %v914, 1
        %v917 = vsel %vm897, %v912, %v916
        %v918 = vshrl.u32 %v889, 16
        %v920 = vor.u32 %v918, %v916
        %v922 = vshll.u32 %v890, 16
        %v924 = vrot.slane %v922, 1
        %v925 = vsel %vm897, %v920, %v924
        %v926 = vshrl.u32 %v890, 16
        %v928 = vor.u32 %v926, %v924
        %v930 = vshll.u32 %v891, 16
        %v932 = vrot.slane %v930, 1
        %v933 = vsel %vm897, %v928, %v932
        %v934 = vshrl.u32 %v891, 16
        %v936 = vor.u32 %v934, %v932
        %v938 = vshll.u32 %v892, 16
        %v940 = vrot.slane %v938, 1
        %v941 = vsel %vm897, %v936, %v940
        %v942 = vshrl.u32 %v892, 16
        %v944 = vor.u32 %v942, %v940
        %v946 = vshll.u32 %v893, 16
        %v948 = vrot.slane %v946, 1
        %v949 = vsel %vm897, %v944, %v948
        %v950 = vshrl.u32 %v893, 16
        %v952 = vor.u32 %v950, %v948
        %v954 = vshll.u32 %v894, 16
        %v956 = vrot.slane %v954, 1
        %v957 = vsel %vm897, %v952, %v956
        %v958 = vshrl.u32 %v894, 16
        %v960 = vor.u32 %v958, %v956
        %v962 = vshll.u32 %v895, 16
        %v964 = vrot.slane %v962, 1
        %v965 = vsel %vm897, %v960, %v964
        %v966 = vshrl.u32 %v895, 16
        %v968 = vor.u32 %v966, %v964
        %v970 = vshll.u32 %v896, 16
        %v972 = vrot.slane %v970, 1
        %v973 = vsel %vm897, %v968, %v972
        %v999 = vunpack.c.l.b16 %v833
        %v1000 = vunpack.c.l.b16 %v834
        %v1001 = vunpack.c.l.b16 %v835
        %v1002 = vunpack.c.l.b16 %v836
        %v1003 = vunpack.c.l.b16 %v837
        %v1004 = vunpack.c.l.b16 %v838
        %v1005 = vunpack.c.l.b16 %v839
        %v1006 = vunpack.c.l.b16 %v840
        %v1007 = vunpack.c.l.b16 %v841
        %v1008 = vunpack.c.l.b16 %v842
        %v1009 = vunpack.c.l.b16 %v843
        %v1010 = vunpack.c.l.b16 %v844
        %v1011 = vunpack.c.l.b16 %v845
        %v1012 = vunpack.c.l.b16 %v846
        %v1013 = vunpack.c.l.b16 %v847
        %v1014 = vunpack.c.l.b16 %v848
        %v1015 = vpack.c.b16 %v1000, %v999
        %v1016 = vpack.c.b16 %v1002, %v1001
        %v1017 = vpack.c.b16 %v1004, %v1003
        %v1018 = vpack.c.b16 %v1006, %v1005
        %v1019 = vpack.c.b16 %v1008, %v1007
        %v1020 = vpack.c.b16 %v1010, %v1009
        %v1021 = vpack.c.b16 %v1012, %v1011
        %v1022 = vpack.c.b16 %v1014, %v1013
        %1031 = vmatpush.bf16.msra.mxu0 %v1022
        %1032 = vmatpush.bf16.msra.mxu0 %v1021
        %1033 = vmatpush.bf16.msra.mxu0 %v1020
        %1034 = vmatpush.bf16.msra.mxu0 %v1019
        %1035 = vmatpush.bf16.msra.mxu0 %v1018
        %1036 = vmatpush.bf16.msra.mxu0 %v1017
        %1037 = vmatpush.bf16.msra.mxu0 %v1016
        %1038 = vmatpush.bf16.msra.mxu0 %v1015
        %1039 = vmatmul.bf16.gmra.mxu0 %v909
        %v1040 = vpop.f32.mrf.mxu0
        %v1041 = vadd.f32 0.0, %v1040
        %v1042 = vpop.f32.mrf.mxu0
        %v1043 = vadd.f32 0.0, %v1042
        %1044 = vmatmul.bf16.gmra.mxu0 %v917
        %v1045 = vpop.f32.mrf.mxu0
        %v1046 = vadd.f32 0.0, %v1045
        %v1047 = vpop.f32.mrf.mxu0
        %v1048 = vadd.f32 0.0, %v1047
        %1049 = vmatmul.bf16.gmra.mxu0 %v925
        %v1050 = vpop.f32.mrf.mxu0
        %v1051 = vadd.f32 0.0, %v1050
        %v1052 = vpop.f32.mrf.mxu0
        %v1053 = vadd.f32 0.0, %v1052
        %1054 = vmatmul.bf16.gmra.mxu0 %v933
        %v1055 = vpop.f32.mrf.mxu0
        %v1056 = vadd.f32 0.0, %v1055
        %v1057 = vpop.f32.mrf.mxu0
        %v1058 = vadd.f32 0.0, %v1057
        %1059 = vmatmul.bf16.gmra.mxu0 %v941
        %v1060 = vpop.f32.mrf.mxu0
        %v1061 = vadd.f32 0.0, %v1060
        %v1062 = vpop.f32.mrf.mxu0
        %v1063 = vadd.f32 0.0, %v1062
        %1064 = vmatmul.bf16.gmra.mxu0 %v949
        %v1065 = vpop.f32.mrf.mxu0
        %v1066 = vadd.f32 0.0, %v1065
        %v1067 = vpop.f32.mrf.mxu0
        %v1068 = vadd.f32 0.0, %v1067
        %1069 = vmatmul.bf16.gmra.mxu0 %v957
        %v1070 = vpop.f32.mrf.mxu0
        %v1071 = vadd.f32 0.0, %v1070
        %v1072 = vpop.f32.mrf.mxu0
        %v1073 = vadd.f32 0.0, %v1072
        %1074 = vmatmul.bf16.gmra.mxu0 %v965
        %v1075 = vpop.f32.mrf.mxu0
        %v1076 = vadd.f32 0.0, %v1075
        %v1077 = vpop.f32.mrf.mxu0
        %v1078 = vadd.f32 0.0, %v1077
        %1079 = vmatmul.bf16.gmra.mxu0 %v973
        %v1080 = vpop.f32.mrf.mxu0
        %v1081 = vadd.f32 0.0, %v1080
        %v1082 = vpop.f32.mrf.mxu0
        %v1083 = vadd.f32 0.0, %v1082
        %1084 = vdwg.mxu0
        %v1085 = vadd.f32 %v769, %v1041
        %v1086 = vadd.f32 %v771, %v1043
        %v1087 = vadd.f32 %v774, %v1046
        %v1088 = vadd.f32 %v776, %v1048
        %v1089 = vadd.f32 %v779, %v1051
        %v1090 = vadd.f32 %v781, %v1053
        %v1091 = vadd.f32 %v784, %v1056
        %v1092 = vadd.f32 %v786, %v1058
        %v1093 = vadd.f32 %v789, %v1061
        %v1094 = vadd.f32 %v791, %v1063
        %v1095 = vadd.f32 %v794, %v1066
        %v1096 = vadd.f32 %v796, %v1068
        %v1097 = vadd.f32 %v799, %v1071
        %v1098 = vadd.f32 %v801, %v1073
        %v1099 = vadd.f32 %v804, %v1076
        %v1100 = vadd.f32 %v806, %v1078
        %v1101 = vadd.f32 %v809, %v1081
        %v1102 = vadd.f32 %v811, %v1083
        %v1103 = vld [vmem:[#allocation2 + $0x14] sm:$0x8]
        %v1104 = vld [vmem:[#allocation2 + $0x18] sm:$0xf]
        %v1105 = vld [vmem:[#allocation2 + $0x1c] sm:$0xf]
        %v1106 = vld [vmem:[#allocation2 + $0x20] sm:$0xf]
        %v1107 = vld [vmem:[#allocation2 + $0x24] sm:$0xf]
        %v1108 = vld [vmem:[#allocation2 + $0x28] sm:$0xf]
        %v1109 = vld [vmem:[#allocation2 + $0x2c] sm:$0xf]
        %v1110 = vld [vmem:[#allocation2 + $0x30] sm:$0xf]
        %v1111 = vld [vmem:[#allocation2 + $0x34] sm:$0xf]
        %v1112 = vld [vmem:[#allocation2 + $0x38] sm:$0xf]
        %v1113 = vld [vmem:[#allocation2 + $0x3c] sm:$0xf]
        %v1114 = vld [vmem:[#allocation2 + $0x40] sm:$0xf]
        %v1115 = vld [vmem:[#allocation2 + $0x44] sm:$0xf]
        %v1116 = vld [vmem:[#allocation2 + $0x48] sm:$0xf]
        %v1117 = vld [vmem:[#allocation2 + $0x4c] sm:$0xf]
        %v1118 = vld [vmem:[#allocation2 + $0x50] sm:$0xf]
        %v1119 = vld [vmem:[#allocation2 + $0x54] sm:$0xf]
        %v1120 = vld [vmem:[#allocation2 + $0x58] sm:$0xf]
        %v1121 = vld [vmem:[#allocation2 + $0x5c] sm:$0xf]
        %s1122 = scalar_lea.vmem [#allocation8], 192
        %v1123 = vld [vmem:[%s1122] sm:$0xf]
        %v1124 = vld [vmem:[%s1122 + $0x4] sm:$0xf]
        %v1125 = vld [vmem:[%s1122 + $0x8] sm:$0xf]
        %v1126 = vld [vmem:[%s1122 + $0xc] sm:$0xf]
        %v1127 = vld [vmem:[%s1122 + $0x10] sm:$0xf]
        %v1128 = vld [vmem:[%s1122 + $0x14] sm:$0xf]
        %v1129 = vld [vmem:[%s1122 + $0x18] sm:$0xf]
        %v1130 = vld [vmem:[%s1122 + $0x1c] sm:$0xf]
        %v1131 = vld [vmem:[%s1122 + $0x20] sm:$0xf]
        %v1132 = vld [vmem:[%s1122 + $0x24] sm:$0xf]
        %v1133 = vld [vmem:[%s1122 + $0x28] sm:$0xf]
        %v1134 = vld [vmem:[%s1122 + $0x2c] sm:$0xf]
        %v1135 = vld [vmem:[%s1122 + $0x30] sm:$0xf]
        %v1136 = vld [vmem:[%s1122 + $0x34] sm:$0xf]
        %v1137 = vld [vmem:[%s1122 + $0x38] sm:$0xf]
        %v1138 = vld [vmem:[%s1122 + $0x3c] sm:$0xf]
        %v1158 = vunpack.c.l.b16 %v1103
        %v1159 = vunpack.c.l.b16 %v1104
        %v1160 = vunpack.c.l.b16 %v1105
        %v1161 = vunpack.c.l.b16 %v1106
        %v1162 = vunpack.c.l.b16 %v1107
        %v1163 = vunpack.c.l.b16 %v1108
        %v1164 = vunpack.c.l.b16 %v1109
        %v1165 = vunpack.c.l.b16 %v1110
        %v1166 = vunpack.c.l.b16 %v1111
        %v1167 = vunpack.c.l.b16 %v1112
        %v1168 = vunpack.c.l.b16 %v1113
        %v1169 = vunpack.c.l.b16 %v1114
        %v1170 = vunpack.c.l.b16 %v1115
        %v1171 = vunpack.c.l.b16 %v1116
        %v1172 = vunpack.c.l.b16 %v1117
        %v1173 = vunpack.c.l.b16 %v1118
        %v1174 = vunpack.c.l.b16 %v1119
        %v1175 = vunpack.c.l.b16 %v1120
        %v1176 = vunpack.c.l.b16 %v1121
        %v1177 = vpack.c.b16 %v1159, %v1158
        %v1178 = vpack.c.b16 %v1161, %v1160
        %v1179 = vpack.c.b16 %v1163, %v1162
        %v1180 = vpack.c.b16 %v1165, %v1164
        %v1181 = vpack.c.b16 %v1167, %v1166
        %v1182 = vpack.c.b16 %v1169, %v1168
        %v1183 = vpack.c.b16 %v1171, %v1170
        %v1184 = vpack.c.b16 %v1173, %v1172
        %v1185 = vpack.c.b16 %v1175, %v1174
        %v1186 = vpack.c.b16 %v1176, %v1176
        %v1188 = vshrl.u32 %v1177, 16
        %v1190 = vrot.slane %v1188, 3
        %v1191 = vshll.u32 %v1177, 16
        %v1193 = vrot.slane %v1191, 4
        %v1194 = vor.u32 %v1190, %v1193
        %v1196 = vshrl.u32 %v1178, 16
        %v1198 = vrot.slane %v1196, 3
        %v1199 = vshll.u32 %v1178, 16
        %v1201 = vrot.slane %v1199, 4
        %v1202 = vor.u32 %v1198, %v1201
        %v1203 = vsel %vm612, %v1194, %v1202
        %v1205 = vshrl.u32 %v1179, 16
        %v1207 = vrot.slane %v1205, 3
        %v1208 = vshll.u32 %v1179, 16
        %v1210 = vrot.slane %v1208, 4
        %v1211 = vor.u32 %v1207, %v1210
        %v1212 = vsel %vm612, %v1202, %v1211
        %v1214 = vshrl.u32 %v1180, 16
        %v1216 = vrot.slane %v1214, 3
        %v1217 = vshll.u32 %v1180, 16
        %v1219 = vrot.slane %v1217, 4
        %v1220 = vor.u32 %v1216, %v1219
        %v1221 = vsel %vm612, %v1211, %v1220
        %v1223 = vshrl.u32 %v1181, 16
        %v1225 = vrot.slane %v1223, 3
        %v1226 = vshll.u32 %v1181, 16
        %v1228 = vrot.slane %v1226, 4
        %v1229 = vor.u32 %v1225, %v1228
        %v1230 = vsel %vm612, %v1220, %v1229
        %v1232 = vshrl.u32 %v1182, 16
        %v1234 = vrot.slane %v1232, 3
        %v1235 = vshll.u32 %v1182, 16
        %v1237 = vrot.slane %v1235, 4
        %v1238 = vor.u32 %v1234, %v1237
        %v1239 = vsel %vm612, %v1229, %v1238
        %v1241 = vshrl.u32 %v1183, 16
        %v1243 = vrot.slane %v1241, 3
        %v1244 = vshll.u32 %v1183, 16
        %v1246 = vrot.slane %v1244, 4
        %v1247 = vor.u32 %v1243, %v1246
        %v1248 = vsel %vm612, %v1238, %v1247
        %v1250 = vshrl.u32 %v1184, 16
        %v1252 = vrot.slane %v1250, 3
        %v1253 = vshll.u32 %v1184, 16
        %v1255 = vrot.slane %v1253, 4
        %v1256 = vor.u32 %v1252, %v1255
        %v1257 = vsel %vm612, %v1247, %v1256
        %v1259 = vshrl.u32 %v1185, 16
        %v1261 = vrot.slane %v1259, 3
        %v1262 = vshll.u32 %v1185, 16
        %v1264 = vrot.slane %v1262, 4
        %v1265 = vor.u32 %v1261, %v1264
        %v1266 = vsel %vm612, %v1256, %v1265
        %v1268 = vshrl.u32 %v1186, 16
        %v1270 = vrot.slane %v1268, 3
        %v1271 = vshll.u32 %v1186, 16
        %v1273 = vrot.slane %v1271, 4
        %v1274 = vor.u32 %v1270, %v1273
        %v1275 = vsel %vm612, %v1265, %v1274
        %v1301 = vunpack.c.l.b16 %v1123
        %v1302 = vunpack.c.l.b16 %v1124
        %v1303 = vunpack.c.l.b16 %v1125
        %v1304 = vunpack.c.l.b16 %v1126
        %v1305 = vunpack.c.l.b16 %v1127
        %v1306 = vunpack.c.l.b16 %v1128
        %v1307 = vunpack.c.l.b16 %v1129
        %v1308 = vunpack.c.l.b16 %v1130
        %v1309 = vunpack.c.l.b16 %v1131
        %v1310 = vunpack.c.l.b16 %v1132
        %v1311 = vunpack.c.l.b16 %v1133
        %v1312 = vunpack.c.l.b16 %v1134
        %v1313 = vunpack.c.l.b16 %v1135
        %v1314 = vunpack.c.l.b16 %v1136
        %v1315 = vunpack.c.l.b16 %v1137
        %v1316 = vunpack.c.l.b16 %v1138
        %v1317 = vpack.c.b16 %v1302, %v1301
        %v1318 = vpack.c.b16 %v1304, %v1303
        %v1319 = vpack.c.b16 %v1306, %v1305
        %v1320 = vpack.c.b16 %v1308, %v1307
        %v1321 = vpack.c.b16 %v1310, %v1309
        %v1322 = vpack.c.b16 %v1312, %v1311
        %v1323 = vpack.c.b16 %v1314, %v1313
        %v1324 = vpack.c.b16 %v1316, %v1315
        %1333 = vmatpush.bf16.msra.mxu0 %v1324
        %1334 = vmatpush.bf16.msra.mxu0 %v1323
        %1335 = vmatpush.bf16.msra.mxu0 %v1322
        %1336 = vmatpush.bf16.msra.mxu0 %v1321
        %1337 = vmatpush.bf16.msra.mxu0 %v1320
        %1338 = vmatpush.bf16.msra.mxu0 %v1319
        %1339 = vmatpush.bf16.msra.mxu0 %v1318
        %1340 = vmatpush.bf16.msra.mxu0 %v1317
        %1341 = vmatmul.bf16.gmra.mxu0 %v1203
        %v1342 = vpop.f32.mrf.mxu0
        %v1343 = vadd.f32 0.0, %v1342
        %v1344 = vpop.f32.mrf.mxu0
        %v1345 = vadd.f32 0.0, %v1344
        %1346 = vmatmul.bf16.gmra.mxu0 %v1212
        %v1347 = vpop.f32.mrf.mxu0
        %v1348 = vadd.f32 0.0, %v1347
        %v1349 = vpop.f32.mrf.mxu0
        %v1350 = vadd.f32 0.0, %v1349
        %1351 = vmatmul.bf16.gmra.mxu0 %v1221
        %v1352 = vpop.f32.mrf.mxu0
        %v1353 = vadd.f32 0.0, %v1352
        %v1354 = vpop.f32.mrf.mxu0
        %v1355 = vadd.f32 0.0, %v1354
        %1356 = vmatmul.bf16.gmra.mxu0 %v1230
        %v1357 = vpop.f32.mrf.mxu0
        %v1358 = vadd.f32 0.0, %v1357
        %v1359 = vpop.f32.mrf.mxu0
        %v1360 = vadd.f32 0.0, %v1359
        %1361 = vmatmul.bf16.gmra.mxu0 %v1239
        %v1362 = vpop.f32.mrf.mxu0
        %v1363 = vadd.f32 0.0, %v1362
        %v1364 = vpop.f32.mrf.mxu0
        %v1365 = vadd.f32 0.0, %v1364
        %1366 = vmatmul.bf16.gmra.mxu0 %v1248
        %v1367 = vpop.f32.mrf.mxu0
        %v1368 = vadd.f32 0.0, %v1367
        %v1369 = vpop.f32.mrf.mxu0
        %v1370 = vadd.f32 0.0, %v1369
        %1371 = vmatmul.bf16.gmra.mxu0 %v1257
        %v1372 = vpop.f32.mrf.mxu0
        %v1373 = vadd.f32 0.0, %v1372
        %v1374 = vpop.f32.mrf.mxu0
        %v1375 = vadd.f32 0.0, %v1374
        %1376 = vmatmul.bf16.gmra.mxu0 %v1266
        %v1377 = vpop.f32.mrf.mxu0
        %v1378 = vadd.f32 0.0, %v1377
        %v1379 = vpop.f32.mrf.mxu0
        %v1380 = vadd.f32 0.0, %v1379
        %1381 = vmatmul.bf16.gmra.mxu0 %v1275
        %v1382 = vpop.f32.mrf.mxu0
        %v1383 = vadd.f32 0.0, %v1382
        %v1384 = vpop.f32.mrf.mxu0
        %v1385 = vadd.f32 0.0, %v1384
        %1386 = vdwg.mxu0
        %v1387 = vadd.f32 %v1085, %v1343
        %v1388 = vadd.f32 %v1086, %v1345
        %v1389 = vadd.f32 %v1087, %v1348
        %v1390 = vadd.f32 %v1088, %v1350
        %v1391 = vadd.f32 %v1089, %v1353
        %v1392 = vadd.f32 %v1090, %v1355
        %v1393 = vadd.f32 %v1091, %v1358
        %v1394 = vadd.f32 %v1092, %v1360
        %v1395 = vadd.f32 %v1093, %v1363
        %v1396 = vadd.f32 %v1094, %v1365
        %v1397 = vadd.f32 %v1095, %v1368
        %v1398 = vadd.f32 %v1096, %v1370
        %v1399 = vadd.f32 %v1097, %v1373
        %v1400 = vadd.f32 %v1098, %v1375
        %v1401 = vadd.f32 %v1099, %v1378
        %v1402 = vadd.f32 %v1100, %v1380
        %v1403 = vadd.f32 %v1101, %v1383
        %v1404 = vadd.f32 %v1102, %v1385
        %s1405 = scalar_lea.vmem [#allocation8], 256
        %v1406 = vld [vmem:[%s1405] sm:$0xf]
        %v1407 = vld [vmem:[%s1405 + $0x4] sm:$0xf]
        %v1408 = vld [vmem:[%s1405 + $0x8] sm:$0xf]
        %v1409 = vld [vmem:[%s1405 + $0xc] sm:$0xf]
        %v1410 = vld [vmem:[%s1405 + $0x10] sm:$0xf]
        %v1411 = vld [vmem:[%s1405 + $0x14] sm:$0xf]
        %v1412 = vld [vmem:[%s1405 + $0x18] sm:$0xf]
        %v1413 = vld [vmem:[%s1405 + $0x1c] sm:$0xf]
        %v1414 = vld [vmem:[%s1405 + $0x20] sm:$0xf]
        %v1415 = vld [vmem:[%s1405 + $0x24] sm:$0xf]
        %v1416 = vld [vmem:[%s1405 + $0x28] sm:$0xf]
        %v1417 = vld [vmem:[%s1405 + $0x2c] sm:$0xf]
        %v1418 = vld [vmem:[%s1405 + $0x30] sm:$0xf]
        %v1419 = vld [vmem:[%s1405 + $0x34] sm:$0xf]
        %v1420 = vld [vmem:[%s1405 + $0x38] sm:$0xf]
        %v1421 = vld [vmem:[%s1405 + $0x3c] sm:$0xf]
        %v1422 = vpack.c.b16 %v1160, %v1159
        %v1423 = vpack.c.b16 %v1162, %v1161
        %v1424 = vpack.c.b16 %v1164, %v1163
        %v1425 = vpack.c.b16 %v1166, %v1165
        %v1426 = vpack.c.b16 %v1168, %v1167
        %v1427 = vpack.c.b16 %v1170, %v1169
        %v1428 = vpack.c.b16 %v1172, %v1171
        %v1429 = vpack.c.b16 %v1174, %v1173
        %v1430 = vpack.c.b16 %v1176, %v1175
        %v1456 = vunpack.c.l.b16 %v1406
        %v1457 = vunpack.c.l.b16 %v1407
        %v1458 = vunpack.c.l.b16 %v1408
        %v1459 = vunpack.c.l.b16 %v1409
        %v1460 = vunpack.c.l.b16 %v1410
        %v1461 = vunpack.c.l.b16 %v1411
        %v1462 = vunpack.c.l.b16 %v1412
        %v1463 = vunpack.c.l.b16 %v1413
        %v1464 = vunpack.c.l.b16 %v1414
        %v1465 = vunpack.c.l.b16 %v1415
        %v1466 = vunpack.c.l.b16 %v1416
        %v1467 = vunpack.c.l.b16 %v1417
        %v1468 = vunpack.c.l.b16 %v1418
        %v1469 = vunpack.c.l.b16 %v1419
        %v1470 = vunpack.c.l.b16 %v1420
        %v1471 = vunpack.c.l.b16 %v1421
        %v1472 = vpack.c.b16 %v1457, %v1456
        %v1473 = vpack.c.b16 %v1459, %v1458
        %v1474 = vpack.c.b16 %v1461, %v1460
        %v1475 = vpack.c.b16 %v1463, %v1462
        %v1476 = vpack.c.b16 %v1465, %v1464
        %v1477 = vpack.c.b16 %v1467, %v1466
        %v1478 = vpack.c.b16 %v1469, %v1468
        %v1479 = vpack.c.b16 %v1471, %v1470
        %1488 = vmatpush.bf16.msra.mxu0 %v1479
        %1489 = vmatpush.bf16.msra.mxu0 %v1478
        %1490 = vmatpush.bf16.msra.mxu0 %v1477
        %1491 = vmatpush.bf16.msra.mxu0 %v1476
        %1492 = vmatpush.bf16.msra.mxu0 %v1475
        %1493 = vmatpush.bf16.msra.mxu0 %v1474
        %1494 = vmatpush.bf16.msra.mxu0 %v1473
        %1495 = vmatpush.bf16.msra.mxu0 %v1472
        %1496 = vmatmul.bf16.gmra.mxu0 %v1422
        %v1497 = vpop.f32.mrf.mxu0
        %v1498 = vadd.f32 0.0, %v1497
        %v1499 = vpop.f32.mrf.mxu0
        %v1500 = vadd.f32 0.0, %v1499
        %1501 = vmatmul.bf16.gmra.mxu0 %v1423
        %v1502 = vpop.f32.mrf.mxu0
        %v1503 = vadd.f32 0.0, %v1502
        %v1504 = vpop.f32.mrf.mxu0
        %v1505 = vadd.f32 0.0, %v1504
        %1506 = vmatmul.bf16.gmra.mxu0 %v1424
        %v1507 = vpop.f32.mrf.mxu0
        %v1508 = vadd.f32 0.0, %v1507
        %v1509 = vpop.f32.mrf.mxu0
        %v1510 = vadd.f32 0.0, %v1509
        %1511 = vmatmul.bf16.gmra.mxu0 %v1425
        %v1512 = vpop.f32.mrf.mxu0
        %v1513 = vadd.f32 0.0, %v1512
        %v1514 = vpop.f32.mrf.mxu0
        %v1515 = vadd.f32 0.0, %v1514
        %1516 = vmatmul.bf16.gmra.mxu0 %v1426
        %v1517 = vpop.f32.mrf.mxu0
        %v1518 = vadd.f32 0.0, %v1517
        %v1519 = vpop.f32.mrf.mxu0
        %v1520 = vadd.f32 0.0, %v1519
        %1521 = vmatmul.bf16.gmra.mxu0 %v1427
        %v1522 = vpop.f32.mrf.mxu0
        %v1523 = vadd.f32 0.0, %v1522
        %v1524 = vpop.f32.mrf.mxu0
        %v1525 = vadd.f32 0.0, %v1524
        %1526 = vmatmul.bf16.gmra.mxu0 %v1428
        %v1527 = vpop.f32.mrf.mxu0
        %v1528 = vadd.f32 0.0, %v1527
        %v1529 = vpop.f32.mrf.mxu0
        %v1530 = vadd.f32 0.0, %v1529
        %1531 = vmatmul.bf16.gmra.mxu0 %v1429
        %v1532 = vpop.f32.mrf.mxu0
        %v1533 = vadd.f32 0.0, %v1532
        %v1534 = vpop.f32.mrf.mxu0
        %v1535 = vadd.f32 0.0, %v1534
        %1536 = vmatmul.bf16.gmra.mxu0 %v1430
        %v1537 = vpop.f32.mrf.mxu0
        %v1538 = vadd.f32 0.0, %v1537
        %v1539 = vpop.f32.mrf.mxu0
        %v1540 = vadd.f32 0.0, %v1539
        %1541 = vdwg.mxu0
        %v1542 = vadd.f32 %v1387, %v1498
        %v1543 = vadd.f32 %v1388, %v1500
        %v1544 = vadd.f32 %v1389, %v1503
        %v1545 = vadd.f32 %v1390, %v1505
        %v1546 = vadd.f32 %v1391, %v1508
        %v1547 = vadd.f32 %v1392, %v1510
        %v1548 = vadd.f32 %v1393, %v1513
        %v1549 = vadd.f32 %v1394, %v1515
        %v1550 = vadd.f32 %v1395, %v1518
        %v1551 = vadd.f32 %v1396, %v1520
        %v1552 = vadd.f32 %v1397, %v1523
        %v1553 = vadd.f32 %v1398, %v1525
        %v1554 = vadd.f32 %v1399, %v1528
        %v1555 = vadd.f32 %v1400, %v1530
        %v1556 = vadd.f32 %v1401, %v1533
        %v1557 = vadd.f32 %v1402, %v1535
        %v1558 = vadd.f32 %v1403, %v1538
        %v1559 = vadd.f32 %v1404, %v1540
        %v1560 = vld [vmem:[#allocation2 + $0x18] sm:$0xf]
        %v1561 = vld [vmem:[#allocation2 + $0x1c] sm:$0xf]
        %v1562 = vld [vmem:[#allocation2 + $0x20] sm:$0xf]
        %v1563 = vld [vmem:[#allocation2 + $0x24] sm:$0xf]
        %v1564 = vld [vmem:[#allocation2 + $0x28] sm:$0xf]
        %v1565 = vld [vmem:[#allocation2 + $0x2c] sm:$0xf]
        %v1566 = vld [vmem:[#allocation2 + $0x30] sm:$0xf]
        %v1567 = vld [vmem:[#allocation2 + $0x34] sm:$0xf]
        %v1568 = vld [vmem:[#allocation2 + $0x38] sm:$0xf]
        %v1569 = vld [vmem:[#allocation2 + $0x3c] sm:$0xf]
        %v1570 = vld [vmem:[#allocation2 + $0x40] sm:$0xf]
        %v1571 = vld [vmem:[#allocation2 + $0x44] sm:$0xf]
        %v1572 = vld [vmem:[#allocation2 + $0x48] sm:$0xf]
        %v1573 = vld [vmem:[#allocation2 + $0x4c] sm:$0xf]
        %v1574 = vld [vmem:[#allocation2 + $0x50] sm:$0xf]
        %v1575 = vld [vmem:[#allocation2 + $0x54] sm:$0xf]
        %v1576 = vld [vmem:[#allocation2 + $0x58] sm:$0xf]
        %v1577 = vld [vmem:[#allocation2 + $0x5c] sm:$0xf]
        %v1578 = vld [vmem:[#allocation2 + $0x60] sm:$0x1]
        %s1579 = scalar_lea.vmem [#allocation8], 320
        %v1580 = vld [vmem:[%s1579] sm:$0xf]
        %v1581 = vld [vmem:[%s1579 + $0x4] sm:$0xf]
        %v1582 = vld [vmem:[%s1579 + $0x8] sm:$0xf]
        %v1583 = vld [vmem:[%s1579 + $0xc] sm:$0xf]
        %v1584 = vld [vmem:[%s1579 + $0x10] sm:$0xf]
        %v1585 = vld [vmem:[%s1579 + $0x14] sm:$0xf]
        %v1586 = vld [vmem:[%s1579 + $0x18] sm:$0xf]
        %v1587 = vld [vmem:[%s1579 + $0x1c] sm:$0xf]
        %v1588 = vld [vmem:[%s1579 + $0x20] sm:$0xf]
        %v1589 = vld [vmem:[%s1579 + $0x24] sm:$0xf]
        %v1590 = vld [vmem:[%s1579 + $0x28] sm:$0xf]
        %v1591 = vld [vmem:[%s1579 + $0x2c] sm:$0xf]
        %v1592 = vld [vmem:[%s1579 + $0x30] sm:$0xf]
        %v1593 = vld [vmem:[%s1579 + $0x34] sm:$0xf]
        %v1594 = vld [vmem:[%s1579 + $0x38] sm:$0xf]
        %v1595 = vld [vmem:[%s1579 + $0x3c] sm:$0xf]
        %v1615 = vunpack.c.l.b16 %v1560
        %v1616 = vunpack.c.l.b16 %v1561
        %v1617 = vunpack.c.l.b16 %v1562
        %v1618 = vunpack.c.l.b16 %v1563
        %v1619 = vunpack.c.l.b16 %v1564
        %v1620 = vunpack.c.l.b16 %v1565
        %v1621 = vunpack.c.l.b16 %v1566
        %v1622 = vunpack.c.l.b16 %v1567
        %v1623 = vunpack.c.l.b16 %v1568
        %v1624 = vunpack.c.l.b16 %v1569
        %v1625 = vunpack.c.l.b16 %v1570
        %v1626 = vunpack.c.l.b16 %v1571
        %v1627 = vunpack.c.l.b16 %v1572
        %v1628 = vunpack.c.l.b16 %v1573
        %v1629 = vunpack.c.l.b16 %v1574
        %v1630 = vunpack.c.l.b16 %v1575
        %v1631 = vunpack.c.l.b16 %v1576
        %v1632 = vunpack.c.l.b16 %v1577
        %v1633 = vunpack.c.l.b16 %v1578
        %v1634 = vpack.c.b16 %v1616, %v1615
        %v1635 = vpack.c.b16 %v1618, %v1617
        %v1636 = vpack.c.b16 %v1620, %v1619
        %v1637 = vpack.c.b16 %v1622, %v1621
        %v1638 = vpack.c.b16 %v1624, %v1623
        %v1639 = vpack.c.b16 %v1626, %v1625
        %v1640 = vpack.c.b16 %v1628, %v1627
        %v1641 = vpack.c.b16 %v1630, %v1629
        %v1642 = vpack.c.b16 %v1632, %v1631
        %v1643 = vpack.c.b16 %v1633, %v1633
        %v1645 = vshrl.u32 %v1634, 16
        %v1647 = vshll.u32 %v1634, 16
        %v1649 = vrot.slane %v1647, 1
        %v1650 = vor.u32 %v1645, %v1649
        %v1652 = vshll.u32 %v1635, 16
        %v1654 = vrot.slane %v1652, 1
        %v1655 = vsel %vm897, %v1650, %v1654
        %v1656 = vshrl.u32 %v1635, 16
        %v1658 = vor.u32 %v1656, %v1654
        %v1660 = vshll.u32 %v1636, 16
        %v1662 = vrot.slane %v1660, 1
        %v1663 = vsel %vm897, %v1658, %v1662
        %v1664 = vshrl.u32 %v1636, 16
        %v1666 = vor.u32 %v1664, %v1662
        %v1668 = vshll.u32 %v1637, 16
        %v1670 = vrot.slane %v1668, 1
        %v1671 = vsel %vm897, %v1666, %v1670
        %v1672 = vshrl.u32 %v1637, 16
        %v1674 = vor.u32 %v1672, %v1670
        %v1676 = vshll.u32 %v1638, 16
        %v1678 = vrot.slane %v1676, 1
        %v1679 = vsel %vm897, %v1674, %v1678
        %v1680 = vshrl.u32 %v1638, 16
        %v1682 = vor.u32 %v1680, %v1678
        %v1684 = vshll.u32 %v1639, 16
        %v1686 = vrot.slane %v1684, 1
        %v1687 = vsel %vm897, %v1682, %v1686
        %v1688 = vshrl.u32 %v1639, 16
        %v1690 = vor.u32 %v1688, %v1686
        %v1692 = vshll.u32 %v1640, 16
        %v1694 = vrot.slane %v1692, 1
        %v1695 = vsel %vm897, %v1690, %v1694
        %v1696 = vshrl.u32 %v1640, 16
        %v1698 = vor.u32 %v1696, %v1694
        %v1700 = vshll.u32 %v1641, 16
        %v1702 = vrot.slane %v1700, 1
        %v1703 = vsel %vm897, %v1698, %v1702
        %v1704 = vshrl.u32 %v1641, 16
        %v1706 = vor.u32 %v1704, %v1702
        %v1708 = vshll.u32 %v1642, 16
        %v1710 = vrot.slane %v1708, 1
        %v1711 = vsel %vm897, %v1706, %v1710
        %v1712 = vshrl.u32 %v1642, 16
        %v1714 = vor.u32 %v1712, %v1710
        %v1716 = vshll.u32 %v1643, 16
        %v1718 = vrot.slane %v1716, 1
        %v1719 = vsel %vm897, %v1714, %v1718
        %v1745 = vunpack.c.l.b16 %v1580
        %v1746 = vunpack.c.l.b16 %v1581
        %v1747 = vunpack.c.l.b16 %v1582
        %v1748 = vunpack.c.l.b16 %v1583
        %v1749 = vunpack.c.l.b16 %v1584
        %v1750 = vunpack.c.l.b16 %v1585
        %v1751 = vunpack.c.l.b16 %v1586
        %v1752 = vunpack.c.l.b16 %v1587
        %v1753 = vunpack.c.l.b16 %v1588
        %v1754 = vunpack.c.l.b16 %v1589
        %v1755 = vunpack.c.l.b16 %v1590
        %v1756 = vunpack.c.l.b16 %v1591
        %v1757 = vunpack.c.l.b16 %v1592
        %v1758 = vunpack.c.l.b16 %v1593
        %v1759 = vunpack.c.l.b16 %v1594
        %v1760 = vunpack.c.l.b16 %v1595
        %v1761 = vpack.c.b16 %v1746, %v1745
        %v1762 = vpack.c.b16 %v1748, %v1747
        %v1763 = vpack.c.b16 %v1750, %v1749
        %v1764 = vpack.c.b16 %v1752, %v1751
        %v1765 = vpack.c.b16 %v1754, %v1753
        %v1766 = vpack.c.b16 %v1756, %v1755
        %v1767 = vpack.c.b16 %v1758, %v1757
        %v1768 = vpack.c.b16 %v1760, %v1759
        %1777 = vmatpush.bf16.msra.mxu0 %v1768
        %1778 = vmatpush.bf16.msra.mxu0 %v1767
        %1779 = vmatpush.bf16.msra.mxu0 %v1766
        %1780 = vmatpush.bf16.msra.mxu0 %v1765
        %1781 = vmatpush.bf16.msra.mxu0 %v1764
        %1782 = vmatpush.bf16.msra.mxu0 %v1763
        %1783 = vmatpush.bf16.msra.mxu0 %v1762
        %1784 = vmatpush.bf16.msra.mxu0 %v1761
        %1785 = vmatmul.bf16.gmra.mxu0 %v1655
        %v1786 = vpop.f32.mrf.mxu0
        %v1787 = vadd.f32 0.0, %v1786
        %v1788 = vpop.f32.mrf.mxu0
        %v1789 = vadd.f32 0.0, %v1788
        %1790 = vmatmul.bf16.gmra.mxu0 %v1663
        %v1791 = vpop.f32.mrf.mxu0
        %v1792 = vadd.f32 0.0, %v1791
        %v1793 = vpop.f32.mrf.mxu0
        %v1794 = vadd.f32 0.0, %v1793
        %1795 = vmatmul.bf16.gmra.mxu0 %v1671
        %v1796 = vpop.f32.mrf.mxu0
        %v1797 = vadd.f32 0.0, %v1796
        %v1798 = vpop.f32.mrf.mxu0
        %v1799 = vadd.f32 0.0, %v1798
        %1800 = vmatmul.bf16.gmra.mxu0 %v1679
        %v1801 = vpop.f32.mrf.mxu0
        %v1802 = vadd.f32 0.0, %v1801
        %v1803 = vpop.f32.mrf.mxu0
        %v1804 = vadd.f32 0.0, %v1803
        %1805 = vmatmul.bf16.gmra.mxu0 %v1687
        %v1806 = vpop.f32.mrf.mxu0
        %v1807 = vadd.f32 0.0, %v1806
        %v1808 = vpop.f32.mrf.mxu0
        %v1809 = vadd.f32 0.0, %v1808
        %1810 = vmatmul.bf16.gmra.mxu0 %v1695
        %v1811 = vpop.f32.mrf.mxu0
        %v1812 = vadd.f32 0.0, %v1811
        %v1813 = vpop.f32.mrf.mxu0
        %v1814 = vadd.f32 0.0, %v1813
        %1815 = vmatmul.bf16.gmra.mxu0 %v1703
        %v1816 = vpop.f32.mrf.mxu0
        %v1817 = vadd.f32 0.0, %v1816
        %v1818 = vpop.f32.mrf.mxu0
        %v1819 = vadd.f32 0.0, %v1818
        %1820 = vmatmul.bf16.gmra.mxu0 %v1711
        %v1821 = vpop.f32.mrf.mxu0
        %v1822 = vadd.f32 0.0, %v1821
        %v1823 = vpop.f32.mrf.mxu0
        %v1824 = vadd.f32 0.0, %v1823
        %1825 = vmatmul.bf16.gmra.mxu0 %v1719
        %v1826 = vpop.f32.mrf.mxu0
        %v1827 = vadd.f32 0.0, %v1826
        %v1828 = vpop.f32.mrf.mxu0
        %v1829 = vadd.f32 0.0, %v1828
        %1830 = vdwg.mxu0
        %v1831 = vadd.f32 %v1542, %v1787
        %v1832 = vadd.f32 %v1543, %v1789
        %v1833 = vadd.f32 %v1544, %v1792
        %v1834 = vadd.f32 %v1545, %v1794
        %v1835 = vadd.f32 %v1546, %v1797
        %v1836 = vadd.f32 %v1547, %v1799
        %v1837 = vadd.f32 %v1548, %v1802
        %v1838 = vadd.f32 %v1549, %v1804
        %v1839 = vadd.f32 %v1550, %v1807
        %v1840 = vadd.f32 %v1551, %v1809
        %v1841 = vadd.f32 %v1552, %v1812
        %v1842 = vadd.f32 %v1553, %v1814
        %v1843 = vadd.f32 %v1554, %v1817
        %v1844 = vadd.f32 %v1555, %v1819
        %v1845 = vadd.f32 %v1556, %v1822
        %v1846 = vadd.f32 %v1557, %v1824
        %v1847 = vadd.f32 %v1558, %v1827
        %v1848 = vadd.f32 %v1559, %v1829
        %v1849 = vld [vmem:[#allocation2 + $0x20] sm:$0x8]
        %v1850 = vld [vmem:[#allocation2 + $0x24] sm:$0xf]
        %v1851 = vld [vmem:[#allocation2 + $0x28] sm:$0xf]
        %v1852 = vld [vmem:[#allocation2 + $0x2c] sm:$0xf]
        %v1853 = vld [vmem:[#allocation2 + $0x30] sm:$0xf]
        %v1854 = vld [vmem:[#allocation2 + $0x34] sm:$0xf]
        %v1855 = vld [vmem:[#allocation2 + $0x38] sm:$0xf]
        %v1856 = vld [vmem:[#allocation2 + $0x3c] sm:$0xf]
        %v1857 = vld [vmem:[#allocation2 + $0x40] sm:$0xf]
        %v1858 = vld [vmem:[#allocation2 + $0x44] sm:$0xf]
        %v1859 = vld [vmem:[#allocation2 + $0x48] sm:$0xf]
        %v1860 = vld [vmem:[#allocation2 + $0x4c] sm:$0xf]
        %v1861 = vld [vmem:[#allocation2 + $0x50] sm:$0xf]
        %v1862 = vld [vmem:[#allocation2 + $0x54] sm:$0xf]
        %v1863 = vld [vmem:[#allocation2 + $0x58] sm:$0xf]
        %v1864 = vld [vmem:[#allocation2 + $0x5c] sm:$0xf]
        %v1865 = vld [vmem:[#allocation2 + $0x60] sm:$0xf]
        %v1866 = vld [vmem:[#allocation2 + $0x64] sm:$0xf]
        %v1867 = vld [vmem:[#allocation2 + $0x68] sm:$0xf]
        %s1868 = scalar_lea.vmem [#allocation8], 384
        %v1869 = vld [vmem:[%s1868] sm:$0xf]
        %v1870 = vld [vmem:[%s1868 + $0x4] sm:$0xf]
        %v1871 = vld [vmem:[%s1868 + $0x8] sm:$0xf]
        %v1872 = vld [vmem:[%s1868 + $0xc] sm:$0xf]
        %v1873 = vld [vmem:[%s1868 + $0x10] sm:$0xf]
        %v1874 = vld [vmem:[%s1868 + $0x14] sm:$0xf]
        %v1875 = vld [vmem:[%s1868 + $0x18] sm:$0xf]
        %v1876 = vld [vmem:[%s1868 + $0x1c] sm:$0xf]
        %v1877 = vld [vmem:[%s1868 + $0x20] sm:$0xf]
        %v1878 = vld [vmem:[%s1868 + $0x24] sm:$0xf]
        %v1879 = vld [vmem:[%s1868 + $0x28] sm:$0xf]
        %v1880 = vld [vmem:[%s1868 + $0x2c] sm:$0xf]
        %v1881 = vld [vmem:[%s1868 + $0x30] sm:$0xf]
        %v1882 = vld [vmem:[%s1868 + $0x34] sm:$0xf]
        %v1883 = vld [vmem:[%s1868 + $0x38] sm:$0xf]
        %v1884 = vld [vmem:[%s1868 + $0x3c] sm:$0xf]
        %v1904 = vunpack.c.l.b16 %v1849
        %v1905 = vunpack.c.l.b16 %v1850
        %v1906 = vunpack.c.l.b16 %v1851
        %v1907 = vunpack.c.l.b16 %v1852
        %v1908 = vunpack.c.l.b16 %v1853
        %v1909 = vunpack.c.l.b16 %v1854
        %v1910 = vunpack.c.l.b16 %v1855
        %v1911 = vunpack.c.l.b16 %v1856
        %v1912 = vunpack.c.l.b16 %v1857
        %v1913 = vunpack.c.l.b16 %v1858
        %v1914 = vunpack.c.l.b16 %v1859
        %v1915 = vunpack.c.l.b16 %v1860
        %v1916 = vunpack.c.l.b16 %v1861
        %v1917 = vunpack.c.l.b16 %v1862
        %v1918 = vunpack.c.l.b16 %v1863
        %v1919 = vunpack.c.l.b16 %v1864
        %v1920 = vunpack.c.l.b16 %v1865
        %v1921 = vunpack.c.l.b16 %v1866
        %v1922 = vunpack.c.l.b16 %v1867
        %v1923 = vpack.c.b16 %v1905, %v1904
        %v1924 = vpack.c.b16 %v1907, %v1906
        %v1925 = vpack.c.b16 %v1909, %v1908
        %v1926 = vpack.c.b16 %v1911, %v1910
        %v1927 = vpack.c.b16 %v1913, %v1912
        %v1928 = vpack.c.b16 %v1915, %v1914
        %v1929 = vpack.c.b16 %v1917, %v1916
        %v1930 = vpack.c.b16 %v1919, %v1918
        %v1931 = vpack.c.b16 %v1921, %v1920
        %v1932 = vpack.c.b16 %v1922, %v1922
        %v1934 = vshrl.u32 %v1923, 16
        %v1936 = vrot.slane %v1934, 3
        %v1937 = vshll.u32 %v1923, 16
        %v1939 = vrot.slane %v1937, 4
        %v1940 = vor.u32 %v1936, %v1939
        %v1942 = vshrl.u32 %v1924, 16
        %v1944 = vrot.slane %v1942, 3
        %v1945 = vshll.u32 %v1924, 16
        %v1947 = vrot.slane %v1945, 4
        %v1948 = vor.u32 %v1944, %v1947
        %v1949 = vsel %vm612, %v1940, %v1948
        %v1951 = vshrl.u32 %v1925, 16
        %v1953 = vrot.slane %v1951, 3
        %v1954 = vshll.u32 %v1925, 16
        %v1956 = vrot.slane %v1954, 4
        %v1957 = vor.u32 %v1953, %v1956
        %v1958 = vsel %vm612, %v1948, %v1957
        %v1960 = vshrl.u32 %v1926, 16
        %v1962 = vrot.slane %v1960, 3
        %v1963 = vshll.u32 %v1926, 16
        %v1965 = vrot.slane %v1963, 4
        %v1966 = vor.u32 %v1962, %v1965
        %v1967 = vsel %vm612, %v1957, %v1966
        %v1969 = vshrl.u32 %v1927, 16
        %v1971 = vrot.slane %v1969, 3
        %v1972 = vshll.u32 %v1927, 16
        %v1974 = vrot.slane %v1972, 4
        %v1975 = vor.u32 %v1971, %v1974
        %v1976 = vsel %vm612, %v1966, %v1975
        %v1978 = vshrl.u32 %v1928, 16
        %v1980 = vrot.slane %v1978, 3
        %v1981 = vshll.u32 %v1928, 16
        %v1983 = vrot.slane %v1981, 4
        %v1984 = vor.u32 %v1980, %v1983
        %v1985 = vsel %vm612, %v1975, %v1984
        %v1987 = vshrl.u32 %v1929, 16
        %v1989 = vrot.slane %v1987, 3
        %v1990 = vshll.u32 %v1929, 16
        %v1992 = vrot.slane %v1990, 4
        %v1993 = vor.u32 %v1989, %v1992
        %v1994 = vsel %vm612, %v1984, %v1993
        %v1996 = vshrl.u32 %v1930, 16
        %v1998 = vrot.slane %v1996, 3
        %v1999 = vshll.u32 %v1930, 16
        %v2001 = vrot.slane %v1999, 4
        %v2002 = vor.u32 %v1998, %v2001
        %v2003 = vsel %vm612, %v1993, %v2002
        %v2005 = vshrl.u32 %v1931, 16
        %v2007 = vrot.slane %v2005, 3
        %v2008 = vshll.u32 %v1931, 16
        %v2010 = vrot.slane %v2008, 4
        %v2011 = vor.u32 %v2007, %v2010
        %v2012 = vsel %vm612, %v2002, %v2011
        %v2014 = vshrl.u32 %v1932, 16
        %v2016 = vrot.slane %v2014, 3
        %v2017 = vshll.u32 %v1932, 16
        %v2019 = vrot.slane %v2017, 4
        %v2020 = vor.u32 %v2016, %v2019
        %v2021 = vsel %vm612, %v2011, %v2020
        %v2047 = vunpack.c.l.b16 %v1869
        %v2048 = vunpack.c.l.b16 %v1870
        %v2049 = vunpack.c.l.b16 %v1871
        %v2050 = vunpack.c.l.b16 %v1872
        %v2051 = vunpack.c.l.b16 %v1873
        %v2052 = vunpack.c.l.b16 %v1874
        %v2053 = vunpack.c.l.b16 %v1875
        %v2054 = vunpack.c.l.b16 %v1876
        %v2055 = vunpack.c.l.b16 %v1877
        %v2056 = vunpack.c.l.b16 %v1878
        %v2057 = vunpack.c.l.b16 %v1879
        %v2058 = vunpack.c.l.b16 %v1880
        %v2059 = vunpack.c.l.b16 %v1881
        %v2060 = vunpack.c.l.b16 %v1882
        %v2061 = vunpack.c.l.b16 %v1883
        %v2062 = vunpack.c.l.b16 %v1884
        %v2063 = vpack.c.b16 %v2048, %v2047
        %v2064 = vpack.c.b16 %v2050, %v2049
        %v2065 = vpack.c.b16 %v2052, %v2051
        %v2066 = vpack.c.b16 %v2054, %v2053
        %v2067 = vpack.c.b16 %v2056, %v2055
        %v2068 = vpack.c.b16 %v2058, %v2057
        %v2069 = vpack.c.b16 %v2060, %v2059
        %v2070 = vpack.c.b16 %v2062, %v2061
        %2079 = vmatpush.bf16.msra.mxu0 %v2070
        %2080 = vmatpush.bf16.msra.mxu0 %v2069
        %2081 = vmatpush.bf16.msra.mxu0 %v2068
        %2082 = vmatpush.bf16.msra.mxu0 %v2067
        %2083 = vmatpush.bf16.msra.mxu0 %v2066
        %2084 = vmatpush.bf16.msra.mxu0 %v2065
        %2085 = vmatpush.bf16.msra.mxu0 %v2064
        %2086 = vmatpush.bf16.msra.mxu0 %v2063
        %2087 = vmatmul.bf16.gmra.mxu0 %v1949
        %v2088 = vpop.f32.mrf.mxu0
        %v2089 = vadd.f32 0.0, %v2088
        %v2090 = vpop.f32.mrf.mxu0
        %v2091 = vadd.f32 0.0, %v2090
        %2092 = vmatmul.bf16.gmra.mxu0 %v1958
        %v2093 = vpop.f32.mrf.mxu0
        %v2094 = vadd.f32 0.0, %v2093
        %v2095 = vpop.f32.mrf.mxu0
        %v2096 = vadd.f32 0.0, %v2095
        %2097 = vmatmul.bf16.gmra.mxu0 %v1967
        %v2098 = vpop.f32.mrf.mxu0
        %v2099 = vadd.f32 0.0, %v2098
        %v2100 = vpop.f32.mrf.mxu0
        %v2101 = vadd.f32 0.0, %v2100
        %2102 = vmatmul.bf16.gmra.mxu0 %v1976
        %v2103 = vpop.f32.mrf.mxu0
        %v2104 = vadd.f32 0.0, %v2103
        %v2105 = vpop.f32.mrf.mxu0
        %v2106 = vadd.f32 0.0, %v2105
        %2107 = vmatmul.bf16.gmra.mxu0 %v1985
        %v2108 = vpop.f32.mrf.mxu0
        %v2109 = vadd.f32 0.0, %v2108
        %v2110 = vpop.f32.mrf.mxu0
        %v2111 = vadd.f32 0.0, %v2110
        %2112 = vmatmul.bf16.gmra.mxu0 %v1994
        %v2113 = vpop.f32.mrf.mxu0
        %v2114 = vadd.f32 0.0, %v2113
        %v2115 = vpop.f32.mrf.mxu0
        %v2116 = vadd.f32 0.0, %v2115
        %2117 = vmatmul.bf16.gmra.mxu0 %v2003
        %v2118 = vpop.f32.mrf.mxu0
        %v2119 = vadd.f32 0.0, %v2118
        %v2120 = vpop.f32.mrf.mxu0
        %v2121 = vadd.f32 0.0, %v2120
        %2122 = vmatmul.bf16.gmra.mxu0 %v2012
        %v2123 = vpop.f32.mrf.mxu0
        %v2124 = vadd.f32 0.0, %v2123
        %v2125 = vpop.f32.mrf.mxu0
        %v2126 = vadd.f32 0.0, %v2125
        %2127 = vmatmul.bf16.gmra.mxu0 %v2021
        %v2128 = vpop.f32.mrf.mxu0
        %v2129 = vadd.f32 0.0, %v2128
        %v2130 = vpop.f32.mrf.mxu0
        %v2131 = vadd.f32 0.0, %v2130
        %2132 = vdwg.mxu0
        %v2133 = vadd.f32 %v1831, %v2089
        %v2134 = vadd.f32 %v1832, %v2091
        %v2135 = vadd.f32 %v1833, %v2094
        %v2136 = vadd.f32 %v1834, %v2096
        %v2137 = vadd.f32 %v1835, %v2099
        %v2138 = vadd.f32 %v1836, %v2101
        %v2139 = vadd.f32 %v1837, %v2104
        %v2140 = vadd.f32 %v1838, %v2106
        %v2141 = vadd.f32 %v1839, %v2109
        %v2142 = vadd.f32 %v1840, %v2111
        %v2143 = vadd.f32 %v1841, %v2114
        %v2144 = vadd.f32 %v1842, %v2116
        %v2145 = vadd.f32 %v1843, %v2119
        %v2146 = vadd.f32 %v1844, %v2121
        %v2147 = vadd.f32 %v1845, %v2124
        %v2148 = vadd.f32 %v1846, %v2126
        %v2149 = vadd.f32 %v1847, %v2129
        %v2150 = vadd.f32 %v1848, %v2131
        %s2151 = scalar_lea.vmem [#allocation8], 448
        %v2152 = vld [vmem:[%s2151] sm:$0xf]
        %v2153 = vld [vmem:[%s2151 + $0x4] sm:$0xf]
        %v2154 = vld [vmem:[%s2151 + $0x8] sm:$0xf]
        %v2155 = vld [vmem:[%s2151 + $0xc] sm:$0xf]
        %v2156 = vld [vmem:[%s2151 + $0x10] sm:$0xf]
        %v2157 = vld [vmem:[%s2151 + $0x14] sm:$0xf]
        %v2158 = vld [vmem:[%s2151 + $0x18] sm:$0xf]
        %v2159 = vld [vmem:[%s2151 + $0x1c] sm:$0xf]
        %v2160 = vld [vmem:[%s2151 + $0x20] sm:$0xf]
        %v2161 = vld [vmem:[%s2151 + $0x24] sm:$0xf]
        %v2162 = vld [vmem:[%s2151 + $0x28] sm:$0xf]
        %v2163 = vld [vmem:[%s2151 + $0x2c] sm:$0xf]
        %v2164 = vld [vmem:[%s2151 + $0x30] sm:$0xf]
        %v2165 = vld [vmem:[%s2151 + $0x34] sm:$0xf]
        %v2166 = vld [vmem:[%s2151 + $0x38] sm:$0xf]
        %v2167 = vld [vmem:[%s2151 + $0x3c] sm:$0xf]
        %v2168 = vpack.c.b16 %v1906, %v1905
        %v2169 = vpack.c.b16 %v1908, %v1907
        %v2170 = vpack.c.b16 %v1910, %v1909
        %v2171 = vpack.c.b16 %v1912, %v1911
        %v2172 = vpack.c.b16 %v1914, %v1913
        %v2173 = vpack.c.b16 %v1916, %v1915
        %v2174 = vpack.c.b16 %v1918, %v1917
        %v2175 = vpack.c.b16 %v1920, %v1919
        %v2176 = vpack.c.b16 %v1922, %v1921
        %v2202 = vunpack.c.l.b16 %v2152
        %v2203 = vunpack.c.l.b16 %v2153
        %v2204 = vunpack.c.l.b16 %v2154
        %v2205 = vunpack.c.l.b16 %v2155
        %v2206 = vunpack.c.l.b16 %v2156
        %v2207 = vunpack.c.l.b16 %v2157
        %v2208 = vunpack.c.l.b16 %v2158
        %v2209 = vunpack.c.l.b16 %v2159
        %v2210 = vunpack.c.l.b16 %v2160
        %v2211 = vunpack.c.l.b16 %v2161
        %v2212 = vunpack.c.l.b16 %v2162
        %v2213 = vunpack.c.l.b16 %v2163
        %v2214 = vunpack.c.l.b16 %v2164
        %v2215 = vunpack.c.l.b16 %v2165
        %v2216 = vunpack.c.l.b16 %v2166
        %v2217 = vunpack.c.l.b16 %v2167
        %v2218 = vpack.c.b16 %v2203, %v2202
        %v2219 = vpack.c.b16 %v2205, %v2204
        %v2220 = vpack.c.b16 %v2207, %v2206
        %v2221 = vpack.c.b16 %v2209, %v2208
        %v2222 = vpack.c.b16 %v2211, %v2210
        %v2223 = vpack.c.b16 %v2213, %v2212
        %v2224 = vpack.c.b16 %v2215, %v2214
        %v2225 = vpack.c.b16 %v2217, %v2216
        %2234 = vmatpush.bf16.msra.mxu0 %v2225
        %2235 = vmatpush.bf16.msra.mxu0 %v2224
        %2236 = vmatpush.bf16.msra.mxu0 %v2223
        %2237 = vmatpush.bf16.msra.mxu0 %v2222
        %2238 = vmatpush.bf16.msra.mxu0 %v2221
        %2239 = vmatpush.bf16.msra.mxu0 %v2220
        %2240 = vmatpush.bf16.msra.mxu0 %v2219
        %2241 = vmatpush.bf16.msra.mxu0 %v2218
        %2242 = vmatmul.bf16.gmra.mxu0 %v2168
        %v2243 = vpop.f32.mrf.mxu0
        %v2244 = vadd.f32 0.0, %v2243
        %v2245 = vpop.f32.mrf.mxu0
        %v2246 = vadd.f32 0.0, %v2245
        %2247 = vmatmul.bf16.gmra.mxu0 %v2169
        %v2248 = vpop.f32.mrf.mxu0
        %v2249 = vadd.f32 0.0, %v2248
        %v2250 = vpop.f32.mrf.mxu0
        %v2251 = vadd.f32 0.0, %v2250
        %2252 = vmatmul.bf16.gmra.mxu0 %v2170
        %v2253 = vpop.f32.mrf.mxu0
        %v2254 = vadd.f32 0.0, %v2253
        %v2255 = vpop.f32.mrf.mxu0
        %v2256 = vadd.f32 0.0, %v2255
        %2257 = vmatmul.bf16.gmra.mxu0 %v2171
        %v2258 = vpop.f32.mrf.mxu0
        %v2259 = vadd.f32 0.0, %v2258
        %v2260 = vpop.f32.mrf.mxu0
        %v2261 = vadd.f32 0.0, %v2260
        %2262 = vmatmul.bf16.gmra.mxu0 %v2172
        %v2263 = vpop.f32.mrf.mxu0
        %v2264 = vadd.f32 0.0, %v2263
        %v2265 = vpop.f32.mrf.mxu0
        %v2266 = vadd.f32 0.0, %v2265
        %2267 = vmatmul.bf16.gmra.mxu0 %v2173
        %v2268 = vpop.f32.mrf.mxu0
        %v2269 = vadd.f32 0.0, %v2268
        %v2270 = vpop.f32.mrf.mxu0
        %v2271 = vadd.f32 0.0, %v2270
        %2272 = vmatmul.bf16.gmra.mxu0 %v2174
        %v2273 = vpop.f32.mrf.mxu0
        %v2274 = vadd.f32 0.0, %v2273
        %v2275 = vpop.f32.mrf.mxu0
        %v2276 = vadd.f32 0.0, %v2275
        %2277 = vmatmul.bf16.gmra.mxu0 %v2175
        %v2278 = vpop.f32.mrf.mxu0
        %v2279 = vadd.f32 0.0, %v2278
        %v2280 = vpop.f32.mrf.mxu0
        %v2281 = vadd.f32 0.0, %v2280
        %2282 = vmatmul.bf16.gmra.mxu0 %v2176
        %v2283 = vpop.f32.mrf.mxu0
        %v2284 = vadd.f32 0.0, %v2283
        %v2285 = vpop.f32.mrf.mxu0
        %v2286 = vadd.f32 0.0, %v2285
        %2287 = vdwg.mxu0
        %v2288 = vadd.f32 %v2133, %v2244
        %v2289 = vadd.f32 %v2134, %v2246
        %v2290 = vadd.f32 %v2135, %v2249
        %v2291 = vadd.f32 %v2136, %v2251
        %v2292 = vadd.f32 %v2137, %v2254
        %v2293 = vadd.f32 %v2138, %v2256
        %v2294 = vadd.f32 %v2139, %v2259
        %v2295 = vadd.f32 %v2140, %v2261
        %v2296 = vadd.f32 %v2141, %v2264
        %v2297 = vadd.f32 %v2142, %v2266
        %v2298 = vadd.f32 %v2143, %v2269
        %v2299 = vadd.f32 %v2144, %v2271
        %v2300 = vadd.f32 %v2145, %v2274
        %v2301 = vadd.f32 %v2146, %v2276
        %v2302 = vadd.f32 %v2147, %v2279
        %v2303 = vadd.f32 %v2148, %v2281
        %v2304 = vadd.f32 %v2149, %v2284
        %v2305 = vadd.f32 %v2150, %v2286
        %v2306 = vld [vmem:[#allocation2 + $0x24] sm:$0xf]
        %v2307 = vld [vmem:[#allocation2 + $0x28] sm:$0xf]
        %v2308 = vld [vmem:[#allocation2 + $0x2c] sm:$0xf]
        %v2309 = vld [vmem:[#allocation2 + $0x30] sm:$0xf]
        %v2310 = vld [vmem:[#allocation2 + $0x34] sm:$0xf]
        %v2311 = vld [vmem:[#allocation2 + $0x38] sm:$0xf]
        %v2312 = vld [vmem:[#allocation2 + $0x3c] sm:$0xf]
        %v2313 = vld [vmem:[#allocation2 + $0x40] sm:$0xf]
        %v2314 = vld [vmem:[#allocation2 + $0x44] sm:$0xf]
        %v2315 = vld [vmem:[#allocation2 + $0x48] sm:$0xf]
        %v2316 = vld [vmem:[#allocation2 + $0x4c] sm:$0xf]
        %v2317 = vld [vmem:[#allocation2 + $0x50] sm:$0xf]
        %v2318 = vld [vmem:[#allocation2 + $0x54] sm:$0xf]
        %v2319 = vld [vmem:[#allocation2 + $0x58] sm:$0xf]
        %v2320 = vld [vmem:[#allocation2 + $0x5c] sm:$0xf]
        %v2321 = vld [vmem:[#allocation2 + $0x60] sm:$0xf]
        %v2322 = vld [vmem:[#allocation2 + $0x64] sm:$0xf]
        %v2323 = vld [vmem:[#allocation2 + $0x68] sm:$0xf]
        %v2324 = vld [vmem:[#allocation2 + $0x6c] sm:$0x1]
        %s2325 = scalar_lea.vmem [#allocation8], 512
        %v2326 = vld [vmem:[%s2325] sm:$0xf]
        %v2327 = vld [vmem:[%s2325 + $0x4] sm:$0xf]
        %v2328 = vld [vmem:[%s2325 + $0x8] sm:$0xf]
        %v2329 = vld [vmem:[%s2325 + $0xc] sm:$0xf]
        %v2330 = vld [vmem:[%s2325 + $0x10] sm:$0xf]
        %v2331 = vld [vmem:[%s2325 + $0x14] sm:$0xf]
        %v2332 = vld [vmem:[%s2325 + $0x18] sm:$0xf]
        %v2333 = vld [vmem:[%s2325 + $0x1c] sm:$0xf]
        %v2334 = vld [vmem:[%s2325 + $0x20] sm:$0xf]
        %v2335 = vld [vmem:[%s2325 + $0x24] sm:$0xf]
        %v2336 = vld [vmem:[%s2325 + $0x28] sm:$0xf]
        %v2337 = vld [vmem:[%s2325 + $0x2c] sm:$0xf]
        %v2338 = vld [vmem:[%s2325 + $0x30] sm:$0xf]
        %v2339 = vld [vmem:[%s2325 + $0x34] sm:$0xf]
        %v2340 = vld [vmem:[%s2325 + $0x38] sm:$0xf]
        %v2341 = vld [vmem:[%s2325 + $0x3c] sm:$0xf]
        %v2361 = vunpack.c.l.b16 %v2306
        %v2362 = vunpack.c.l.b16 %v2307
        %v2363 = vunpack.c.l.b16 %v2308
        %v2364 = vunpack.c.l.b16 %v2309
        %v2365 = vunpack.c.l.b16 %v2310
        %v2366 = vunpack.c.l.b16 %v2311
        %v2367 = vunpack.c.l.b16 %v2312
        %v2368 = vunpack.c.l.b16 %v2313
        %v2369 = vunpack.c.l.b16 %v2314
        %v2370 = vunpack.c.l.b16 %v2315
        %v2371 = vunpack.c.l.b16 %v2316
        %v2372 = vunpack.c.l.b16 %v2317
        %v2373 = vunpack.c.l.b16 %v2318
        %v2374 = vunpack.c.l.b16 %v2319
        %v2375 = vunpack.c.l.b16 %v2320
        %v2376 = vunpack.c.l.b16 %v2321
        %v2377 = vunpack.c.l.b16 %v2322
        %v2378 = vunpack.c.l.b16 %v2323
        %v2379 = vunpack.c.l.b16 %v2324
        %v2380 = vpack.c.b16 %v2362, %v2361
        %v2381 = vpack.c.b16 %v2364, %v2363
        %v2382 = vpack.c.b16 %v2366, %v2365
        %v2383 = vpack.c.b16 %v2368, %v2367
        %v2384 = vpack.c.b16 %v2370, %v2369
        %v2385 = vpack.c.b16 %v2372, %v2371
        %v2386 = vpack.c.b16 %v2374, %v2373
        %v2387 = vpack.c.b16 %v2376, %v2375
        %v2388 = vpack.c.b16 %v2378, %v2377
        %v2389 = vpack.c.b16 %v2379, %v2379
        %v2391 = vshrl.u32 %v2380, 16
        %v2393 = vshll.u32 %v2380, 16
        %v2395 = vrot.slane %v2393, 1
        %v2396 = vor.u32 %v2391, %v2395
        %v2398 = vshll.u32 %v2381, 16
        %v2400 = vrot.slane %v2398, 1
        %v2401 = vsel %vm897, %v2396, %v2400
        %v2402 = vshrl.u32 %v2381, 16
        %v2404 = vor.u32 %v2402, %v2400
        %v2406 = vshll.u32 %v2382, 16
        %v2408 = vrot.slane %v2406, 1
        %v2409 = vsel %vm897, %v2404, %v2408
        %v2410 = vshrl.u32 %v2382, 16
        %v2412 = vor.u32 %v2410, %v2408
        %v2414 = vshll.u32 %v2383, 16
        %v2416 = vrot.slane %v2414, 1
        %v2417 = vsel %vm897, %v2412, %v2416
        %v2418 = vshrl.u32 %v2383, 16
        %v2420 = vor.u32 %v2418, %v2416
        %v2422 = vshll.u32 %v2384, 16
        %v2424 = vrot.slane %v2422, 1
        %v2425 = vsel %vm897, %v2420, %v2424
        %v2426 = vshrl.u32 %v2384, 16
        %v2428 = vor.u32 %v2426, %v2424
        %v2430 = vshll.u32 %v2385, 16
        %v2432 = vrot.slane %v2430, 1
        %v2433 = vsel %vm897, %v2428, %v2432
        %v2434 = vshrl.u32 %v2385, 16
        %v2436 = vor.u32 %v2434, %v2432
        %v2438 = vshll.u32 %v2386, 16
        %v2440 = vrot.slane %v2438, 1
        %v2441 = vsel %vm897, %v2436, %v2440
        %v2442 = vshrl.u32 %v2386, 16
        %v2444 = vor.u32 %v2442, %v2440
        %v2446 = vshll.u32 %v2387, 16
        %v2448 = vrot.slane %v2446, 1
        %v2449 = vsel %vm897, %v2444, %v2448
        %v2450 = vshrl.u32 %v2387, 16
        %v2452 = vor.u32 %v2450, %v2448
        %v2454 = vshll.u32 %v2388, 16
        %v2456 = vrot.slane %v2454, 1
        %v2457 = vsel %vm897, %v2452, %v2456
        %v2458 = vshrl.u32 %v2388, 16
        %v2460 = vor.u32 %v2458, %v2456
        %v2462 = vshll.u32 %v2389, 16
        %v2464 = vrot.slane %v2462, 1
        %v2465 = vsel %vm897, %v2460, %v2464
        %v2491 = vunpack.c.l.b16 %v2326
        %v2492 = vunpack.c.l.b16 %v2327
        %v2493 = vunpack.c.l.b16 %v2328
        %v2494 = vunpack.c.l.b16 %v2329
        %v2495 = vunpack.c.l.b16 %v2330
        %v2496 = vunpack.c.l.b16 %v2331
        %v2497 = vunpack.c.l.b16 %v2332
        %v2498 = vunpack.c.l.b16 %v2333
        %v2499 = vunpack.c.l.b16 %v2334
        %v2500 = vunpack.c.l.b16 %v2335
        %v2501 = vunpack.c.l.b16 %v2336
        %v2502 = vunpack.c.l.b16 %v2337
        %v2503 = vunpack.c.l.b16 %v2338
        %v2504 = vunpack.c.l.b16 %v2339
        %v2505 = vunpack.c.l.b16 %v2340
        %v2506 = vunpack.c.l.b16 %v2341
        %v2507 = vpack.c.b16 %v2492, %v2491
        %v2508 = vpack.c.b16 %v2494, %v2493
        %v2509 = vpack.c.b16 %v2496, %v2495
        %v2510 = vpack.c.b16 %v2498, %v2497
        %v2511 = vpack.c.b16 %v2500, %v2499
        %v2512 = vpack.c.b16 %v2502, %v2501
        %v2513 = vpack.c.b16 %v2504, %v2503
        %v2514 = vpack.c.b16 %v2506, %v2505
        %2523 = vmatpush.bf16.msra.mxu0 %v2514
        %2524 = vmatpush.bf16.msra.mxu0 %v2513
        %2525 = vmatpush.bf16.msra.mxu0 %v2512
        %2526 = vmatpush.bf16.msra.mxu0 %v2511
        %2527 = vmatpush.bf16.msra.mxu0 %v2510
        %2528 = vmatpush.bf16.msra.mxu0 %v2509
        %2529 = vmatpush.bf16.msra.mxu0 %v2508
        %2530 = vmatpush.bf16.msra.mxu0 %v2507
        %2531 = vmatmul.bf16.gmra.mxu0 %v2401
        %v2532 = vpop.f32.mrf.mxu0
        %v2533 = vadd.f32 0.0, %v2532
        %v2534 = vpop.f32.mrf.mxu0
        %v2535 = vadd.f32 0.0, %v2534
        %2536 = vmatmul.bf16.gmra.mxu0 %v2409
        %v2537 = vpop.f32.mrf.mxu0
        %v2538 = vadd.f32 0.0, %v2537
        %v2539 = vpop.f32.mrf.mxu0
        %v2540 = vadd.f32 0.0, %v2539
        %2541 = vmatmul.bf16.gmra.mxu0 %v2417
        %v2542 = vpop.f32.mrf.mxu0
        %v2543 = vadd.f32 0.0, %v2542
        %v2544 = vpop.f32.mrf.mxu0
        %v2545 = vadd.f32 0.0, %v2544
        %2546 = vmatmul.bf16.gmra.mxu0 %v2425
        %v2547 = vpop.f32.mrf.mxu0
        %v2548 = vadd.f32 0.0, %v2547
        %v2549 = vpop.f32.mrf.mxu0
        %v2550 = vadd.f32 0.0, %v2549
        %2551 = vmatmul.bf16.gmra.mxu0 %v2433
        %v2552 = vpop.f32.mrf.mxu0
        %v2553 = vadd.f32 0.0, %v2552
        %v2554 = vpop.f32.mrf.mxu0
        %v2555 = vadd.f32 0.0, %v2554
        %2556 = vmatmul.bf16.gmra.mxu0 %v2441
        %v2557 = vpop.f32.mrf.mxu0
        %v2558 = vadd.f32 0.0, %v2557
        %v2559 = vpop.f32.mrf.mxu0
        %v2560 = vadd.f32 0.0, %v2559
        %2561 = vmatmul.bf16.gmra.mxu0 %v2449
        %v2562 = vpop.f32.mrf.mxu0
        %v2563 = vadd.f32 0.0, %v2562
        %v2564 = vpop.f32.mrf.mxu0
        %v2565 = vadd.f32 0.0, %v2564
        %2566 = vmatmul.bf16.gmra.mxu0 %v2457
        %v2567 = vpop.f32.mrf.mxu0
        %v2568 = vadd.f32 0.0, %v2567
        %v2569 = vpop.f32.mrf.mxu0
        %v2570 = vadd.f32 0.0, %v2569
        %2571 = vmatmul.bf16.gmra.mxu0 %v2465
        %v2572 = vpop.f32.mrf.mxu0
        %v2573 = vadd.f32 0.0, %v2572
        %v2574 = vpop.f32.mrf.mxu0
        %v2575 = vadd.f32 0.0, %v2574
        %2576 = vdwg.mxu0
        %v2577 = vadd.f32 %v2288, %v2533
        %v2578 = vadd.f32 %v2289, %v2535
        %v2579 = vadd.f32 %v2290, %v2538
        %v2580 = vadd.f32 %v2291, %v2540
        %v2581 = vadd.f32 %v2292, %v2543
        %v2582 = vadd.f32 %v2293, %v2545
        %v2583 = vadd.f32 %v2294, %v2548
        %v2584 = vadd.f32 %v2295, %v2550
        %v2585 = vadd.f32 %v2296, %v2553
        %v2586 = vadd.f32 %v2297, %v2555
        %v2587 = vadd.f32 %v2298, %v2558
        %v2588 = vadd.f32 %v2299, %v2560
        %v2589 = vadd.f32 %v2300, %v2563
        %v2590 = vadd.f32 %v2301, %v2565
        %v2591 = vadd.f32 %v2302, %v2568
        %v2592 = vadd.f32 %v2303, %v2570
        %v2593 = vadd.f32 %v2304, %v2573
        %v2594 = vadd.f32 %v2305, %v2575
        %v2595 = vlaneseq
        %v2596 = vshrl.u32 %v2595, 7
        %v2597 = vadd.s32 %v2596, 8
        %v2598 = vadd.s32 %v2596, 16
        %vm2599 = vcmp.ge.s32.totalorder %v2596, 1
        %vm2600 = vcmp.ge.s32.totalorder %v2597, 1
        %vm2601 = vcmp.ge.s32.totalorder %v2598, 1
        %vm2602 = vcmp.le.s32.totalorder %v2596, 16
        %vm2603 = vcmp.le.s32.totalorder %v2597, 16
        %vm2604 = vcmp.le.s32.totalorder %v2598, 16
        %vm2605 = vmand %vm2599, %vm2602
        %vm2606 = vmand %vm2600, %vm2603
        %vm2607 = vmand %vm2601, %vm2604
        %v2608 = vmax.f32 %v2577, 0.0
        %v2609 = vmax.f32 %v2578, 0.0
        %v2610 = vmax.f32 %v2579, 0.0
        %v2611 = vmax.f32 %v2580, 0.0
        %v2612 = vmax.f32 %v2581, 0.0
        %v2613 = vmax.f32 %v2582, 0.0
        %v2614 = vmax.f32 %v2583, 0.0
        %v2615 = vmax.f32 %v2584, 0.0
        %v2616 = vmax.f32 %v2585, 0.0
        %v2617 = vmax.f32 %v2586, 0.0
        %v2618 = vmax.f32 %v2587, 0.0
        %v2619 = vmax.f32 %v2588, 0.0
        %v2620 = vmax.f32 %v2589, 0.0
        %v2621 = vmax.f32 %v2590, 0.0
        %v2622 = vmax.f32 %v2591, 0.0
        %v2623 = vmax.f32 %v2592, 0.0
        %v2624 = vmax.f32 %v2593, 0.0
        %v2625 = vmax.f32 %v2594, 0.0
        %v2626 = vmul.f32 %v2608, 1.7139589
        %v2627 = vmul.f32 %v2609, 1.7139589
        %v2628 = vmul.f32 %v2610, 1.7139589
        %v2629 = vmul.f32 %v2611, 1.7139589
        %v2630 = vmul.f32 %v2612, 1.7139589
        %v2631 = vmul.f32 %v2613, 1.7139589
        %v2632 = vmul.f32 %v2614, 1.7139589
        %v2633 = vmul.f32 %v2615, 1.7139589
        %v2634 = vmul.f32 %v2616, 1.7139589
        %v2635 = vmul.f32 %v2617, 1.7139589
        %v2636 = vmul.f32 %v2618, 1.7139589
        %v2637 = vmul.f32 %v2619, 1.7139589
        %v2638 = vmul.f32 %v2620, 1.7139589
        %v2639 = vmul.f32 %v2621, 1.7139589
        %v2640 = vmul.f32 %v2622, 1.7139589
        %v2641 = vmul.f32 %v2623, 1.7139589
        %v2642 = vmul.f32 %v2624, 1.7139589
        %v2643 = vmul.f32 %v2625, 1.7139589
        %v2644 = vsel %vm2605, 1, 0
        %v2645 = vsel %vm2606, 1, 0
        %v2646 = vsel %vm2607, 1, 0
        %vm2647 = vcmp.eq.s32.totalorder %v2644, 1
        %vm2648 = vcmp.eq.s32.totalorder %v2645, 1
        %vm2649 = vcmp.eq.s32.totalorder %v2646, 1
        %v2650 = vsel %vm2647, %v2626, 0.0
        %v2651 = vsel %vm2648, %v2627, 0.0
        %v2652 = vsel %vm2649, %v2628, 0.0
        %v2653 = vsel %vm2647, %v2629, 0.0
        %v2654 = vsel %vm2648, %v2630, 0.0
        %v2655 = vsel %vm2649, %v2631, 0.0
        %v2656 = vsel %vm2647, %v2632, 0.0
        %v2657 = vsel %vm2648, %v2633, 0.0
        %v2658 = vsel %vm2649, %v2634, 0.0
        %v2659 = vsel %vm2647, %v2635, 0.0
        %v2660 = vsel %vm2648, %v2636, 0.0
        %v2661 = vsel %vm2649, %v2637, 0.0
        %v2662 = vsel %vm2647, %v2638, 0.0
        %v2663 = vsel %vm2648, %v2639, 0.0
        %v2664 = vsel %vm2649, %v2640, 0.0
        %v2665 = vsel %vm2647, %v2641, 0.0
        %v2666 = vsel %vm2648, %v2642, 0.0
        %v2667 = vsel %vm2649, %v2643, 0.0
        %v2668 = vpack.c.bf16 %v2650, %v2650
        %v2669 = vpack.c.bf16 %v2651, %v2651
        %v2670 = vpack.c.bf16 %v2652, %v2652
        %v2671 = vpack.c.bf16 %v2653, %v2653
        %v2672 = vpack.c.bf16 %v2654, %v2654
        %v2673 = vpack.c.bf16 %v2655, %v2655
        %v2674 = vpack.c.bf16 %v2656, %v2656
        %v2675 = vpack.c.bf16 %v2657, %v2657
        %v2676 = vpack.c.bf16 %v2658, %v2658
        %v2677 = vpack.c.bf16 %v2659, %v2659
        %v2678 = vpack.c.bf16 %v2660, %v2660
        %v2679 = vpack.c.bf16 %v2661, %v2661
        %v2680 = vpack.c.bf16 %v2662, %v2662
        %v2681 = vpack.c.bf16 %v2663, %v2663
        %v2682 = vpack.c.bf16 %v2664, %v2664
        %v2683 = vpack.c.bf16 %v2665, %v2665
        %v2684 = vpack.c.bf16 %v2666, %v2666
        %v2685 = vpack.c.bf16 %v2667, %v2667
        %2686 = vst [vmem:[#allocation2 + $0xc] sm:$0xf] %v2668
        %2687 = vst [vmem:[#allocation2 + $0x10] sm:$0xf] %v2669
        %2688 = vst [vmem:[#allocation2 + $0x14] sm:$0xf] %v2670
        %2689 = vst [vmem:[#allocation2 + $0x18] sm:$0xf] %v2671
        %2690 = vst [vmem:[#allocation2 + $0x1c] sm:$0xf] %v2672
        %2691 = vst [vmem:[#allocation2 + $0x20] sm:$0xf] %v2673
        %2692 = vst [vmem:[#allocation2 + $0x24] sm:$0xf] %v2674
        %2693 = vst [vmem:[#allocation2 + $0x28] sm:$0xf] %v2675
        %2694 = vst [vmem:[#allocation2 + $0x2c] sm:$0xf] %v2676
        %2695 = vst [vmem:[#allocation2 + $0x30] sm:$0xf] %v2677
        %2696 = vst [vmem:[#allocation2 + $0x34] sm:$0xf] %v2678
        %2697 = vst [vmem:[#allocation2 + $0x38] sm:$0xf] %v2679
        %2698 = vst [vmem:[#allocation2 + $0x3c] sm:$0xf] %v2680
        %2699 = vst [vmem:[#allocation2 + $0x40] sm:$0xf] %v2681
        %2700 = vst [vmem:[#allocation2 + $0x44] sm:$0xf] %v2682
        %2701 = vst [vmem:[#allocation2 + $0x48] sm:$0xf] %v2683
        %2702 = vst [vmem:[#allocation2 + $0x4c] sm:$0xf] %v2684
        %2703 = vst [vmem:[#allocation2 + $0x50] sm:$0xf] %v2685
        %p2704 = scmp.eq.s32.totalorder %s28, 0
        // Predicated region
        $region45: #{tpu_custom_call.1} parent=31 // pred_check
          %p2705 = pneg %p2704
        $region46: #{tpu_custom_call.1} parent=31 // pred_check_branch
          %2707 = sbr.rel (%p2705) target = $region48
        $region47: #{tpu_custom_call.1} parent=31 // pred_region
          %2708 = vst [vmem:[#allocation2 + $0xc] sm:$0xf] 0
          %2709 = vst [vmem:[#allocation2 + $0x10] sm:$0xf] 0
          %2710 = vst [vmem:[#allocation2 + $0x14] sm:$0xf] 0
        $region48: #{tpu_custom_call.1} parent=31 // pred_fallthru
          _
        %p2711 = scmp.eq.s32.totalorder %s28, 3
        // Predicated region
        $region49: #{tpu_custom_call.1} parent=31 // pred_check
          %p2712 = pneg %p2711
        $region50: #{tpu_custom_call.1} parent=31 // pred_check_branch
          %2714 = sbr.rel (%p2712) target = $region52
        $region51: #{tpu_custom_call.1} parent=31 // pred_region
          %2715 = vst [vmem:[#allocation2 + $0x48] sm:$0xf] 0
          %2716 = vst [vmem:[#allocation2 + $0x4c] sm:$0xf] 0
          %2717 = vst [vmem:[#allocation2 + $0x50] sm:$0xf] 0
        $region52: #{tpu_custom_call.1} parent=31 // pred_fallthru
          _
        %v2718 = vld [vmem:[#allocation2 + $0x8] sm:$0x8]
        %v2719 = vld [vmem:[#allocation2 + $0xc] sm:$0xf]
        %v2720 = vld [vmem:[#allocation2 + $0x10] sm:$0xf]
        %v2721 = vld [vmem:[#allocation2 + $0x14] sm:$0xf]
        %v2722 = vld [vmem:[#allocation2 + $0x18] sm:$0xf]
        %v2723 = vld [vmem:[#allocation2 + $0x1c] sm:$0xf]
        %v2724 = vld [vmem:[#allocation2 + $0x20] sm:$0xf]
        %v2725 = vld [vmem:[#allocation2 + $0x24] sm:$0xf]
        %v2726 = vld [vmem:[#allocation2 + $0x28] sm:$0xf]
        %v2727 = vld [vmem:[#allocation2 + $0x2c] sm:$0xf]
        %v2728 = vld [vmem:[#allocation2 + $0x30] sm:$0xf]
        %v2729 = vld [vmem:[#allocation2 + $0x34] sm:$0xf]
        %v2730 = vld [vmem:[#allocation2 + $0x38] sm:$0xf]
        %s2731 = scalar_lea.vmem [#allocation8], 576
        %v2732 = vld [vmem:[%s2731] sm:$0xf]
        %v2733 = vld [vmem:[%s2731 + $0x4] sm:$0xf]
        %v2734 = vld [vmem:[%s2731 + $0x8] sm:$0xf]
        %v2735 = vld [vmem:[%s2731 + $0xc] sm:$0xf]
        %v2736 = vld [vmem:[%s2731 + $0x10] sm:$0xf]
        %v2737 = vld [vmem:[%s2731 + $0x14] sm:$0xf]
        %v2738 = vld [vmem:[%s2731 + $0x18] sm:$0xf]
        %v2739 = vld [vmem:[%s2731 + $0x1c] sm:$0xf]
        %v2740 = vld [vmem:[%s2731 + $0x20] sm:$0xf]
        %v2741 = vld [vmem:[%s2731 + $0x24] sm:$0xf]
        %v2742 = vld [vmem:[%s2731 + $0x28] sm:$0xf]
        %v2743 = vld [vmem:[%s2731 + $0x2c] sm:$0xf]
        %v2744 = vld [vmem:[%s2731 + $0x30] sm:$0xf]
        %v2745 = vld [vmem:[%s2731 + $0x34] sm:$0xf]
        %v2746 = vld [vmem:[%s2731 + $0x38] sm:$0xf]
        %v2747 = vld [vmem:[%s2731 + $0x3c] sm:$0xf]
        %s2748 = scalar_lea.vmem [#allocation8], 640
        %v2749 = vld [vmem:[%s2748] sm:$0xf]
        %v2750 = vld [vmem:[%s2748 + $0x4] sm:$0xf]
        %v2751 = vld [vmem:[%s2748 + $0x8] sm:$0xf]
        %v2752 = vld [vmem:[%s2748 + $0xc] sm:$0xf]
        %v2753 = vld [vmem:[%s2748 + $0x10] sm:$0xf]
        %v2754 = vld [vmem:[%s2748 + $0x14] sm:$0xf]
        %v2755 = vld [vmem:[%s2748 + $0x18] sm:$0xf]
        %v2756 = vld [vmem:[%s2748 + $0x1c] sm:$0xf]
        %v2757 = vld [vmem:[%s2748 + $0x20] sm:$0xf]
        %v2758 = vld [vmem:[%s2748 + $0x24] sm:$0xf]
        %v2759 = vld [vmem:[%s2748 + $0x28] sm:$0xf]
        %v2760 = vld [vmem:[%s2748 + $0x2c] sm:$0xf]
        %v2761 = vld [vmem:[%s2748 + $0x30] sm:$0xf]
        %v2762 = vld [vmem:[%s2748 + $0x34] sm:$0xf]
        %v2763 = vld [vmem:[%s2748 + $0x38] sm:$0xf]
        %v2764 = vld [vmem:[%s2748 + $0x3c] sm:$0xf]
        %v2777 = vunpack.c.l.b16 %v2719
        %v2778 = vunpack.c.l.b16 %v2720
        %v2779 = vunpack.c.l.b16 %v2721
        %v2780 = vunpack.c.l.b16 %v2722
        %v2781 = vunpack.c.l.b16 %v2723
        %v2782 = vunpack.c.l.b16 %v2724
        %v2783 = vunpack.c.l.b16 %v2725
        %v2784 = vunpack.c.l.b16 %v2726
        %v2785 = vunpack.c.l.b16 %v2727
        %v2786 = vunpack.c.l.b16 %v2728
        %v2787 = vunpack.c.l.b16 %v2729
        %v2788 = vunpack.c.l.b16 %v2730
        %v2789 = vpack.c.b16 %v2778, %v2777
        %v2790 = vpack.c.b16 %v2780, %v2779
        %v2791 = vpack.c.b16 %v2782, %v2781
        %v2792 = vpack.c.b16 %v2784, %v2783
        %v2793 = vpack.c.b16 %v2786, %v2785
        %v2794 = vpack.c.b16 %v2788, %v2787
        %v2817 = vunpack.c.l.b16 %v2749
        %v2818 = vunpack.c.l.b16 %v2750
        %v2819 = vunpack.c.l.b16 %v2751
        %v2820 = vunpack.c.l.b16 %v2752
        %v2821 = vunpack.c.l.b16 %v2753
        %v2822 = vunpack.c.l.b16 %v2754
        %v2823 = vunpack.c.l.b16 %v2755
        %v2824 = vunpack.c.l.b16 %v2756
        %v2825 = vunpack.c.l.b16 %v2757
        %v2826 = vunpack.c.l.b16 %v2758
        %v2827 = vunpack.c.l.b16 %v2759
        %v2828 = vunpack.c.l.b16 %v2760
        %v2829 = vunpack.c.l.b16 %v2761
        %v2830 = vunpack.c.l.b16 %v2762
        %v2831 = vunpack.c.l.b16 %v2763
        %v2832 = vunpack.c.l.b16 %v2764
        %v2833 = vpack.c.b16 %v2818, %v2817
        %v2834 = vpack.c.b16 %v2820, %v2819
        %v2835 = vpack.c.b16 %v2822, %v2821
        %v2836 = vpack.c.b16 %v2824, %v2823
        %v2837 = vpack.c.b16 %v2826, %v2825
        %v2838 = vpack.c.b16 %v2828, %v2827
        %v2839 = vpack.c.b16 %v2830, %v2829
        %v2840 = vpack.c.b16 %v2832, %v2831
        %2849 = vmatpush.bf16.msra.mxu0 %v2840
        %2850 = vmatpush.bf16.msra.mxu0 %v2839
        %2851 = vmatpush.bf16.msra.mxu0 %v2838
        %2852 = vmatpush.bf16.msra.mxu0 %v2837
        %2853 = vmatpush.bf16.msra.mxu0 %v2836
        %2854 = vmatpush.bf16.msra.mxu0 %v2835
        %2855 = vmatpush.bf16.msra.mxu0 %v2834
        %2856 = vmatpush.bf16.msra.mxu0 %v2833
        %2857 = vmatmul.bf16.gmra.mxu0 %v2789
        %v2858 = vpop.f32.mrf.mxu0
        %v2859 = vadd.f32 0.0, %v2858
        %v2860 = vpop.f32.mrf.mxu0
        %v2861 = vadd.f32 0.0, %v2860
        %2862 = vmatmul.bf16.gmra.mxu0 %v2790
        %v2863 = vpop.f32.mrf.mxu0
        %v2864 = vadd.f32 0.0, %v2863
        %v2865 = vpop.f32.mrf.mxu0
        %v2866 = vadd.f32 0.0, %v2865
        %2867 = vmatmul.bf16.gmra.mxu0 %v2791
        %v2868 = vpop.f32.mrf.mxu0
        %v2869 = vadd.f32 0.0, %v2868
        %v2870 = vpop.f32.mrf.mxu0
        %v2871 = vadd.f32 0.0, %v2870
        %2872 = vmatmul.bf16.gmra.mxu0 %v2792
        %v2873 = vpop.f32.mrf.mxu0
        %v2874 = vadd.f32 0.0, %v2873
        %v2875 = vpop.f32.mrf.mxu0
        %v2876 = vadd.f32 0.0, %v2875
        %2877 = vmatmul.bf16.gmra.mxu0 %v2793
        %v2878 = vpop.f32.mrf.mxu0
        %v2879 = vadd.f32 0.0, %v2878
        %v2880 = vpop.f32.mrf.mxu0
        %v2881 = vadd.f32 0.0, %v2880
        %2882 = vmatmul.bf16.gmra.mxu0 %v2794
        %v2883 = vpop.f32.mrf.mxu0
        %v2884 = vadd.f32 0.0, %v2883
        %v2885 = vpop.f32.mrf.mxu0
        %v2886 = vadd.f32 0.0, %v2885
        %2887 = vdwg.mxu0
        %v2889 = vunpack.c.l.b16 %v2718
        %v2890 = vpack.c.b16 %v2777, %v2889
        %v2891 = vpack.c.b16 %v2779, %v2778
        %v2892 = vpack.c.b16 %v2781, %v2780
        %v2893 = vpack.c.b16 %v2783, %v2782
        %v2894 = vpack.c.b16 %v2785, %v2784
        %v2895 = vpack.c.b16 %v2787, %v2786
        %v2896 = vpack.c.b16 %v2788, %v2788
        %v2898 = vshrl.u32 %v2890, 16
        %v2900 = vrot.slane %v2898, 3
        %v2901 = vshll.u32 %v2890, 16
        %v2903 = vrot.slane %v2901, 4
        %v2904 = vor.u32 %v2900, %v2903
        %v2906 = vshrl.u32 %v2891, 16
        %v2908 = vrot.slane %v2906, 3
        %v2909 = vshll.u32 %v2891, 16
        %v2911 = vrot.slane %v2909, 4
        %v2912 = vor.u32 %v2908, %v2911
        %v2913 = vsel %vm612, %v2904, %v2912
        %v2915 = vshrl.u32 %v2892, 16
        %v2917 = vrot.slane %v2915, 3
        %v2918 = vshll.u32 %v2892, 16
        %v2920 = vrot.slane %v2918, 4
        %v2921 = vor.u32 %v2917, %v2920
        %v2922 = vsel %vm612, %v2912, %v2921
        %v2924 = vshrl.u32 %v2893, 16
        %v2926 = vrot.slane %v2924, 3
        %v2927 = vshll.u32 %v2893, 16
        %v2929 = vrot.slane %v2927, 4
        %v2930 = vor.u32 %v2926, %v2929
        %v2931 = vsel %vm612, %v2921, %v2930
        %v2933 = vshrl.u32 %v2894, 16
        %v2935 = vrot.slane %v2933, 3
        %v2936 = vshll.u32 %v2894, 16
        %v2938 = vrot.slane %v2936, 4
        %v2939 = vor.u32 %v2935, %v2938
        %v2940 = vsel %vm612, %v2930, %v2939
        %v2942 = vshrl.u32 %v2895, 16
        %v2944 = vrot.slane %v2942, 3
        %v2945 = vshll.u32 %v2895, 16
        %v2947 = vrot.slane %v2945, 4
        %v2948 = vor.u32 %v2944, %v2947
        %v2949 = vsel %vm612, %v2939, %v2948
        %v2951 = vshrl.u32 %v2896, 16
        %v2953 = vrot.slane %v2951, 3
        %v2954 = vshll.u32 %v2896, 16
        %v2956 = vrot.slane %v2954, 4
        %v2957 = vor.u32 %v2953, %v2956
        %v2958 = vsel %vm612, %v2948, %v2957
        %v2981 = vunpack.c.l.b16 %v2732
        %v2982 = vunpack.c.l.b16 %v2733
        %v2983 = vunpack.c.l.b16 %v2734
        %v2984 = vunpack.c.l.b16 %v2735
        %v2985 = vunpack.c.l.b16 %v2736
        %v2986 = vunpack.c.l.b16 %v2737
        %v2987 = vunpack.c.l.b16 %v2738
        %v2988 = vunpack.c.l.b16 %v2739
        %v2989 = vunpack.c.l.b16 %v2740
        %v2990 = vunpack.c.l.b16 %v2741
        %v2991 = vunpack.c.l.b16 %v2742
        %v2992 = vunpack.c.l.b16 %v2743
        %v2993 = vunpack.c.l.b16 %v2744
        %v2994 = vunpack.c.l.b16 %v2745
        %v2995 = vunpack.c.l.b16 %v2746
        %v2996 = vunpack.c.l.b16 %v2747
        %v2997 = vpack.c.b16 %v2982, %v2981
        %v2998 = vpack.c.b16 %v2984, %v2983
        %v2999 = vpack.c.b16 %v2986, %v2985
        %v3000 = vpack.c.b16 %v2988, %v2987
        %v3001 = vpack.c.b16 %v2990, %v2989
        %v3002 = vpack.c.b16 %v2992, %v2991
        %v3003 = vpack.c.b16 %v2994, %v2993
        %v3004 = vpack.c.b16 %v2996, %v2995
        %3013 = vmatpush.bf16.msra.mxu0 %v3004
        %3014 = vmatpush.bf16.msra.mxu0 %v3003
        %3015 = vmatpush.bf16.msra.mxu0 %v3002
        %3016 = vmatpush.bf16.msra.mxu0 %v3001
        %3017 = vmatpush.bf16.msra.mxu0 %v3000
        %3018 = vmatpush.bf16.msra.mxu0 %v2999
        %3019 = vmatpush.bf16.msra.mxu0 %v2998
        %3020 = vmatpush.bf16.msra.mxu0 %v2997
        %3021 = vmatmul.bf16.gmra.mxu0 %v2913
        %v3022 = vpop.f32.mrf.mxu0
        %v3023 = vadd.f32 %v2859, %v3022
        %v3024 = vpop.f32.mrf.mxu0
        %v3025 = vadd.f32 %v2861, %v3024
        %3026 = vmatmul.bf16.gmra.mxu0 %v2922
        %v3027 = vpop.f32.mrf.mxu0
        %v3028 = vadd.f32 %v2864, %v3027
        %v3029 = vpop.f32.mrf.mxu0
        %v3030 = vadd.f32 %v2866, %v3029
        %3031 = vmatmul.bf16.gmra.mxu0 %v2931
        %v3032 = vpop.f32.mrf.mxu0
        %v3033 = vadd.f32 %v2869, %v3032
        %v3034 = vpop.f32.mrf.mxu0
        %v3035 = vadd.f32 %v2871, %v3034
        %3036 = vmatmul.bf16.gmra.mxu0 %v2940
        %v3037 = vpop.f32.mrf.mxu0
        %v3038 = vadd.f32 %v2874, %v3037
        %v3039 = vpop.f32.mrf.mxu0
        %v3040 = vadd.f32 %v2876, %v3039
        %3041 = vmatmul.bf16.gmra.mxu0 %v2949
        %v3042 = vpop.f32.mrf.mxu0
        %v3043 = vadd.f32 %v2879, %v3042
        %v3044 = vpop.f32.mrf.mxu0
        %v3045 = vadd.f32 %v2881, %v3044
        %3046 = vmatmul.bf16.gmra.mxu0 %v2958
        %v3047 = vpop.f32.mrf.mxu0
        %v3048 = vadd.f32 %v2884, %v3047
        %v3049 = vpop.f32.mrf.mxu0
        %v3050 = vadd.f32 %v2886, %v3049
        %3051 = vdwg.mxu0
        %v3052 = vld [vmem:[#allocation2 + $0xc] sm:$0xf]
        %v3053 = vld [vmem:[#allocation2 + $0x10] sm:$0xf]
        %v3054 = vld [vmem:[#allocation2 + $0x14] sm:$0xf]
        %v3055 = vld [vmem:[#allocation2 + $0x18] sm:$0xf]
        %v3056 = vld [vmem:[#allocation2 + $0x1c] sm:$0xf]
        %v3057 = vld [vmem:[#allocation2 + $0x20] sm:$0xf]
        %v3058 = vld [vmem:[#allocation2 + $0x24] sm:$0xf]
        %v3059 = vld [vmem:[#allocation2 + $0x28] sm:$0xf]
        %v3060 = vld [vmem:[#allocation2 + $0x2c] sm:$0xf]
        %v3061 = vld [vmem:[#allocation2 + $0x30] sm:$0xf]
        %v3062 = vld [vmem:[#allocation2 + $0x34] sm:$0xf]
        %v3063 = vld [vmem:[#allocation2 + $0x38] sm:$0xf]
        %v3064 = vld [vmem:[#allocation2 + $0x3c] sm:$0x1]
        %s3065 = scalar_lea.vmem [#allocation8], 704
        %v3066 = vld [vmem:[%s3065] sm:$0xf]
        %v3067 = vld [vmem:[%s3065 + $0x4] sm:$0xf]
        %v3068 = vld [vmem:[%s3065 + $0x8] sm:$0xf]
        %v3069 = vld [vmem:[%s3065 + $0xc] sm:$0xf]
        %v3070 = vld [vmem:[%s3065 + $0x10] sm:$0xf]
        %v3071 = vld [vmem:[%s3065 + $0x14] sm:$0xf]
        %v3072 = vld [vmem:[%s3065 + $0x18] sm:$0xf]
        %v3073 = vld [vmem:[%s3065 + $0x1c] sm:$0xf]
        %v3074 = vld [vmem:[%s3065 + $0x20] sm:$0xf]
        %v3075 = vld [vmem:[%s3065 + $0x24] sm:$0xf]
        %v3076 = vld [vmem:[%s3065 + $0x28] sm:$0xf]
        %v3077 = vld [vmem:[%s3065 + $0x2c] sm:$0xf]
        %v3078 = vld [vmem:[%s3065 + $0x30] sm:$0xf]
        %v3079 = vld [vmem:[%s3065 + $0x34] sm:$0xf]
        %v3080 = vld [vmem:[%s3065 + $0x38] sm:$0xf]
        %v3081 = vld [vmem:[%s3065 + $0x3c] sm:$0xf]
        %v3095 = vunpack.c.l.b16 %v3052
        %v3096 = vunpack.c.l.b16 %v3053
        %v3097 = vunpack.c.l.b16 %v3054
        %v3098 = vunpack.c.l.b16 %v3055
        %v3099 = vunpack.c.l.b16 %v3056
        %v3100 = vunpack.c.l.b16 %v3057
        %v3101 = vunpack.c.l.b16 %v3058
        %v3102 = vunpack.c.l.b16 %v3059
        %v3103 = vunpack.c.l.b16 %v3060
        %v3104 = vunpack.c.l.b16 %v3061
        %v3105 = vunpack.c.l.b16 %v3062
        %v3106 = vunpack.c.l.b16 %v3063
        %v3107 = vunpack.c.l.b16 %v3064
        %v3108 = vpack.c.b16 %v3096, %v3095
        %v3109 = vpack.c.b16 %v3098, %v3097
        %v3110 = vpack.c.b16 %v3100, %v3099
        %v3111 = vpack.c.b16 %v3102, %v3101
        %v3112 = vpack.c.b16 %v3104, %v3103
        %v3113 = vpack.c.b16 %v3106, %v3105
        %v3114 = vpack.c.b16 %v3107, %v3107
        %v3116 = vshrl.u32 %v3108, 16
        %v3118 = vshll.u32 %v3108, 16
        %v3120 = vrot.slane %v3118, 1
        %v3121 = vor.u32 %v3116, %v3120
        %v3123 = vshll.u32 %v3109, 16
        %v3125 = vrot.slane %v3123, 1
        %v3126 = vsel %vm897, %v3121, %v3125
        %v3127 = vshrl.u32 %v3109, 16
        %v3129 = vor.u32 %v3127, %v3125
        %v3131 = vshll.u32 %v3110, 16
        %v3133 = vrot.slane %v3131, 1
        %v3134 = vsel %vm897, %v3129, %v3133
        %v3135 = vshrl.u32 %v3110, 16
        %v3137 = vor.u32 %v3135, %v3133
        %v3139 = vshll.u32 %v3111, 16
        %v3141 = vrot.slane %v3139, 1
        %v3142 = vsel %vm897, %v3137, %v3141
        %v3143 = vshrl.u32 %v3111, 16
        %v3145 = vor.u32 %v3143, %v3141
        %v3147 = vshll.u32 %v3112, 16
        %v3149 = vrot.slane %v3147, 1
        %v3150 = vsel %vm897, %v3145, %v3149
        %v3151 = vshrl.u32 %v3112, 16
        %v3153 = vor.u32 %v3151, %v3149
        %v3155 = vshll.u32 %v3113, 16
        %v3157 = vrot.slane %v3155, 1
        %v3158 = vsel %vm897, %v3153, %v3157
        %v3159 = vshrl.u32 %v3113, 16
        %v3161 = vor.u32 %v3159, %v3157
        %v3163 = vshll.u32 %v3114, 16
        %v3165 = vrot.slane %v3163, 1
        %v3166 = vsel %vm897, %v3161, %v3165
        %v3189 = vunpack.c.l.b16 %v3066
        %v3190 = vunpack.c.l.b16 %v3067
        %v3191 = vunpack.c.l.b16 %v3068
        %v3192 = vunpack.c.l.b16 %v3069
        %v3193 = vunpack.c.l.b16 %v3070
        %v3194 = vunpack.c.l.b16 %v3071
        %v3195 = vunpack.c.l.b16 %v3072
        %v3196 = vunpack.c.l.b16 %v3073
        %v3197 = vunpack.c.l.b16 %v3074
        %v3198 = vunpack.c.l.b16 %v3075
        %v3199 = vunpack.c.l.b16 %v3076
        %v3200 = vunpack.c.l.b16 %v3077
        %v3201 = vunpack.c.l.b16 %v3078
        %v3202 = vunpack.c.l.b16 %v3079
        %v3203 = vunpack.c.l.b16 %v3080
        %v3204 = vunpack.c.l.b16 %v3081
        %v3205 = vpack.c.b16 %v3190, %v3189
        %v3206 = vpack.c.b16 %v3192, %v3191
        %v3207 = vpack.c.b16 %v3194, %v3193
        %v3208 = vpack.c.b16 %v3196, %v3195
        %v3209 = vpack.c.b16 %v3198, %v3197
        %v3210 = vpack.c.b16 %v3200, %v3199
        %v3211 = vpack.c.b16 %v3202, %v3201
        %v3212 = vpack.c.b16 %v3204, %v3203
        %3221 = vmatpush.bf16.msra.mxu0 %v3212
        %3222 = vmatpush.bf16.msra.mxu0 %v3211
        %3223 = vmatpush.bf16.msra.mxu0 %v3210
        %3224 = vmatpush.bf16.msra.mxu0 %v3209
        %3225 = vmatpush.bf16.msra.mxu0 %v3208
        %3226 = vmatpush.bf16.msra.mxu0 %v3207
        %3227 = vmatpush.bf16.msra.mxu0 %v3206
        %3228 = vmatpush.bf16.msra.mxu0 %v3205
        %3229 = vmatmul.bf16.gmra.mxu0 %v3126
        %v3230 = vpop.f32.mrf.mxu0
        %v3231 = vadd.f32 0.0, %v3230
        %v3232 = vpop.f32.mrf.mxu0
        %v3233 = vadd.f32 0.0, %v3232
        %3234 = vmatmul.bf16.gmra.mxu0 %v3134
        %v3235 = vpop.f32.mrf.mxu0
        %v3236 = vadd.f32 0.0, %v3235
        %v3237 = vpop.f32.mrf.mxu0
        %v3238 = vadd.f32 0.0, %v3237
        %3239 = vmatmul.bf16.gmra.mxu0 %v3142
        %v3240 = vpop.f32.mrf.mxu0
        %v3241 = vadd.f32 0.0, %v3240
        %v3242 = vpop.f32.mrf.mxu0
        %v3243 = vadd.f32 0.0, %v3242
        %3244 = vmatmul.bf16.gmra.mxu0 %v3150
        %v3245 = vpop.f32.mrf.mxu0
        %v3246 = vadd.f32 0.0, %v3245
        %v3247 = vpop.f32.mrf.mxu0
        %v3248 = vadd.f32 0.0, %v3247
        %3249 = vmatmul.bf16.gmra.mxu0 %v3158
        %v3250 = vpop.f32.mrf.mxu0
        %v3251 = vadd.f32 0.0, %v3250
        %v3252 = vpop.f32.mrf.mxu0
        %v3253 = vadd.f32 0.0, %v3252
        %3254 = vmatmul.bf16.gmra.mxu0 %v3166
        %v3255 = vpop.f32.mrf.mxu0
        %v3256 = vadd.f32 0.0, %v3255
        %v3257 = vpop.f32.mrf.mxu0
        %v3258 = vadd.f32 0.0, %v3257
        %3259 = vdwg.mxu0
        %v3260 = vadd.f32 %v3023, %v3231
        %v3261 = vadd.f32 %v3025, %v3233
        %v3262 = vadd.f32 %v3028, %v3236
        %v3263 = vadd.f32 %v3030, %v3238
        %v3264 = vadd.f32 %v3033, %v3241
        %v3265 = vadd.f32 %v3035, %v3243
        %v3266 = vadd.f32 %v3038, %v3246
        %v3267 = vadd.f32 %v3040, %v3248
        %v3268 = vadd.f32 %v3043, %v3251
        %v3269 = vadd.f32 %v3045, %v3253
        %v3270 = vadd.f32 %v3048, %v3256
        %v3271 = vadd.f32 %v3050, %v3258
        %v3272 = vld [vmem:[#allocation2 + $0x14] sm:$0x8]
        %v3273 = vld [vmem:[#allocation2 + $0x18] sm:$0xf]
        %v3274 = vld [vmem:[#allocation2 + $0x1c] sm:$0xf]
        %v3275 = vld [vmem:[#allocation2 + $0x20] sm:$0xf]
        %v3276 = vld [vmem:[#allocation2 + $0x24] sm:$0xf]
        %v3277 = vld [vmem:[#allocation2 + $0x28] sm:$0xf]
        %v3278 = vld [vmem:[#allocation2 + $0x2c] sm:$0xf]
        %v3279 = vld [vmem:[#allocation2 + $0x30] sm:$0xf]
        %v3280 = vld [vmem:[#allocation2 + $0x34] sm:$0xf]
        %v3281 = vld [vmem:[#allocation2 + $0x38] sm:$0xf]
        %v3282 = vld [vmem:[#allocation2 + $0x3c] sm:$0xf]
        %v3283 = vld [vmem:[#allocation2 + $0x40] sm:$0xf]
        %v3284 = vld [vmem:[#allocation2 + $0x44] sm:$0xf]
        %s3285 = scalar_lea.vmem [#allocation8], 768
        %v3286 = vld [vmem:[%s3285] sm:$0xf]
        %v3287 = vld [vmem:[%s3285 + $0x4] sm:$0xf]
        %v3288 = vld [vmem:[%s3285 + $0x8] sm:$0xf]
        %v3289 = vld [vmem:[%s3285 + $0xc] sm:$0xf]
        %v3290 = vld [vmem:[%s3285 + $0x10] sm:$0xf]
        %v3291 = vld [vmem:[%s3285 + $0x14] sm:$0xf]
        %v3292 = vld [vmem:[%s3285 + $0x18] sm:$0xf]
        %v3293 = vld [vmem:[%s3285 + $0x1c] sm:$0xf]
        %v3294 = vld [vmem:[%s3285 + $0x20] sm:$0xf]
        %v3295 = vld [vmem:[%s3285 + $0x24] sm:$0xf]
        %v3296 = vld [vmem:[%s3285 + $0x28] sm:$0xf]
        %v3297 = vld [vmem:[%s3285 + $0x2c] sm:$0xf]
        %v3298 = vld [vmem:[%s3285 + $0x30] sm:$0xf]
        %v3299 = vld [vmem:[%s3285 + $0x34] sm:$0xf]
        %v3300 = vld [vmem:[%s3285 + $0x38] sm:$0xf]
        %v3301 = vld [vmem:[%s3285 + $0x3c] sm:$0xf]
        %v3315 = vunpack.c.l.b16 %v3272
        %v3316 = vunpack.c.l.b16 %v3273
        %v3317 = vunpack.c.l.b16 %v3274
        %v3318 = vunpack.c.l.b16 %v3275
        %v3319 = vunpack.c.l.b16 %v3276
        %v3320 = vunpack.c.l.b16 %v3277
        %v3321 = vunpack.c.l.b16 %v3278
        %v3322 = vunpack.c.l.b16 %v3279
        %v3323 = vunpack.c.l.b16 %v3280
        %v3324 = vunpack.c.l.b16 %v3281
        %v3325 = vunpack.c.l.b16 %v3282
        %v3326 = vunpack.c.l.b16 %v3283
        %v3327 = vunpack.c.l.b16 %v3284
        %v3328 = vpack.c.b16 %v3316, %v3315
        %v3329 = vpack.c.b16 %v3318, %v3317
        %v3330 = vpack.c.b16 %v3320, %v3319
        %v3331 = vpack.c.b16 %v3322, %v3321
        %v3332 = vpack.c.b16 %v3324, %v3323
        %v3333 = vpack.c.b16 %v3326, %v3325
        %v3334 = vpack.c.b16 %v3327, %v3327
        %v3336 = vshrl.u32 %v3328, 16
        %v3338 = vrot.slane %v3336, 3
        %v3339 = vshll.u32 %v3328, 16
        %v3341 = vrot.slane %v3339, 4
        %v3342 = vor.u32 %v3338, %v3341
        %v3344 = vshrl.u32 %v3329, 16
        %v3346 = vrot.slane %v3344, 3
        %v3347 = vshll.u32 %v3329, 16
        %v3349 = vrot.slane %v3347, 4
        %v3350 = vor.u32 %v3346, %v3349
        %v3351 = vsel %vm612, %v3342, %v3350
        %v3353 = vshrl.u32 %v3330, 16
        %v3355 = vrot.slane %v3353, 3
        %v3356 = vshll.u32 %v3330, 16
        %v3358 = vrot.slane %v3356, 4
        %v3359 = vor.u32 %v3355, %v3358
        %v3360 = vsel %vm612, %v3350, %v3359
        %v3362 = vshrl.u32 %v3331, 16
        %v3364 = vrot.slane %v3362, 3
        %v3365 = vshll.u32 %v3331, 16
        %v3367 = vrot.slane %v3365, 4
        %v3368 = vor.u32 %v3364, %v3367
        %v3369 = vsel %vm612, %v3359, %v3368
        %v3371 = vshrl.u32 %v3332, 16
        %v3373 = vrot.slane %v3371, 3
        %v3374 = vshll.u32 %v3332, 16
        %v3376 = vrot.slane %v3374, 4
        %v3377 = vor.u32 %v3373, %v3376
        %v3378 = vsel %vm612, %v3368, %v3377
        %v3380 = vshrl.u32 %v3333, 16
        %v3382 = vrot.slane %v3380, 3
        %v3383 = vshll.u32 %v3333, 16
        %v3385 = vrot.slane %v3383, 4
        %v3386 = vor.u32 %v3382, %v3385
        %v3387 = vsel %vm612, %v3377, %v3386
        %v3389 = vshrl.u32 %v3334, 16
        %v3391 = vrot.slane %v3389, 3
        %v3392 = vshll.u32 %v3334, 16
        %v3394 = vrot.slane %v3392, 4
        %v3395 = vor.u32 %v3391, %v3394
        %v3396 = vsel %vm612, %v3386, %v3395
        %v3419 = vunpack.c.l.b16 %v3286
        %v3420 = vunpack.c.l.b16 %v3287
        %v3421 = vunpack.c.l.b16 %v3288
        %v3422 = vunpack.c.l.b16 %v3289
        %v3423 = vunpack.c.l.b16 %v3290
        %v3424 = vunpack.c.l.b16 %v3291
        %v3425 = vunpack.c.l.b16 %v3292
        %v3426 = vunpack.c.l.b16 %v3293
        %v3427 = vunpack.c.l.b16 %v3294
        %v3428 = vunpack.c.l.b16 %v3295
        %v3429 = vunpack.c.l.b16 %v3296
        %v3430 = vunpack.c.l.b16 %v3297
        %v3431 = vunpack.c.l.b16 %v3298
        %v3432 = vunpack.c.l.b16 %v3299
        %v3433 = vunpack.c.l.b16 %v3300
        %v3434 = vunpack.c.l.b16 %v3301
        %v3435 = vpack.c.b16 %v3420, %v3419
        %v3436 = vpack.c.b16 %v3422, %v3421
        %v3437 = vpack.c.b16 %v3424, %v3423
        %v3438 = vpack.c.b16 %v3426, %v3425
        %v3439 = vpack.c.b16 %v3428, %v3427
        %v3440 = vpack.c.b16 %v3430, %v3429
        %v3441 = vpack.c.b16 %v3432, %v3431
        %v3442 = vpack.c.b16 %v3434, %v3433
        %3451 = vmatpush.bf16.msra.mxu0 %v3442
        %3452 = vmatpush.bf16.msra.mxu0 %v3441
        %3453 = vmatpush.bf16.msra.mxu0 %v3440
        %3454 = vmatpush.bf16.msra.mxu0 %v3439
        %3455 = vmatpush.bf16.msra.mxu0 %v3438
        %3456 = vmatpush.bf16.msra.mxu0 %v3437
        %3457 = vmatpush.bf16.msra.mxu0 %v3436
        %3458 = vmatpush.bf16.msra.mxu0 %v3435
        %3459 = vmatmul.bf16.gmra.mxu0 %v3351
        %v3460 = vpop.f32.mrf.mxu0
        %v3461 = vadd.f32 0.0, %v3460
        %v3462 = vpop.f32.mrf.mxu0
        %v3463 = vadd.f32 0.0, %v3462
        %3464 = vmatmul.bf16.gmra.mxu0 %v3360
        %v3465 = vpop.f32.mrf.mxu0
        %v3466 = vadd.f32 0.0, %v3465
        %v3467 = vpop.f32.mrf.mxu0
        %v3468 = vadd.f32 0.0, %v3467
        %3469 = vmatmul.bf16.gmra.mxu0 %v3369
        %v3470 = vpop.f32.mrf.mxu0
        %v3471 = vadd.f32 0.0, %v3470
        %v3472 = vpop.f32.mrf.mxu0
        %v3473 = vadd.f32 0.0, %v3472
        %3474 = vmatmul.bf16.gmra.mxu0 %v3378
        %v3475 = vpop.f32.mrf.mxu0
        %v3476 = vadd.f32 0.0, %v3475
        %v3477 = vpop.f32.mrf.mxu0
        %v3478 = vadd.f32 0.0, %v3477
        %3479 = vmatmul.bf16.gmra.mxu0 %v3387
        %v3480 = vpop.f32.mrf.mxu0
        %v3481 = vadd.f32 0.0, %v3480
        %v3482 = vpop.f32.mrf.mxu0
        %v3483 = vadd.f32 0.0, %v3482
        %3484 = vmatmul.bf16.gmra.mxu0 %v3396
        %v3485 = vpop.f32.mrf.mxu0
        %v3486 = vadd.f32 0.0, %v3485
        %v3487 = vpop.f32.mrf.mxu0
        %v3488 = vadd.f32 0.0, %v3487
        %3489 = vdwg.mxu0
        %v3490 = vadd.f32 %v3260, %v3461
        %v3491 = vadd.f32 %v3261, %v3463
        %v3492 = vadd.f32 %v3262, %v3466
        %v3493 = vadd.f32 %v3263, %v3468
        %v3494 = vadd.f32 %v3264, %v3471
        %v3495 = vadd.f32 %v3265, %v3473
        %v3496 = vadd.f32 %v3266, %v3476
        %v3497 = vadd.f32 %v3267, %v3478
        %v3498 = vadd.f32 %v3268, %v3481
        %v3499 = vadd.f32 %v3269, %v3483
        %v3500 = vadd.f32 %v3270, %v3486
        %v3501 = vadd.f32 %v3271, %v3488
        %s3502 = scalar_lea.vmem [#allocation8], 832
        %v3503 = vld [vmem:[%s3502] sm:$0xf]
        %v3504 = vld [vmem:[%s3502 + $0x4] sm:$0xf]
        %v3505 = vld [vmem:[%s3502 + $0x8] sm:$0xf]
        %v3506 = vld [vmem:[%s3502 + $0xc] sm:$0xf]
        %v3507 = vld [vmem:[%s3502 + $0x10] sm:$0xf]
        %v3508 = vld [vmem:[%s3502 + $0x14] sm:$0xf]
        %v3509 = vld [vmem:[%s3502 + $0x18] sm:$0xf]
        %v3510 = vld [vmem:[%s3502 + $0x1c] sm:$0xf]
        %v3511 = vld [vmem:[%s3502 + $0x20] sm:$0xf]
        %v3512 = vld [vmem:[%s3502 + $0x24] sm:$0xf]
        %v3513 = vld [vmem:[%s3502 + $0x28] sm:$0xf]
        %v3514 = vld [vmem:[%s3502 + $0x2c] sm:$0xf]
        %v3515 = vld [vmem:[%s3502 + $0x30] sm:$0xf]
        %v3516 = vld [vmem:[%s3502 + $0x34] sm:$0xf]
        %v3517 = vld [vmem:[%s3502 + $0x38] sm:$0xf]
        %v3518 = vld [vmem:[%s3502 + $0x3c] sm:$0xf]
        %v3519 = vpack.c.b16 %v3317, %v3316
        %v3520 = vpack.c.b16 %v3319, %v3318
        %v3521 = vpack.c.b16 %v3321, %v3320
        %v3522 = vpack.c.b16 %v3323, %v3322
        %v3523 = vpack.c.b16 %v3325, %v3324
        %v3524 = vpack.c.b16 %v3327, %v3326
        %v3547 = vunpack.c.l.b16 %v3503
        %v3548 = vunpack.c.l.b16 %v3504
        %v3549 = vunpack.c.l.b16 %v3505
        %v3550 = vunpack.c.l.b16 %v3506
        %v3551 = vunpack.c.l.b16 %v3507
        %v3552 = vunpack.c.l.b16 %v3508
        %v3553 = vunpack.c.l.b16 %v3509
        %v3554 = vunpack.c.l.b16 %v3510
        %v3555 = vunpack.c.l.b16 %v3511
        %v3556 = vunpack.c.l.b16 %v3512
        %v3557 = vunpack.c.l.b16 %v3513
        %v3558 = vunpack.c.l.b16 %v3514
        %v3559 = vunpack.c.l.b16 %v3515
        %v3560 = vunpack.c.l.b16 %v3516
        %v3561 = vunpack.c.l.b16 %v3517
        %v3562 = vunpack.c.l.b16 %v3518
        %v3563 = vpack.c.b16 %v3548, %v3547
        %v3564 = vpack.c.b16 %v3550, %v3549
        %v3565 = vpack.c.b16 %v3552, %v3551
        %v3566 = vpack.c.b16 %v3554, %v3553
        %v3567 = vpack.c.b16 %v3556, %v3555
        %v3568 = vpack.c.b16 %v3558, %v3557
        %v3569 = vpack.c.b16 %v3560, %v3559
        %v3570 = vpack.c.b16 %v3562, %v3561
        %3579 = vmatpush.bf16.msra.mxu0 %v3570
        %3580 = vmatpush.bf16.msra.mxu0 %v3569
        %3581 = vmatpush.bf16.msra.mxu0 %v3568
        %3582 = vmatpush.bf16.msra.mxu0 %v3567
        %3583 = vmatpush.bf16.msra.mxu0 %v3566
        %3584 = vmatpush.bf16.msra.mxu0 %v3565
        %3585 = vmatpush.bf16.msra.mxu0 %v3564
        %3586 = vmatpush.bf16.msra.mxu0 %v3563
        %3587 = vmatmul.bf16.gmra.mxu0 %v3519
        %v3588 = vpop.f32.mrf.mxu0
        %v3589 = vadd.f32 0.0, %v3588
        %v3590 = vpop.f32.mrf.mxu0
        %v3591 = vadd.f32 0.0, %v3590
        %3592 = vmatmul.bf16.gmra.mxu0 %v3520
        %v3593 = vpop.f32.mrf.mxu0
        %v3594 = vadd.f32 0.0, %v3593
        %v3595 = vpop.f32.mrf.mxu0
        %v3596 = vadd.f32 0.0, %v3595
        %3597 = vmatmul.bf16.gmra.mxu0 %v3521
        %v3598 = vpop.f32.mrf.mxu0
        %v3599 = vadd.f32 0.0, %v3598
        %v3600 = vpop.f32.mrf.mxu0
        %v3601 = vadd.f32 0.0, %v3600
        %3602 = vmatmul.bf16.gmra.mxu0 %v3522
        %v3603 = vpop.f32.mrf.mxu0
        %v3604 = vadd.f32 0.0, %v3603
        %v3605 = vpop.f32.mrf.mxu0
        %v3606 = vadd.f32 0.0, %v3605
        %3607 = vmatmul.bf16.gmra.mxu0 %v3523
        %v3608 = vpop.f32.mrf.mxu0
        %v3609 = vadd.f32 0.0, %v3608
        %v3610 = vpop.f32.mrf.mxu0
        %v3611 = vadd.f32 0.0, %v3610
        %3612 = vmatmul.bf16.gmra.mxu0 %v3524
        %v3613 = vpop.f32.mrf.mxu0
        %v3614 = vadd.f32 0.0, %v3613
        %v3615 = vpop.f32.mrf.mxu0
        %v3616 = vadd.f32 0.0, %v3615
        %3617 = vdwg.mxu0
        %v3618 = vadd.f32 %v3490, %v3589
        %v3619 = vadd.f32 %v3491, %v3591
        %v3620 = vadd.f32 %v3492, %v3594
        %v3621 = vadd.f32 %v3493, %v3596
        %v3622 = vadd.f32 %v3494, %v3599
        %v3623 = vadd.f32 %v3495, %v3601
        %v3624 = vadd.f32 %v3496, %v3604
        %v3625 = vadd.f32 %v3497, %v3606
        %v3626 = vadd.f32 %v3498, %v3609
        %v3627 = vadd.f32 %v3499, %v3611
        %v3628 = vadd.f32 %v3500, %v3614
        %v3629 = vadd.f32 %v3501, %v3616
        %v3630 = vld [vmem:[#allocation2 + $0x18] sm:$0xf]
        %v3631 = vld [vmem:[#allocation2 + $0x1c] sm:$0xf]
        %v3632 = vld [vmem:[#allocation2 + $0x20] sm:$0xf]
        %v3633 = vld [vmem:[#allocation2 + $0x24] sm:$0xf]
        %v3634 = vld [vmem:[#allocation2 + $0x28] sm:$0xf]
        %v3635 = vld [vmem:[#allocation2 + $0x2c] sm:$0xf]
        %v3636 = vld [vmem:[#allocation2 + $0x30] sm:$0xf]
        %v3637 = vld [vmem:[#allocation2 + $0x34] sm:$0xf]
        %v3638 = vld [vmem:[#allocation2 + $0x38] sm:$0xf]
        %v3639 = vld [vmem:[#allocation2 + $0x3c] sm:$0xf]
        %v3640 = vld [vmem:[#allocation2 + $0x40] sm:$0xf]
        %v3641 = vld [vmem:[#allocation2 + $0x44] sm:$0xf]
        %v3642 = vld [vmem:[#allocation2 + $0x48] sm:$0x1]
        %s3643 = scalar_lea.vmem [#allocation8], 896
        %v3644 = vld [vmem:[%s3643] sm:$0xf]
        %v3645 = vld [vmem:[%s3643 + $0x4] sm:$0xf]
        %v3646 = vld [vmem:[%s3643 + $0x8] sm:$0xf]
        %v3647 = vld [vmem:[%s3643 + $0xc] sm:$0xf]
        %v3648 = vld [vmem:[%s3643 + $0x10] sm:$0xf]
        %v3649 = vld [vmem:[%s3643 + $0x14] sm:$0xf]
        %v3650 = vld [vmem:[%s3643 + $0x18] sm:$0xf]
        %v3651 = vld [vmem:[%s3643 + $0x1c] sm:$0xf]
        %v3652 = vld [vmem:[%s3643 + $0x20] sm:$0xf]
        %v3653 = vld [vmem:[%s3643 + $0x24] sm:$0xf]
        %v3654 = vld [vmem:[%s3643 + $0x28] sm:$0xf]
        %v3655 = vld [vmem:[%s3643 + $0x2c] sm:$0xf]
        %v3656 = vld [vmem:[%s3643 + $0x30] sm:$0xf]
        %v3657 = vld [vmem:[%s3643 + $0x34] sm:$0xf]
        %v3658 = vld [vmem:[%s3643 + $0x38] sm:$0xf]
        %v3659 = vld [vmem:[%s3643 + $0x3c] sm:$0xf]
        %v3673 = vunpack.c.l.b16 %v3630
        %v3674 = vunpack.c.l.b16 %v3631
        %v3675 = vunpack.c.l.b16 %v3632
        %v3676 = vunpack.c.l.b16 %v3633
        %v3677 = vunpack.c.l.b16 %v3634
        %v3678 = vunpack.c.l.b16 %v3635
        %v3679 = vunpack.c.l.b16 %v3636
        %v3680 = vunpack.c.l.b16 %v3637
        %v3681 = vunpack.c.l.b16 %v3638
        %v3682 = vunpack.c.l.b16 %v3639
        %v3683 = vunpack.c.l.b16 %v3640
        %v3684 = vunpack.c.l.b16 %v3641
        %v3685 = vunpack.c.l.b16 %v3642
        %v3686 = vpack.c.b16 %v3674, %v3673
        %v3687 = vpack.c.b16 %v3676, %v3675
        %v3688 = vpack.c.b16 %v3678, %v3677
        %v3689 = vpack.c.b16 %v3680, %v3679
        %v3690 = vpack.c.b16 %v3682, %v3681
        %v3691 = vpack.c.b16 %v3684, %v3683
        %v3692 = vpack.c.b16 %v3685, %v3685
        %v3694 = vshrl.u32 %v3686, 16
        %v3696 = vshll.u32 %v3686, 16
        %v3698 = vrot.slane %v3696, 1
        %v3699 = vor.u32 %v3694, %v3698
        %v3701 = vshll.u32 %v3687, 16
        %v3703 = vrot.slane %v3701, 1
        %v3704 = vsel %vm897, %v3699, %v3703
        %v3705 = vshrl.u32 %v3687, 16
        %v3707 = vor.u32 %v3705, %v3703
        %v3709 = vshll.u32 %v3688, 16
        %v3711 = vrot.slane %v3709, 1
        %v3712 = vsel %vm897, %v3707, %v3711
        %v3713 = vshrl.u32 %v3688, 16
        %v3715 = vor.u32 %v3713, %v3711
        %v3717 = vshll.u32 %v3689, 16
        %v3719 = vrot.slane %v3717, 1
        %v3720 = vsel %vm897, %v3715, %v3719
        %v3721 = vshrl.u32 %v3689, 16
        %v3723 = vor.u32 %v3721, %v3719
        %v3725 = vshll.u32 %v3690, 16
        %v3727 = vrot.slane %v3725, 1
        %v3728 = vsel %vm897, %v3723, %v3727
        %v3729 = vshrl.u32 %v3690, 16
        %v3731 = vor.u32 %v3729, %v3727
        %v3733 = vshll.u32 %v3691, 16
        %v3735 = vrot.slane %v3733, 1
        %v3736 = vsel %vm897, %v3731, %v3735
        %v3737 = vshrl.u32 %v3691, 16
        %v3739 = vor.u32 %v3737, %v3735
        %v3741 = vshll.u32 %v3692, 16
        %v3743 = vrot.slane %v3741, 1
        %v3744 = vsel %vm897, %v3739, %v3743
        %v3767 = vunpack.c.l.b16 %v3644
        %v3768 = vunpack.c.l.b16 %v3645
        %v3769 = vunpack.c.l.b16 %v3646
        %v3770 = vunpack.c.l.b16 %v3647
        %v3771 = vunpack.c.l.b16 %v3648
        %v3772 = vunpack.c.l.b16 %v3649
        %v3773 = vunpack.c.l.b16 %v3650
        %v3774 = vunpack.c.l.b16 %v3651
        %v3775 = vunpack.c.l.b16 %v3652
        %v3776 = vunpack.c.l.b16 %v3653
        %v3777 = vunpack.c.l.b16 %v3654
        %v3778 = vunpack.c.l.b16 %v3655
        %v3779 = vunpack.c.l.b16 %v3656
        %v3780 = vunpack.c.l.b16 %v3657
        %v3781 = vunpack.c.l.b16 %v3658
        %v3782 = vunpack.c.l.b16 %v3659
        %v3783 = vpack.c.b16 %v3768, %v3767
        %v3784 = vpack.c.b16 %v3770, %v3769
        %v3785 = vpack.c.b16 %v3772, %v3771
        %v3786 = vpack.c.b16 %v3774, %v3773
        %v3787 = vpack.c.b16 %v3776, %v3775
        %v3788 = vpack.c.b16 %v3778, %v3777
        %v3789 = vpack.c.b16 %v3780, %v3779
        %v3790 = vpack.c.b16 %v3782, %v3781
        %3799 = vmatpush.bf16.msra.mxu0 %v3790
        %3800 = vmatpush.bf16.msra.mxu0 %v3789
        %3801 = vmatpush.bf16.msra.mxu0 %v3788
        %3802 = vmatpush.bf16.msra.mxu0 %v3787
        %3803 = vmatpush.bf16.msra.mxu0 %v3786
        %3804 = vmatpush.bf16.msra.mxu0 %v3785
        %3805 = vmatpush.bf16.msra.mxu0 %v3784
        %3806 = vmatpush.bf16.msra.mxu0 %v3783
        %3807 = vmatmul.bf16.gmra.mxu0 %v3704
        %v3808 = vpop.f32.mrf.mxu0
        %v3809 = vadd.f32 0.0, %v3808
        %v3810 = vpop.f32.mrf.mxu0
        %v3811 = vadd.f32 0.0, %v3810
        %3812 = vmatmul.bf16.gmra.mxu0 %v3712
        %v3813 = vpop.f32.mrf.mxu0
        %v3814 = vadd.f32 0.0, %v3813
        %v3815 = vpop.f32.mrf.mxu0
        %v3816 = vadd.f32 0.0, %v3815
        %3817 = vmatmul.bf16.gmra.mxu0 %v3720
        %v3818 = vpop.f32.mrf.mxu0
        %v3819 = vadd.f32 0.0, %v3818
        %v3820 = vpop.f32.mrf.mxu0
        %v3821 = vadd.f32 0.0, %v3820
        %3822 = vmatmul.bf16.gmra.mxu0 %v3728
        %v3823 = vpop.f32.mrf.mxu0
        %v3824 = vadd.f32 0.0, %v3823
        %v3825 = vpop.f32.mrf.mxu0
        %v3826 = vadd.f32 0.0, %v3825
        %3827 = vmatmul.bf16.gmra.mxu0 %v3736
        %v3828 = vpop.f32.mrf.mxu0
        %v3829 = vadd.f32 0.0, %v3828
        %v3830 = vpop.f32.mrf.mxu0
        %v3831 = vadd.f32 0.0, %v3830
        %3832 = vmatmul.bf16.gmra.mxu0 %v3744
        %v3833 = vpop.f32.mrf.mxu0
        %v3834 = vadd.f32 0.0, %v3833
        %v3835 = vpop.f32.mrf.mxu0
        %v3836 = vadd.f32 0.0, %v3835
        %3837 = vdwg.mxu0
        %v3838 = vadd.f32 %v3618, %v3809
        %v3839 = vadd.f32 %v3619, %v3811
        %v3840 = vadd.f32 %v3620, %v3814
        %v3841 = vadd.f32 %v3621, %v3816
        %v3842 = vadd.f32 %v3622, %v3819
        %v3843 = vadd.f32 %v3623, %v3821
        %v3844 = vadd.f32 %v3624, %v3824
        %v3845 = vadd.f32 %v3625, %v3826
        %v3846 = vadd.f32 %v3626, %v3829
        %v3847 = vadd.f32 %v3627, %v3831
        %v3848 = vadd.f32 %v3628, %v3834
        %v3849 = vadd.f32 %v3629, %v3836
        %v3850 = vld [vmem:[#allocation2 + $0x20] sm:$0x8]
        %v3851 = vld [vmem:[#allocation2 + $0x24] sm:$0xf]
        %v3852 = vld [vmem:[#allocation2 + $0x28] sm:$0xf]
        %v3853 = vld [vmem:[#allocation2 + $0x2c] sm:$0xf]
        %v3854 = vld [vmem:[#allocation2 + $0x30] sm:$0xf]
        %v3855 = vld [vmem:[#allocation2 + $0x34] sm:$0xf]
        %v3856 = vld [vmem:[#allocation2 + $0x38] sm:$0xf]
        %v3857 = vld [vmem:[#allocation2 + $0x3c] sm:$0xf]
        %v3858 = vld [vmem:[#allocation2 + $0x40] sm:$0xf]
        %v3859 = vld [vmem:[#allocation2 + $0x44] sm:$0xf]
        %v3860 = vld [vmem:[#allocation2 + $0x48] sm:$0xf]
        %v3861 = vld [vmem:[#allocation2 + $0x4c] sm:$0xf]
        %v3862 = vld [vmem:[#allocation2 + $0x50] sm:$0xf]
        %s3863 = scalar_lea.vmem [#allocation8], 960
        %v3864 = vld [vmem:[%s3863] sm:$0xf]
        %v3865 = vld [vmem:[%s3863 + $0x4] sm:$0xf]
        %v3866 = vld [vmem:[%s3863 + $0x8] sm:$0xf]
        %v3867 = vld [vmem:[%s3863 + $0xc] sm:$0xf]
        %v3868 = vld [vmem:[%s3863 + $0x10] sm:$0xf]
        %v3869 = vld [vmem:[%s3863 + $0x14] sm:$0xf]
        %v3870 = vld [vmem:[%s3863 + $0x18] sm:$0xf]
        %v3871 = vld [vmem:[%s3863 + $0x1c] sm:$0xf]
        %v3872 = vld [vmem:[%s3863 + $0x20] sm:$0xf]
        %v3873 = vld [vmem:[%s3863 + $0x24] sm:$0xf]
        %v3874 = vld [vmem:[%s3863 + $0x28] sm:$0xf]
        %v3875 = vld [vmem:[%s3863 + $0x2c] sm:$0xf]
        %v3876 = vld [vmem:[%s3863 + $0x30] sm:$0xf]
        %v3877 = vld [vmem:[%s3863 + $0x34] sm:$0xf]
        %v3878 = vld [vmem:[%s3863 + $0x38] sm:$0xf]
        %v3879 = vld [vmem:[%s3863 + $0x3c] sm:$0xf]
        %v3893 = vunpack.c.l.b16 %v3850
        %v3894 = vunpack.c.l.b16 %v3851
        %v3895 = vunpack.c.l.b16 %v3852
        %v3896 = vunpack.c.l.b16 %v3853
        %v3897 = vunpack.c.l.b16 %v3854
        %v3898 = vunpack.c.l.b16 %v3855
        %v3899 = vunpack.c.l.b16 %v3856
        %v3900 = vunpack.c.l.b16 %v3857
        %v3901 = vunpack.c.l.b16 %v3858
        %v3902 = vunpack.c.l.b16 %v3859
        %v3903 = vunpack.c.l.b16 %v3860
        %v3904 = vunpack.c.l.b16 %v3861
        %v3905 = vunpack.c.l.b16 %v3862
        %v3906 = vpack.c.b16 %v3894, %v3893
        %v3907 = vpack.c.b16 %v3896, %v3895
        %v3908 = vpack.c.b16 %v3898, %v3897
        %v3909 = vpack.c.b16 %v3900, %v3899
        %v3910 = vpack.c.b16 %v3902, %v3901
        %v3911 = vpack.c.b16 %v3904, %v3903
        %v3912 = vpack.c.b16 %v3905, %v3905
        %v3914 = vshrl.u32 %v3906, 16
        %v3916 = vrot.slane %v3914, 3
        %v3917 = vshll.u32 %v3906, 16
        %v3919 = vrot.slane %v3917, 4
        %v3920 = vor.u32 %v3916, %v3919
        %v3922 = vshrl.u32 %v3907, 16
        %v3924 = vrot.slane %v3922, 3
        %v3925 = vshll.u32 %v3907, 16
        %v3927 = vrot.slane %v3925, 4
        %v3928 = vor.u32 %v3924, %v3927
        %v3929 = vsel %vm612, %v3920, %v3928
        %v3931 = vshrl.u32 %v3908, 16
        %v3933 = vrot.slane %v3931, 3
        %v3934 = vshll.u32 %v3908, 16
        %v3936 = vrot.slane %v3934, 4
        %v3937 = vor.u32 %v3933, %v3936
        %v3938 = vsel %vm612, %v3928, %v3937
        %v3940 = vshrl.u32 %v3909, 16
        %v3942 = vrot.slane %v3940, 3
        %v3943 = vshll.u32 %v3909, 16
        %v3945 = vrot.slane %v3943, 4
        %v3946 = vor.u32 %v3942, %v3945
        %v3947 = vsel %vm612, %v3937, %v3946
        %v3949 = vshrl.u32 %v3910, 16
        %v3951 = vrot.slane %v3949, 3
        %v3952 = vshll.u32 %v3910, 16
        %v3954 = vrot.slane %v3952, 4
        %v3955 = vor.u32 %v3951, %v3954
        %v3956 = vsel %vm612, %v3946, %v3955
        %v3958 = vshrl.u32 %v3911, 16
        %v3960 = vrot.slane %v3958, 3
        %v3961 = vshll.u32 %v3911, 16
        %v3963 = vrot.slane %v3961, 4
        %v3964 = vor.u32 %v3960, %v3963
        %v3965 = vsel %vm612, %v3955, %v3964
        %v3967 = vshrl.u32 %v3912, 16
        %v3969 = vrot.slane %v3967, 3
        %v3970 = vshll.u32 %v3912, 16
        %v3972 = vrot.slane %v3970, 4
        %v3973 = vor.u32 %v3969, %v3972
        %v3974 = vsel %vm612, %v3964, %v3973
        %v3997 = vunpack.c.l.b16 %v3864
        %v3998 = vunpack.c.l.b16 %v3865
        %v3999 = vunpack.c.l.b16 %v3866
        %v4000 = vunpack.c.l.b16 %v3867
        %v4001 = vunpack.c.l.b16 %v3868
        %v4002 = vunpack.c.l.b16 %v3869
        %v4003 = vunpack.c.l.b16 %v3870
        %v4004 = vunpack.c.l.b16 %v3871
        %v4005 = vunpack.c.l.b16 %v3872
        %v4006 = vunpack.c.l.b16 %v3873
        %v4007 = vunpack.c.l.b16 %v3874
        %v4008 = vunpack.c.l.b16 %v3875
        %v4009 = vunpack.c.l.b16 %v3876
        %v4010 = vunpack.c.l.b16 %v3877
        %v4011 = vunpack.c.l.b16 %v3878
        %v4012 = vunpack.c.l.b16 %v3879
        %v4013 = vpack.c.b16 %v3998, %v3997
        %v4014 = vpack.c.b16 %v4000, %v3999
        %v4015 = vpack.c.b16 %v4002, %v4001
        %v4016 = vpack.c.b16 %v4004, %v4003
        %v4017 = vpack.c.b16 %v4006, %v4005
        %v4018 = vpack.c.b16 %v4008, %v4007
        %v4019 = vpack.c.b16 %v4010, %v4009
        %v4020 = vpack.c.b16 %v4012, %v4011
        %4029 = vmatpush.bf16.msra.mxu0 %v4020
        %4030 = vmatpush.bf16.msra.mxu0 %v4019
        %4031 = vmatpush.bf16.msra.mxu0 %v4018
        %4032 = vmatpush.bf16.msra.mxu0 %v4017
        %4033 = vmatpush.bf16.msra.mxu0 %v4016
        %4034 = vmatpush.bf16.msra.mxu0 %v4015
        %4035 = vmatpush.bf16.msra.mxu0 %v4014
        %4036 = vmatpush.bf16.msra.mxu0 %v4013
        %4037 = vmatmul.bf16.gmra.mxu0 %v3929
        %v4038 = vpop.f32.mrf.mxu0
        %v4039 = vadd.f32 0.0, %v4038
        %v4040 = vpop.f32.mrf.mxu0
        %v4041 = vadd.f32 0.0, %v4040
        %4042 = vmatmul.bf16.gmra.mxu0 %v3938
        %v4043 = vpop.f32.mrf.mxu0
        %v4044 = vadd.f32 0.0, %v4043
        %v4045 = vpop.f32.mrf.mxu0
        %v4046 = vadd.f32 0.0, %v4045
        %4047 = vmatmul.bf16.gmra.mxu0 %v3947
        %v4048 = vpop.f32.mrf.mxu0
        %v4049 = vadd.f32 0.0, %v4048
        %v4050 = vpop.f32.mrf.mxu0
        %v4051 = vadd.f32 0.0, %v4050
        %4052 = vmatmul.bf16.gmra.mxu0 %v3956
        %v4053 = vpop.f32.mrf.mxu0
        %v4054 = vadd.f32 0.0, %v4053
        %v4055 = vpop.f32.mrf.mxu0
        %v4056 = vadd.f32 0.0, %v4055
        %4057 = vmatmul.bf16.gmra.mxu0 %v3965
        %v4058 = vpop.f32.mrf.mxu0
        %v4059 = vadd.f32 0.0, %v4058
        %v4060 = vpop.f32.mrf.mxu0
        %v4061 = vadd.f32 0.0, %v4060
        %4062 = vmatmul.bf16.gmra.mxu0 %v3974
        %v4063 = vpop.f32.mrf.mxu0
        %v4064 = vadd.f32 0.0, %v4063
        %v4065 = vpop.f32.mrf.mxu0
        %v4066 = vadd.f32 0.0, %v4065
        %4067 = vdwg.mxu0
        %v4068 = vadd.f32 %v3838, %v4039
        %v4069 = vadd.f32 %v3839, %v4041
        %v4070 = vadd.f32 %v3840, %v4044
        %v4071 = vadd.f32 %v3841, %v4046
        %v4072 = vadd.f32 %v3842, %v4049
        %v4073 = vadd.f32 %v3843, %v4051
        %v4074 = vadd.f32 %v3844, %v4054
        %v4075 = vadd.f32 %v3845, %v4056
        %v4076 = vadd.f32 %v3846, %v4059
        %v4077 = vadd.f32 %v3847, %v4061
        %v4078 = vadd.f32 %v3848, %v4064
        %v4079 = vadd.f32 %v3849, %v4066
        %s4080 = scalar_lea.vmem [#allocation8], 1024
        %v4081 = vld [vmem:[%s4080] sm:$0xf]
        %v4082 = vld [vmem:[%s4080 + $0x4] sm:$0xf]
        %v4083 = vld [vmem:[%s4080 + $0x8] sm:$0xf]
        %v4084 = vld [vmem:[%s4080 + $0xc] sm:$0xf]
        %v4085 = vld [vmem:[%s4080 + $0x10] sm:$0xf]
        %v4086 = vld [vmem:[%s4080 + $0x14] sm:$0xf]
        %v4087 = vld [vmem:[%s4080 + $0x18] sm:$0xf]
        %v4088 = vld [vmem:[%s4080 + $0x1c] sm:$0xf]
        %v4089 = vld [vmem:[%s4080 + $0x20] sm:$0xf]
        %v4090 = vld [vmem:[%s4080 + $0x24] sm:$0xf]
        %v4091 = vld [vmem:[%s4080 + $0x28] sm:$0xf]
        %v4092 = vld [vmem:[%s4080 + $0x2c] sm:$0xf]
        %v4093 = vld [vmem:[%s4080 + $0x30] sm:$0xf]
        %v4094 = vld [vmem:[%s4080 + $0x34] sm:$0xf]
        %v4095 = vld [vmem:[%s4080 + $0x38] sm:$0xf]
        %v4096 = vld [vmem:[%s4080 + $0x3c] sm:$0xf]
        %v4097 = vpack.c.b16 %v3895, %v3894
        %v4098 = vpack.c.b16 %v3897, %v3896
        %v4099 = vpack.c.b16 %v3899, %v3898
        %v4100 = vpack.c.b16 %v3901, %v3900
        %v4101 = vpack.c.b16 %v3903, %v3902
        %v4102 = vpack.c.b16 %v3905, %v3904
        %v4125 = vunpack.c.l.b16 %v4081
        %v4126 = vunpack.c.l.b16 %v4082
        %v4127 = vunpack.c.l.b16 %v4083
        %v4128 = vunpack.c.l.b16 %v4084
        %v4129 = vunpack.c.l.b16 %v4085
        %v4130 = vunpack.c.l.b16 %v4086
        %v4131 = vunpack.c.l.b16 %v4087
        %v4132 = vunpack.c.l.b16 %v4088
        %v4133 = vunpack.c.l.b16 %v4089
        %v4134 = vunpack.c.l.b16 %v4090
        %v4135 = vunpack.c.l.b16 %v4091
        %v4136 = vunpack.c.l.b16 %v4092
        %v4137 = vunpack.c.l.b16 %v4093
        %v4138 = vunpack.c.l.b16 %v4094
        %v4139 = vunpack.c.l.b16 %v4095
        %v4140 = vunpack.c.l.b16 %v4096
        %v4141 = vpack.c.b16 %v4126, %v4125
        %v4142 = vpack.c.b16 %v4128, %v4127
        %v4143 = vpack.c.b16 %v4130, %v4129
        %v4144 = vpack.c.b16 %v4132, %v4131
        %v4145 = vpack.c.b16 %v4134, %v4133
        %v4146 = vpack.c.b16 %v4136, %v4135
        %v4147 = vpack.c.b16 %v4138, %v4137
        %v4148 = vpack.c.b16 %v4140, %v4139
        %4157 = vmatpush.bf16.msra.mxu0 %v4148
        %4158 = vmatpush.bf16.msra.mxu0 %v4147
        %4159 = vmatpush.bf16.msra.mxu0 %v4146
        %4160 = vmatpush.bf16.msra.mxu0 %v4145
        %4161 = vmatpush.bf16.msra.mxu0 %v4144
        %4162 = vmatpush.bf16.msra.mxu0 %v4143
        %4163 = vmatpush.bf16.msra.mxu0 %v4142
        %4164 = vmatpush.bf16.msra.mxu0 %v4141
        %4165 = vmatmul.bf16.gmra.mxu0 %v4097
        %v4166 = vpop.f32.mrf.mxu0
        %v4167 = vadd.f32 0.0, %v4166
        %v4168 = vpop.f32.mrf.mxu0
        %v4169 = vadd.f32 0.0, %v4168
        %4170 = vmatmul.bf16.gmra.mxu0 %v4098
        %v4171 = vpop.f32.mrf.mxu0
        %v4172 = vadd.f32 0.0, %v4171
        %v4173 = vpop.f32.mrf.mxu0
        %v4174 = vadd.f32 0.0, %v4173
        %4175 = vmatmul.bf16.gmra.mxu0 %v4099
        %v4176 = vpop.f32.mrf.mxu0
        %v4177 = vadd.f32 0.0, %v4176
        %v4178 = vpop.f32.mrf.mxu0
        %v4179 = vadd.f32 0.0, %v4178
        %4180 = vmatmul.bf16.gmra.mxu0 %v4100
        %v4181 = vpop.f32.mrf.mxu0
        %v4182 = vadd.f32 0.0, %v4181
        %v4183 = vpop.f32.mrf.mxu0
        %v4184 = vadd.f32 0.0, %v4183
        %4185 = vmatmul.bf16.gmra.mxu0 %v4101
        %v4186 = vpop.f32.mrf.mxu0
        %v4187 = vadd.f32 0.0, %v4186
        %v4188 = vpop.f32.mrf.mxu0
        %v4189 = vadd.f32 0.0, %v4188
        %4190 = vmatmul.bf16.gmra.mxu0 %v4102
        %v4191 = vpop.f32.mrf.mxu0
        %v4192 = vadd.f32 0.0, %v4191
        %v4193 = vpop.f32.mrf.mxu0
        %v4194 = vadd.f32 0.0, %v4193
        %4195 = vdwg.mxu0
        %v4196 = vadd.f32 %v4068, %v4167
        %v4197 = vadd.f32 %v4069, %v4169
        %v4198 = vadd.f32 %v4070, %v4172
        %v4199 = vadd.f32 %v4071, %v4174
        %v4200 = vadd.f32 %v4072, %v4177
        %v4201 = vadd.f32 %v4073, %v4179
        %v4202 = vadd.f32 %v4074, %v4182
        %v4203 = vadd.f32 %v4075, %v4184
        %v4204 = vadd.f32 %v4076, %v4187
        %v4205 = vadd.f32 %v4077, %v4189
        %v4206 = vadd.f32 %v4078, %v4192
        %v4207 = vadd.f32 %v4079, %v4194
        %v4208 = vld [vmem:[#allocation2 + $0x24] sm:$0xf]
        %v4209 = vld [vmem:[#allocation2 + $0x28] sm:$0xf]
        %v4210 = vld [vmem:[#allocation2 + $0x2c] sm:$0xf]
        %v4211 = vld [vmem:[#allocation2 + $0x30] sm:$0xf]
        %v4212 = vld [vmem:[#allocation2 + $0x34] sm:$0xf]
        %v4213 = vld [vmem:[#allocation2 + $0x38] sm:$0xf]
        %v4214 = vld [vmem:[#allocation2 + $0x3c] sm:$0xf]
        %v4215 = vld [vmem:[#allocation2 + $0x40] sm:$0xf]
        %v4216 = vld [vmem:[#allocation2 + $0x44] sm:$0xf]
        %v4217 = vld [vmem:[#allocation2 + $0x48] sm:$0xf]
        %v4218 = vld [vmem:[#allocation2 + $0x4c] sm:$0xf]
        %v4219 = vld [vmem:[#allocation2 + $0x50] sm:$0xf]
        %v4220 = vld [vmem:[#allocation2 + $0x54] sm:$0x1]
        %s4221 = scalar_lea.vmem [#allocation8], 1088
        %v4222 = vld [vmem:[%s4221] sm:$0xf]
        %v4223 = vld [vmem:[%s4221 + $0x4] sm:$0xf]
        %v4224 = vld [vmem:[%s4221 + $0x8] sm:$0xf]
        %v4225 = vld [vmem:[%s4221 + $0xc] sm:$0xf]
        %v4226 = vld [vmem:[%s4221 + $0x10] sm:$0xf]
        %v4227 = vld [vmem:[%s4221 + $0x14] sm:$0xf]
        %v4228 = vld [vmem:[%s4221 + $0x18] sm:$0xf]
        %v4229 = vld [vmem:[%s4221 + $0x1c] sm:$0xf]
        %v4230 = vld [vmem:[%s4221 + $0x20] sm:$0xf]
        %v4231 = vld [vmem:[%s4221 + $0x24] sm:$0xf]
        %v4232 = vld [vmem:[%s4221 + $0x28] sm:$0xf]
        %v4233 = vld [vmem:[%s4221 + $0x2c] sm:$0xf]
        %v4234 = vld [vmem:[%s4221 + $0x30] sm:$0xf]
        %v4235 = vld [vmem:[%s4221 + $0x34] sm:$0xf]
        %v4236 = vld [vmem:[%s4221 + $0x38] sm:$0xf]
        %v4237 = vld [vmem:[%s4221 + $0x3c] sm:$0xf]
        %v4251 = vunpack.c.l.b16 %v4208
        %v4252 = vunpack.c.l.b16 %v4209
        %v4253 = vunpack.c.l.b16 %v4210
        %v4254 = vunpack.c.l.b16 %v4211
        %v4255 = vunpack.c.l.b16 %v4212
        %v4256 = vunpack.c.l.b16 %v4213
        %v4257 = vunpack.c.l.b16 %v4214
        %v4258 = vunpack.c.l.b16 %v4215
        %v4259 = vunpack.c.l.b16 %v4216
        %v4260 = vunpack.c.l.b16 %v4217
        %v4261 = vunpack.c.l.b16 %v4218
        %v4262 = vunpack.c.l.b16 %v4219
        %v4263 = vunpack.c.l.b16 %v4220
        %v4264 = vpack.c.b16 %v4252, %v4251
        %v4265 = vpack.c.b16 %v4254, %v4253
        %v4266 = vpack.c.b16 %v4256, %v4255
        %v4267 = vpack.c.b16 %v4258, %v4257
        %v4268 = vpack.c.b16 %v4260, %v4259
        %v4269 = vpack.c.b16 %v4262, %v4261
        %v4270 = vpack.c.b16 %v4263, %v4263
        %v4272 = vshrl.u32 %v4264, 16
        %v4274 = vshll.u32 %v4264, 16
        %v4276 = vrot.slane %v4274, 1
        %v4277 = vor.u32 %v4272, %v4276
        %v4279 = vshll.u32 %v4265, 16
        %v4281 = vrot.slane %v4279, 1
        %v4282 = vsel %vm897, %v4277, %v4281
        %v4283 = vshrl.u32 %v4265, 16
        %v4285 = vor.u32 %v4283, %v4281
        %v4287 = vshll.u32 %v4266, 16
        %v4289 = vrot.slane %v4287, 1
        %v4290 = vsel %vm897, %v4285, %v4289
        %v4291 = vshrl.u32 %v4266, 16
        %v4293 = vor.u32 %v4291, %v4289
        %v4295 = vshll.u32 %v4267, 16
        %v4297 = vrot.slane %v4295, 1
        %v4298 = vsel %vm897, %v4293, %v4297
        %v4299 = vshrl.u32 %v4267, 16
        %v4301 = vor.u32 %v4299, %v4297
        %v4303 = vshll.u32 %v4268, 16
        %v4305 = vrot.slane %v4303, 1
        %v4306 = vsel %vm897, %v4301, %v4305
        %v4307 = vshrl.u32 %v4268, 16
        %v4309 = vor.u32 %v4307, %v4305
        %v4311 = vshll.u32 %v4269, 16
        %v4313 = vrot.slane %v4311, 1
        %v4314 = vsel %vm897, %v4309, %v4313
        %v4315 = vshrl.u32 %v4269, 16
        %v4317 = vor.u32 %v4315, %v4313
        %v4319 = vshll.u32 %v4270, 16
        %v4321 = vrot.slane %v4319, 1
        %v4322 = vsel %vm897, %v4317, %v4321
        %v4345 = vunpack.c.l.b16 %v4222
        %v4346 = vunpack.c.l.b16 %v4223
        %v4347 = vunpack.c.l.b16 %v4224
        %v4348 = vunpack.c.l.b16 %v4225
        %v4349 = vunpack.c.l.b16 %v4226
        %v4350 = vunpack.c.l.b16 %v4227
        %v4351 = vunpack.c.l.b16 %v4228
        %v4352 = vunpack.c.l.b16 %v4229
        %v4353 = vunpack.c.l.b16 %v4230
        %v4354 = vunpack.c.l.b16 %v4231
        %v4355 = vunpack.c.l.b16 %v4232
        %v4356 = vunpack.c.l.b16 %v4233
        %v4357 = vunpack.c.l.b16 %v4234
        %v4358 = vunpack.c.l.b16 %v4235
        %v4359 = vunpack.c.l.b16 %v4236
        %v4360 = vunpack.c.l.b16 %v4237
        %v4361 = vpack.c.b16 %v4346, %v4345
        %v4362 = vpack.c.b16 %v4348, %v4347
        %v4363 = vpack.c.b16 %v4350, %v4349
        %v4364 = vpack.c.b16 %v4352, %v4351
        %v4365 = vpack.c.b16 %v4354, %v4353
        %v4366 = vpack.c.b16 %v4356, %v4355
        %v4367 = vpack.c.b16 %v4358, %v4357
        %v4368 = vpack.c.b16 %v4360, %v4359
        %4377 = vmatpush.bf16.msra.mxu0 %v4368
        %4378 = vmatpush.bf16.msra.mxu0 %v4367
        %4379 = vmatpush.bf16.msra.mxu0 %v4366
        %4380 = vmatpush.bf16.msra.mxu0 %v4365
        %4381 = vmatpush.bf16.msra.mxu0 %v4364
        %4382 = vmatpush.bf16.msra.mxu0 %v4363
        %4383 = vmatpush.bf16.msra.mxu0 %v4362
        %4384 = vmatpush.bf16.msra.mxu0 %v4361
        %4385 = vmatmul.bf16.gmra.mxu0 %v4282
        %v4386 = vpop.f32.mrf.mxu0
        %v4387 = vadd.f32 0.0, %v4386
        %v4388 = vpop.f32.mrf.mxu0
        %v4389 = vadd.f32 0.0, %v4388
        %4390 = vmatmul.bf16.gmra.mxu0 %v4290
        %v4391 = vpop.f32.mrf.mxu0
        %v4392 = vadd.f32 0.0, %v4391
        %v4393 = vpop.f32.mrf.mxu0
        %v4394 = vadd.f32 0.0, %v4393
        %4395 = vmatmul.bf16.gmra.mxu0 %v4298
        %v4396 = vpop.f32.mrf.mxu0
        %v4397 = vadd.f32 0.0, %v4396
        %v4398 = vpop.f32.mrf.mxu0
        %v4399 = vadd.f32 0.0, %v4398
        %4400 = vmatmul.bf16.gmra.mxu0 %v4306
        %v4401 = vpop.f32.mrf.mxu0
        %v4402 = vadd.f32 0.0, %v4401
        %v4403 = vpop.f32.mrf.mxu0
        %v4404 = vadd.f32 0.0, %v4403
        %4405 = vmatmul.bf16.gmra.mxu0 %v4314
        %v4406 = vpop.f32.mrf.mxu0
        %v4407 = vadd.f32 0.0, %v4406
        %v4408 = vpop.f32.mrf.mxu0
        %v4409 = vadd.f32 0.0, %v4408
        %4410 = vmatmul.bf16.gmra.mxu0 %v4322
        %v4411 = vpop.f32.mrf.mxu0
        %v4412 = vadd.f32 0.0, %v4411
        %v4413 = vpop.f32.mrf.mxu0
        %v4414 = vadd.f32 0.0, %v4413
        %4415 = vdwg.mxu0
        %v4416 = vadd.f32 %v4196, %v4387
        %v4417 = vadd.f32 %v4197, %v4389
        %v4418 = vadd.f32 %v4198, %v4392
        %v4419 = vadd.f32 %v4199, %v4394
        %v4420 = vadd.f32 %v4200, %v4397
        %v4421 = vadd.f32 %v4201, %v4399
        %v4422 = vadd.f32 %v4202, %v4402
        %v4423 = vadd.f32 %v4203, %v4404
        %v4424 = vadd.f32 %v4204, %v4407
        %v4425 = vadd.f32 %v4205, %v4409
        %v4426 = vadd.f32 %v4206, %v4412
        %v4427 = vadd.f32 %v4207, %v4414
        %v4428 = vmul.f32 %v4416, 0.2
        %v4429 = vmul.f32 %v4417, 0.2
        %v4430 = vmul.f32 %v4418, 0.2
        %v4431 = vmul.f32 %v4419, 0.2
        %v4432 = vmul.f32 %v4420, 0.2
        %v4433 = vmul.f32 %v4421, 0.2
        %v4434 = vmul.f32 %v4422, 0.2
        %v4435 = vmul.f32 %v4423, 0.2
        %v4436 = vmul.f32 %v4424, 0.2
        %v4437 = vmul.f32 %v4425, 0.2
        %v4438 = vmul.f32 %v4426, 0.2
        %v4439 = vmul.f32 %v4427, 0.2
        %v4440 = vld [vmem:[%s227] sm:$0xff]
        %v4441 = vld [vmem:[%s227 + $0x8] sm:$0xff]
        %v4442 = vld [vmem:[%s227 + $0x10] sm:$0xff]
        %v4443 = vld [vmem:[%s227 + $0x18] sm:$0xff]
        %v4444 = vld [vmem:[%s227 + $0x20] sm:$0xff]
        %v4445 = vld [vmem:[%s227 + $0x28] sm:$0xff]
        %v4446 = vld [vmem:[%s227 + $0x30] sm:$0xff]
        %v4447 = vld [vmem:[%s227 + $0x38] sm:$0xff]
        %v4448 = vld [vmem:[%s227 + $0x40] sm:$0xff]
        %v4449 = vld [vmem:[%s227 + $0x48] sm:$0xff]
        %v4450 = vld [vmem:[%s227 + $0x50] sm:$0xff]
        %v4451 = vld [vmem:[%s227 + $0x58] sm:$0xff]
        %v4452 = vadd.f32 %v4428, %v4440
        %v4453 = vadd.f32 %v4429, %v4441
        %v4454 = vadd.f32 %v4430, %v4442
        %v4455 = vadd.f32 %v4431, %v4443
        %v4456 = vadd.f32 %v4432, %v4444
        %v4457 = vadd.f32 %v4433, %v4445
        %v4458 = vadd.f32 %v4434, %v4446
        %v4459 = vadd.f32 %v4435, %v4447
        %v4460 = vadd.f32 %v4436, %v4448
        %v4461 = vadd.f32 %v4437, %v4449
        %v4462 = vadd.f32 %v4438, %v4450
        %v4463 = vadd.f32 %v4439, %v4451
        %4464 = vst [vmem:[%s270] sm:$0xff] %v4452
        %4465 = vst [vmem:[%s270 + $0x8] sm:$0xff] %v4453
        %4466 = vst [vmem:[%s270 + $0x10] sm:$0xff] %v4454
        %4467 = vst [vmem:[%s270 + $0x18] sm:$0xff] %v4455
        %4468 = vst [vmem:[%s270 + $0x20] sm:$0xff] %v4456
        %4469 = vst [vmem:[%s270 + $0x28] sm:$0xff] %v4457
        %4470 = vst [vmem:[%s270 + $0x30] sm:$0xff] %v4458
        %4471 = vst [vmem:[%s270 + $0x38] sm:$0xff] %v4459
        %4472 = vst [vmem:[%s270 + $0x40] sm:$0xff] %v4460
        %4473 = vst [vmem:[%s270 + $0x48] sm:$0xff] %v4461
        %4474 = vst [vmem:[%s270 + $0x50] sm:$0xff] %v4462
        %4475 = vst [vmem:[%s270 + $0x58] sm:$0xff] %v4463
        %s4476 = sand.u32 %s122, 1
        %s4477 = scalar_lea.sflag [#allocation5], %s4476
        %s4478 = sand.u32 %s122, 1
        %s4479 = smul.addr %s4478, 96
        %s4480 = scalar_lea.vmem [#allocation9], %s4479
        // Predicated region
        $region53: #{tpu_custom_call.1} parent=31 // pred_check
          %p4481 = pneg %p132
        $region54: #{tpu_custom_call.1} parent=31 // pred_check_branch
          %4483 = sbr.rel (%p4481) target = $region56
        $region55: #{tpu_custom_call.1} parent=31 // pred_region
          %4485 = vsyncadd %s4477, 0
          %s4486 = smul.addr %s28, 12
          %s4487 = smul.addr %s27, 48
          %s4488 = sadd.s32 %s4486, %s4487
          %s4489 = smul.addr %s4488, 8
          %s4490 = scalar_lea.hbm %s3, %s4489
          %s4491 = sshll.u32 %s4480, 4
          %s4492 = int_to_ptr.vmem [resolvable:$true] %s4491
          %s4493 = sshll.u32 %s4490, 4
          %s4494 = int_to_ptr.hbm [resolvable:$true] %s4493
          %4499 = dma.vmem_to_hbm [thread:$0]  %s4492, 1536, %s4494, %s4477, 128, 128, 8
        $region56: #{tpu_custom_call.1} parent=31 // pred_fallthru
          _
      $region32: #{tpu_custom_call.1} parent=5 // pred_fallthru
        _
      %p4500 = scmp.le.s32.totalorder 2, %s18
      // Predicated region
      $region57: #{tpu_custom_call.1} parent=5 // pred_check
        %p4501 = pneg %p4500
      $region58: #{tpu_custom_call.1} parent=5 // pred_check_branch
        %4503 = sbr.rel (%p4501) target = $region60
      $region59: #{tpu_custom_call.1} parent=5 // pred_region
        %s4504 = ssub.s32 %s18, 2
        // Predicated region
        $region61: #{tpu_custom_call.1} parent=59 // pred_check
          %p4505 = pneg %p138
        $region62: #{tpu_custom_call.1} parent=59 // pred_check_branch
          %4507 = sbr.rel (%p4505) target = $region64
        $region63: #{tpu_custom_call.1} parent=59 // pred_region
          %s4508 = sand.u32 %s123, 1
          %s4509 = scalar_lea.sflag [#allocation5], %s4508
          %s4510 = sand.u32 %s123, 1
          %s4511 = smul.addr %s4510, 96
          %s4512 = scalar_lea.vmem [#allocation9], %s4511
          %4514 = dma.done %s4509, 1536
        $region64: #{tpu_custom_call.1} parent=59 // pred_fallthru
          _
      $region60: #{tpu_custom_call.1} parent=5 // pred_fallthru
        _
    $region6: #{tpu_custom_call.1} parent=1 // loop_footer
      %s22 = sadd.s32 1, %s18
    $region7: #{tpu_custom_call.1} parent=1 // loop_footer_branch
      %17 = sbr.rel target = $region3
    $region8: #{tpu_custom_call.1} parent=1 // loop_exit
      _
    %4515 = vsyncpa [#allocation4], 1
    %s4516 = scalar_lea.sflag [#allocation4], 1
    %4517 = vsyncpa %s4516, 1
    %4518 = vsyncpa [#allocation7], 1
    %s4519 = scalar_lea.sflag [#allocation7], 1
    %4520 = vsyncpa %s4519, 1
    %4521 = vsyncpa [#allocation5], 1
    %s4522 = scalar_lea.sflag [#allocation5], 1
    %4523 = vsyncpa %s4522, 1

// kernel: tpu_custom_call.1
$region0: #{tpu_custom_call.1}
  #allocation0 [shape = 'u32[]', space=smem, size = 0x4, offset = 0x4, fixed_abs, tag = 'smem constant byte address 0x4 - core index']
  #allocation1 [shape = 'u32[72,128]{1,0:T(1,128)}', space=vmem, size = 0x9000, scoped, tag = 'internal scratch']
  #allocation2 [shape = 'bf16[240,128]{1,0:T(8,128)(2,1)}', space=vmem, size = 0xf000, scoped, tag = 'scratch operand']
  %s0 = inlined_call_operand.hbm [shape: f32[2,4,96,128], index: 0, kind: input, shape index: {}]
  %s1 = inlined_call_operand.hbm [shape: f32[2,4,96,128], index: 1, kind: input, shape index: {}]
  %s2 = inlined_call_operand.hbm [shape: bf16[18,128,128], index: 2, kind: input, shape index: {}]
  %s3 = inlined_call_operand.hbm [shape: f32[2,4,96,128], index: 3, kind: output, shape index: {}]
  %s4 = sld [smem:[#allocation0]]
  $region65: #{tpu_custom_call.1} parent=0
    _
  %s6 = ssub.s32 1, %s4
  %s7 = scalar_select 0, %s6, %s4
  $region1: #{tpu_custom_call.1} parent=0
    #allocation3 [shape = 'u8[98304]{0}', space=vmem, size = 0x18000, scoped, tag = 'input window, operand 0']
    #allocation4 [shape = 's32[2]{0}', space=sflag, size = 0x8, scoped, tag = 'scoped memory for tpu_custom_call.1']
    #allocation5 [shape = 's32[2]{0}', space=sflag, size = 0x8, scoped, tag = 'scoped memory for tpu_custom_call.1']
    #allocation6 [shape = 'u8[98304]{0}', space=vmem, size = 0x18000, scoped, tag = 'input window, operand 1']
    #allocation7 [shape = 's32[2]{0}', space=sflag, size = 0x8, scoped, tag = 'scoped memory for tpu_custom_call.1']
    #allocation8 [shape = 'u8[589824]{0}', space=vmem, size = 0x90000, scoped, tag = 'input window, operand 2, single buffered']
    #allocation9 [shape = 'u8[98304]{0}', space=vmem, size = 0x18000, scoped, tag = 'output window, operand 0']
    %8 = vsyncpa [#allocation4], 0
    %s9 = scalar_lea.sflag [#allocation4], 1
    %10 = vsyncpa %s9, 0
    %11 = vsyncpa [#allocation7], 0
    %s12 = scalar_lea.sflag [#allocation7], 1
    %13 = vsyncpa %s12, 0
    %14 = vsyncpa [#allocation5], 0
    %s15 = scalar_lea.sflag [#allocation5], 1
    %16 = vsyncpa %s15, 0
    loop: start=0, step=1, limit=10
    $region2: #{tpu_custom_call.1} parent=1 // loop_pre_header
      _
    $region3: #{tpu_custom_call.1} parent=1 // loop_header
      %s18 = sphi 0, %s22
      %p19 = scmp.ge.s32.totalorder %s18, 10
      %s25 = sphi 0, %s37
      %s26 = sphi 0, %s33
      %s27 = sphi 0, %s25
      %s28 = sphi 0, %s26
      %s29 = sphi 0, %s27
      %s30 = sphi 0, %s28
      %s42 = sphi 0, %s44
      %s45 = sphi 0, %s42
      %s46 = sphi 0, %s45
      %s62 = sphi 0, %s46
      %s70 = sphi 0, %s72
      %s73 = sphi 0, %s70
      %s74 = sphi 0, %s73
      %s90 = sphi 0, %s74
      %s94 = sphi 0, %s94
      %s96 = sphi 0, %s94
      %s97 = sphi 0, %s96
      %s111 = sphi 0, %s97
      %s119 = sphi 0, %s121
      %s122 = sphi 0, %s119
      %s123 = sphi 0, %s122
      %s139 = sphi 0, %s123
    $region4: #{tpu_custom_call.1} parent=1 // loop_header_branch
      %21 = sbr.rel (%p19) target = $region8
    $region5: #{tpu_custom_call.1} parent=1 // loop_body
      %s23 = ssub.s32 %s18, 1
      %s24 = ssub.s32 %s18, 2
      %s31 = sadd.s32 1, %s26
      %p32 = scmp.ge.s32.totalorder %s31, 4
      %s33 = scalar_select %p32, 0, %s31
      %s34 = sadd.s32 1, %s25
      %s35 = scalar_select %p32, %s34, %s25
      %p36 = scmp.ge.s32.totalorder %s35, 2
      %s37 = scalar_select %p36, 0, %s35
      %s38 = ssub.s32 %s25, %s37
      %s39 = ssub.s32 %s26, %s33
      %s40 = sor.u32 %s38, %s39
      %p41 = scmp.eq.s32.totalorder %s40, 0
      %s43 = sadd.s32 %s42, 1
      %s44 = scalar_select %p41, %s42, %s43
      %p47 = pneg %p41
      %p48 = scmp.eq.s32.totalorder %s18, 7
      %p49 = por %p47, %p48
      %p50 = scmp.ne.s32.totalorder %s42, %s45
      %p51 = scmp.eq.s32.totalorder %s18, 0
      %p52 = por %p50, %p51
      %p53 = scmp.ne.s32.totalorder %s42, %s45
      %p54 = scmp.eq.s32.totalorder %s23, 7
      %p55 = por %p53, %p54
      %p56 = scmp.ne.s32.totalorder %s45, %s46
      %p57 = scmp.eq.s32.totalorder %s23, 0
      %p58 = por %p56, %p57
      %p59 = scmp.ne.s32.totalorder %s45, %s46
      %p60 = scmp.eq.s32.totalorder %s24, 7
      %p61 = por %p59, %p60
      %p63 = scmp.ne.s32.totalorder %s46, %s62
      %p64 = scmp.eq.s32.totalorder %s24, 0
      %p65 = por %p63, %p64
      %s66 = ssub.s32 %s25, %s37
      %s67 = ssub.s32 %s26, %s33
      %s68 = sor.u32 %s66, %s67
      %p69 = scmp.eq.s32.totalorder %s68, 0
      %s71 = sadd.s32 %s70, 1
      %s72 = scalar_select %p69, %s70, %s71
      %p75 = pneg %p69
      %p76 = scmp.eq.s32.totalorder %s18, 7
      %p77 = por %p75, %p76
      %p78 = scmp.ne.s32.totalorder %s70, %s73
      %p79 = scmp.eq.s32.totalorder %s18, 0
      %p80 = por %p78, %p79
      %p81 = scmp.ne.s32.totalorder %s70, %s73
      %p82 = scmp.eq.s32.totalorder %s23, 7
      %p83 = por %p81, %p82
      %p84 = scmp.ne.s32.totalorder %s73, %s74
      %p85 = scmp.eq.s32.totalorder %s23, 0
      %p86 = por %p84, %p85
      %p87 = scmp.ne.s32.totalorder %s73, %s74
      %p88 = scmp.eq.s32.totalorder %s24, 7
      %p89 = por %p87, %p88
      %p91 = scmp.ne.s32.totalorder %s74, %s90
      %p92 = scmp.eq.s32.totalorder %s24, 0
      %p93 = por %p91, %p92
      %s95 = sadd.s32 %s94, 1
      %p98 = scmp.eq.s32.totalorder %s18, 7
      %p99 = scmp.ne.s32.totalorder %s94, %s96
      %p100 = scmp.eq.s32.totalorder %s18, 0
      %p101 = por %p99, %p100
      %p102 = scmp.ne.s32.totalorder %s94, %s96
      %p103 = scmp.eq.s32.totalorder %s23, 7
      %p104 = por %p102, %p103
      %p105 = scmp.ne.s32.totalorder %s96, %s97
      %p106 = scmp.eq.s32.totalorder %s23, 0
      %p107 = por %p105, %p106
      %p108 = scmp.ne.s32.totalorder %s96, %s97
      %p109 = scmp.eq.s32.totalorder %s24, 7
      %p110 = por %p108, %p109
      %p112 = scmp.ne.s32.totalorder %s97, %s111
      %p113 = scmp.eq.s32.totalorder %s24, 0
      %p114 = por %p112, %p113
      %s115 = ssub.s32 %s25, %s37
      %s116 = ssub.s32 %s26, %s33
      %s117 = sor.u32 %s115, %s116
      %p118 = scmp.eq.s32.totalorder %s117, 0
      %s120 = sadd.s32 %s119, 1
      %s121 = scalar_select %p118, %s119, %s120
      %p124 = pneg %p118
      %p125 = scmp.eq.s32.totalorder %s18, 7
      %p126 = por %p124, %p125
      %p127 = scmp.ne.s32.totalorder %s119, %s122
      %p128 = scmp.eq.s32.totalorder %s18, 0
      %p129 = por %p127, %p128
      %p130 = scmp.ne.s32.totalorder %s119, %s122
      %p131 = scmp.eq.s32.totalorder %s23, 7
      %p132 = por %p130, %p131
      %p133 = scmp.ne.s32.totalorder %s122, %s123
      %p134 = scmp.eq.s32.totalorder %s23, 0
      %p135 = por %p133, %p134
      %p136 = scmp.ne.s32.totalorder %s122, %s123
      %p137 = scmp.eq.s32.totalorder %s24, 7
      %p138 = por %p136, %p137
      %p140 = scmp.ne.s32.totalorder %s123, %s139
      %p141 = scmp.eq.s32.totalorder %s24, 0
      %p142 = por %p140, %p141
      %p143 = scmp.le.s32.totalorder 1, %s18
      %p144 = scmp.lt.s32.totalorder %s18, 9
      %p145 = pnand %p143, %p144
      %p146 = pneg %p145
      // Predicated region
      $region9: #{tpu_custom_call.1} parent=5 // pred_check
        _
      $region10: #{tpu_custom_call.1} parent=5 // pred_check_branch
        %148 = sbr.rel (%p145) target = $region12
      $region11: #{tpu_custom_call.1} parent=5 // pred_region
        %s149 = ssub.s32 %s18, 1
        // Predicated region
        $region13: #{tpu_custom_call.1} parent=11 // pred_check
          %p150 = pneg %p107
        $region14: #{tpu_custom_call.1} parent=11 // pred_check_branch
          %152 = sbr.rel (%p150) target = $region16
        $region15: #{tpu_custom_call.1} parent=11 // pred_region
          %154 = vsyncadd [#allocation7], 0
          %s155 = sshll.u32 %s2, 4
          %s156 = int_to_ptr.hbm [resolvable:$true] %s155
          %s157 = sshll.u32 [#allocation8], 4
          %s158 = int_to_ptr.vmem [resolvable:$true] %s157
          %163 = dma.hbm_to_vmem [thread:$0]  %s156, 18432, %s158, [#allocation7], 64, 64, 4
        $region16: #{tpu_custom_call.1} parent=11 // pred_fallthru
          _
      $region12: #{tpu_custom_call.1} parent=5 // pred_fallthru
        _
      %p164 = scmp.lt.s32.totalorder %s18, 8
      // Predicated region
      $region17: #{tpu_custom_call.1} parent=5 // pred_check
        %p165 = pneg %p164
      $region18: #{tpu_custom_call.1} parent=5 // pred_check_branch
        %167 = sbr.rel (%p165) target = $region20
      $region19: #{tpu_custom_call.1} parent=5 // pred_region
        // Predicated region
        $region21: #{tpu_custom_call.1} parent=19 // pred_check
          %p168 = pneg %p52
        $region22: #{tpu_custom_call.1} parent=19 // pred_check_branch
          %170 = sbr.rel (%p168) target = $region24
        $region23: #{tpu_custom_call.1} parent=19 // pred_region
          %s171 = sand.u32 %s42, 1
          %s172 = scalar_lea.sflag [#allocation4], %s171
          %s173 = sand.u32 %s42, 1
          %s174 = smul.addr %s173, 96
          %s175 = scalar_lea.vmem [#allocation3], %s174
          %177 = vsyncadd %s172, 0
          %s178 = smul.addr %s26, 12
          %s179 = smul.addr %s25, 48
          %s180 = sadd.s32 %s178, %s179
          %s181 = smul.addr %s180, 8
          %s182 = scalar_lea.hbm %s0, %s181
          %s183 = sshll.u32 %s182, 4
          %s184 = int_to_ptr.hbm [resolvable:$true] %s183
          %s185 = sshll.u32 %s175, 4
          %s186 = int_to_ptr.vmem [resolvable:$true] %s185
          %191 = dma.hbm_to_vmem [thread:$0]  %s184, 1536, %s186, %s172, 128, 128, 8
        $region24: #{tpu_custom_call.1} parent=19 // pred_fallthru
          _
        // Predicated region
        $region25: #{tpu_custom_call.1} parent=19 // pred_check
          %p192 = pneg %p80
        $region26: #{tpu_custom_call.1} parent=19 // pred_check_branch
          %194 = sbr.rel (%p192) target = $region28
        $region27: #{tpu_custom_call.1} parent=19 // pred_region
          %s195 = sand.u32 %s18, 1
          %s196 = scalar_lea.sflag [#allocation7], %s195
          %s197 = sand.u32 %s70, 1
          %s198 = smul.addr %s197, 96
          %s199 = scalar_lea.vmem [#allocation6], %s198
          %201 = vsyncadd %s196, 0
          %s202 = smul.addr %s26, 12
          %s203 = smul.addr %s25, 48
          %s204 = sadd.s32 %s202, %s203
          %s205 = smul.addr %s204, 8
          %s206 = scalar_lea.hbm %s1, %s205
          %s207 = sshll.u32 %s206, 4
          %s208 = int_to_ptr.hbm [resolvable:$true] %s207
          %s209 = sshll.u32 %s199, 4
          %s210 = int_to_ptr.vmem [resolvable:$true] %s209
          %215 = dma.hbm_to_vmem [thread:$0]  %s208, 1536, %s210, %s196, 128, 128, 8
        $region28: #{tpu_custom_call.1} parent=19 // pred_fallthru
          _
      $region20: #{tpu_custom_call.1} parent=5 // pred_fallthru
        _
      %p216 = scmp.le.s32.totalorder 1, %s18
      %p217 = scmp.lt.s32.totalorder %s18, 9
      %p218 = pnand %p216, %p217
      %p219 = pneg %p218
      // Predicated region
      $region29: #{tpu_custom_call.1} parent=5 // pred_check
        _
      $region30: #{tpu_custom_call.1} parent=5 // pred_check_branch
        %221 = sbr.rel (%p218) target = $region32
      $region31: #{tpu_custom_call.1} parent=5 // pred_region
        %s222 = ssub.s32 %s18, 1
        %s223 = sand.u32 %s45, 1
        %s224 = scalar_lea.sflag [#allocation4], %s223
        %s225 = sand.u32 %s45, 1
        %s226 = smul.addr %s225, 96
        %s227 = scalar_lea.vmem [#allocation3], %s226
        // Predicated region
        $region33: #{tpu_custom_call.1} parent=31 // pred_check
          %p228 = pneg %p58
        $region34: #{tpu_custom_call.1} parent=31 // pred_check_branch
          %230 = sbr.rel (%p228) target = $region36
        $region35: #{tpu_custom_call.1} parent=31 // pred_region
          %232 = dma.done %s224, 1536
        $region36: #{tpu_custom_call.1} parent=31 // pred_fallthru
          _
        %s233 = sand.u32 %s23, 1
        %s234 = scalar_lea.sflag [#allocation7], %s233
        %s235 = sand.u32 %s73, 1
        %s236 = smul.addr %s235, 96
        %s237 = scalar_lea.vmem [#allocation6], %s236
        // Predicated region
        $region37: #{tpu_custom_call.1} parent=31 // pred_check
          %p238 = pneg %p86
        $region38: #{tpu_custom_call.1} parent=31 // pred_check_branch
          %240 = sbr.rel (%p238) target = $region40
        $region39: #{tpu_custom_call.1} parent=31 // pred_region
          %242 = dma.done %s234, 1536
        $region40: #{tpu_custom_call.1} parent=31 // pred_fallthru
          _
        // Predicated region
        $region41: #{tpu_custom_call.1} parent=31 // pred_check
          %p243 = pneg %p107
        $region42: #{tpu_custom_call.1} parent=31 // pred_check_branch
          %245 = sbr.rel (%p243) target = $region44
        $region43: #{tpu_custom_call.1} parent=31 // pred_region
          %247 = dma.done [#allocation7], 18432
        $region44: #{tpu_custom_call.1} parent=31 // pred_fallthru
          _
        %s248 = sand.u32 %s45, 1
        %s249 = scalar_lea.sflag [#allocation4], %s248
        %s250 = sand.u32 %s45, 1
        %s251 = smul.addr %s250, 96
        %s252 = scalar_lea.vmem [#allocation3], %s251
        %p253 = pneg %p58
        %p254 = pneg %p55
        %s255 = sand.u32 %s23, 1
        %s256 = scalar_lea.sflag [#allocation7], %s255
        %s257 = sand.u32 %s73, 1
        %s258 = smul.addr %s257, 96
        %s259 = scalar_lea.vmem [#allocation6], %s258
        %p260 = pneg %p86
        %p261 = pneg %p83
        %p262 = pneg %p107
        %p263 = pneg %p104
        %p264 = pneg %p135
        %p265 = pneg %p132
        %s266 = sand.u32 %s122, 1
        %s267 = scalar_lea.sflag [#allocation5], %s266
        %s268 = sand.u32 %s122, 1
        %s269 = smul.addr %s268, 96
        %s270 = scalar_lea.vmem [#allocation9], %s269
        %v272 = vld [vmem:[%s237] sm:$0xff]
        %v273 = vld [vmem:[%s237 + $0x8] sm:$0xff]
        %v274 = vld [vmem:[%s237 + $0x10] sm:$0xff]
        %v275 = vld [vmem:[%s237 + $0x18] sm:$0xff]
        %v276 = vld [vmem:[%s237 + $0x20] sm:$0xff]
        %v277 = vld [vmem:[%s237 + $0x28] sm:$0xff]
        %v278 = vld [vmem:[%s237 + $0x30] sm:$0xff]
        %v279 = vld [vmem:[%s237 + $0x38] sm:$0xff]
        %v280 = vld [vmem:[%s237 + $0x40] sm:$0xff]
        %v281 = vld [vmem:[%s237 + $0x48] sm:$0xff]
        %v282 = vld [vmem:[%s237 + $0x50] sm:$0xff]
        %v283 = vld [vmem:[%s237 + $0x58] sm:$0xff]
        %v284 = vmax.f32 %v272, 0.0
        %v285 = vmax.f32 %v273, 0.0
        %v286 = vmax.f32 %v274, 0.0
        %v287 = vmax.f32 %v275, 0.0
        %v288 = vmax.f32 %v276, 0.0
        %v289 = vmax.f32 %v277, 0.0
        %v290 = vmul.f32 %v284, 1.7139589
        %v291 = vmul.f32 %v285, 1.7139589
        %v292 = vmul.f32 %v286, 1.7139589
        %v293 = vmul.f32 %v287, 1.7139589
        %v294 = vmul.f32 %v288, 1.7139589
        %v295 = vmul.f32 %v289, 1.7139589
        %v296 = vpack.c.bf16 %v290, %v290
        %v297 = vpack.c.bf16 %v291, %v291
        %v298 = vpack.c.bf16 %v292, %v292
        %v299 = vpack.c.bf16 %v293, %v293
        %v300 = vpack.c.bf16 %v294, %v294
        %v301 = vpack.c.bf16 %v295, %v295
        %302 = vst [vmem:[#allocation2 + $0xc] sm:$0xf] %v296
        %303 = vst [vmem:[#allocation2 + $0x10] sm:$0xf] %v297
        %304 = vst [vmem:[#allocation2 + $0x14] sm:$0xf] %v298
        %305 = vst [vmem:[#allocation2 + $0x18] sm:$0xf] %v299
        %306 = vst [vmem:[#allocation2 + $0x1c] sm:$0xf] %v300
        %307 = vst [vmem:[#allocation2 + $0x20] sm:$0xf] %v301
        %v308 = vld [vmem:[%s227] sm:$0xff]
        %v309 = vld [vmem:[%s227 + $0x8] sm:$0xff]
        %v310 = vld [vmem:[%s227 + $0x10] sm:$0xff]
        %v311 = vld [vmem:[%s227 + $0x18] sm:$0xff]
        %v312 = vld [vmem:[%s227 + $0x20] sm:$0xff]
        %v313 = vld [vmem:[%s227 + $0x28] sm:$0xff]
        %v314 = vld [vmem:[%s227 + $0x30] sm:$0xff]
        %v315 = vld [vmem:[%s227 + $0x38] sm:$0xff]
        %v316 = vld [vmem:[%s227 + $0x40] sm:$0xff]
        %v317 = vld [vmem:[%s227 + $0x48] sm:$0xff]
        %v318 = vld [vmem:[%s227 + $0x50] sm:$0xff]
        %v319 = vld [vmem:[%s227 + $0x58] sm:$0xff]
        %v320 = vmax.f32 %v308, 0.0
        %v321 = vmax.f32 %v309, 0.0
        %v322 = vmax.f32 %v310, 0.0
        %v323 = vmax.f32 %v311, 0.0
        %v324 = vmax.f32 %v312, 0.0
        %v325 = vmax.f32 %v313, 0.0
        %v326 = vmax.f32 %v314, 0.0
        %v327 = vmax.f32 %v315, 0.0
        %v328 = vmax.f32 %v316, 0.0
        %v329 = vmax.f32 %v317, 0.0
        %v330 = vmax.f32 %v318, 0.0
        %v331 = vmax.f32 %v319, 0.0
        %v332 = vmul.f32 %v320, 1.7139589
        %v333 = vmul.f32 %v321, 1.7139589
        %v334 = vmul.f32 %v322, 1.7139589
        %v335 = vmul.f32 %v323, 1.7139589
        %v336 = vmul.f32 %v324, 1.7139589
        %v337 = vmul.f32 %v325, 1.7139589
        %v338 = vmul.f32 %v326, 1.7139589
        %v339 = vmul.f32 %v327, 1.7139589
        %v340 = vmul.f32 %v328, 1.7139589
        %v341 = vmul.f32 %v329, 1.7139589
        %v342 = vmul.f32 %v330, 1.7139589
        %v343 = vmul.f32 %v331, 1.7139589
        %v344 = vpack.c.bf16 %v332, %v332
        %v345 = vpack.c.bf16 %v333, %v333
        %v346 = vpack.c.bf16 %v334, %v334
        %v347 = vpack.c.bf16 %v335, %v335
        %v348 = vpack.c.bf16 %v336, %v336
        %v349 = vpack.c.bf16 %v337, %v337
        %v350 = vpack.c.bf16 %v338, %v338
        %v351 = vpack.c.bf16 %v339, %v339
        %v352 = vpack.c.bf16 %v340, %v340
        %v353 = vpack.c.bf16 %v341, %v341
        %v354 = vpack.c.bf16 %v342, %v342
        %v355 = vpack.c.bf16 %v343, %v343
        %356 = vst [vmem:[#allocation2 + $0x24] sm:$0xf] %v344
        %357 = vst [vmem:[#allocation2 + $0x28] sm:$0xf] %v345
        %358 = vst [vmem:[#allocation2 + $0x2c] sm:$0xf] %v346
        %359 = vst [vmem:[#allocation2 + $0x30] sm:$0xf] %v347
        %360 = vst [vmem:[#allocation2 + $0x34] sm:$0xf] %v348
        %361 = vst [vmem:[#allocation2 + $0x38] sm:$0xf] %v349
        %362 = vst [vmem:[#allocation2 + $0x3c] sm:$0xf] %v350
        %363 = vst [vmem:[#allocation2 + $0x40] sm:$0xf] %v351
        %364 = vst [vmem:[#allocation2 + $0x44] sm:$0xf] %v352
        %365 = vst [vmem:[#allocation2 + $0x48] sm:$0xf] %v353
        %366 = vst [vmem:[#allocation2 + $0x4c] sm:$0xf] %v354
        %367 = vst [vmem:[#allocation2 + $0x50] sm:$0xf] %v355
        %v368 = vmax.f32 %v278, 0.0
        %v369 = vmax.f32 %v279, 0.0
        %v370 = vmax.f32 %v280, 0.0
        %v371 = vmax.f32 %v281, 0.0
        %v372 = vmax.f32 %v282, 0.0
        %v373 = vmax.f32 %v283, 0.0
        %v374 = vmul.f32 %v368, 1.7139589
        %v375 = vmul.f32 %v369, 1.7139589
        %v376 = vmul.f32 %v370, 1.7139589
        %v377 = vmul.f32 %v371, 1.7139589
        %v378 = vmul.f32 %v372, 1.7139589
        %v379 = vmul.f32 %v373, 1.7139589
        %v380 = vpack.c.bf16 %v374, %v374
        %v381 = vpack.c.bf16 %v375, %v375
        %v382 = vpack.c.bf16 %v376, %v376
        %v383 = vpack.c.bf16 %v377, %v377
        %v384 = vpack.c.bf16 %v378, %v378
        %v385 = vpack.c.bf16 %v379, %v379
        %386 = vst [vmem:[#allocation2 + $0x54] sm:$0xf] %v380
        %387 = vst [vmem:[#allocation2 + $0x58] sm:$0xf] %v381
        %388 = vst [vmem:[#allocation2 + $0x5c] sm:$0xf] %v382
        %389 = vst [vmem:[#allocation2 + $0x60] sm:$0xf] %v383
        %390 = vst [vmem:[#allocation2 + $0x64] sm:$0xf] %v384
        %391 = vst [vmem:[#allocation2 + $0x68] sm:$0xf] %v385
        %v392 = vld [vmem:[#allocation2 + $0x8] sm:$0x8]
        %v393 = vld [vmem:[#allocation2 + $0xc] sm:$0xf]
        %v394 = vld [vmem:[#allocation2 + $0x10] sm:$0xf]
        %v395 = vld [vmem:[#allocation2 + $0x14] sm:$0xf]
        %v396 = vld [vmem:[#allocation2 + $0x18] sm:$0xf]
        %v397 = vld [vmem:[#allocation2 + $0x1c] sm:$0xf]
        %v398 = vld [vmem:[#allocation2 + $0x20] sm:$0xf]
        %v399 = vld [vmem:[#allocation2 + $0x24] sm:$0xf]
        %v400 = vld [vmem:[#allocation2 + $0x28] sm:$0xf]
        %v401 = vld [vmem:[#allocation2 + $0x2c] sm:$0xf]
        %v402 = vld [vmem:[#allocation2 + $0x30] sm:$0xf]
        %v403 = vld [vmem:[#allocation2 + $0x34] sm:$0xf]
        %v404 = vld [vmem:[#allocation2 + $0x38] sm:$0xf]
        %v405 = vld [vmem:[#allocation2 + $0x3c] sm:$0xf]
        %v406 = vld [vmem:[#allocation2 + $0x40] sm:$0xf]
        %v407 = vld [vmem:[#allocation2 + $0x44] sm:$0xf]
        %v408 = vld [vmem:[#allocation2 + $0x48] sm:$0xf]
        %v409 = vld [vmem:[#allocation2 + $0x4c] sm:$0xf]
        %v410 = vld [vmem:[#allocation2 + $0x50] sm:$0xf]
        %v411 = vld [vmem:[#allocation8] sm:$0xf]
        %v412 = vld [vmem:[#allocation8 + $0x4] sm:$0xf]
        %v413 = vld [vmem:[#allocation8 + $0x8] sm:$0xf]
        %v414 = vld [vmem:[#allocation8 + $0xc] sm:$0xf]
        %v415 = vld [vmem:[#allocation8 + $0x10] sm:$0xf]
        %v416 = vld [vmem:[#allocation8 + $0x14] sm:$0xf]
        %v417 = vld [vmem:[#allocation8 + $0x18] sm:$0xf]
        %v418 = vld [vmem:[#allocation8 + $0x1c] sm:$0xf]
        %v419 = vld [vmem:[#allocation8 + $0x20] sm:$0xf]
        %v420 = vld [vmem:[#allocation8 + $0x24] sm:$0xf]
        %v421 = vld [vmem:[#allocation8 + $0x28] sm:$0xf]
        %v422 = vld [vmem:[#allocation8 + $0x2c] sm:$0xf]
        %v423 = vld [vmem:[#allocation8 + $0x30] sm:$0xf]
        %v424 = vld [vmem:[#allocation8 + $0x34] sm:$0xf]
        %v425 = vld [vmem:[#allocation8 + $0x38] sm:$0xf]
        %v426 = vld [vmem:[#allocation8 + $0x3c] sm:$0xf]
        %s427 = scalar_lea.vmem [#allocation8], 64
        %v428 = vld [vmem:[%s427] sm:$0xf]
        %v429 = vld [vmem:[%s427 + $0x4] sm:$0xf]
        %v430 = vld [vmem:[%s427 + $0x8] sm:$0xf]
        %v431 = vld [vmem:[%s427 + $0xc] sm:$0xf]
        %v432 = vld [vmem:[%s427 + $0x10] sm:$0xf]
        %v433 = vld [vmem:[%s427 + $0x14] sm:$0xf]
        %v434 = vld [vmem:[%s427 + $0x18] sm:$0xf]
        %v435 = vld [vmem:[%s427 + $0x1c] sm:$0xf]
        %v436 = vld [vmem:[%s427 + $0x20] sm:$0xf]
        %v437 = vld [vmem:[%s427 + $0x24] sm:$0xf]
        %v438 = vld [vmem:[%s427 + $0x28] sm:$0xf]
        %v439 = vld [vmem:[%s427 + $0x2c] sm:$0xf]
        %v440 = vld [vmem:[%s427 + $0x30] sm:$0xf]
        %v441 = vld [vmem:[%s427 + $0x34] sm:$0xf]
        %v442 = vld [vmem:[%s427 + $0x38] sm:$0xf]
        %v443 = vld [vmem:[%s427 + $0x3c] sm:$0xf]
        %v462 = vunpack.c.l.b16 %v393
        %v463 = vunpack.c.l.b16 %v394
        %v464 = vunpack.c.l.b16 %v395
        %v465 = vunpack.c.l.b16 %v396
        %v466 = vunpack.c.l.b16 %v397
        %v467 = vunpack.c.l.b16 %v398
        %v468 = vunpack.c.l.b16 %v399
        %v469 = vunpack.c.l.b16 %v400
        %v470 = vunpack.c.l.b16 %v401
        %v471 = vunpack.c.l.b16 %v402
        %v472 = vunpack.c.l.b16 %v403
        %v473 = vunpack.c.l.b16 %v404
        %v474 = vunpack.c.l.b16 %v405
        %v475 = vunpack.c.l.b16 %v406
        %v476 = vunpack.c.l.b16 %v407
        %v477 = vunpack.c.l.b16 %v408
        %v478 = vunpack.c.l.b16 %v409
        %v479 = vunpack.c.l.b16 %v410
        %v480 = vpack.c.b16 %v463, %v462
        %v481 = vpack.c.b16 %v465, %v464
        %v482 = vpack.c.b16 %v467, %v466
        %v483 = vpack.c.b16 %v469, %v468
        %v484 = vpack.c.b16 %v471, %v470
        %v485 = vpack.c.b16 %v473, %v472
        %v486 = vpack.c.b16 %v475, %v474
        %v487 = vpack.c.b16 %v477, %v476
        %v488 = vpack.c.b16 %v479, %v478
        %v514 = vunpack.c.l.b16 %v428
        %v515 = vunpack.c.l.b16 %v429
        %v516 = vunpack.c.l.b16 %v430
        %v517 = vunpack.c.l.b16 %v431
        %v518 = vunpack.c.l.b16 %v432
        %v519 = vunpack.c.l.b16 %v433
        %v520 = vunpack.c.l.b16 %v434
        %v521 = vunpack.c.l.b16 %v435
        %v522 = vunpack.c.l.b16 %v436
        %v523 = vunpack.c.l.b16 %v437
        %v524 = vunpack.c.l.b16 %v438
        %v525 = vunpack.c.l.b16 %v439
        %v526 = vunpack.c.l.b16 %v440
        %v527 = vunpack.c.l.b16 %v441
        %v528 = vunpack.c.l.b16 %v442
        %v529 = vunpack.c.l.b16 %v443
        %v530 = vpack.c.b16 %v515, %v514
        %v531 = vpack.c.b16 %v517, %v516
        %v532 = vpack.c.b16 %v519, %v518
        %v533 = vpack.c.b16 %v521, %v520
        %v534 = vpack.c.b16 %v523, %v522
        %v535 = vpack.c.b16 %v525, %v524
        %v536 = vpack.c.b16 %v527, %v526
        %v537 = vpack.c.b16 %v529, %v528
        %546 = vmatpush.bf16.msra.mxu0 %v537
        %547 = vmatpush.bf16.msra.mxu0 %v536
        %548 = vmatpush.bf16.msra.mxu0 %v535
        %549 = vmatpush.bf16.msra.mxu0 %v534
        %550 = vmatpush.bf16.msra.mxu0 %v533
        %551 = vmatpush.bf16.msra.mxu0 %v532
        %552 = vmatpush.bf16.msra.mxu0 %v531
        %553 = vmatpush.bf16.msra.mxu0 %v530
        %554 = vmatmul.bf16.gmra.mxu0 %v480
        %v555 = vpop.f32.mrf.mxu0
        %v556 = vadd.f32 0.0, %v555
        %v557 = vpop.f32.mrf.mxu0
        %v558 = vadd.f32 0.0, %v557
        %559 = vmatmul.bf16.gmra.mxu0 %v481
        %v560 = vpop.f32.mrf.mxu0
        %v561 = vadd.f32 0.0, %v560
        %v562 = vpop.f32.mrf.mxu0
        %v563 = vadd.f32 0.0, %v562
        %564 = vmatmul.bf16.gmra.mxu0 %v482
        %v565 = vpop.f32.mrf.mxu0
        %v566 = vadd.f32 0.0, %v565
        %v567 = vpop.f32.mrf.mxu0
        %v568 = vadd.f32 0.0, %v567
        %569 = vmatmul.bf16.gmra.mxu0 %v483
        %v570 = vpop.f32.mrf.mxu0
        %v571 = vadd.f32 0.0, %v570
        %v572 = vpop.f32.mrf.mxu0
        %v573 = vadd.f32 0.0, %v572
        %574 = vmatmul.bf16.gmra.mxu0 %v484
        %v575 = vpop.f32.mrf.mxu0
        %v576 = vadd.f32 0.0, %v575
        %v577 = vpop.f32.mrf.mxu0
        %v578 = vadd.f32 0.0, %v577
        %579 = vmatmul.bf16.gmra.mxu0 %v485
        %v580 = vpop.f32.mrf.mxu0
        %v581 = vadd.f32 0.0, %v580
        %v582 = vpop.f32.mrf.mxu0
        %v583 = vadd.f32 0.0, %v582
        %584 = vmatmul.bf16.gmra.mxu0 %v486
        %v585 = vpop.f32.mrf.mxu0
        %v586 = vadd.f32 0.0, %v585
        %v587 = vpop.f32.mrf.mxu0
        %v588 = vadd.f32 0.0, %v587
        %589 = vmatmul.bf16.gmra.mxu0 %v487
        %v590 = vpop.f32.mrf.mxu0
        %v591 = vadd.f32 0.0, %v590
        %v592 = vpop.f32.mrf.mxu0
        %v593 = vadd.f32 0.0, %v592
        %594 = vmatmul.bf16.gmra.mxu0 %v488
        %v595 = vpop.f32.mrf.mxu0
        %v596 = vadd.f32 0.0, %v595
        %v597 = vpop.f32.mrf.mxu0
        %v598 = vadd.f32 0.0, %v597
        %599 = vdwg.mxu0
        %v601 = vunpack.c.l.b16 %v392
        %v602 = vpack.c.b16 %v462, %v601
        %v603 = vpack.c.b16 %v464, %v463
        %v604 = vpack.c.b16 %v466, %v465
        %v605 = vpack.c.b16 %v468, %v467
        %v606 = vpack.c.b16 %v470, %v469
        %v607 = vpack.c.b16 %v472, %v471
        %v608 = vpack.c.b16 %v474, %v473
        %v609 = vpack.c.b16 %v476, %v475
        %v610 = vpack.c.b16 %v478, %v477
        %v611 = vpack.c.b16 %v479, %v479
        %vm612 = vsmask.f32 4352
        %v614 = vshrl.u32 %v602, 16
        %v616 = vrot.slane %v614, 3
        %v617 = vshll.u32 %v602, 16
        %v619 = vrot.slane %v617, 4
        %v620 = vor.u32 %v616, %v619
        %v622 = vshrl.u32 %v603, 16
        %v624 = vrot.slane %v622, 3
        %v625 = vshll.u32 %v603, 16
        %v627 = vrot.slane %v625, 4
        %v628 = vor.u32 %v624, %v627
        %v629 = vsel %vm612, %v620, %v628
        %v631 = vshrl.u32 %v604, 16
        %v633 = vrot.slane %v631, 3
        %v634 = vshll.u32 %v604, 16
        %v636 = vrot.slane %v634, 4
        %v637 = vor.u32 %v633, %v636
        %v638 = vsel %vm612, %v628, %v637
        %v640 = vshrl.u32 %v605, 16
        %v642 = vrot.slane %v640, 3
        %v643 = vshll.u32 %v605, 16
        %v645 = vrot.slane %v643, 4
        %v646 = vor.u32 %v642, %v645
        %v647 = vsel %vm612, %v637, %v646
        %v649 = vshrl.u32 %v606, 16
        %v651 = vrot.slane %v649, 3
        %v652 = vshll.u32 %v606, 16
        %v654 = vrot.slane %v652, 4
        %v655 = vor.u32 %v651, %v654
        %v656 = vsel %vm612, %v646, %v655
        %v658 = vshrl.u32 %v607, 16
        %v660 = vrot.slane %v658, 3
        %v661 = vshll.u32 %v607, 16
        %v663 = vrot.slane %v661, 4
        %v664 = vor.u32 %v660, %v663
        %v665 = vsel %vm612, %v655, %v664
        %v667 = vshrl.u32 %v608, 16
        %v669 = vrot.slane %v667, 3
        %v670 = vshll.u32 %v608, 16
        %v672 = vrot.slane %v670, 4
        %v673 = vor.u32 %v669, %v672
        %v674 = vsel %vm612, %v664, %v673
        %v676 = vshrl.u32 %v609, 16
        %v678 = vrot.slane %v676, 3
        %v679 = vshll.u32 %v609, 16
        %v681 = vrot.slane %v679, 4
        %v682 = vor.u32 %v678, %v681
        %v683 = vsel %vm612, %v673, %v682
        %v685 = vshrl.u32 %v610, 16
        %v687 = vrot.slane %v685, 3
        %v688 = vshll.u32 %v610, 16
        %v690 = vrot.slane %v688, 4
        %v691 = vor.u32 %v687, %v690
        %v692 = vsel %vm612, %v682, %v691
        %v694 = vshrl.u32 %v611, 16
        %v696 = vrot.slane %v694, 3
        %v697 = vshll.u32 %v611, 16
        %v699 = vrot.slane %v697, 4
        %v700 = vor.u32 %v696, %v699
        %v701 = vsel %vm612, %v691, %v700
        %v727 = vunpack.c.l.b16 %v411
        %v728 = vunpack.c.l.b16 %v412
        %v729 = vunpack.c.l.b16 %v413
        %v730 = vunpack.c.l.b16 %v414
        %v731 = vunpack.c.l.b16 %v415
        %v732 = vunpack.c.l.b16 %v416
        %v733 = vunpack.c.l.b16 %v417
        %v734 = vunpack.c.l.b16 %v418
        %v735 = vunpack.c.l.b16 %v419
        %v736 = vunpack.c.l.b16 %v420
        %v737 = vunpack.c.l.b16 %v421
        %v738 = vunpack.c.l.b16 %v422
        %v739 = vunpack.c.l.b16 %v423
        %v740 = vunpack.c.l.b16 %v424
        %v741 = vunpack.c.l.b16 %v425
        %v742 = vunpack.c.l.b16 %v426
        %v743 = vpack.c.b16 %v728, %v727
        %v744 = vpack.c.b16 %v730, %v729
        %v745 = vpack.c.b16 %v732, %v731
        %v746 = vpack.c.b16 %v734, %v733
        %v747 = vpack.c.b16 %v736, %v735
        %v748 = vpack.c.b16 %v738, %v737
        %v749 = vpack.c.b16 %v740, %v739
        %v750 = vpack.c.b16 %v742, %v741
        %759 = vmatpush.bf16.msra.mxu0 %v750
        %760 = vmatpush.bf16.msra.mxu0 %v749
        %761 = vmatpush.bf16.msra.mxu0 %v748
        %762 = vmatpush.bf16.msra.mxu0 %v747
        %763 = vmatpush.bf16.msra.mxu0 %v746
        %764 = vmatpush.bf16.msra.mxu0 %v745
        %765 = vmatpush.bf16.msra.mxu0 %v744
        %766 = vmatpush.bf16.msra.mxu0 %v743
        %767 = vmatmul.bf16.gmra.mxu0 %v629
        %v768 = vpop.f32.mrf.mxu0
        %v769 = vadd.f32 %v556, %v768
        %v770 = vpop.f32.mrf.mxu0
        %v771 = vadd.f32 %v558, %v770
        %772 = vmatmul.bf16.gmra.mxu0 %v638
        %v773 = vpop.f32.mrf.mxu0
        %v774 = vadd.f32 %v561, %v773
        %v775 = vpop.f32.mrf.mxu0
        %v776 = vadd.f32 %v563, %v775
        %777 = vmatmul.bf16.gmra.mxu0 %v647
        %v778 = vpop.f32.mrf.mxu0
        %v779 = vadd.f32 %v566, %v778
        %v780 = vpop.f32.mrf.mxu0
        %v781 = vadd.f32 %v568, %v780
        %782 = vmatmul.bf16.gmra.mxu0 %v656
        %v783 = vpop.f32.mrf.mxu0
        %v784 = vadd.f32 %v571, %v783
        %v785 = vpop.f32.mrf.mxu0
        %v786 = vadd.f32 %v573, %v785
        %787 = vmatmul.bf16.gmra.mxu0 %v665
        %v788 = vpop.f32.mrf.mxu0
        %v789 = vadd.f32 %v576, %v788
        %v790 = vpop.f32.mrf.mxu0
        %v791 = vadd.f32 %v578, %v790
        %792 = vmatmul.bf16.gmra.mxu0 %v674
        %v793 = vpop.f32.mrf.mxu0
        %v794 = vadd.f32 %v581, %v793
        %v795 = vpop.f32.mrf.mxu0
        %v796 = vadd.f32 %v583, %v795
        %797 = vmatmul.bf16.gmra.mxu0 %v683
        %v798 = vpop.f32.mrf.mxu0
        %v799 = vadd.f32 %v586, %v798
        %v800 = vpop.f32.mrf.mxu0
        %v801 = vadd.f32 %v588, %v800
        %802 = vmatmul.bf16.gmra.mxu0 %v692
        %v803 = vpop.f32.mrf.mxu0
        %v804 = vadd.f32 %v591, %v803
        %v805 = vpop.f32.mrf.mxu0
        %v806 = vadd.f32 %v593, %v805
        %807 = vmatmul.bf16.gmra.mxu0 %v701
        %v808 = vpop.f32.mrf.mxu0
        %v809 = vadd.f32 %v596, %v808
        %v810 = vpop.f32.mrf.mxu0
        %v811 = vadd.f32 %v598, %v810
        %812 = vdwg.mxu0
        %v813 = vld [vmem:[#allocation2 + $0xc] sm:$0xf]
        %v814 = vld [vmem:[#allocation2 + $0x10] sm:$0xf]
        %v815 = vld [vmem:[#allocation2 + $0x14] sm:$0xf]
        %v816 = vld [vmem:[#allocation2 + $0x18] sm:$0xf]
        %v817 = vld [vmem:[#allocation2 + $0x1c] sm:$0xf]
        %v818 = vld [vmem:[#allocation2 + $0x20] sm:$0xf]
        %v819 = vld [vmem:[#allocation2 + $0x24] sm:$0xf]
        %v820 = vld [vmem:[#allocation2 + $0x28] sm:$0xf]
        %v821 = vld [vmem:[#allocation2 + $0x2c] sm:$0xf]
        %v822 = vld [vmem:[#allocation2 + $0x30] sm:$0xf]
        %v823 = vld [vmem:[#allocation2 + $0x34] sm:$0xf]
        %v824 = vld [vmem:[#allocation2 + $0x38] sm:$0xf]
        %v825 = vld [vmem:[#allocation2 + $0x3c] sm:$0xf]
        %v826 = vld [vmem:[#allocation2 + $0x40] sm:$0xf]
        %v827 = vld [vmem:[#allocation2 + $0x44] sm:$0xf]
        %v828 = vld [vmem:[#allocation2 + $0x48] sm:$0xf]
        %v829 = vld [vmem:[#allocation2 + $0x4c] sm:$0xf]
        %v830 = vld [vmem:[#allocation2 + $0x50] sm:$0xf]
        %v831 = vld [vmem:[#allocation2 + $0x54] sm:$0x1]
        %s832 = scalar_lea.vmem [#allocation8], 128
        %v833 = vld [vmem:[%s832] sm:$0xf]
        %v834 = vld [vmem:[%s832 + $0x4] sm:$0xf]
        %v835 = vld [vmem:[%s832 + $0x8] sm:$0xf]
        %v836 = vld [vmem:[%s832 + $0xc] sm:$0xf]
        %v837 = vld [vmem:[%s832 + $0x10] sm:$0xf]
        %v838 = vld [vmem:[%s832 + $0x14] sm:$0xf]
        %v839 = vld [vmem:[%s832 + $0x18] sm:$0xf]
        %v840 = vld [vmem:[%s832 + $0x1c] sm:$0xf]
        %v841 = vld [vmem:[%s832 + $0x20] sm:$0xf]
        %v842 = vld [vmem:[%s832 + $0x24] sm:$0xf]
        %v843 = vld [vmem:[%s832 + $0x28] sm:$0xf]
        %v844 = vld [vmem:[%s832 + $0x2c] sm:$0xf]
        %v845 = vld [vmem:[%s832 + $0x30] sm:$0xf]
        %v846 = vld [vmem:[%s832 + $0x34] sm:$0xf]
        %v847 = vld [vmem:[%s832 + $0x38] sm:$0xf]
        %v848 = vld [vmem:[%s832 + $0x3c] sm:$0xf]
        %v868 = vunpack.c.l.b16 %v813
        %v869 = vunpack.c.l.b16 %v814
        %v870 = vunpack.c.l.b16 %v815
        %v871 = vunpack.c.l.b16 %v816
        %v872 = vunpack.c.l.b16 %v817
        %v873 = vunpack.c.l.b16 %v818
        %v874 = vunpack.c.l.b16 %v819
        %v875 = vunpack.c.l.b16 %v820
        %v876 = vunpack.c.l.b16 %v821
        %v877 = vunpack.c.l.b16 %v822
        %v878 = vunpack.c.l.b16 %v823
        %v879 = vunpack.c.l.b16 %v824
        %v880 = vunpack.c.l.b16 %v825
        %v881 = vunpack.c.l.b16 %v826
        %v882 = vunpack.c.l.b16 %v827
        %v883 = vunpack.c.l.b16 %v828
        %v884 = vunpack.c.l.b16 %v829
        %v885 = vunpack.c.l.b16 %v830
        %v886 = vunpack.c.l.b16 %v831
        %v887 = vpack.c.b16 %v869, %v868
        %v888 = vpack.c.b16 %v871, %v870
        %v889 = vpack.c.b16 %v873, %v872
        %v890 = vpack.c.b16 %v875, %v874
        %v891 = vpack.c.b16 %v877, %v876
        %v892 = vpack.c.b16 %v879, %v878
        %v893 = vpack.c.b16 %v881, %v880
        %v894 = vpack.c.b16 %v883, %v882
        %v895 = vpack.c.b16 %v885, %v884
        %v896 = vpack.c.b16 %v886, %v886
        %vm897 = vsmask.f32 7424
        %v899 = vshrl.u32 %v887, 16
        %v901 = vshll.u32 %v887, 16
        %v903 = vrot.slane %v901, 1
        %v904 = vor.u32 %v899, %v903
        %v906 = vshll.u32 %v888, 16
        %v908 = vrot.slane %v906, 1
        %v909 = vsel %vm897, %v904, %v908
        %v910 = vshrl.u32 %v888, 16
        %v912 = vor.u32 %v910, %v908
        %v914 = vshll.u32 %v889, 16
        %v916 = vrot.slane %v914, 1
        %v917 = vsel %vm897, %v912, %v916
        %v918 = vshrl.u32 %v889, 16
        %v920 = vor.u32 %v918, %v916
        %v922 = vshll.u32 %v890, 16
        %v924 = vrot.slane %v922, 1
        %v925 = vsel %vm897, %v920, %v924
        %v926 = vshrl.u32 %v890, 16
        %v928 = vor.u32 %v926, %v924
        %v930 = vshll.u32 %v891, 16
        %v932 = vrot.slane %v930, 1
        %v933 = vsel %vm897, %v928, %v932
        %v934 = vshrl.u32 %v891, 16
        %v936 = vor.u32 %v934, %v932
        %v938 = vshll.u32 %v892, 16
        %v940 = vrot.slane %v938, 1
        %v941 = vsel %vm897, %v936, %v940
        %v942 = vshrl.u32 %v892, 16
        %v944 = vor.u32 %v942, %v940
        %v946 = vshll.u32 %v893, 16
        %v948 = vrot.slane %v946, 1
        %v949 = vsel %vm897, %v944, %v948
        %v950 = vshrl.u32 %v893, 16
        %v952 = vor.u32 %v950, %v948
        %v954 = vshll.u32 %v894, 16
        %v956 = vrot.slane %v954, 1
        %v957 = vsel %vm897, %v952, %v956
        %v958 = vshrl.u32 %v894, 16
        %v960 = vor.u32 %v958, %v956
        %v962 = vshll.u32 %v895, 16
        %v964 = vrot.slane %v962, 1
        %v965 = vsel %vm897, %v960, %v964
        %v966 = vshrl.u32 %v895, 16
        %v968 = vor.u32 %v966, %v964
        %v970 = vshll.u32 %v896, 16
        %v972 = vrot.slane %v970, 1
        %v973 = vsel %vm897, %v968, %v972
        %v999 = vunpack.c.l.b16 %v833
        %v1000 = vunpack.c.l.b16 %v834
        %v1001 = vunpack.c.l.b16 %v835
        %v1002 = vunpack.c.l.b16 %v836
        %v1003 = vunpack.c.l.b16 %v837
        %v1004 = vunpack.c.l.b16 %v838
        %v1005 = vunpack.c.l.b16 %v839
        %v1006 = vunpack.c.l.b16 %v840
        %v1007 = vunpack.c.l.b16 %v841
        %v1008 = vunpack.c.l.b16 %v842
        %v1009 = vunpack.c.l.b16 %v843
        %v1010 = vunpack.c.l.b16 %v844
        %v1011 = vunpack.c.l.b16 %v845
        %v1012 = vunpack.c.l.b16 %v846
        %v1013 = vunpack.c.l.b16 %v847
        %v1014 = vunpack.c.l.b16 %v848
        %v1015 = vpack.c.b16 %v1000, %v999
        %v1016 = vpack.c.b16 %v1002, %v1001
        %v1017 = vpack.c.b16 %v1004, %v1003
        %v1018 = vpack.c.b16 %v1006, %v1005
        %v1019 = vpack.c.b16 %v1008, %v1007
        %v1020 = vpack.c.b16 %v1010, %v1009
        %v1021 = vpack.c.b16 %v1012, %v1011
        %v1022 = vpack.c.b16 %v1014, %v1013
        %1031 = vmatpush.bf16.msra.mxu0 %v1022
        %1032 = vmatpush.bf16.msra.mxu0 %v1021
        %1033 = vmatpush.bf16.msra.mxu0 %v1020
        %1034 = vmatpush.bf16.msra.mxu0 %v1019
        %1035 = vmatpush.bf16.msra.mxu0 %v1018
        %1036 = vmatpush.bf16.msra.mxu0 %v1017
        %1037 = vmatpush.bf16.msra.mxu0 %v1016
        %1038 = vmatpush.bf16.msra.mxu0 %v1015
        %1039 = vmatmul.bf16.gmra.mxu0 %v909
        %v1040 = vpop.f32.mrf.mxu0
        %v1041 = vadd.f32 0.0, %v1040
        %v1042 = vpop.f32.mrf.mxu0
        %v1043 = vadd.f32 0.0, %v1042
        %1044 = vmatmul.bf16.gmra.mxu0 %v917
        %v1045 = vpop.f32.mrf.mxu0
        %v1046 = vadd.f32 0.0, %v1045
        %v1047 = vpop.f32.mrf.mxu0
        %v1048 = vadd.f32 0.0, %v1047
        %1049 = vmatmul.bf16.gmra.mxu0 %v925
        %v1050 = vpop.f32.mrf.mxu0
        %v1051 = vadd.f32 0.0, %v1050
        %v1052 = vpop.f32.mrf.mxu0
        %v1053 = vadd.f32 0.0, %v1052
        %1054 = vmatmul.bf16.gmra.mxu0 %v933
        %v1055 = vpop.f32.mrf.mxu0
        %v1056 = vadd.f32 0.0, %v1055
        %v1057 = vpop.f32.mrf.mxu0
        %v1058 = vadd.f32 0.0, %v1057
        %1059 = vmatmul.bf16.gmra.mxu0 %v941
        %v1060 = vpop.f32.mrf.mxu0
        %v1061 = vadd.f32 0.0, %v1060
        %v1062 = vpop.f32.mrf.mxu0
        %v1063 = vadd.f32 0.0, %v1062
        %1064 = vmatmul.bf16.gmra.mxu0 %v949
        %v1065 = vpop.f32.mrf.mxu0
        %v1066 = vadd.f32 0.0, %v1065
        %v1067 = vpop.f32.mrf.mxu0
        %v1068 = vadd.f32 0.0, %v1067
        %1069 = vmatmul.bf16.gmra.mxu0 %v957
        %v1070 = vpop.f32.mrf.mxu0
        %v1071 = vadd.f32 0.0, %v1070
        %v1072 = vpop.f32.mrf.mxu0
        %v1073 = vadd.f32 0.0, %v1072
        %1074 = vmatmul.bf16.gmra.mxu0 %v965
        %v1075 = vpop.f32.mrf.mxu0
        %v1076 = vadd.f32 0.0, %v1075
        %v1077 = vpop.f32.mrf.mxu0
        %v1078 = vadd.f32 0.0, %v1077
        %1079 = vmatmul.bf16.gmra.mxu0 %v973
        %v1080 = vpop.f32.mrf.mxu0
        %v1081 = vadd.f32 0.0, %v1080
        %v1082 = vpop.f32.mrf.mxu0
        %v1083 = vadd.f32 0.0, %v1082
        %1084 = vdwg.mxu0
        %v1085 = vadd.f32 %v769, %v1041
        %v1086 = vadd.f32 %v771, %v1043
        %v1087 = vadd.f32 %v774, %v1046
        %v1088 = vadd.f32 %v776, %v1048
        %v1089 = vadd.f32 %v779, %v1051
        %v1090 = vadd.f32 %v781, %v1053
        %v1091 = vadd.f32 %v784, %v1056
        %v1092 = vadd.f32 %v786, %v1058
        %v1093 = vadd.f32 %v789, %v1061
        %v1094 = vadd.f32 %v791, %v1063
        %v1095 = vadd.f32 %v794, %v1066
        %v1096 = vadd.f32 %v796, %v1068
        %v1097 = vadd.f32 %v799, %v1071
        %v1098 = vadd.f32 %v801, %v1073
        %v1099 = vadd.f32 %v804, %v1076
        %v1100 = vadd.f32 %v806, %v1078
        %v1101 = vadd.f32 %v809, %v1081
        %v1102 = vadd.f32 %v811, %v1083
        %v1103 = vld [vmem:[#allocation2 + $0x14] sm:$0x8]
        %v1104 = vld [vmem:[#allocation2 + $0x18] sm:$0xf]
        %v1105 = vld [vmem:[#allocation2 + $0x1c] sm:$0xf]
        %v1106 = vld [vmem:[#allocation2 + $0x20] sm:$0xf]
        %v1107 = vld [vmem:[#allocation2 + $0x24] sm:$0xf]
        %v1108 = vld [vmem:[#allocation2 + $0x28] sm:$0xf]
        %v1109 = vld [vmem:[#allocation2 + $0x2c] sm:$0xf]
        %v1110 = vld [vmem:[#allocation2 + $0x30] sm:$0xf]
        %v1111 = vld [vmem:[#allocation2 + $0x34] sm:$0xf]
        %v1112 = vld [vmem:[#allocation2 + $0x38] sm:$0xf]
        %v1113 = vld [vmem:[#allocation2 + $0x3c] sm:$0xf]
        %v1114 = vld [vmem:[#allocation2 + $0x40] sm:$0xf]
        %v1115 = vld [vmem:[#allocation2 + $0x44] sm:$0xf]
        %v1116 = vld [vmem:[#allocation2 + $0x48] sm:$0xf]
        %v1117 = vld [vmem:[#allocation2 + $0x4c] sm:$0xf]
        %v1118 = vld [vmem:[#allocation2 + $0x50] sm:$0xf]
        %v1119 = vld [vmem:[#allocation2 + $0x54] sm:$0xf]
        %v1120 = vld [vmem:[#allocation2 + $0x58] sm:$0xf]
        %v1121 = vld [vmem:[#allocation2 + $0x5c] sm:$0xf]
        %s1122 = scalar_lea.vmem [#allocation8], 192
        %v1123 = vld [vmem:[%s1122] sm:$0xf]
        %v1124 = vld [vmem:[%s1122 + $0x4] sm:$0xf]
        %v1125 = vld [vmem:[%s1122 + $0x8] sm:$0xf]
        %v1126 = vld [vmem:[%s1122 + $0xc] sm:$0xf]
        %v1127 = vld [vmem:[%s1122 + $0x10] sm:$0xf]
        %v1128 = vld [vmem:[%s1122 + $0x14] sm:$0xf]
        %v1129 = vld [vmem:[%s1122 + $0x18] sm:$0xf]
        %v1130 = vld [vmem:[%s1122 + $0x1c] sm:$0xf]
        %v1131 = vld [vmem:[%s1122 + $0x20] sm:$0xf]
        %v1132 = vld [vmem:[%s1122 + $0x24] sm:$0xf]
        %v1133 = vld [vmem:[%s1122 + $0x28] sm:$0xf]
        %v1134 = vld [vmem:[%s1122 + $0x2c] sm:$0xf]
        %v1135 = vld [vmem:[%s1122 + $0x30] sm:$0xf]
        %v1136 = vld [vmem:[%s1122 + $0x34] sm:$0xf]
        %v1137 = vld [vmem:[%s1122 + $0x38] sm:$0xf]
        %v1138 = vld [vmem:[%s1122 + $0x3c] sm:$0xf]
        %v1158 = vunpack.c.l.b16 %v1103
        %v1159 = vunpack.c.l.b16 %v1104
        %v1160 = vunpack.c.l.b16 %v1105
        %v1161 = vunpack.c.l.b16 %v1106
        %v1162 = vunpack.c.l.b16 %v1107
        %v1163 = vunpack.c.l.b16 %v1108
        %v1164 = vunpack.c.l.b16 %v1109
        %v1165 = vunpack.c.l.b16 %v1110
        %v1166 = vunpack.c.l.b16 %v1111
        %v1167 = vunpack.c.l.b16 %v1112
        %v1168 = vunpack.c.l.b16 %v1113
        %v1169 = vunpack.c.l.b16 %v1114
        %v1170 = vunpack.c.l.b16 %v1115
        %v1171 = vunpack.c.l.b16 %v1116
        %v1172 = vunpack.c.l.b16 %v1117
        %v1173 = vunpack.c.l.b16 %v1118
        %v1174 = vunpack.c.l.b16 %v1119
        %v1175 = vunpack.c.l.b16 %v1120
        %v1176 = vunpack.c.l.b16 %v1121
        %v1177 = vpack.c.b16 %v1159, %v1158
        %v1178 = vpack.c.b16 %v1161, %v1160
        %v1179 = vpack.c.b16 %v1163, %v1162
        %v1180 = vpack.c.b16 %v1165, %v1164
        %v1181 = vpack.c.b16 %v1167, %v1166
        %v1182 = vpack.c.b16 %v1169, %v1168
        %v1183 = vpack.c.b16 %v1171, %v1170
        %v1184 = vpack.c.b16 %v1173, %v1172
        %v1185 = vpack.c.b16 %v1175, %v1174
        %v1186 = vpack.c.b16 %v1176, %v1176
        %v1188 = vshrl.u32 %v1177, 16
        %v1190 = vrot.slane %v1188, 3
        %v1191 = vshll.u32 %v1177, 16
        %v1193 = vrot.slane %v1191, 4
        %v1194 = vor.u32 %v1190, %v1193
        %v1196 = vshrl.u32 %v1178, 16
        %v1198 = vrot.slane %v1196, 3
        %v1199 = vshll.u32 %v1178, 16
        %v1201 = vrot.slane %v1199, 4
        %v1202 = vor.u32 %v1198, %v1201
        %v1203 = vsel %vm612, %v1194, %v1202
        %v1205 = vshrl.u32 %v1179, 16
        %v1207 = vrot.slane %v1205, 3
        %v1208 = vshll.u32 %v1179, 16
        %v1210 = vrot.slane %v1208, 4
        %v1211 = vor.u32 %v1207, %v1210
        %v1212 = vsel %vm612, %v1202, %v1211
        %v1214 = vshrl.u32 %v1180, 16
        %v1216 = vrot.slane %v1214, 3
        %v1217 = vshll.u32 %v1180, 16
        %v1219 = vrot.slane %v1217, 4
        %v1220 = vor.u32 %v1216, %v1219
        %v1221 = vsel %vm612, %v1211, %v1220
        %v1223 = vshrl.u32 %v1181, 16
        %v1225 = vrot.slane %v1223, 3
        %v1226 = vshll.u32 %v1181, 16
        %v1228 = vrot.slane %v1226, 4
        %v1229 = vor.u32 %v1225, %v1228
        %v1230 = vsel %vm612, %v1220, %v1229
        %v1232 = vshrl.u32 %v1182, 16
        %v1234 = vrot.slane %v1232, 3
        %v1235 = vshll.u32 %v1182, 16
        %v1237 = vrot.slane %v1235, 4
        %v1238 = vor.u32 %v1234, %v1237
        %v1239 = vsel %vm612, %v1229, %v1238
        %v1241 = vshrl.u32 %v1183, 16
        %v1243 = vrot.slane %v1241, 3
        %v1244 = vshll.u32 %v1183, 16
        %v1246 = vrot.slane %v1244, 4
        %v1247 = vor.u32 %v1243, %v1246
        %v1248 = vsel %vm612, %v1238, %v1247
        %v1250 = vshrl.u32 %v1184, 16
        %v1252 = vrot.slane %v1250, 3
        %v1253 = vshll.u32 %v1184, 16
        %v1255 = vrot.slane %v1253, 4
        %v1256 = vor.u32 %v1252, %v1255
        %v1257 = vsel %vm612, %v1247, %v1256
        %v1259 = vshrl.u32 %v1185, 16
        %v1261 = vrot.slane %v1259, 3
        %v1262 = vshll.u32 %v1185, 16
        %v1264 = vrot.slane %v1262, 4
        %v1265 = vor.u32 %v1261, %v1264
        %v1266 = vsel %vm612, %v1256, %v1265
        %v1268 = vshrl.u32 %v1186, 16
        %v1270 = vrot.slane %v1268, 3
        %v1271 = vshll.u32 %v1186, 16
        %v1273 = vrot.slane %v1271, 4
        %v1274 = vor.u32 %v1270, %v1273
        %v1275 = vsel %vm612, %v1265, %v1274
        %v1301 = vunpack.c.l.b16 %v1123
        %v1302 = vunpack.c.l.b16 %v1124
        %v1303 = vunpack.c.l.b16 %v1125
        %v1304 = vunpack.c.l.b16 %v1126
        %v1305 = vunpack.c.l.b16 %v1127
        %v1306 = vunpack.c.l.b16 %v1128
        %v1307 = vunpack.c.l.b16 %v1129
        %v1308 = vunpack.c.l.b16 %v1130
        %v1309 = vunpack.c.l.b16 %v1131
        %v1310 = vunpack.c.l.b16 %v1132
        %v1311 = vunpack.c.l.b16 %v1133
        %v1312 = vunpack.c.l.b16 %v1134
        %v1313 = vunpack.c.l.b16 %v1135
        %v1314 = vunpack.c.l.b16 %v1136
        %v1315 = vunpack.c.l.b16 %v1137
        %v1316 = vunpack.c.l.b16 %v1138
        %v1317 = vpack.c.b16 %v1302, %v1301
        %v1318 = vpack.c.b16 %v1304, %v1303
        %v1319 = vpack.c.b16 %v1306, %v1305
        %v1320 = vpack.c.b16 %v1308, %v1307
        %v1321 = vpack.c.b16 %v1310, %v1309
        %v1322 = vpack.c.b16 %v1312, %v1311
        %v1323 = vpack.c.b16 %v1314, %v1313
        %v1324 = vpack.c.b16 %v1316, %v1315
        %1333 = vmatpush.bf16.msra.mxu0 %v1324
        %1334 = vmatpush.bf16.msra.mxu0 %v1323
        %1335 = vmatpush.bf16.msra.mxu0 %v1322
        %1336 = vmatpush.bf16.msra.mxu0 %v1321
        %1337 = vmatpush.bf16.msra.mxu0 %v1320
        %1338 = vmatpush.bf16.msra.mxu0 %v1319
        %1339 = vmatpush.bf16.msra.mxu0 %v1318
        %1340 = vmatpush.bf16.msra.mxu0 %v1317
        %1341 = vmatmul.bf16.gmra.mxu0 %v1203
        %v1342 = vpop.f32.mrf.mxu0
        %v1343 = vadd.f32 0.0, %v1342
        %v1344 = vpop.f32.mrf.mxu0
        %v1345 = vadd.f32 0.0, %v1344
        %1346 = vmatmul.bf16.gmra.mxu0 %v1212
        %v1347 = vpop.f32.mrf.mxu0
        %v1348 = vadd.f32 0.0, %v1347
        %v1349 = vpop.f32.mrf.mxu0
        %v1350 = vadd.f32 0.0, %v1349
        %1351 = vmatmul.bf16.gmra.mxu0 %v1221
        %v1352 = vpop.f32.mrf.mxu0
        %v1353 = vadd.f32 0.0, %v1352
        %v1354 = vpop.f32.mrf.mxu0
        %v1355 = vadd.f32 0.0, %v1354
        %1356 = vmatmul.bf16.gmra.mxu0 %v1230
        %v1357 = vpop.f32.mrf.mxu0
        %v1358 = vadd.f32 0.0, %v1357
        %v1359 = vpop.f32.mrf.mxu0
        %v1360 = vadd.f32 0.0, %v1359
        %1361 = vmatmul.bf16.gmra.mxu0 %v1239
        %v1362 = vpop.f32.mrf.mxu0
        %v1363 = vadd.f32 0.0, %v1362
        %v1364 = vpop.f32.mrf.mxu0
        %v1365 = vadd.f32 0.0, %v1364
        %1366 = vmatmul.bf16.gmra.mxu0 %v1248
        %v1367 = vpop.f32.mrf.mxu0
        %v1368 = vadd.f32 0.0, %v1367
        %v1369 = vpop.f32.mrf.mxu0
        %v1370 = vadd.f32 0.0, %v1369
        %1371 = vmatmul.bf16.gmra.mxu0 %v1257
        %v1372 = vpop.f32.mrf.mxu0
        %v1373 = vadd.f32 0.0, %v1372
        %v1374 = vpop.f32.mrf.mxu0
        %v1375 = vadd.f32 0.0, %v1374
        %1376 = vmatmul.bf16.gmra.mxu0 %v1266
        %v1377 = vpop.f32.mrf.mxu0
        %v1378 = vadd.f32 0.0, %v1377
        %v1379 = vpop.f32.mrf.mxu0
        %v1380 = vadd.f32 0.0, %v1379
        %1381 = vmatmul.bf16.gmra.mxu0 %v1275
        %v1382 = vpop.f32.mrf.mxu0
        %v1383 = vadd.f32 0.0, %v1382
        %v1384 = vpop.f32.mrf.mxu0
        %v1385 = vadd.f32 0.0, %v1384
        %1386 = vdwg.mxu0
        %v1387 = vadd.f32 %v1085, %v1343
        %v1388 = vadd.f32 %v1086, %v1345
        %v1389 = vadd.f32 %v1087, %v1348
        %v1390 = vadd.f32 %v1088, %v1350
        %v1391 = vadd.f32 %v1089, %v1353
        %v1392 = vadd.f32 %v1090, %v1355
        %v1393 = vadd.f32 %v1091, %v1358
        %v1394 = vadd.f32 %v1092, %v1360
        %v1395 = vadd.f32 %v1093, %v1363
        %v1396 = vadd.f32 %v1094, %v1365
        %v1397 = vadd.f32 %v1095, %v1368
        %v1398 = vadd.f32 %v1096, %v1370
        %v1399 = vadd.f32 %v1097, %v1373
        %v1400 = vadd.f32 %v1098, %v1375
        %v1401 = vadd.f32 %v1099, %v1378
        %v1402 = vadd.f32 %v1100, %v1380
        %v1403 = vadd.f32 %v1101, %v1383
        %v1404 = vadd.f32 %v1102, %v1385
        %s1405 = scalar_lea.vmem [#allocation8], 256
        %v1406 = vld [vmem:[%s1405] sm:$0xf]
        %v1407 = vld [vmem:[%s1405 + $0x4] sm:$0xf]
        %v1408 = vld [vmem:[%s1405 + $0x8] sm:$0xf]
        %v1409 = vld [vmem:[%s1405 + $0xc] sm:$0xf]
        %v1410 = vld [vmem:[%s1405 + $0x10] sm:$0xf]
        %v1411 = vld [vmem:[%s1405 + $0x14] sm:$0xf]
        %v1412 = vld [vmem:[%s1405 + $0x18] sm:$0xf]
        %v1413 = vld [vmem:[%s1405 + $0x1c] sm:$0xf]
        %v1414 = vld [vmem:[%s1405 + $0x20] sm:$0xf]
        %v1415 = vld [vmem:[%s1405 + $0x24] sm:$0xf]
        %v1416 = vld [vmem:[%s1405 + $0x28] sm:$0xf]
        %v1417 = vld [vmem:[%s1405 + $0x2c] sm:$0xf]
        %v1418 = vld [vmem:[%s1405 + $0x30] sm:$0xf]
        %v1419 = vld [vmem:[%s1405 + $0x34] sm:$0xf]
        %v1420 = vld [vmem:[%s1405 + $0x38] sm:$0xf]
        %v1421 = vld [vmem:[%s1405 + $0x3c] sm:$0xf]
        %v1422 = vpack.c.b16 %v1160, %v1159
        %v1423 = vpack.c.b16 %v1162, %v1161
        %v1424 = vpack.c.b16 %v1164, %v1163
        %v1425 = vpack.c.b16 %v1166, %v1165
        %v1426 = vpack.c.b16 %v1168, %v1167
        %v1427 = vpack.c.b16 %v1170, %v1169
        %v1428 = vpack.c.b16 %v1172, %v1171
        %v1429 = vpack.c.b16 %v1174, %v1173
        %v1430 = vpack.c.b16 %v1176, %v1175
        %v1456 = vunpack.c.l.b16 %v1406
        %v1457 = vunpack.c.l.b16 %v1407
        %v1458 = vunpack.c.l.b16 %v1408
        %v1459 = vunpack.c.l.b16 %v1409
        %v1460 = vunpack.c.l.b16 %v1410
        %v1461 = vunpack.c.l.b16 %v1411
        %v1462 = vunpack.c.l.b16 %v1412
        %v1463 = vunpack.c.l.b16 %v1413
        %v1464 = vunpack.c.l.b16 %v1414
        %v1465 = vunpack.c.l.b16 %v1415
        %v1466 = vunpack.c.l.b16 %v1416
        %v1467 = vunpack.c.l.b16 %v1417
        %v1468 = vunpack.c.l.b16 %v1418
        %v1469 = vunpack.c.l.b16 %v1419
        %v1470 = vunpack.c.l.b16 %v1420
        %v1471 = vunpack.c.l.b16 %v1421
        %v1472 = vpack.c.b16 %v1457, %v1456
        %v1473 = vpack.c.b16 %v1459, %v1458
        %v1474 = vpack.c.b16 %v1461, %v1460
        %v1475 = vpack.c.b16 %v1463, %v1462
        %v1476 = vpack.c.b16 %v1465, %v1464
        %v1477 = vpack.c.b16 %v1467, %v1466
        %v1478 = vpack.c.b16 %v1469, %v1468
        %v1479 = vpack.c.b16 %v1471, %v1470
        %1488 = vmatpush.bf16.msra.mxu0 %v1479
        %1489 = vmatpush.bf16.msra.mxu0 %v1478
        %1490 = vmatpush.bf16.msra.mxu0 %v1477
        %1491 = vmatpush.bf16.msra.mxu0 %v1476
        %1492 = vmatpush.bf16.msra.mxu0 %v1475
        %1493 = vmatpush.bf16.msra.mxu0 %v1474
        %1494 = vmatpush.bf16.msra.mxu0 %v1473
        %1495 = vmatpush.bf16.msra.mxu0 %v1472
        %1496 = vmatmul.bf16.gmra.mxu0 %v1422
        %v1497 = vpop.f32.mrf.mxu0
        %v1498 = vadd.f32 0.0, %v1497
        %v1499 = vpop.f32.mrf.mxu0
        %v1500 = vadd.f32 0.0, %v1499
        %1501 = vmatmul.bf16.gmra.mxu0 %v1423
        %v1502 = vpop.f32.mrf.mxu0
        %v1503 = vadd.f32 0.0, %v1502
        %v1504 = vpop.f32.mrf.mxu0
        %v1505 = vadd.f32 0.0, %v1504
        %1506 = vmatmul.bf16.gmra.mxu0 %v1424
        %v1507 = vpop.f32.mrf.mxu0
        %v1508 = vadd.f32 0.0, %v1507
        %v1509 = vpop.f32.mrf.mxu0
        %v1510 = vadd.f32 0.0, %v1509
        %1511 = vmatmul.bf16.gmra.mxu0 %v1425
        %v1512 = vpop.f32.mrf.mxu0
        %v1513 = vadd.f32 0.0, %v1512
        %v1514 = vpop.f32.mrf.mxu0
        %v1515 = vadd.f32 0.0, %v1514
        %1516 = vmatmul.bf16.gmra.mxu0 %v1426
        %v1517 = vpop.f32.mrf.mxu0
        %v1518 = vadd.f32 0.0, %v1517
        %v1519 = vpop.f32.mrf.mxu0
        %v1520 = vadd.f32 0.0, %v1519
        %1521 = vmatmul.bf16.gmra.mxu0 %v1427
        %v1522 = vpop.f32.mrf.mxu0
        %v1523 = vadd.f32 0.0, %v1522
        %v1524 = vpop.f32.mrf.mxu0
        %v1525 = vadd.f32 0.0, %v1524
        %1526 = vmatmul.bf16.gmra.mxu0 %v1428
        %v1527 = vpop.f32.mrf.mxu0
        %v1528 = vadd.f32 0.0, %v1527
        %v1529 = vpop.f32.mrf.mxu0
        %v1530 = vadd.f32 0.0, %v1529
        %1531 = vmatmul.bf16.gmra.mxu0 %v1429
        %v1532 = vpop.f32.mrf.mxu0
        %v1533 = vadd.f32 0.0, %v1532
        %v1534 = vpop.f32.mrf.mxu0
        %v1535 = vadd.f32 0.0, %v1534
        %1536 = vmatmul.bf16.gmra.mxu0 %v1430
        %v1537 = vpop.f32.mrf.mxu0
        %v1538 = vadd.f32 0.0, %v1537
        %v1539 = vpop.f32.mrf.mxu0
        %v1540 = vadd.f32 0.0, %v1539
        %1541 = vdwg.mxu0
        %v1542 = vadd.f32 %v1387, %v1498
        %v1543 = vadd.f32 %v1388, %v1500
        %v1544 = vadd.f32 %v1389, %v1503
        %v1545 = vadd.f32 %v1390, %v1505
        %v1546 = vadd.f32 %v1391, %v1508
        %v1547 = vadd.f32 %v1392, %v1510
        %v1548 = vadd.f32 %v1393, %v1513
        %v1549 = vadd.f32 %v1394, %v1515
        %v1550 = vadd.f32 %v1395, %v1518
        %v1551 = vadd.f32 %v1396, %v1520
        %v1552 = vadd.f32 %v1397, %v1523
        %v1553 = vadd.f32 %v1398, %v1525
        %v1554 = vadd.f32 %v1399, %v1528
        %v1555 = vadd.f32 %v1400, %v1530
        %v1556 = vadd.f32 %v1401, %v1533
        %v1557 = vadd.f32 %v1402, %v1535
        %v1558 = vadd.f32 %v1403, %v1538
        %v1559 = vadd.f32 %v1404, %v1540
        %v1560 = vld [vmem:[#allocation2 + $0x18] sm:$0xf]
        %v1561 = vld [vmem:[#allocation2 + $0x1c] sm:$0xf]
        %v1562 = vld [vmem:[#allocation2 + $0x20] sm:$0xf]
        %v1563 = vld [vmem:[#allocation2 + $0x24] sm:$0xf]
        %v1564 = vld [vmem:[#allocation2 + $0x28] sm:$0xf]
        %v1565 = vld [vmem:[#allocation2 + $0x2c] sm:$0xf]
        %v1566 = vld [vmem:[#allocation2 + $0x30] sm:$0xf]
        %v1567 = vld [vmem:[#allocation2 + $0x34] sm:$0xf]
        %v1568 = vld [vmem:[#allocation2 + $0x38] sm:$0xf]
        %v1569 = vld [vmem:[#allocation2 + $0x3c] sm:$0xf]
        %v1570 = vld [vmem:[#allocation2 + $0x40] sm:$0xf]
        %v1571 = vld [vmem:[#allocation2 + $0x44] sm:$0xf]
        %v1572 = vld [vmem:[#allocation2 + $0x48] sm:$0xf]
        %v1573 = vld [vmem:[#allocation2 + $0x4c] sm:$0xf]
        %v1574 = vld [vmem:[#allocation2 + $0x50] sm:$0xf]
        %v1575 = vld [vmem:[#allocation2 + $0x54] sm:$0xf]
        %v1576 = vld [vmem:[#allocation2 + $0x58] sm:$0xf]
        %v1577 = vld [vmem:[#allocation2 + $0x5c] sm:$0xf]
        %v1578 = vld [vmem:[#allocation2 + $0x60] sm:$0x1]
        %s1579 = scalar_lea.vmem [#allocation8], 320
        %v1580 = vld [vmem:[%s1579] sm:$0xf]
        %v1581 = vld [vmem:[%s1579 + $0x4] sm:$0xf]
        %v1582 = vld [vmem:[%s1579 + $0x8] sm:$0xf]
        %v1583 = vld [vmem:[%s1579 + $0xc] sm:$0xf]
        %v1584 = vld [vmem:[%s1579 + $0x10] sm:$0xf]
        %v1585 = vld [vmem:[%s1579 + $0x14] sm:$0xf]
        %v1586 = vld [vmem:[%s1579 + $0x18] sm:$0xf]
        %v1587 = vld [vmem:[%s1579 + $0x1c] sm:$0xf]
        %v1588 = vld [vmem:[%s1579 + $0x20] sm:$0xf]
        %v1589 = vld [vmem:[%s1579 + $0x24] sm:$0xf]
        %v1590 = vld [vmem:[%s1579 + $0x28] sm:$0xf]
        %v1591 = vld [vmem:[%s1579 + $0x2c] sm:$0xf]
        %v1592 = vld [vmem:[%s1579 + $0x30] sm:$0xf]
        %v1593 = vld [vmem:[%s1579 + $0x34] sm:$0xf]
        %v1594 = vld [vmem:[%s1579 + $0x38] sm:$0xf]
        %v1595 = vld [vmem:[%s1579 + $0x3c] sm:$0xf]
        %v1615 = vunpack.c.l.b16 %v1560
        %v1616 = vunpack.c.l.b16 %v1561
        %v1617 = vunpack.c.l.b16 %v1562
        %v1618 = vunpack.c.l.b16 %v1563
        %v1619 = vunpack.c.l.b16 %v1564
        %v1620 = vunpack.c.l.b16 %v1565
        %v1621 = vunpack.c.l.b16 %v1566
        %v1622 = vunpack.c.l.b16 %v1567
        %v1623 = vunpack.c.l.b16 %v1568
        %v1624 = vunpack.c.l.b16 %v1569
        %v1625 = vunpack.c.l.b16 %v1570
        %v1626 = vunpack.c.l.b16 %v1571
        %v1627 = vunpack.c.l.b16 %v1572
        %v1628 = vunpack.c.l.b16 %v1573
        %v1629 = vunpack.c.l.b16 %v1574
        %v1630 = vunpack.c.l.b16 %v1575
        %v1631 = vunpack.c.l.b16 %v1576
        %v1632 = vunpack.c.l.b16 %v1577
        %v1633 = vunpack.c.l.b16 %v1578
        %v1634 = vpack.c.b16 %v1616, %v1615
        %v1635 = vpack.c.b16 %v1618, %v1617
        %v1636 = vpack.c.b16 %v1620, %v1619
        %v1637 = vpack.c.b16 %v1622, %v1621
        %v1638 = vpack.c.b16 %v1624, %v1623
        %v1639 = vpack.c.b16 %v1626, %v1625
        %v1640 = vpack.c.b16 %v1628, %v1627
        %v1641 = vpack.c.b16 %v1630, %v1629
        %v1642 = vpack.c.b16 %v1632, %v1631
        %v1643 = vpack.c.b16 %v1633, %v1633
        %v1645 = vshrl.u32 %v1634, 16
        %v1647 = vshll.u32 %v1634, 16
        %v1649 = vrot.slane %v1647, 1
        %v1650 = vor.u32 %v1645, %v1649
        %v1652 = vshll.u32 %v1635, 16
        %v1654 = vrot.slane %v1652, 1
        %v1655 = vsel %vm897, %v1650, %v1654
        %v1656 = vshrl.u32 %v1635, 16
        %v1658 = vor.u32 %v1656, %v1654
        %v1660 = vshll.u32 %v1636, 16
        %v1662 = vrot.slane %v1660, 1
        %v1663 = vsel %vm897, %v1658, %v1662
        %v1664 = vshrl.u32 %v1636, 16
        %v1666 = vor.u32 %v1664, %v1662
        %v1668 = vshll.u32 %v1637, 16
        %v1670 = vrot.slane %v1668, 1
        %v1671 = vsel %vm897, %v1666, %v1670
        %v1672 = vshrl.u32 %v1637, 16
        %v1674 = vor.u32 %v1672, %v1670
        %v1676 = vshll.u32 %v1638, 16
        %v1678 = vrot.slane %v1676, 1
        %v1679 = vsel %vm897, %v1674, %v1678
        %v1680 = vshrl.u32 %v1638, 16
        %v1682 = vor.u32 %v1680, %v1678
        %v1684 = vshll.u32 %v1639, 16
        %v1686 = vrot.slane %v1684, 1
        %v1687 = vsel %vm897, %v1682, %v1686
        %v1688 = vshrl.u32 %v1639, 16
        %v1690 = vor.u32 %v1688, %v1686
        %v1692 = vshll.u32 %v1640, 16
        %v1694 = vrot.slane %v1692, 1
        %v1695 = vsel %vm897, %v1690, %v1694
        %v1696 = vshrl.u32 %v1640, 16
        %v1698 = vor.u32 %v1696, %v1694
        %v1700 = vshll.u32 %v1641, 16
        %v1702 = vrot.slane %v1700, 1
        %v1703 = vsel %vm897, %v1698, %v1702
        %v1704 = vshrl.u32 %v1641, 16
        %v1706 = vor.u32 %v1704, %v1702
        %v1708 = vshll.u32 %v1642, 16
        %v1710 = vrot.slane %v1708, 1
        %v1711 = vsel %vm897, %v1706, %v1710
        %v1712 = vshrl.u32 %v1642, 16
        %v1714 = vor.u32 %v1712, %v1710
        %v1716 = vshll.u32 %v1643, 16
        %v1718 = vrot.slane %v1716, 1
        %v1719 = vsel %vm897, %v1714, %v1718
        %v1745 = vunpack.c.l.b16 %v1580
        %v1746 = vunpack.c.l.b16 %v1581
        %v1747 = vunpack.c.l.b16 %v1582
        %v1748 = vunpack.c.l.b16 %v1583
        %v1749 = vunpack.c.l.b16 %v1584
        %v1750 = vunpack.c.l.b16 %v1585
        %v1751 = vunpack.c.l.b16 %v1586
        %v1752 = vunpack.c.l.b16 %v1587
        %v1753 = vunpack.c.l.b16 %v1588
        %v1754 = vunpack.c.l.b16 %v1589
        %v1755 = vunpack.c.l.b16 %v1590
        %v1756 = vunpack.c.l.b16 %v1591
        %v1757 = vunpack.c.l.b16 %v1592
        %v1758 = vunpack.c.l.b16 %v1593
        %v1759 = vunpack.c.l.b16 %v1594
        %v1760 = vunpack.c.l.b16 %v1595
        %v1761 = vpack.c.b16 %v1746, %v1745
        %v1762 = vpack.c.b16 %v1748, %v1747
        %v1763 = vpack.c.b16 %v1750, %v1749
        %v1764 = vpack.c.b16 %v1752, %v1751
        %v1765 = vpack.c.b16 %v1754, %v1753
        %v1766 = vpack.c.b16 %v1756, %v1755
        %v1767 = vpack.c.b16 %v1758, %v1757
        %v1768 = vpack.c.b16 %v1760, %v1759
        %1777 = vmatpush.bf16.msra.mxu0 %v1768
        %1778 = vmatpush.bf16.msra.mxu0 %v1767
        %1779 = vmatpush.bf16.msra.mxu0 %v1766
        %1780 = vmatpush.bf16.msra.mxu0 %v1765
        %1781 = vmatpush.bf16.msra.mxu0 %v1764
        %1782 = vmatpush.bf16.msra.mxu0 %v1763
        %1783 = vmatpush.bf16.msra.mxu0 %v1762
        %1784 = vmatpush.bf16.msra.mxu0 %v1761
        %1785 = vmatmul.bf16.gmra.mxu0 %v1655
        %v1786 = vpop.f32.mrf.mxu0
        %v1787 = vadd.f32 0.0, %v1786
        %v1788 = vpop.f32.mrf.mxu0
        %v1789 = vadd.f32 0.0, %v1788
        %1790 = vmatmul.bf16.gmra.mxu0 %v1663
        %v1791 = vpop.f32.mrf.mxu0
        %v1792 = vadd.f32 0.0, %v1791
        %v1793 = vpop.f32.mrf.mxu0
        %v1794 = vadd.f32 0.0, %v1793
        %1795 = vmatmul.bf16.gmra.mxu0 %v1671
        %v1796 = vpop.f32.mrf.mxu0
        %v1797 = vadd.f32 0.0, %v1796
        %v1798 = vpop.f32.mrf.mxu0
        %v1799 = vadd.f32 0.0, %v1798
        %1800 = vmatmul.bf16.gmra.mxu0 %v1679
        %v1801 = vpop.f32.mrf.mxu0
        %v1802 = vadd.f32 0.0, %v1801
        %v1803 = vpop.f32.mrf.mxu0
        %v1804 = vadd.f32 0.0, %v1803
        %1805 = vmatmul.bf16.gmra.mxu0 %v1687
        %v1806 = vpop.f32.mrf.mxu0
        %v1807 = vadd.f32 0.0, %v1806
        %v1808 = vpop.f32.mrf.mxu0
        %v1809 = vadd.f32 0.0, %v1808
        %1810 = vmatmul.bf16.gmra.mxu0 %v1695
        %v1811 = vpop.f32.mrf.mxu0
        %v1812 = vadd.f32 0.0, %v1811
        %v1813 = vpop.f32.mrf.mxu0
        %v1814 = vadd.f32 0.0, %v1813
        %1815 = vmatmul.bf16.gmra.mxu0 %v1703
        %v1816 = vpop.f32.mrf.mxu0
        %v1817 = vadd.f32 0.0, %v1816
        %v1818 = vpop.f32.mrf.mxu0
        %v1819 = vadd.f32 0.0, %v1818
        %1820 = vmatmul.bf16.gmra.mxu0 %v1711
        %v1821 = vpop.f32.mrf.mxu0
        %v1822 = vadd.f32 0.0, %v1821
        %v1823 = vpop.f32.mrf.mxu0
        %v1824 = vadd.f32 0.0, %v1823
        %1825 = vmatmul.bf16.gmra.mxu0 %v1719
        %v1826 = vpop.f32.mrf.mxu0
        %v1827 = vadd.f32 0.0, %v1826
        %v1828 = vpop.f32.mrf.mxu0
        %v1829 = vadd.f32 0.0, %v1828
        %1830 = vdwg.mxu0
        %v1831 = vadd.f32 %v1542, %v1787
        %v1832 = vadd.f32 %v1543, %v1789
        %v1833 = vadd.f32 %v1544, %v1792
        %v1834 = vadd.f32 %v1545, %v1794
        %v1835 = vadd.f32 %v1546, %v1797
        %v1836 = vadd.f32 %v1547, %v1799
        %v1837 = vadd.f32 %v1548, %v1802
        %v1838 = vadd.f32 %v1549, %v1804
        %v1839 = vadd.f32 %v1550, %v1807
        %v1840 = vadd.f32 %v1551, %v1809
        %v1841 = vadd.f32 %v1552, %v1812
        %v1842 = vadd.f32 %v1553, %v1814
        %v1843 = vadd.f32 %v1554, %v1817
        %v1844 = vadd.f32 %v1555, %v1819
        %v1845 = vadd.f32 %v1556, %v1822
        %v1846 = vadd.f32 %v1557, %v1824
        %v1847 = vadd.f32 %v1558, %v1827
        %v1848 = vadd.f32 %v1559, %v1829
        %v1849 = vld [vmem:[#allocation2 + $0x20] sm:$0x8]
        %v1850 = vld [vmem:[#allocation2 + $0x24] sm:$0xf]
        %v1851 = vld [vmem:[#allocation2 + $0x28] sm:$0xf]
        %v1852 = vld [vmem:[#allocation2 + $0x2c] sm:$0xf]
        %v1853 = vld [vmem:[#allocation2 + $0x30] sm:$0xf]
        %v1854 = vld [vmem:[#allocation2 + $0x34] sm:$0xf]
        %v1855 = vld [vmem:[#allocation2 + $0x38] sm:$0xf]
        %v1856 = vld [vmem:[#allocation2 + $0x3c] sm:$0xf]
        %v1857 = vld [vmem:[#allocation2 + $0x40] sm:$0xf]
        %v1858 = vld [vmem:[#allocation2 + $0x44] sm:$0xf]
        %v1859 = vld [vmem:[#allocation2 + $0x48] sm:$0xf]
        %v1860 = vld [vmem:[#allocation2 + $0x4c] sm:$0xf]
        %v1861 = vld [vmem:[#allocation2 + $0x50] sm:$0xf]
        %v1862 = vld [vmem:[#allocation2 + $0x54] sm:$0xf]
        %v1863 = vld [vmem:[#allocation2 + $0x58] sm:$0xf]
        %v1864 = vld [vmem:[#allocation2 + $0x5c] sm:$0xf]
        %v1865 = vld [vmem:[#allocation2 + $0x60] sm:$0xf]
        %v1866 = vld [vmem:[#allocation2 + $0x64] sm:$0xf]
        %v1867 = vld [vmem:[#allocation2 + $0x68] sm:$0xf]
        %s1868 = scalar_lea.vmem [#allocation8], 384
        %v1869 = vld [vmem:[%s1868] sm:$0xf]
        %v1870 = vld [vmem:[%s1868 + $0x4] sm:$0xf]
        %v1871 = vld [vmem:[%s1868 + $0x8] sm:$0xf]
        %v1872 = vld [vmem:[%s1868 + $0xc] sm:$0xf]
        %v1873 = vld [vmem:[%s1868 + $0x10] sm:$0xf]
        %v1874 = vld [vmem:[%s1868 + $0x14] sm:$0xf]
        %v1875 = vld [vmem:[%s1868 + $0x18] sm:$0xf]
        %v1876 = vld [vmem:[%s1868 + $0x1c] sm:$0xf]
        %v1877 = vld [vmem:[%s1868 + $0x20] sm:$0xf]
        %v1878 = vld [vmem:[%s1868 + $0x24] sm:$0xf]
        %v1879 = vld [vmem:[%s1868 + $0x28] sm:$0xf]
        %v1880 = vld [vmem:[%s1868 + $0x2c] sm:$0xf]
        %v1881 = vld [vmem:[%s1868 + $0x30] sm:$0xf]
        %v1882 = vld [vmem:[%s1868 + $0x34] sm:$0xf]
        %v1883 = vld [vmem:[%s1868 + $0x38] sm:$0xf]
        %v1884 = vld [vmem:[%s1868 + $0x3c] sm:$0xf]
        %v1904 = vunpack.c.l.b16 %v1849
        %v1905 = vunpack.c.l.b16 %v1850
        %v1906 = vunpack.c.l.b16 %v1851
        %v1907 = vunpack.c.l.b16 %v1852
        %v1908 = vunpack.c.l.b16 %v1853
        %v1909 = vunpack.c.l.b16 %v1854
        %v1910 = vunpack.c.l.b16 %v1855
        %v1911 = vunpack.c.l.b16 %v1856
        %v1912 = vunpack.c.l.b16 %v1857
        %v1913 = vunpack.c.l.b16 %v1858
        %v1914 = vunpack.c.l.b16 %v1859
        %v1915 = vunpack.c.l.b16 %v1860
        %v1916 = vunpack.c.l.b16 %v1861
        %v1917 = vunpack.c.l.b16 %v1862
        %v1918 = vunpack.c.l.b16 %v1863
        %v1919 = vunpack.c.l.b16 %v1864
        %v1920 = vunpack.c.l.b16 %v1865
        %v1921 = vunpack.c.l.b16 %v1866
        %v1922 = vunpack.c.l.b16 %v1867
        %v1923 = vpack.c.b16 %v1905, %v1904
        %v1924 = vpack.c.b16 %v1907, %v1906
        %v1925 = vpack.c.b16 %v1909, %v1908
        %v1926 = vpack.c.b16 %v1911, %v1910
        %v1927 = vpack.c.b16 %v1913, %v1912
        %v1928 = vpack.c.b16 %v1915, %v1914
        %v1929 = vpack.c.b16 %v1917, %v1916
        %v1930 = vpack.c.b16 %v1919, %v1918
        %v1931 = vpack.c.b16 %v1921, %v1920
        %v1932 = vpack.c.b16 %v1922, %v1922
        %v1934 = vshrl.u32 %v1923, 16
        %v1936 = vrot.slane %v1934, 3
        %v1937 = vshll.u32 %v1923, 16
        %v1939 = vrot.slane %v1937, 4
        %v1940 = vor.u32 %v1936, %v1939
        %v1942 = vshrl.u32 %v1924, 16
        %v1944 = vrot.slane %v1942, 3
        %v1945 = vshll.u32 %v1924, 16
        %v1947 = vrot.slane %v1945, 4
        %v1948 = vor.u32 %v1944, %v1947
        %v1949 = vsel %vm612, %v1940, %v1948
        %v1951 = vshrl.u32 %v1925, 16
        %v1953 = vrot.slane %v1951, 3
        %v1954 = vshll.u32 %v1925, 16
        %v1956 = vrot.slane %v1954, 4
        %v1957 = vor.u32 %v1953, %v1956
        %v1958 = vsel %vm612, %v1948, %v1957
        %v1960 = vshrl.u32 %v1926, 16
        %v1962 = vrot.slane %v1960, 3
        %v1963 = vshll.u32 %v1926, 16
        %v1965 = vrot.slane %v1963, 4
        %v1966 = vor.u32 %v1962, %v1965
        %v1967 = vsel %vm612, %v1957, %v1966
        %v1969 = vshrl.u32 %v1927, 16
        %v1971 = vrot.slane %v1969, 3
        %v1972 = vshll.u32 %v1927, 16
        %v1974 = vrot.slane %v1972, 4
        %v1975 = vor.u32 %v1971, %v1974
        %v1976 = vsel %vm612, %v1966, %v1975
        %v1978 = vshrl.u32 %v1928, 16
        %v1980 = vrot.slane %v1978, 3
        %v1981 = vshll.u32 %v1928, 16
        %v1983 = vrot.slane %v1981, 4
        %v1984 = vor.u32 %v1980, %v1983
        %v1985 = vsel %vm612, %v1975, %v1984
        %v1987 = vshrl.u32 %v1929, 16
        %v1989 = vrot.slane %v1987, 3
        %v1990 = vshll.u32 %v1929, 16
        %v1992 = vrot.slane %v1990, 4
        %v1993 = vor.u32 %v1989, %v1992
        %v1994 = vsel %vm612, %v1984, %v1993
        %v1996 = vshrl.u32 %v1930, 16
        %v1998 = vrot.slane %v1996, 3
        %v1999 = vshll.u32 %v1930, 16
        %v2001 = vrot.slane %v1999, 4
        %v2002 = vor.u32 %v1998, %v2001
        %v2003 = vsel %vm612, %v1993, %v2002
        %v2005 = vshrl.u32 %v1931, 16
        %v2007 = vrot.slane %v2005, 3
        %v2008 = vshll.u32 %v1931, 16
        %v2010 = vrot.slane %v2008, 4
        %v2011 = vor.u32 %v2007, %v2010
        %v2012 = vsel %vm612, %v2002, %v2011
        %v2014 = vshrl.u32 %v1932, 16
        %v2016 = vrot.slane %v2014, 3
        %v2017 = vshll.u32 %v1932, 16
        %v2019 = vrot.slane %v2017, 4
        %v2020 = vor.u32 %v2016, %v2019
        %v2021 = vsel %vm612, %v2011, %v2020
        %v2047 = vunpack.c.l.b16 %v1869
        %v2048 = vunpack.c.l.b16 %v1870
        %v2049 = vunpack.c.l.b16 %v1871
        %v2050 = vunpack.c.l.b16 %v1872
        %v2051 = vunpack.c.l.b16 %v1873
        %v2052 = vunpack.c.l.b16 %v1874
        %v2053 = vunpack.c.l.b16 %v1875
        %v2054 = vunpack.c.l.b16 %v1876
        %v2055 = vunpack.c.l.b16 %v1877
        %v2056 = vunpack.c.l.b16 %v1878
        %v2057 = vunpack.c.l.b16 %v1879
        %v2058 = vunpack.c.l.b16 %v1880
        %v2059 = vunpack.c.l.b16 %v1881
        %v2060 = vunpack.c.l.b16 %v1882
        %v2061 = vunpack.c.l.b16 %v1883
        %v2062 = vunpack.c.l.b16 %v1884
        %v2063 = vpack.c.b16 %v2048, %v2047
        %v2064 = vpack.c.b16 %v2050, %v2049
        %v2065 = vpack.c.b16 %v2052, %v2051
        %v2066 = vpack.c.b16 %v2054, %v2053
        %v2067 = vpack.c.b16 %v2056, %v2055
        %v2068 = vpack.c.b16 %v2058, %v2057
        %v2069 = vpack.c.b16 %v2060, %v2059
        %v2070 = vpack.c.b16 %v2062, %v2061
        %2079 = vmatpush.bf16.msra.mxu0 %v2070
        %2080 = vmatpush.bf16.msra.mxu0 %v2069
        %2081 = vmatpush.bf16.msra.mxu0 %v2068
        %2082 = vmatpush.bf16.msra.mxu0 %v2067
        %2083 = vmatpush.bf16.msra.mxu0 %v2066
        %2084 = vmatpush.bf16.msra.mxu0 %v2065
        %2085 = vmatpush.bf16.msra.mxu0 %v2064
        %2086 = vmatpush.bf16.msra.mxu0 %v2063
        %2087 = vmatmul.bf16.gmra.mxu0 %v1949
        %v2088 = vpop.f32.mrf.mxu0
        %v2089 = vadd.f32 0.0, %v2088
        %v2090 = vpop.f32.mrf.mxu0
        %v2091 = vadd.f32 0.0, %v2090
        %2092 = vmatmul.bf16.gmra.mxu0 %v1958
        %v2093 = vpop.f32.mrf.mxu0
        %v2094 = vadd.f32 0.0, %v2093
        %v2095 = vpop.f32.mrf.mxu0
        %v2096 = vadd.f32 0.0, %v2095
        %2097 = vmatmul.bf16.gmra.mxu0 %v1967
        %v2098 = vpop.f32.mrf.mxu0
        %v2099 = vadd.f32 0.0, %v2098
        %v2100 = vpop.f32.mrf.mxu0
        %v2101 = vadd.f32 0.0, %v2100
        %2102 = vmatmul.bf16.gmra.mxu0 %v1976
        %v2103 = vpop.f32.mrf.mxu0
        %v2104 = vadd.f32 0.0, %v2103
        %v2105 = vpop.f32.mrf.mxu0
        %v2106 = vadd.f32 0.0, %v2105
        %2107 = vmatmul.bf16.gmra.mxu0 %v1985
        %v2108 = vpop.f32.mrf.mxu0
        %v2109 = vadd.f32 0.0, %v2108
        %v2110 = vpop.f32.mrf.mxu0
        %v2111 = vadd.f32 0.0, %v2110
        %2112 = vmatmul.bf16.gmra.mxu0 %v1994
        %v2113 = vpop.f32.mrf.mxu0
        %v2114 = vadd.f32 0.0, %v2113
        %v2115 = vpop.f32.mrf.mxu0
        %v2116 = vadd.f32 0.0, %v2115
        %2117 = vmatmul.bf16.gmra.mxu0 %v2003
        %v2118 = vpop.f32.mrf.mxu0
        %v2119 = vadd.f32 0.0, %v2118
        %v2120 = vpop.f32.mrf.mxu0
        %v2121 = vadd.f32 0.0, %v2120
        %2122 = vmatmul.bf16.gmra.mxu0 %v2012
        %v2123 = vpop.f32.mrf.mxu0
        %v2124 = vadd.f32 0.0, %v2123
        %v2125 = vpop.f32.mrf.mxu0
        %v2126 = vadd.f32 0.0, %v2125
        %2127 = vmatmul.bf16.gmra.mxu0 %v2021
        %v2128 = vpop.f32.mrf.mxu0
        %v2129 = vadd.f32 0.0, %v2128
        %v2130 = vpop.f32.mrf.mxu0
        %v2131 = vadd.f32 0.0, %v2130
        %2132 = vdwg.mxu0
        %v2133 = vadd.f32 %v1831, %v2089
        %v2134 = vadd.f32 %v1832, %v2091
        %v2135 = vadd.f32 %v1833, %v2094
        %v2136 = vadd.f32 %v1834, %v2096
        %v2137 = vadd.f32 %v1835, %v2099
        %v2138 = vadd.f32 %v1836, %v2101
        %v2139 = vadd.f32 %v1837, %v2104
        %v2140 = vadd.f32 %v1838, %v2106
        %v2141 = vadd.f32 %v1839, %v2109
        %v2142 = vadd.f32 %v1840, %v2111
        %v2143 = vadd.f32 %v1841, %v2114
        %v2144 = vadd.f32 %v1842, %v2116
        %v2145 = vadd.f32 %v1843, %v2119
        %v2146 = vadd.f32 %v1844, %v2121
        %v2147 = vadd.f32 %v1845, %v2124
        %v2148 = vadd.f32 %v1846, %v2126
        %v2149 = vadd.f32 %v1847, %v2129
        %v2150 = vadd.f32 %v1848, %v2131
        %s2151 = scalar_lea.vmem [#allocation8], 448
        %v2152 = vld [vmem:[%s2151] sm:$0xf]
        %v2153 = vld [vmem:[%s2151 + $0x4] sm:$0xf]
        %v2154 = vld [vmem:[%s2151 + $0x8] sm:$0xf]
        %v2155 = vld [vmem:[%s2151 + $0xc] sm:$0xf]
        %v2156 = vld [vmem:[%s2151 + $0x10] sm:$0xf]
        %v2157 = vld [vmem:[%s2151 + $0x14] sm:$0xf]
        %v2158 = vld [vmem:[%s2151 + $0x18] sm:$0xf]
        %v2159 = vld [vmem:[%s2151 + $0x1c] sm:$0xf]
        %v2160 = vld [vmem:[%s2151 + $0x20] sm:$0xf]
        %v2161 = vld [vmem:[%s2151 + $0x24] sm:$0xf]
        %v2162 = vld [vmem:[%s2151 + $0x28] sm:$0xf]
        %v2163 = vld [vmem:[%s2151 + $0x2c] sm:$0xf]
        %v2164 = vld [vmem:[%s2151 + $0x30] sm:$0xf]
        %v2165 = vld [vmem:[%s2151 + $0x34] sm:$0xf]
        %v2166 = vld [vmem:[%s2151 + $0x38] sm:$0xf]
        %v2167 = vld [vmem:[%s2151 + $0x3c] sm:$0xf]
        %v2168 = vpack.c.b16 %v1906, %v1905
        %v2169 = vpack.c.b16 %v1908, %v1907
        %v2170 = vpack.c.b16 %v1910, %v1909
        %v2171 = vpack.c.b16 %v1912, %v1911
        %v2172 = vpack.c.b16 %v1914, %v1913
        %v2173 = vpack.c.b16 %v1916, %v1915
        %v2174 = vpack.c.b16 %v1918, %v1917
        %v2175 = vpack.c.b16 %v1920, %v1919
        %v2176 = vpack.c.b16 %v1922, %v1921
        %v2202 = vunpack.c.l.b16 %v2152
        %v2203 = vunpack.c.l.b16 %v2153
        %v2204 = vunpack.c.l.b16 %v2154
        %v2205 = vunpack.c.l.b16 %v2155
        %v2206 = vunpack.c.l.b16 %v2156
        %v2207 = vunpack.c.l.b16 %v2157
        %v2208 = vunpack.c.l.b16 %v2158
        %v2209 = vunpack.c.l.b16 %v2159
        %v2210 = vunpack.c.l.b16 %v2160
        %v2211 = vunpack.c.l.b16 %v2161
        %v2212 = vunpack.c.l.b16 %v2162
        %v2213 = vunpack.c.l.b16 %v2163
        %v2214 = vunpack.c.l.b16 %v2164
        %v2215 = vunpack.c.l.b16 %v2165
        %v2216 = vunpack.c.l.b16 %v2166
        %v2217 = vunpack.c.l.b16 %v2167
        %v2218 = vpack.c.b16 %v2203, %v2202
        %v2219 = vpack.c.b16 %v2205, %v2204
        %v2220 = vpack.c.b16 %v2207, %v2206
        %v2221 = vpack.c.b16 %v2209, %v2208
        %v2222 = vpack.c.b16 %v2211, %v2210
        %v2223 = vpack.c.b16 %v2213, %v2212
        %v2224 = vpack.c.b16 %v2215, %v2214
        %v2225 = vpack.c.b16 %v2217, %v2216
        %2234 = vmatpush.bf16.msra.mxu0 %v2225
        %2235 = vmatpush.bf16.msra.mxu0 %v2224
        %2236 = vmatpush.bf16.msra.mxu0 %v2223
        %2237 = vmatpush.bf16.msra.mxu0 %v2222
        %2238 = vmatpush.bf16.msra.mxu0 %v2221
        %2239 = vmatpush.bf16.msra.mxu0 %v2220
        %2240 = vmatpush.bf16.msra.mxu0 %v2219
        %2241 = vmatpush.bf16.msra.mxu0 %v2218
        %2242 = vmatmul.bf16.gmra.mxu0 %v2168
        %v2243 = vpop.f32.mrf.mxu0
        %v2244 = vadd.f32 0.0, %v2243
        %v2245 = vpop.f32.mrf.mxu0
        %v2246 = vadd.f32 0.0, %v2245
        %2247 = vmatmul.bf16.gmra.mxu0 %v2169
        %v2248 = vpop.f32.mrf.mxu0
        %v2249 = vadd.f32 0.0, %v2248
        %v2250 = vpop.f32.mrf.mxu0
        %v2251 = vadd.f32 0.0, %v2250
        %2252 = vmatmul.bf16.gmra.mxu0 %v2170
        %v2253 = vpop.f32.mrf.mxu0
        %v2254 = vadd.f32 0.0, %v2253
        %v2255 = vpop.f32.mrf.mxu0
        %v2256 = vadd.f32 0.0, %v2255
        %2257 = vmatmul.bf16.gmra.mxu0 %v2171
        %v2258 = vpop.f32.mrf.mxu0
        %v2259 = vadd.f32 0.0, %v2258
        %v2260 = vpop.f32.mrf.mxu0
        %v2261 = vadd.f32 0.0, %v2260
        %2262 = vmatmul.bf16.gmra.mxu0 %v2172
        %v2263 = vpop.f32.mrf.mxu0
        %v2264 = vadd.f32 0.0, %v2263
        %v2265 = vpop.f32.mrf.mxu0
        %v2266 = vadd.f32 0.0, %v2265
        %2267 = vmatmul.bf16.gmra.mxu0 %v2173
        %v2268 = vpop.f32.mrf.mxu0
        %v2269 = vadd.f32 0.0, %v2268
        %v2270 = vpop.f32.mrf.mxu0
        %v2271 = vadd.f32 0.0, %v2270
        %2272 = vmatmul.bf16.gmra.mxu0 %v2174
        %v2273 = vpop.f32.mrf.mxu0
        %v2274 = vadd.f32 0.0, %v2273
        %v2275 = vpop.f32.mrf.mxu0
        %v2276 = vadd.f32 0.0, %v2275
        %2277 = vmatmul.bf16.gmra.mxu0 %v2175
        %v2278 = vpop.f32.mrf.mxu0
        %v2279 = vadd.f32 0.0, %v2278
        %v2280 = vpop.f32.mrf.mxu0
        %v2281 = vadd.f32 0.0, %v2280
        %2282 = vmatmul.bf16.gmra.mxu0 %v2176
        %v2283 = vpop.f32.mrf.mxu0
        %v2284 = vadd.f32 0.0, %v2283
        %v2285 = vpop.f32.mrf.mxu0
        %v2286 = vadd.f32 0.0, %v2285
        %2287 = vdwg.mxu0
        %v2288 = vadd.f32 %v2133, %v2244
        %v2289 = vadd.f32 %v2134, %v2246
        %v2290 = vadd.f32 %v2135, %v2249
        %v2291 = vadd.f32 %v2136, %v2251
        %v2292 = vadd.f32 %v2137, %v2254
        %v2293 = vadd.f32 %v2138, %v2256
        %v2294 = vadd.f32 %v2139, %v2259
        %v2295 = vadd.f32 %v2140, %v2261
        %v2296 = vadd.f32 %v2141, %v2264
        %v2297 = vadd.f32 %v2142, %v2266
        %v2298 = vadd.f32 %v2143, %v2269
        %v2299 = vadd.f32 %v2144, %v2271
        %v2300 = vadd.f32 %v2145, %v2274
        %v2301 = vadd.f32 %v2146, %v2276
        %v2302 = vadd.f32 %v2147, %v2279
        %v2303 = vadd.f32 %v2148, %v2281
        %v2304 = vadd.f32 %v2149, %v2284
        %v2305 = vadd.f32 %v2150, %v2286
        %v2306 = vld [vmem:[#allocation2 + $0x24] sm:$0xf]
        %v2307 = vld [vmem:[#allocation2 + $0x28] sm:$0xf]
        %v2308 = vld [vmem:[#allocation2 + $0x2c] sm:$0xf]
        %v2309 = vld [vmem:[#allocation2 + $0x30] sm:$0xf]
        %v2310 = vld [vmem:[#allocation2 + $0x34] sm:$0xf]
        %v2311 = vld [vmem:[#allocation2 + $0x38] sm:$0xf]
        %v2312 = vld [vmem:[#allocation2 + $0x3c] sm:$0xf]
        %v2313 = vld [vmem:[#allocation2 + $0x40] sm:$0xf]
        %v2314 = vld [vmem:[#allocation2 + $0x44] sm:$0xf]
        %v2315 = vld [vmem:[#allocation2 + $0x48] sm:$0xf]
        %v2316 = vld [vmem:[#allocation2 + $0x4c] sm:$0xf]
        %v2317 = vld [vmem:[#allocation2 + $0x50] sm:$0xf]
        %v2318 = vld [vmem:[#allocation2 + $0x54] sm:$0xf]
        %v2319 = vld [vmem:[#allocation2 + $0x58] sm:$0xf]
        %v2320 = vld [vmem:[#allocation2 + $0x5c] sm:$0xf]
        %v2321 = vld [vmem:[#allocation2 + $0x60] sm:$0xf]
        %v2322 = vld [vmem:[#allocation2 + $0x64] sm:$0xf]
        %v2323 = vld [vmem:[#allocation2 + $0x68] sm:$0xf]
        %v2324 = vld [vmem:[#allocation2 + $0x6c] sm:$0x1]
        %s2325 = scalar_lea.vmem [#allocation8], 512
        %v2326 = vld [vmem:[%s2325] sm:$0xf]
        %v2327 = vld [vmem:[%s2325 + $0x4] sm:$0xf]
        %v2328 = vld [vmem:[%s2325 + $0x8] sm:$0xf]
        %v2329 = vld [vmem:[%s2325 + $0xc] sm:$0xf]
        %v2330 = vld [vmem:[%s2325 + $0x10] sm:$0xf]
        %v2331 = vld [vmem:[%s2325 + $0x14] sm:$0xf]
        %v2332 = vld [vmem:[%s2325 + $0x18] sm:$0xf]
        %v2333 = vld [vmem:[%s2325 + $0x1c] sm:$0xf]
        %v2334 = vld [vmem:[%s2325 + $0x20] sm:$0xf]
        %v2335 = vld [vmem:[%s2325 + $0x24] sm:$0xf]
        %v2336 = vld [vmem:[%s2325 + $0x28] sm:$0xf]
        %v2337 = vld [vmem:[%s2325 + $0x2c] sm:$0xf]
        %v2338 = vld [vmem:[%s2325 + $0x30] sm:$0xf]
        %v2339 = vld [vmem:[%s2325 + $0x34] sm:$0xf]
        %v2340 = vld [vmem:[%s2325 + $0x38] sm:$0xf]
        %v2341 = vld [vmem:[%s2325 + $0x3c] sm:$0xf]
        %v2361 = vunpack.c.l.b16 %v2306
        %v2362 = vunpack.c.l.b16 %v2307
        %v2363 = vunpack.c.l.b16 %v2308
        %v2364 = vunpack.c.l.b16 %v2309
        %v2365 = vunpack.c.l.b16 %v2310
        %v2366 = vunpack.c.l.b16 %v2311
        %v2367 = vunpack.c.l.b16 %v2312
        %v2368 = vunpack.c.l.b16 %v2313
        %v2369 = vunpack.c.l.b16 %v2314
        %v2370 = vunpack.c.l.b16 %v2315
        %v2371 = vunpack.c.l.b16 %v2316
        %v2372 = vunpack.c.l.b16 %v2317
        %v2373 = vunpack.c.l.b16 %v2318
        %v2374 = vunpack.c.l.b16 %v2319
        %v2375 = vunpack.c.l.b16 %v2320
        %v2376 = vunpack.c.l.b16 %v2321
        %v2377 = vunpack.c.l.b16 %v2322
        %v2378 = vunpack.c.l.b16 %v2323
        %v2379 = vunpack.c.l.b16 %v2324
        %v2380 = vpack.c.b16 %v2362, %v2361
        %v2381 = vpack.c.b16 %v2364, %v2363
        %v2382 = vpack.c.b16 %v2366, %v2365
        %v2383 = vpack.c.b16 %v2368, %v2367
        %v2384 = vpack.c.b16 %v2370, %v2369
        %v2385 = vpack.c.b16 %v2372, %v2371
        %v2386 = vpack.c.b16 %v2374, %v2373
        %v2387 = vpack.c.b16 %v2376, %v2375
        %v2388 = vpack.c.b16 %v2378, %v2377
        %v2389 = vpack.c.b16 %v2379, %v2379
        %v2391 = vshrl.u32 %v2380, 16
        %v2393 = vshll.u32 %v2380, 16
        %v2395 = vrot.slane %v2393, 1
        %v2396 = vor.u32 %v2391, %v2395
        %v2398 = vshll.u32 %v2381, 16
        %v2400 = vrot.slane %v2398, 1
        %v2401 = vsel %vm897, %v2396, %v2400
        %v2402 = vshrl.u32 %v2381, 16
        %v2404 = vor.u32 %v2402, %v2400
        %v2406 = vshll.u32 %v2382, 16
        %v2408 = vrot.slane %v2406, 1
        %v2409 = vsel %vm897, %v2404, %v2408
        %v2410 = vshrl.u32 %v2382, 16
        %v2412 = vor.u32 %v2410, %v2408
        %v2414 = vshll.u32 %v2383, 16
        %v2416 = vrot.slane %v2414, 1
        %v2417 = vsel %vm897, %v2412, %v2416
        %v2418 = vshrl.u32 %v2383, 16
        %v2420 = vor.u32 %v2418, %v2416
        %v2422 = vshll.u32 %v2384, 16
        %v2424 = vrot.slane %v2422, 1
        %v2425 = vsel %vm897, %v2420, %v2424
        %v2426 = vshrl.u32 %v2384, 16
        %v2428 = vor.u32 %v2426, %v2424
        %v2430 = vshll.u32 %v2385, 16
        %v2432 = vrot.slane %v2430, 1
        %v2433 = vsel %vm897, %v2428, %v2432
        %v2434 = vshrl.u32 %v2385, 16
        %v2436 = vor.u32 %v2434, %v2432
        %v2438 = vshll.u32 %v2386, 16
        %v2440 = vrot.slane %v2438, 1
        %v2441 = vsel %vm897, %v2436, %v2440
        %v2442 = vshrl.u32 %v2386, 16
        %v2444 = vor.u32 %v2442, %v2440
        %v2446 = vshll.u32 %v2387, 16
        %v2448 = vrot.slane %v2446, 1
        %v2449 = vsel %vm897, %v2444, %v2448
        %v2450 = vshrl.u32 %v2387, 16
        %v2452 = vor.u32 %v2450, %v2448
        %v2454 = vshll.u32 %v2388, 16
        %v2456 = vrot.slane %v2454, 1
        %v2457 = vsel %vm897, %v2452, %v2456
        %v2458 = vshrl.u32 %v2388, 16
        %v2460 = vor.u32 %v2458, %v2456
        %v2462 = vshll.u32 %v2389, 16
        %v2464 = vrot.slane %v2462, 1
        %v2465 = vsel %vm897, %v2460, %v2464
        %v2491 = vunpack.c.l.b16 %v2326
        %v2492 = vunpack.c.l.b16 %v2327
        %v2493 = vunpack.c.l.b16 %v2328
        %v2494 = vunpack.c.l.b16 %v2329
        %v2495 = vunpack.c.l.b16 %v2330
        %v2496 = vunpack.c.l.b16 %v2331
        %v2497 = vunpack.c.l.b16 %v2332
        %v2498 = vunpack.c.l.b16 %v2333
        %v2499 = vunpack.c.l.b16 %v2334
        %v2500 = vunpack.c.l.b16 %v2335
        %v2501 = vunpack.c.l.b16 %v2336
        %v2502 = vunpack.c.l.b16 %v2337
        %v2503 = vunpack.c.l.b16 %v2338
        %v2504 = vunpack.c.l.b16 %v2339
        %v2505 = vunpack.c.l.b16 %v2340
        %v2506 = vunpack.c.l.b16 %v2341
        %v2507 = vpack.c.b16 %v2492, %v2491
        %v2508 = vpack.c.b16 %v2494, %v2493
        %v2509 = vpack.c.b16 %v2496, %v2495
        %v2510 = vpack.c.b16 %v2498, %v2497
        %v2511 = vpack.c.b16 %v2500, %v2499
        %v2512 = vpack.c.b16 %v2502, %v2501
        %v2513 = vpack.c.b16 %v2504, %v2503
        %v2514 = vpack.c.b16 %v2506, %v2505
        %2523 = vmatpush.bf16.msra.mxu0 %v2514
        %2524 = vmatpush.bf16.msra.mxu0 %v2513
        %2525 = vmatpush.bf16.msra.mxu0 %v2512
        %2526 = vmatpush.bf16.msra.mxu0 %v2511
        %2527 = vmatpush.bf16.msra.mxu0 %v2510
        %2528 = vmatpush.bf16.msra.mxu0 %v2509
        %2529 = vmatpush.bf16.msra.mxu0 %v2508
        %2530 = vmatpush.bf16.msra.mxu0 %v2507
        %2531 = vmatmul.bf16.gmra.mxu0 %v2401
        %v2532 = vpop.f32.mrf.mxu0
        %v2533 = vadd.f32 0.0, %v2532
        %v2534 = vpop.f32.mrf.mxu0
        %v2535 = vadd.f32 0.0, %v2534
        %2536 = vmatmul.bf16.gmra.mxu0 %v2409
        %v2537 = vpop.f32.mrf.mxu0
        %v2538 = vadd.f32 0.0, %v2537
        %v2539 = vpop.f32.mrf.mxu0
        %v2540 = vadd.f32 0.0, %v2539
        %2541 = vmatmul.bf16.gmra.mxu0 %v2417
        %v2542 = vpop.f32.mrf.mxu0
        %v2543 = vadd.f32 0.0, %v2542
        %v2544 = vpop.f32.mrf.mxu0
        %v2545 = vadd.f32 0.0, %v2544
        %2546 = vmatmul.bf16.gmra.mxu0 %v2425
        %v2547 = vpop.f32.mrf.mxu0
        %v2548 = vadd.f32 0.0, %v2547
        %v2549 = vpop.f32.mrf.mxu0
        %v2550 = vadd.f32 0.0, %v2549
        %2551 = vmatmul.bf16.gmra.mxu0 %v2433
        %v2552 = vpop.f32.mrf.mxu0
        %v2553 = vadd.f32 0.0, %v2552
        %v2554 = vpop.f32.mrf.mxu0
        %v2555 = vadd.f32 0.0, %v2554
        %2556 = vmatmul.bf16.gmra.mxu0 %v2441
        %v2557 = vpop.f32.mrf.mxu0
        %v2558 = vadd.f32 0.0, %v2557
        %v2559 = vpop.f32.mrf.mxu0
        %v2560 = vadd.f32 0.0, %v2559
        %2561 = vmatmul.bf16.gmra.mxu0 %v2449
        %v2562 = vpop.f32.mrf.mxu0
        %v2563 = vadd.f32 0.0, %v2562
        %v2564 = vpop.f32.mrf.mxu0
        %v2565 = vadd.f32 0.0, %v2564
        %2566 = vmatmul.bf16.gmra.mxu0 %v2457
        %v2567 = vpop.f32.mrf.mxu0
        %v2568 = vadd.f32 0.0, %v2567
        %v2569 = vpop.f32.mrf.mxu0
        %v2570 = vadd.f32 0.0, %v2569
        %2571 = vmatmul.bf16.gmra.mxu0 %v2465
        %v2572 = vpop.f32.mrf.mxu0
        %v2573 = vadd.f32 0.0, %v2572
        %v2574 = vpop.f32.mrf.mxu0
        %v2575 = vadd.f32 0.0, %v2574
        %2576 = vdwg.mxu0
        %v2577 = vadd.f32 %v2288, %v2533
        %v2578 = vadd.f32 %v2289, %v2535
        %v2579 = vadd.f32 %v2290, %v2538
        %v2580 = vadd.f32 %v2291, %v2540
        %v2581 = vadd.f32 %v2292, %v2543
        %v2582 = vadd.f32 %v2293, %v2545
        %v2583 = vadd.f32 %v2294, %v2548
        %v2584 = vadd.f32 %v2295, %v2550
        %v2585 = vadd.f32 %v2296, %v2553
        %v2586 = vadd.f32 %v2297, %v2555
        %v2587 = vadd.f32 %v2298, %v2558
        %v2588 = vadd.f32 %v2299, %v2560
        %v2589 = vadd.f32 %v2300, %v2563
        %v2590 = vadd.f32 %v2301, %v2565
        %v2591 = vadd.f32 %v2302, %v2568
        %v2592 = vadd.f32 %v2303, %v2570
        %v2593 = vadd.f32 %v2304, %v2573
        %v2594 = vadd.f32 %v2305, %v2575
        %v2595 = vlaneseq
        %v2596 = vshrl.u32 %v2595, 7
        %v2597 = vadd.s32 %v2596, 8
        %v2598 = vadd.s32 %v2596, 16
        %vm2599 = vcmp.ge.s32.totalorder %v2596, 1
        %vm2600 = vcmp.ge.s32.totalorder %v2597, 1
        %vm2601 = vcmp.ge.s32.totalorder %v2598, 1
        %vm2602 = vcmp.le.s32.totalorder %v2596, 16
        %vm2603 = vcmp.le.s32.totalorder %v2597, 16
        %vm2604 = vcmp.le.s32.totalorder %v2598, 16
        %vm2605 = vmand %vm2599, %vm2602
        %vm2606 = vmand %vm2600, %vm2603
        %vm2607 = vmand %vm2601, %vm2604
        %v2608 = vmax.f32 %v2577, 0.0
        %v2609 = vmax.f32 %v2578, 0.0
        %v2610 = vmax.f32 %v2579, 0.0
        %v2611 = vmax.f32 %v2580, 0.0
        %v2612 = vmax.f32 %v2581, 0.0
        %v2613 = vmax.f32 %v2582, 0.0
        %v2614 = vmax.f32 %v2583, 0.0
        %v2615 = vmax.f32 %v2584, 0.0
        %v2616 = vmax.f32 %v2585, 0.0
        %v2617 = vmax.f32 %v2586, 0.0
        %v2618 = vmax.f32 %v2587, 0.0
        %v2619 = vmax.f32 %v2588, 0.0
        %v2620 = vmax.f32 %v2589, 0.0
        %v2621 = vmax.f32 %v2590, 0.0
        %v2622 = vmax.f32 %v2591, 0.0
        %v2623 = vmax.f32 %v2592, 0.0
        %v2624 = vmax.f32 %v2593, 0.0
        %v2625 = vmax.f32 %v2594, 0.0
        %v2626 = vmul.f32 %v2608, 1.7139589
        %v2627 = vmul.f32 %v2609, 1.7139589
        %v2628 = vmul.f32 %v2610, 1.7139589
        %v2629 = vmul.f32 %v2611, 1.7139589
        %v2630 = vmul.f32 %v2612, 1.7139589
        %v2631 = vmul.f32 %v2613, 1.7139589
        %v2632 = vmul.f32 %v2614, 1.7139589
        %v2633 = vmul.f32 %v2615, 1.7139589
        %v2634 = vmul.f32 %v2616, 1.7139589
        %v2635 = vmul.f32 %v2617, 1.7139589
        %v2636 = vmul.f32 %v2618, 1.7139589
        %v2637 = vmul.f32 %v2619, 1.7139589
        %v2638 = vmul.f32 %v2620, 1.7139589
        %v2639 = vmul.f32 %v2621, 1.7139589
        %v2640 = vmul.f32 %v2622, 1.7139589
        %v2641 = vmul.f32 %v2623, 1.7139589
        %v2642 = vmul.f32 %v2624, 1.7139589
        %v2643 = vmul.f32 %v2625, 1.7139589
        %v2644 = vsel %vm2605, 1, 0
        %v2645 = vsel %vm2606, 1, 0
        %v2646 = vsel %vm2607, 1, 0
        %vm2647 = vcmp.eq.s32.totalorder %v2644, 1
        %vm2648 = vcmp.eq.s32.totalorder %v2645, 1
        %vm2649 = vcmp.eq.s32.totalorder %v2646, 1
        %v2650 = vsel %vm2647, %v2626, 0.0
        %v2651 = vsel %vm2648, %v2627, 0.0
        %v2652 = vsel %vm2649, %v2628, 0.0
        %v2653 = vsel %vm2647, %v2629, 0.0
        %v2654 = vsel %vm2648, %v2630, 0.0
        %v2655 = vsel %vm2649, %v2631, 0.0
        %v2656 = vsel %vm2647, %v2632, 0.0
        %v2657 = vsel %vm2648, %v2633, 0.0
        %v2658 = vsel %vm2649, %v2634, 0.0
        %v2659 = vsel %vm2647, %v2635, 0.0
        %v2660 = vsel %vm2648, %v2636, 0.0
        %v2661 = vsel %vm2649, %v2637, 0.0
        %v2662 = vsel %vm2647, %v2638, 0.0
        %v2663 = vsel %vm2648, %v2639, 0.0
        %v2664 = vsel %vm2649, %v2640, 0.0
        %v2665 = vsel %vm2647, %v2641, 0.0
        %v2666 = vsel %vm2648, %v2642, 0.0
        %v2667 = vsel %vm2649, %v2643, 0.0
        %v2668 = vpack.c.bf16 %v2650, %v2650
        %v2669 = vpack.c.bf16 %v2651, %v2651
        %v2670 = vpack.c.bf16 %v2652, %v2652
        %v2671 = vpack.c.bf16 %v2653, %v2653
        %v2672 = vpack.c.bf16 %v2654, %v2654
        %v2673 = vpack.c.bf16 %v2655, %v2655
        %v2674 = vpack.c.bf16 %v2656, %v2656
        %v2675 = vpack.c.bf16 %v2657, %v2657
        %v2676 = vpack.c.bf16 %v2658, %v2658
        %v2677 = vpack.c.bf16 %v2659, %v2659
        %v2678 = vpack.c.bf16 %v2660, %v2660
        %v2679 = vpack.c.bf16 %v2661, %v2661
        %v2680 = vpack.c.bf16 %v2662, %v2662
        %v2681 = vpack.c.bf16 %v2663, %v2663
        %v2682 = vpack.c.bf16 %v2664, %v2664
        %v2683 = vpack.c.bf16 %v2665, %v2665
        %v2684 = vpack.c.bf16 %v2666, %v2666
        %v2685 = vpack.c.bf16 %v2667, %v2667
        %2686 = vst [vmem:[#allocation2 + $0xc] sm:$0xf] %v2668
        %2687 = vst [vmem:[#allocation2 + $0x10] sm:$0xf] %v2669
        %2688 = vst [vmem:[#allocation2 + $0x14] sm:$0xf] %v2670
        %2689 = vst [vmem:[#allocation2 + $0x18] sm:$0xf] %v2671
        %2690 = vst [vmem:[#allocation2 + $0x1c] sm:$0xf] %v2672
        %2691 = vst [vmem:[#allocation2 + $0x20] sm:$0xf] %v2673
        %2692 = vst [vmem:[#allocation2 + $0x24] sm:$0xf] %v2674
        %2693 = vst [vmem:[#allocation2 + $0x28] sm:$0xf] %v2675
        %2694 = vst [vmem:[#allocation2 + $0x2c] sm:$0xf] %v2676
        %2695 = vst [vmem:[#allocation2 + $0x30] sm:$0xf] %v2677
        %2696 = vst [vmem:[#allocation2 + $0x34] sm:$0xf] %v2678
        %2697 = vst [vmem:[#allocation2 + $0x38] sm:$0xf] %v2679
        %2698 = vst [vmem:[#allocation2 + $0x3c] sm:$0xf] %v2680
        %2699 = vst [vmem:[#allocation2 + $0x40] sm:$0xf] %v2681
        %2700 = vst [vmem:[#allocation2 + $0x44] sm:$0xf] %v2682
        %2701 = vst [vmem:[#allocation2 + $0x48] sm:$0xf] %v2683
        %2702 = vst [vmem:[#allocation2 + $0x4c] sm:$0xf] %v2684
        %2703 = vst [vmem:[#allocation2 + $0x50] sm:$0xf] %v2685
        %p2704 = scmp.eq.s32.totalorder %s28, 0
        // Predicated region
        $region45: #{tpu_custom_call.1} parent=31 // pred_check
          %p2705 = pneg %p2704
        $region46: #{tpu_custom_call.1} parent=31 // pred_check_branch
          %2707 = sbr.rel (%p2705) target = $region48
        $region47: #{tpu_custom_call.1} parent=31 // pred_region
          %2708 = vst [vmem:[#allocation2 + $0xc] sm:$0xf] 0
          %2709 = vst [vmem:[#allocation2 + $0x10] sm:$0xf] 0
          %2710 = vst [vmem:[#allocation2 + $0x14] sm:$0xf] 0
        $region48: #{tpu_custom_call.1} parent=31 // pred_fallthru
          _
        %p2711 = scmp.eq.s32.totalorder %s28, 3
        // Predicated region
        $region49: #{tpu_custom_call.1} parent=31 // pred_check
          %p2712 = pneg %p2711
        $region50: #{tpu_custom_call.1} parent=31 // pred_check_branch
          %2714 = sbr.rel (%p2712) target = $region52
        $region51: #{tpu_custom_call.1} parent=31 // pred_region
          %2715 = vst [vmem:[#allocation2 + $0x48] sm:$0xf] 0
          %2716 = vst [vmem:[#allocation2 + $0x4c] sm:$0xf] 0
          %2717 = vst [vmem:[#allocation2 + $0x50] sm:$0xf] 0
        $region52: #{tpu_custom_call.1} parent=31 // pred_fallthru
          _
        %v2718 = vld [vmem:[#allocation2 + $0x8] sm:$0x8]
        %v2719 = vld [vmem:[#allocation2 + $0xc] sm:$0xf]
        %v2720 = vld [vmem:[#allocation2 + $0x10] sm:$0xf]
        %v2721 = vld [vmem:[#allocation2 + $0x14] sm:$0xf]
        %v2722 = vld [vmem:[#allocation2 + $0x18] sm:$0xf]
        %v2723 = vld [vmem:[#allocation2 + $0x1c] sm:$0xf]
        %v2724 = vld [vmem:[#allocation2 + $0x20] sm:$0xf]
        %v2725 = vld [vmem:[#allocation2 + $0x24] sm:$0xf]
        %v2726 = vld [vmem:[#allocation2 + $0x28] sm:$0xf]
        %v2727 = vld [vmem:[#allocation2 + $0x2c] sm:$0xf]
        %v2728 = vld [vmem:[#allocation2 + $0x30] sm:$0xf]
        %v2729 = vld [vmem:[#allocation2 + $0x34] sm:$0xf]
        %v2730 = vld [vmem:[#allocation2 + $0x38] sm:$0xf]
        %s2731 = scalar_lea.vmem [#allocation8], 576
        %v2732 = vld [vmem:[%s2731] sm:$0xf]
        %v2733 = vld [vmem:[%s2731 + $0x4] sm:$0xf]
        %v2734 = vld [vmem:[%s2731 + $0x8] sm:$0xf]
        %v2735 = vld [vmem:[%s2731 + $0xc] sm:$0xf]
        %v2736 = vld [vmem:[%s2731 + $0x10] sm:$0xf]
        %v2737 = vld [vmem:[%s2731 + $0x14] sm:$0xf]
        %v2738 = vld [vmem:[%s2731 + $0x18] sm:$0xf]
        %v2739 = vld [vmem:[%s2731 + $0x1c] sm:$0xf]
        %v2740 = vld [vmem:[%s2731 + $0x20] sm:$0xf]
        %v2741 = vld [vmem:[%s2731 + $0x24] sm:$0xf]
        %v2742 = vld [vmem:[%s2731 + $0x28] sm:$0xf]
        %v2743 = vld [vmem:[%s2731 + $0x2c] sm:$0xf]
        %v2744 = vld [vmem:[%s2731 + $0x30] sm:$0xf]
        %v2745 = vld [vmem:[%s2731 + $0x34] sm:$0xf]
        %v2746 = vld [vmem:[%s2731 + $0x38] sm:$0xf]
        %v2747 = vld [vmem:[%s2731 + $0x3c] sm:$0xf]
        %s2748 = scalar_lea.vmem [#allocation8], 640
        %v2749 = vld [vmem:[%s2748] sm:$0xf]
        %v2750 = vld [vmem:[%s2748 + $0x4] sm:$0xf]
        %v2751 = vld [vmem:[%s2748 + $0x8] sm:$0xf]
        %v2752 = vld [vmem:[%s2748 + $0xc] sm:$0xf]
        %v2753 = vld [vmem:[%s2748 + $0x10] sm:$0xf]
        %v2754 = vld [vmem:[%s2748 + $0x14] sm:$0xf]
        %v2755 = vld [vmem:[%s2748 + $0x18] sm:$0xf]
        %v2756 = vld [vmem:[%s2748 + $0x1c] sm:$0xf]
        %v2757 = vld [vmem:[%s2748 + $0x20] sm:$0xf]
        %v2758 = vld [vmem:[%s2748 + $0x24] sm:$0xf]
        %v2759 = vld [vmem:[%s2748 + $0x28] sm:$0xf]
        %v2760 = vld [vmem:[%s2748 + $0x2c] sm:$0xf]
        %v2761 = vld [vmem:[%s2748 + $0x30] sm:$0xf]
        %v2762 = vld [vmem:[%s2748 + $0x34] sm:$0xf]
        %v2763 = vld [vmem:[%s2748 + $0x38] sm:$0xf]
        %v2764 = vld [vmem:[%s2748 + $0x3c] sm:$0xf]
        %v2777 = vunpack.c.l.b16 %v2719
        %v2778 = vunpack.c.l.b16 %v2720
        %v2779 = vunpack.c.l.b16 %v2721
        %v2780 = vunpack.c.l.b16 %v2722
        %v2781 = vunpack.c.l.b16 %v2723
        %v2782 = vunpack.c.l.b16 %v2724
        %v2783 = vunpack.c.l.b16 %v2725
        %v2784 = vunpack.c.l.b16 %v2726
        %v2785 = vunpack.c.l.b16 %v2727
        %v2786 = vunpack.c.l.b16 %v2728
        %v2787 = vunpack.c.l.b16 %v2729
        %v2788 = vunpack.c.l.b16 %v2730
        %v2789 = vpack.c.b16 %v2778, %v2777
        %v2790 = vpack.c.b16 %v2780, %v2779
        %v2791 = vpack.c.b16 %v2782, %v2781
        %v2792 = vpack.c.b16 %v2784, %v2783
        %v2793 = vpack.c.b16 %v2786, %v2785
        %v2794 = vpack.c.b16 %v2788, %v2787
        %v2817 = vunpack.c.l.b16 %v2749
        %v2818 = vunpack.c.l.b16 %v2750
        %v2819 = vunpack.c.l.b16 %v2751
        %v2820 = vunpack.c.l.b16 %v2752
        %v2821 = vunpack.c.l.b16 %v2753
        %v2822 = vunpack.c.l.b16 %v2754
        %v2823 = vunpack.c.l.b16 %v2755
        %v2824 = vunpack.c.l.b16 %v2756
        %v2825 = vunpack.c.l.b16 %v2757
        %v2826 = vunpack.c.l.b16 %v2758
        %v2827 = vunpack.c.l.b16 %v2759
        %v2828 = vunpack.c.l.b16 %v2760
        %v2829 = vunpack.c.l.b16 %v2761
        %v2830 = vunpack.c.l.b16 %v2762
        %v2831 = vunpack.c.l.b16 %v2763
        %v2832 = vunpack.c.l.b16 %v2764
        %v2833 = vpack.c.b16 %v2818, %v2817
        %v2834 = vpack.c.b16 %v2820, %v2819
        %v2835 = vpack.c.b16 %v2822, %v2821
        %v2836 = vpack.c.b16 %v2824, %v2823
        %v2837 = vpack.c.b16 %v2826, %v2825
        %v2838 = vpack.c.b16 %v2828, %v2827
        %v2839 = vpack.c.b16 %v2830, %v2829
        %v2840 = vpack.c.b16 %v2832, %v2831
        %2849 = vmatpush.bf16.msra.mxu0 %v2840
        %2850 = vmatpush.bf16.msra.mxu0 %v2839
        %2851 = vmatpush.bf16.msra.mxu0 %v2838
        %2852 = vmatpush.bf16.msra.mxu0 %v2837
        %2853 = vmatpush.bf16.msra.mxu0 %v2836
        %2854 = vmatpush.bf16.msra.mxu0 %v2835
        %2855 = vmatpush.bf16.msra.mxu0 %v2834
        %2856 = vmatpush.bf16.msra.mxu0 %v2833
        %2857 = vmatmul.bf16.gmra.mxu0 %v2789
        %v2858 = vpop.f32.mrf.mxu0
        %v2859 = vadd.f32 0.0, %v2858
        %v2860 = vpop.f32.mrf.mxu0
        %v2861 = vadd.f32 0.0, %v2860
        %2862 = vmatmul.bf16.gmra.mxu0 %v2790
        %v2863 = vpop.f32.mrf.mxu0
        %v2864 = vadd.f32 0.0, %v2863
        %v2865 = vpop.f32.mrf.mxu0
        %v2866 = vadd.f32 0.0, %v2865
        %2867 = vmatmul.bf16.gmra.mxu0 %v2791
        %v2868 = vpop.f32.mrf.mxu0
        %v2869 = vadd.f32 0.0, %v2868
        %v2870 = vpop.f32.mrf.mxu0
        %v2871 = vadd.f32 0.0, %v2870
        %2872 = vmatmul.bf16.gmra.mxu0 %v2792
        %v2873 = vpop.f32.mrf.mxu0
        %v2874 = vadd.f32 0.0, %v2873
        %v2875 = vpop.f32.mrf.mxu0
        %v2876 = vadd.f32 0.0, %v2875
        %2877 = vmatmul.bf16.gmra.mxu0 %v2793
        %v2878 = vpop.f32.mrf.mxu0
        %v2879 = vadd.f32 0.0, %v2878
        %v2880 = vpop.f32.mrf.mxu0
        %v2881 = vadd.f32 0.0, %v2880
        %2882 = vmatmul.bf16.gmra.mxu0 %v2794
        %v2883 = vpop.f32.mrf.mxu0
        %v2884 = vadd.f32 0.0, %v2883
        %v2885 = vpop.f32.mrf.mxu0
        %v2886 = vadd.f32 0.0, %v2885
        %2887 = vdwg.mxu0
        %v2889 = vunpack.c.l.b16 %v2718
        %v2890 = vpack.c.b16 %v2777, %v2889
        %v2891 = vpack.c.b16 %v2779, %v2778
        %v2892 = vpack.c.b16 %v2781, %v2780
        %v2893 = vpack.c.b16 %v2783, %v2782
        %v2894 = vpack.c.b16 %v2785, %v2784
        %v2895 = vpack.c.b16 %v2787, %v2786
        %v2896 = vpack.c.b16 %v2788, %v2788
        %v2898 = vshrl.u32 %v2890, 16
        %v2900 = vrot.slane %v2898, 3
        %v2901 = vshll.u32 %v2890, 16
        %v2903 = vrot.slane %v2901, 4
        %v2904 = vor.u32 %v2900, %v2903
        %v2906 = vshrl.u32 %v2891, 16
        %v2908 = vrot.slane %v2906, 3
        %v2909 = vshll.u32 %v2891, 16
        %v2911 = vrot.slane %v2909, 4
        %v2912 = vor.u32 %v2908, %v2911
        %v2913 = vsel %vm612, %v2904, %v2912
        %v2915 = vshrl.u32 %v2892, 16
        %v2917 = vrot.slane %v2915, 3
        %v2918 = vshll.u32 %v2892, 16
        %v2920 = vrot.slane %v2918, 4
        %v2921 = vor.u32 %v2917, %v2920
        %v2922 = vsel %vm612, %v2912, %v2921
        %v2924 = vshrl.u32 %v2893, 16
        %v2926 = vrot.slane %v2924, 3
        %v2927 = vshll.u32 %v2893, 16
        %v2929 = vrot.slane %v2927, 4
        %v2930 = vor.u32 %v2926, %v2929
        %v2931 = vsel %vm612, %v2921, %v2930
        %v2933 = vshrl.u32 %v2894, 16
        %v2935 = vrot.slane %v2933, 3
        %v2936 = vshll.u32 %v2894, 16
        %v2938 = vrot.slane %v2936, 4
        %v2939 = vor.u32 %v2935, %v2938
        %v2940 = vsel %vm612, %v2930, %v2939
        %v2942 = vshrl.u32 %v2895, 16
        %v2944 = vrot.slane %v2942, 3
        %v2945 = vshll.u32 %v2895, 16
        %v2947 = vrot.slane %v2945, 4
        %v2948 = vor.u32 %v2944, %v2947
        %v2949 = vsel %vm612, %v2939, %v2948
        %v2951 = vshrl.u32 %v2896, 16
        %v2953 = vrot.slane %v2951, 3
        %v2954 = vshll.u32 %v2896, 16
        %v2956 = vrot.slane %v2954, 4
        %v2957 = vor.u32 %v2953, %v2956
        %v2958 = vsel %vm612, %v2948, %v2957
        %v2981 = vunpack.c.l.b16 %v2732
        %v2982 = vunpack.c.l.b16 %v2733
        %v2983 = vunpack.c.l.b16 %v2734
        %v2984 = vunpack.c.l.b16 %v2735
        %v2985 = vunpack.c.l.b16 %v2736
        %v2986 = vunpack.c.l.b16 %v2737
        %v2987 = vunpack.c.l.b16 %v2738
        %v2988 = vunpack.c.l.b16 %v2739
        %v2989 = vunpack.c.l.b16 %v2740
        %v2990 = vunpack.c.l.b16 %v2741
        %v2991 = vunpack.c.l.b16 %v2742
        %v2992 = vunpack.c.l.b16 %v2743
        %v2993 = vunpack.c.l.b16 %v2744
        %v2994 = vunpack.c.l.b16 %v2745
        %v2995 = vunpack.c.l.b16 %v2746
        %v2996 = vunpack.c.l.b16 %v2747
        %v2997 = vpack.c.b16 %v2982, %v2981
        %v2998 = vpack.c.b16 %v2984, %v2983
        %v2999 = vpack.c.b16 %v2986, %v2985
        %v3000 = vpack.c.b16 %v2988, %v2987
        %v3001 = vpack.c.b16 %v2990, %v2989
        %v3002 = vpack.c.b16 %v2992, %v2991
        %v3003 = vpack.c.b16 %v2994, %v2993
        %v3004 = vpack.c.b16 %v2996, %v2995
        %3013 = vmatpush.bf16.msra.mxu0 %v3004
        %3014 = vmatpush.bf16.msra.mxu0 %v3003
        %3015 = vmatpush.bf16.msra.mxu0 %v3002
        %3016 = vmatpush.bf16.msra.mxu0 %v3001
        %3017 = vmatpush.bf16.msra.mxu0 %v3000
        %3018 = vmatpush.bf16.msra.mxu0 %v2999
        %3019 = vmatpush.bf16.msra.mxu0 %v2998
        %3020 = vmatpush.bf16.msra.mxu0 %v2997
        %3021 = vmatmul.bf16.gmra.mxu0 %v2913
        %v3022 = vpop.f32.mrf.mxu0
        %v3023 = vadd.f32 %v2859, %v3022
        %v3024 = vpop.f32.mrf.mxu0
        %v3025 = vadd.f32 %v2861, %v3024
        %3026 = vmatmul.bf16.gmra.mxu0 %v2922
        %v3027 = vpop.f32.mrf.mxu0
        %v3028 = vadd.f32 %v2864, %v3027
        %v3029 = vpop.f32.mrf.mxu0
        %v3030 = vadd.f32 %v2866, %v3029
        %3031 = vmatmul.bf16.gmra.mxu0 %v2931
        %v3032 = vpop.f32.mrf.mxu0
        %v3033 = vadd.f32 %v2869, %v3032
        %v3034 = vpop.f32.mrf.mxu0
        %v3035 = vadd.f32 %v2871, %v3034
        %3036 = vmatmul.bf16.gmra.mxu0 %v2940
        %v3037 = vpop.f32.mrf.mxu0
        %v3038 = vadd.f32 %v2874, %v3037
        %v3039 = vpop.f32.mrf.mxu0
        %v3040 = vadd.f32 %v2876, %v3039
        %3041 = vmatmul.bf16.gmra.mxu0 %v2949
        %v3042 = vpop.f32.mrf.mxu0
        %v3043 = vadd.f32 %v2879, %v3042
        %v3044 = vpop.f32.mrf.mxu0
        %v3045 = vadd.f32 %v2881, %v3044
        %3046 = vmatmul.bf16.gmra.mxu0 %v2958
        %v3047 = vpop.f32.mrf.mxu0
        %v3048 = vadd.f32 %v2884, %v3047
        %v3049 = vpop.f32.mrf.mxu0
        %v3050 = vadd.f32 %v2886, %v3049
        %3051 = vdwg.mxu0
        %v3052 = vld [vmem:[#allocation2 + $0xc] sm:$0xf]
        %v3053 = vld [vmem:[#allocation2 + $0x10] sm:$0xf]
        %v3054 = vld [vmem:[#allocation2 + $0x14] sm:$0xf]
        %v3055 = vld [vmem:[#allocation2 + $0x18] sm:$0xf]
        %v3056 = vld [vmem:[#allocation2 + $0x1c] sm:$0xf]
        %v3057 = vld [vmem:[#allocation2 + $0x20] sm:$0xf]
        %v3058 = vld [vmem:[#allocation2 + $0x24] sm:$0xf]
        %v3059 = vld [vmem:[#allocation2 + $0x28] sm:$0xf]
        %v3060 = vld [vmem:[#allocation2 + $0x2c] sm:$0xf]
        %v3061 = vld [vmem:[#allocation2 + $0x30] sm:$0xf]
        %v3062 = vld [vmem:[#allocation2 + $0x34] sm:$0xf]
        %v3063 = vld [vmem:[#allocation2 + $0x38] sm:$0xf]
        %v3064 = vld [vmem:[#allocation2 + $0x3c] sm:$0x1]
        %s3065 = scalar_lea.vmem [#allocation8], 704
        %v3066 = vld [vmem:[%s3065] sm:$0xf]
        %v3067 = vld [vmem:[%s3065 + $0x4] sm:$0xf]
        %v3068 = vld [vmem:[%s3065 + $0x8] sm:$0xf]
        %v3069 = vld [vmem:[%s3065 + $0xc] sm:$0xf]
        %v3070 = vld [vmem:[%s3065 + $0x10] sm:$0xf]
        %v3071 = vld [vmem:[%s3065 + $0x14] sm:$0xf]
        %v3072 = vld [vmem:[%s3065 + $0x18] sm:$0xf]
        %v3073 = vld [vmem:[%s3065 + $0x1c] sm:$0xf]
        %v3074 = vld [vmem:[%s3065 + $0x20] sm:$0xf]
        %v3075 = vld [vmem:[%s3065 + $0x24] sm:$0xf]
        %v3076 = vld [vmem:[%s3065 + $0x28] sm:$0xf]
        %v3077 = vld [vmem:[%s3065 + $0x2c] sm:$0xf]
        %v3078 = vld [vmem:[%s3065 + $0x30] sm:$0xf]
        %v3079 = vld [vmem:[%s3065 + $0x34] sm:$0xf]
        %v3080 = vld [vmem:[%s3065 + $0x38] sm:$0xf]
        %v3081 = vld [vmem:[%s3065 + $0x3c] sm:$0xf]
        %v3095 = vunpack.c.l.b16 %v3052
        %v3096 = vunpack.c.l.b16 %v3053
        %v3097 = vunpack.c.l.b16 %v3054
        %v3098 = vunpack.c.l.b16 %v3055
        %v3099 = vunpack.c.l.b16 %v3056
        %v3100 = vunpack.c.l.b16 %v3057
        %v3101 = vunpack.c.l.b16 %v3058
        %v3102 = vunpack.c.l.b16 %v3059
        %v3103 = vunpack.c.l.b16 %v3060
        %v3104 = vunpack.c.l.b16 %v3061
        %v3105 = vunpack.c.l.b16 %v3062
        %v3106 = vunpack.c.l.b16 %v3063
        %v3107 = vunpack.c.l.b16 %v3064
        %v3108 = vpack.c.b16 %v3096, %v3095
        %v3109 = vpack.c.b16 %v3098, %v3097
        %v3110 = vpack.c.b16 %v3100, %v3099
        %v3111 = vpack.c.b16 %v3102, %v3101
        %v3112 = vpack.c.b16 %v3104, %v3103
        %v3113 = vpack.c.b16 %v3106, %v3105
        %v3114 = vpack.c.b16 %v3107, %v3107
        %v3116 = vshrl.u32 %v3108, 16
        %v3118 = vshll.u32 %v3108, 16
        %v3120 = vrot.slane %v3118, 1
        %v3121 = vor.u32 %v3116, %v3120
        %v3123 = vshll.u32 %v3109, 16
        %v3125 = vrot.slane %v3123, 1
        %v3126 = vsel %vm897, %v3121, %v3125
        %v3127 = vshrl.u32 %v3109, 16
        %v3129 = vor.u32 %v3127, %v3125
        %v3131 = vshll.u32 %v3110, 16
        %v3133 = vrot.slane %v3131, 1
        %v3134 = vsel %vm897, %v3129, %v3133
        %v3135 = vshrl.u32 %v3110, 16
        %v3137 = vor.u32 %v3135, %v3133
        %v3139 = vshll.u32 %v3111, 16
        %v3141 = vrot.slane %v3139, 1
        %v3142 = vsel %vm897, %v3137, %v3141
        %v3143 = vshrl.u32 %v3111, 16
        %v3145 = vor.u32 %v3143, %v3141
        %v3147 = vshll.u32 %v3112, 16
        %v3149 = vrot.slane %v3147, 1
        %v3150 = vsel %vm897, %v3145, %v3149
        %v3151 = vshrl.u32 %v3112, 16
        %v3153 = vor.u32 %v3151, %v3149
        %v3155 = vshll.u32 %v3113, 16
        %v3157 = vrot.slane %v3155, 1
        %v3158 = vsel %vm897, %v3153, %v3157
        %v3159 = vshrl.u32 %v3113, 16
        %v3161 = vor.u32 %v3159, %v3157
        %v3163 = vshll.u32 %v3114, 16
        %v3165 = vrot.slane %v3163, 1
        %v3166 = vsel %vm897, %v3161, %v3165
        %v3189 = vunpack.c.l.b16 %v3066
        %v3190 = vunpack.c.l.b16 %v3067
        %v3191 = vunpack.c.l.b16 %v3068
        %v3192 = vunpack.c.l.b16 %v3069
        %v3193 = vunpack.c.l.b16 %v3070
        %v3194 = vunpack.c.l.b16 %v3071
        %v3195 = vunpack.c.l.b16 %v3072
        %v3196 = vunpack.c.l.b16 %v3073
        %v3197 = vunpack.c.l.b16 %v3074
        %v3198 = vunpack.c.l.b16 %v3075
        %v3199 = vunpack.c.l.b16 %v3076
        %v3200 = vunpack.c.l.b16 %v3077
        %v3201 = vunpack.c.l.b16 %v3078
        %v3202 = vunpack.c.l.b16 %v3079
        %v3203 = vunpack.c.l.b16 %v3080
        %v3204 = vunpack.c.l.b16 %v3081
        %v3205 = vpack.c.b16 %v3190, %v3189
        %v3206 = vpack.c.b16 %v3192, %v3191
        %v3207 = vpack.c.b16 %v3194, %v3193
        %v3208 = vpack.c.b16 %v3196, %v3195
        %v3209 = vpack.c.b16 %v3198, %v3197
        %v3210 = vpack.c.b16 %v3200, %v3199
        %v3211 = vpack.c.b16 %v3202, %v3201
        %v3212 = vpack.c.b16 %v3204, %v3203
        %3221 = vmatpush.bf16.msra.mxu0 %v3212
        %3222 = vmatpush.bf16.msra.mxu0 %v3211
        %3223 = vmatpush.bf16.msra.mxu0 %v3210
        %3224 = vmatpush.bf16.msra.mxu0 %v3209
        %3225 = vmatpush.bf16.msra.mxu0 %v3208
        %3226 = vmatpush.bf16.msra.mxu0 %v3207
        %3227 = vmatpush.bf16.msra.mxu0 %v3206
        %3228 = vmatpush.bf16.msra.mxu0 %v3205
        %3229 = vmatmul.bf16.gmra.mxu0 %v3126
        %v3230 = vpop.f32.mrf.mxu0
        %v3231 = vadd.f32 0.0, %v3230
        %v3232 = vpop.f32.mrf.mxu0
        %v3233 = vadd.f32 0.0, %v3232
        %3234 = vmatmul.bf16.gmra.mxu0 %v3134
        %v3235 = vpop.f32.mrf.mxu0
        %v3236 = vadd.f32 0.0, %v3235
        %v3237 = vpop.f32.mrf.mxu0
        %v3238 = vadd.f32 0.0, %v3237
        %3239 = vmatmul.bf16.gmra.mxu0 %v3142
        %v3240 = vpop.f32.mrf.mxu0
        %v3241 = vadd.f32 0.0, %v3240
        %v3242 = vpop.f32.mrf.mxu0
        %v3243 = vadd.f32 0.0, %v3242
        %3244 = vmatmul.bf16.gmra.mxu0 %v3150
        %v3245 = vpop.f32.mrf.mxu0
        %v3246 = vadd.f32 0.0, %v3245
        %v3247 = vpop.f32.mrf.mxu0
        %v3248 = vadd.f32 0.0, %v3247
        %3249 = vmatmul.bf16.gmra.mxu0 %v3158
        %v3250 = vpop.f32.mrf.mxu0
        %v3251 = vadd.f32 0.0, %v3250
        %v3252 = vpop.f32.mrf.mxu0
        %v3253 = vadd.f32 0.0, %v3252
        %3254 = vmatmul.bf16.gmra.mxu0 %v3166
        %v3255 = vpop.f32.mrf.mxu0
        %v3256 = vadd.f32 0.0, %v3255
        %v3257 = vpop.f32.mrf.mxu0
        %v3258 = vadd.f32 0.0, %v3257
        %3259 = vdwg.mxu0
        %v3260 = vadd.f32 %v3023, %v3231
        %v3261 = vadd.f32 %v3025, %v3233
        %v3262 = vadd.f32 %v3028, %v3236
        %v3263 = vadd.f32 %v3030, %v3238
        %v3264 = vadd.f32 %v3033, %v3241
        %v3265 = vadd.f32 %v3035, %v3243
        %v3266 = vadd.f32 %v3038, %v3246
        %v3267 = vadd.f32 %v3040, %v3248
        %v3268 = vadd.f32 %v3043, %v3251
        %v3269 = vadd.f32 %v3045, %v3253
        %v3270 = vadd.f32 %v3048, %v3256
        %v3271 = vadd.f32 %v3050, %v3258
        %v3272 = vld [vmem:[#allocation2 + $0x14] sm:$0x8]
        %v3273 = vld [vmem:[#allocation2 + $0x18] sm:$0xf]
        %v3274 = vld [vmem:[#allocation2 + $0x1c] sm:$0xf]
        %v3275 = vld [vmem:[#allocation2 + $0x20] sm:$0xf]
        %v3276 = vld [vmem:[#allocation2 + $0x24] sm:$0xf]
        %v3277 = vld [vmem:[#allocation2 + $0x28] sm:$0xf]
        %v3278 = vld [vmem:[#allocation2 + $0x2c] sm:$0xf]
        %v3279 = vld [vmem:[#allocation2 + $0x30] sm:$0xf]
        %v3280 = vld [vmem:[#allocation2 + $0x34] sm:$0xf]
        %v3281 = vld [vmem:[#allocation2 + $0x38] sm:$0xf]
        %v3282 = vld [vmem:[#allocation2 + $0x3c] sm:$0xf]
        %v3283 = vld [vmem:[#allocation2 + $0x40] sm:$0xf]
        %v3284 = vld [vmem:[#allocation2 + $0x44] sm:$0xf]
        %s3285 = scalar_lea.vmem [#allocation8], 768
        %v3286 = vld [vmem:[%s3285] sm:$0xf]
        %v3287 = vld [vmem:[%s3285 + $0x4] sm:$0xf]
        %v3288 = vld [vmem:[%s3285 + $0x8] sm:$0xf]
        %v3289 = vld [vmem:[%s3285 + $0xc] sm:$0xf]
        %v3290 = vld [vmem:[%s3285 + $0x10] sm:$0xf]
        %v3291 = vld [vmem:[%s3285 + $0x14] sm:$0xf]
        %v3292 = vld [vmem:[%s3285 + $0x18] sm:$0xf]
        %v3293 = vld [vmem:[%s3285 + $0x1c] sm:$0xf]
        %v3294 = vld [vmem:[%s3285 + $0x20] sm:$0xf]
        %v3295 = vld [vmem:[%s3285 + $0x24] sm:$0xf]
        %v3296 = vld [vmem:[%s3285 + $0x28] sm:$0xf]
        %v3297 = vld [vmem:[%s3285 + $0x2c] sm:$0xf]
        %v3298 = vld [vmem:[%s3285 + $0x30] sm:$0xf]
        %v3299 = vld [vmem:[%s3285 + $0x34] sm:$0xf]
        %v3300 = vld [vmem:[%s3285 + $0x38] sm:$0xf]
        %v3301 = vld [vmem:[%s3285 + $0x3c] sm:$0xf]
        %v3315 = vunpack.c.l.b16 %v3272
        %v3316 = vunpack.c.l.b16 %v3273
        %v3317 = vunpack.c.l.b16 %v3274
        %v3318 = vunpack.c.l.b16 %v3275
        %v3319 = vunpack.c.l.b16 %v3276
        %v3320 = vunpack.c.l.b16 %v3277
        %v3321 = vunpack.c.l.b16 %v3278
        %v3322 = vunpack.c.l.b16 %v3279
        %v3323 = vunpack.c.l.b16 %v3280
        %v3324 = vunpack.c.l.b16 %v3281
        %v3325 = vunpack.c.l.b16 %v3282
        %v3326 = vunpack.c.l.b16 %v3283
        %v3327 = vunpack.c.l.b16 %v3284
        %v3328 = vpack.c.b16 %v3316, %v3315
        %v3329 = vpack.c.b16 %v3318, %v3317
        %v3330 = vpack.c.b16 %v3320, %v3319
        %v3331 = vpack.c.b16 %v3322, %v3321
        %v3332 = vpack.c.b16 %v3324, %v3323
        %v3333 = vpack.c.b16 %v3326, %v3325
        %v3334 = vpack.c.b16 %v3327, %v3327
        %v3336 = vshrl.u32 %v3328, 16
        %v3338 = vrot.slane %v3336, 3
        %v3339 = vshll.u32 %v3328, 16
        %v3341 = vrot.slane %v3339, 4
        %v3342 = vor.u32 %v3338, %v3341
        %v3344 = vshrl.u32 %v3329, 16
        %v3346 = vrot.slane %v3344, 3
        %v3347 = vshll.u32 %v3329, 16
        %v3349 = vrot.slane %v3347, 4
        %v3350 = vor.u32 %v3346, %v3349
        %v3351 = vsel %vm612, %v3342, %v3350
        %v3353 = vshrl.u32 %v3330, 16
        %v3355 = vrot.slane %v3353, 3
        %v3356 = vshll.u32 %v3330, 16
        %v3358 = vrot.slane %v3356, 4
        %v3359 = vor.u32 %v3355, %v3358
        %v3360 = vsel %vm612, %v3350, %v3359
        %v3362 = vshrl.u32 %v3331, 16
        %v3364 = vrot.slane %v3362, 3
        %v3365 = vshll.u32 %v3331, 16
        %v3367 = vrot.slane %v3365, 4
        %v3368 = vor.u32 %v3364, %v3367
        %v3369 = vsel %vm612, %v3359, %v3368
        %v3371 = vshrl.u32 %v3332, 16
        %v3373 = vrot.slane %v3371, 3
        %v3374 = vshll.u32 %v3332, 16
        %v3376 = vrot.slane %v3374, 4
        %v3377 = vor.u32 %v3373, %v3376
        %v3378 = vsel %vm612, %v3368, %v3377
        %v3380 = vshrl.u32 %v3333, 16
        %v3382 = vrot.slane %v3380, 3
        %v3383 = vshll.u32 %v3333, 16
        %v3385 = vrot.slane %v3383, 4
        %v3386 = vor.u32 %v3382, %v3385
        %v3387 = vsel %vm612, %v3377, %v3386
        %v3389 = vshrl.u32 %v3334, 16
        %v3391 = vrot.slane %v3389, 3
        %v3392 = vshll.u32 %v3334, 16
        %v3394 = vrot.slane %v3392, 4
        %v3395 = vor.u32 %v3391, %v3394
        %v3396 = vsel %vm612, %v3386, %v3395
        %v3419 = vunpack.c.l.b16 %v3286
        %v3420 = vunpack.c.l.b16 %v3287
        %v3421 = vunpack.c.l.b16 %v3288
        %v3422 = vunpack.c.l.b16 %v3289
        %v3423 = vunpack.c.l.b16 %v3290
        %v3424 = vunpack.c.l.b16 %v3291
        %v3425 = vunpack.c.l.b16 %v3292
        %v3426 = vunpack.c.l.b16 %v3293
        %v3427 = vunpack.c.l.b16 %v3294
        %v3428 = vunpack.c.l.b16 %v3295
        %v3429 = vunpack.c.l.b16 %v3296
        %v3430 = vunpack.c.l.b16 %v3297
        %v3431 = vunpack.c.l.b16 %v3298
        %v3432 = vunpack.c.l.b16 %v3299
        %v3433 = vunpack.c.l.b16 %v3300
        %v3434 = vunpack.c.l.b16 %v3301
        %v3435 = vpack.c.b16 %v3420, %v3419
        %v3436 = vpack.c.b16 %v3422, %v3421
        %v3437 = vpack.c.b16 %v3424, %v3423
        %v3438 = vpack.c.b16 %v3426, %v3425
        %v3439 = vpack.c.b16 %v3428, %v3427
        %v3440 = vpack.c.b16 %v3430, %v3429
        %v3441 = vpack.c.b16 %v3432, %v3431
        %v3442 = vpack.c.b16 %v3434, %v3433
        %3451 = vmatpush.bf16.msra.mxu0 %v3442
        %3452 = vmatpush.bf16.msra.mxu0 %v3441
        %3453 = vmatpush.bf16.msra.mxu0 %v3440
        %3454 = vmatpush.bf16.msra.mxu0 %v3439
        %3455 = vmatpush.bf16.msra.mxu0 %v3438
        %3456 = vmatpush.bf16.msra.mxu0 %v3437
        %3457 = vmatpush.bf16.msra.mxu0 %v3436
        %3458 = vmatpush.bf16.msra.mxu0 %v3435
        %3459 = vmatmul.bf16.gmra.mxu0 %v3351
        %v3460 = vpop.f32.mrf.mxu0
        %v3461 = vadd.f32 0.0, %v3460
        %v3462 = vpop.f32.mrf.mxu0
        %v3463 = vadd.f32 0.0, %v3462
        %3464 = vmatmul.bf16.gmra.mxu0 %v3360
        %v3465 = vpop.f32.mrf.mxu0
        %v3466 = vadd.f32 0.0, %v3465
        %v3467 = vpop.f32.mrf.mxu0
        %v3468 = vadd.f32 0.0, %v3467
        %3469 = vmatmul.bf16.gmra.mxu0 %v3369
        %v3470 = vpop.f32.mrf.mxu0
        %v3471 = vadd.f32 0.0, %v3470
        %v3472 = vpop.f32.mrf.mxu0
        %v3473 = vadd.f32 0.0, %v3472
        %3474 = vmatmul.bf16.gmra.mxu0 %v3378
        %v3475 = vpop.f32.mrf.mxu0
        %v3476 = vadd.f32 0.0, %v3475
        %v3477 = vpop.f32.mrf.mxu0
        %v3478 = vadd.f32 0.0, %v3477
        %3479 = vmatmul.bf16.gmra.mxu0 %v3387
        %v3480 = vpop.f32.mrf.mxu0
        %v3481 = vadd.f32 0.0, %v3480
        %v3482 = vpop.f32.mrf.mxu0
        %v3483 = vadd.f32 0.0, %v3482
        %3484 = vmatmul.bf16.gmra.mxu0 %v3396
        %v3485 = vpop.f32.mrf.mxu0
        %v3486 = vadd.f32 0.0, %v3485
        %v3487 = vpop.f32.mrf.mxu0
        %v3488 = vadd.f32 0.0, %v3487
        %3489 = vdwg.mxu0
        %v3490 = vadd.f32 %v3260, %v3461
        %v3491 = vadd.f32 %v3261, %v3463
        %v3492 = vadd.f32 %v3262, %v3466
        %v3493 = vadd.f32 %v3263, %v3468
        %v3494 = vadd.f32 %v3264, %v3471
        %v3495 = vadd.f32 %v3265, %v3473
        %v3496 = vadd.f32 %v3266, %v3476
        %v3497 = vadd.f32 %v3267, %v3478
        %v3498 = vadd.f32 %v3268, %v3481
        %v3499 = vadd.f32 %v3269, %v3483
        %v3500 = vadd.f32 %v3270, %v3486
        %v3501 = vadd.f32 %v3271, %v3488
        %s3502 = scalar_lea.vmem [#allocation8], 832
        %v3503 = vld [vmem:[%s3502] sm:$0xf]
        %v3504 = vld [vmem:[%s3502 + $0x4] sm:$0xf]
        %v3505 = vld [vmem:[%s3502 + $0x8] sm:$0xf]
        %v3506 = vld [vmem:[%s3502 + $0xc] sm:$0xf]
        %v3507 = vld [vmem:[%s3502 + $0x10] sm:$0xf]
        %v3508 = vld [vmem:[%s3502 + $0x14] sm:$0xf]
        %v3509 = vld [vmem:[%s3502 + $0x18] sm:$0xf]
        %v3510 = vld [vmem:[%s3502 + $0x1c] sm:$0xf]
        %v3511 = vld [vmem:[%s3502 + $0x20] sm:$0xf]
        %v3512 = vld [vmem:[%s3502 + $0x24] sm:$0xf]
        %v3513 = vld [vmem:[%s3502 + $0x28] sm:$0xf]
        %v3514 = vld [vmem:[%s3502 + $0x2c] sm:$0xf]
        %v3515 = vld [vmem:[%s3502 + $0x30] sm:$0xf]
        %v3516 = vld [vmem:[%s3502 + $0x34] sm:$0xf]
        %v3517 = vld [vmem:[%s3502 + $0x38] sm:$0xf]
        %v3518 = vld [vmem:[%s3502 + $0x3c] sm:$0xf]
        %v3519 = vpack.c.b16 %v3317, %v3316
        %v3520 = vpack.c.b16 %v3319, %v3318
        %v3521 = vpack.c.b16 %v3321, %v3320
        %v3522 = vpack.c.b16 %v3323, %v3322
        %v3523 = vpack.c.b16 %v3325, %v3324
        %v3524 = vpack.c.b16 %v3327, %v3326
        %v3547 = vunpack.c.l.b16 %v3503
        %v3548 = vunpack.c.l.b16 %v3504
        %v3549 = vunpack.c.l.b16 %v3505
        %v3550 = vunpack.c.l.b16 %v3506
        %v3551 = vunpack.c.l.b16 %v3507
        %v3552 = vunpack.c.l.b16 %v3508
        %v3553 = vunpack.c.l.b16 %v3509
        %v3554 = vunpack.c.l.b16 %v3510
        %v3555 = vunpack.c.l.b16 %v3511
        %v3556 = vunpack.c.l.b16 %v3512
        %v3557 = vunpack.c.l.b16 %v3513
        %v3558 = vunpack.c.l.b16 %v3514
        %v3559 = vunpack.c.l.b16 %v3515
        %v3560 = vunpack.c.l.b16 %v3516
        %v3561 = vunpack.c.l.b16 %v3517
        %v3562 = vunpack.c.l.b16 %v3518
        %v3563 = vpack.c.b16 %v3548, %v3547
        %v3564 = vpack.c.b16 %v3550, %v3549
        %v3565 = vpack.c.b16 %v3552, %v3551
        %v3566 = vpack.c.b16 %v3554, %v3553
        %v3567 = vpack.c.b16 %v3556, %v3555
        %v3568 = vpack.c.b16 %v3558, %v3557
        %v3569 = vpack.c.b16 %v3560, %v3559
        %v3570 = vpack.c.b16 %v3562, %v3561
        %3579 = vmatpush.bf16.msra.mxu0 %v3570
        %3580 = vmatpush.bf16.msra.mxu0 %v3569
        %3581 = vmatpush.bf16.msra.mxu0 %v3568
        %3582 = vmatpush.bf16.msra.mxu0 %v3567
        %3583 = vmatpush.bf16.msra.mxu0 %v3566
        %3584 = vmatpush.bf16.msra.mxu0 %v3565
        %3585 = vmatpush.bf16.msra.mxu0 %v3564
        %3586 = vmatpush.bf16.msra.mxu0 %v3563
        %3587 = vmatmul.bf16.gmra.mxu0 %v3519
        %v3588 = vpop.f32.mrf.mxu0
        %v3589 = vadd.f32 0.0, %v3588
        %v3590 = vpop.f32.mrf.mxu0
        %v3591 = vadd.f32 0.0, %v3590
        %3592 = vmatmul.bf16.gmra.mxu0 %v3520
        %v3593 = vpop.f32.mrf.mxu0
        %v3594 = vadd.f32 0.0, %v3593
        %v3595 = vpop.f32.mrf.mxu0
        %v3596 = vadd.f32 0.0, %v3595
        %3597 = vmatmul.bf16.gmra.mxu0 %v3521
        %v3598 = vpop.f32.mrf.mxu0
        %v3599 = vadd.f32 0.0, %v3598
        %v3600 = vpop.f32.mrf.mxu0
        %v3601 = vadd.f32 0.0, %v3600
        %3602 = vmatmul.bf16.gmra.mxu0 %v3522
        %v3603 = vpop.f32.mrf.mxu0
        %v3604 = vadd.f32 0.0, %v3603
        %v3605 = vpop.f32.mrf.mxu0
        %v3606 = vadd.f32 0.0, %v3605
        %3607 = vmatmul.bf16.gmra.mxu0 %v3523
        %v3608 = vpop.f32.mrf.mxu0
        %v3609 = vadd.f32 0.0, %v3608
        %v3610 = vpop.f32.mrf.mxu0
        %v3611 = vadd.f32 0.0, %v3610
        %3612 = vmatmul.bf16.gmra.mxu0 %v3524
        %v3613 = vpop.f32.mrf.mxu0
        %v3614 = vadd.f32 0.0, %v3613
        %v3615 = vpop.f32.mrf.mxu0
        %v3616 = vadd.f32 0.0, %v3615
        %3617 = vdwg.mxu0
        %v3618 = vadd.f32 %v3490, %v3589
        %v3619 = vadd.f32 %v3491, %v3591
        %v3620 = vadd.f32 %v3492, %v3594
        %v3621 = vadd.f32 %v3493, %v3596
        %v3622 = vadd.f32 %v3494, %v3599
        %v3623 = vadd.f32 %v3495, %v3601
        %v3624 = vadd.f32 %v3496, %v3604
        %v3625 = vadd.f32 %v3497, %v3606
        %v3626 = vadd.f32 %v3498, %v3609
        %v3627 = vadd.f32 %v3499, %v3611
        %v3628 = vadd.f32 %v3500, %v3614
        %v3629 = vadd.f32 %v3501, %v3616
        %v3630 = vld [vmem:[#allocation2 + $0x18] sm:$0xf]
        %v3631 = vld [vmem:[#allocation2 + $0x1c] sm:$0xf]
        %v3632 = vld [vmem:[#allocation2 + $0x20] sm:$0xf]
        %v3633 = vld [vmem:[#allocation2 + $0x24] sm:$0xf]
        %v3634 = vld [vmem:[#allocation2 + $0x28] sm:$0xf]
        %v3635 = vld [vmem:[#allocation2 + $0x2c] sm:$0xf]
        %v3636 = vld [vmem:[#allocation2 + $0x30] sm:$0xf]
        %v3637 = vld [vmem:[#allocation2 + $0x34] sm:$0xf]
        %v3638 = vld [vmem:[#allocation2 + $0x38] sm:$0xf]
        %v3639 = vld [vmem:[#allocation2 + $0x3c] sm:$0xf]
        %v3640 = vld [vmem:[#allocation2 + $0x40] sm:$0xf]
        %v3641 = vld [vmem:[#allocation2 + $0x44] sm:$0xf]
        %v3642 = vld [vmem:[#allocation2 + $0x48] sm:$0x1]
        %s3643 = scalar_lea.vmem [#allocation8], 896
        %v3644 = vld [vmem:[%s3643] sm:$0xf]
        %v3645 = vld [vmem:[%s3643 + $0x4] sm:$0xf]
        %v3646 = vld [vmem:[%s3643 + $0x8] sm:$0xf]
        %v3647 = vld [vmem:[%s3643 + $0xc] sm:$0xf]
        %v3648 = vld [vmem:[%s3643 + $0x10] sm:$0xf]
        %v3649 = vld [vmem:[%s3643 + $0x14] sm:$0xf]
        %v3650 = vld [vmem:[%s3643 + $0x18] sm:$0xf]
        %v3651 = vld [vmem:[%s3643 + $0x1c] sm:$0xf]
        %v3652 = vld [vmem:[%s3643 + $0x20] sm:$0xf]
        %v3653 = vld [vmem:[%s3643 + $0x24] sm:$0xf]
        %v3654 = vld [vmem:[%s3643 + $0x28] sm:$0xf]
        %v3655 = vld [vmem:[%s3643 + $0x2c] sm:$0xf]
        %v3656 = vld [vmem:[%s3643 + $0x30] sm:$0xf]
        %v3657 = vld [vmem:[%s3643 + $0x34] sm:$0xf]
        %v3658 = vld [vmem:[%s3643 + $0x38] sm:$0xf]
        %v3659 = vld [vmem:[%s3643 + $0x3c] sm:$0xf]
        %v3673 = vunpack.c.l.b16 %v3630
        %v3674 = vunpack.c.l.b16 %v3631
        %v3675 = vunpack.c.l.b16 %v3632
        %v3676 = vunpack.c.l.b16 %v3633
        %v3677 = vunpack.c.l.b16 %v3634
        %v3678 = vunpack.c.l.b16 %v3635
        %v3679 = vunpack.c.l.b16 %v3636
        %v3680 = vunpack.c.l.b16 %v3637
        %v3681 = vunpack.c.l.b16 %v3638
        %v3682 = vunpack.c.l.b16 %v3639
        %v3683 = vunpack.c.l.b16 %v3640
        %v3684 = vunpack.c.l.b16 %v3641
        %v3685 = vunpack.c.l.b16 %v3642
        %v3686 = vpack.c.b16 %v3674, %v3673
        %v3687 = vpack.c.b16 %v3676, %v3675
        %v3688 = vpack.c.b16 %v3678, %v3677
        %v3689 = vpack.c.b16 %v3680, %v3679
        %v3690 = vpack.c.b16 %v3682, %v3681
        %v3691 = vpack.c.b16 %v3684, %v3683
        %v3692 = vpack.c.b16 %v3685, %v3685
        %v3694 = vshrl.u32 %v3686, 16
        %v3696 = vshll.u32 %v3686, 16
        %v3698 = vrot.slane %v3696, 1
        %v3699 = vor.u32 %v3694, %v3698
        %v3701 = vshll.u32 %v3687, 16
        %v3703 = vrot.slane %v3701, 1
        %v3704 = vsel %vm897, %v3699, %v3703
        %v3705 = vshrl.u32 %v3687, 16
        %v3707 = vor.u32 %v3705, %v3703
        %v3709 = vshll.u32 %v3688, 16
        %v3711 = vrot.slane %v3709, 1
        %v3712 = vsel %vm897, %v3707, %v3711
        %v3713 = vshrl.u32 %v3688, 16
        %v3715 = vor.u32 %v3713, %v3711
        %v3717 = vshll.u32 %v3689, 16
        %v3719 = vrot.slane %v3717, 1
        %v3720 = vsel %vm897, %v3715, %v3719
        %v3721 = vshrl.u32 %v3689, 16
        %v3723 = vor.u32 %v3721, %v3719
        %v3725 = vshll.u32 %v3690, 16
        %v3727 = vrot.slane %v3725, 1
        %v3728 = vsel %vm897, %v3723, %v3727
        %v3729 = vshrl.u32 %v3690, 16
        %v3731 = vor.u32 %v3729, %v3727
        %v3733 = vshll.u32 %v3691, 16
        %v3735 = vrot.slane %v3733, 1
        %v3736 = vsel %vm897, %v3731, %v3735
        %v3737 = vshrl.u32 %v3691, 16
        %v3739 = vor.u32 %v3737, %v3735
        %v3741 = vshll.u32 %v3692, 16
        %v3743 = vrot.slane %v3741, 1
        %v3744 = vsel %vm897, %v3739, %v3743
        %v3767 = vunpack.c.l.b16 %v3644
        %v3768 = vunpack.c.l.b16 %v3645
        %v3769 = vunpack.c.l.b16 %v3646
        %v3770 = vunpack.c.l.b16 %v3647
        %v3771 = vunpack.c.l.b16 %v3648
        %v3772 = vunpack.c.l.b16 %v3649
        %v3773 = vunpack.c.l.b16 %v3650
        %v3774 = vunpack.c.l.b16 %v3651
        %v3775 = vunpack.c.l.b16 %v3652
        %v3776 = vunpack.c.l.b16 %v3653
        %v3777 = vunpack.c.l.b16 %v3654
        %v3778 = vunpack.c.l.b16 %v3655
        %v3779 = vunpack.c.l.b16 %v3656
        %v3780 = vunpack.c.l.b16 %v3657
        %v3781 = vunpack.c.l.b16 %v3658
        %v3782 = vunpack.c.l.b16 %v3659
        %v3783 = vpack.c.b16 %v3768, %v3767
        %v3784 = vpack.c.b16 %v3770, %v3769
        %v3785 = vpack.c.b16 %v3772, %v3771
        %v3786 = vpack.c.b16 %v3774, %v3773
        %v3787 = vpack.c.b16 %v3776, %v3775
        %v3788 = vpack.c.b16 %v3778, %v3777
        %v3789 = vpack.c.b16 %v3780, %v3779
        %v3790 = vpack.c.b16 %v3782, %v3781
        %3799 = vmatpush.bf16.msra.mxu0 %v3790
        %3800 = vmatpush.bf16.msra.mxu0 %v3789
        %3801 = vmatpush.bf16.msra.mxu0 %v3788
        %3802 = vmatpush.bf16.msra.mxu0 %v3787
        %3803 = vmatpush.bf16.msra.mxu0 %v3786
        %3804 = vmatpush.bf16.msra.mxu0 %v3785
        %3805 = vmatpush.bf16.msra.mxu0 %v3784
        %3806 = vmatpush.bf16.msra.mxu0 %v3783
        %3807 = vmatmul.bf16.gmra.mxu0 %v3704
        %v3808 = vpop.f32.mrf.mxu0
        %v3809 = vadd.f32 0.0, %v3808
        %v3810 = vpop.f32.mrf.mxu0
        %v3811 = vadd.f32 0.0, %v3810
        %3812 = vmatmul.bf16.gmra.mxu0 %v3712
        %v3813 = vpop.f32.mrf.mxu0
        %v3814 = vadd.f32 0.0, %v3813
        %v3815 = vpop.f32.mrf.mxu0
        %v3816 = vadd.f32 0.0, %v3815
        %3817 = vmatmul.bf16.gmra.mxu0 %v3720
        %v3818 = vpop.f32.mrf.mxu0
        %v3819 = vadd.f32 0.0, %v3818
        %v3820 = vpop.f32.mrf.mxu0
        %v3821 = vadd.f32 0.0, %v3820
        %3822 = vmatmul.bf16.gmra.mxu0 %v3728
        %v3823 = vpop.f32.mrf.mxu0
        %v3824 = vadd.f32 0.0, %v3823
        %v3825 = vpop.f32.mrf.mxu0
        %v3826 = vadd.f32 0.0, %v3825
        %3827 = vmatmul.bf16.gmra.mxu0 %v3736
        %v3828 = vpop.f32.mrf.mxu0
        %v3829 = vadd.f32 0.0, %v3828
        %v3830 = vpop.f32.mrf.mxu0
        %v3831 = vadd.f32 0.0, %v3830
        %3832 = vmatmul.bf16.gmra.mxu0 %v3744
        %v3833 = vpop.f32.mrf.mxu0
        %v3834 = vadd.f32 0.0, %v3833
        %v3835 = vpop.f32.mrf.mxu0
        %v3836 = vadd.f32 0.0, %v3835
        %3837 = vdwg.mxu0
        %v3838 = vadd.f32 %v3618, %v3809
        %v3839 = vadd.f32 %v3619, %v3811
        %v3840 = vadd.f32 %v3620, %v3814
        %v3841 = vadd.f32 %v3621, %v3816
        %v3842 = vadd.f32 %v3622, %v3819
        %v3843 = vadd.f32 %v3623, %v3821
        %v3844 = vadd.f32 %v3624, %v3824
        %v3845 = vadd.f32 %v3625, %v3826
        %v3846 = vadd.f32 %v3626, %v3829
        %v3847 = vadd.f32 %v3627, %v3831
        %v3848 = vadd.f32 %v3628, %v3834
        %v3849 = vadd.f32 %v3629, %v3836
        %v3850 = vld [vmem:[#allocation2 + $0x20] sm:$0x8]
        %v3851 = vld [vmem:[#allocation2 + $0x24] sm:$0xf]
        %v3852 = vld [vmem:[#allocation2 + $0x28] sm:$0xf]
        %v3853 = vld [vmem:[#allocation2 + $0x2c] sm:$0xf]
        %v3854 = vld [vmem:[#allocation2 + $0x30] sm:$0xf]
        %v3855 = vld [vmem:[#allocation2 + $0x34] sm:$0xf]
        %v3856 = vld [vmem:[#allocation2 + $0x38] sm:$0xf]
        %v3857 = vld [vmem:[#allocation2 + $0x3c] sm:$0xf]
        %v3858 = vld [vmem:[#allocation2 + $0x40] sm:$0xf]
        %v3859 = vld [vmem:[#allocation2 + $0x44] sm:$0xf]
        %v3860 = vld [vmem:[#allocation2 + $0x48] sm:$0xf]
        %v3861 = vld [vmem:[#allocation2 + $0x4c] sm:$0xf]
        %v3862 = vld [vmem:[#allocation2 + $0x50] sm:$0xf]
        %s3863 = scalar_lea.vmem [#allocation8], 960
        %v3864 = vld [vmem:[%s3863] sm:$0xf]
        %v3865 = vld [vmem:[%s3863 + $0x4] sm:$0xf]
        %v3866 = vld [vmem:[%s3863 + $0x8] sm:$0xf]
        %v3867 = vld [vmem:[%s3863 + $0xc] sm:$0xf]
        %v3868 = vld [vmem:[%s3863 + $0x10] sm:$0xf]
        %v3869 = vld [vmem:[%s3863 + $0x14] sm:$0xf]
        %v3870 = vld [vmem:[%s3863 + $0x18] sm:$0xf]
        %v3871 = vld [vmem:[%s3863 + $0x1c] sm:$0xf]
        %v3872 = vld [vmem:[%s3863 + $0x20] sm:$0xf]
        %v3873 = vld [vmem:[%s3863 + $0x24] sm:$0xf]
        %v3874 = vld [vmem:[%s3863 + $0x28] sm:$0xf]
        %v3875 = vld [vmem:[%s3863 + $0x2c] sm:$0xf]
        %v3876 = vld [vmem:[%s3863 + $0x30] sm:$0xf]
        %v3877 = vld [vmem:[%s3863 + $0x34] sm:$0xf]
        %v3878 = vld [vmem:[%s3863 + $0x38] sm:$0xf]
        %v3879 = vld [vmem:[%s3863 + $0x3c] sm:$0xf]
        %v3893 = vunpack.c.l.b16 %v3850
        %v3894 = vunpack.c.l.b16 %v3851
        %v3895 = vunpack.c.l.b16 %v3852
        %v3896 = vunpack.c.l.b16 %v3853
        %v3897 = vunpack.c.l.b16 %v3854
        %v3898 = vunpack.c.l.b16 %v3855
        %v3899 = vunpack.c.l.b16 %v3856
        %v3900 = vunpack.c.l.b16 %v3857
        %v3901 = vunpack.c.l.b16 %v3858
        %v3902 = vunpack.c.l.b16 %v3859
        %v3903 = vunpack.c.l.b16 %v3860
        %v3904 = vunpack.c.l.b16 %v3861
        %v3905 = vunpack.c.l.b16 %v3862
        %v3906 = vpack.c.b16 %v3894, %v3893
        %v3907 = vpack.c.b16 %v3896, %v3895
        %v3908 = vpack.c.b16 %v3898, %v3897
        %v3909 = vpack.c.b16 %v3900, %v3899
        %v3910 = vpack.c.b16 %v3902, %v3901
        %v3911 = vpack.c.b16 %v3904, %v3903
        %v3912 = vpack.c.b16 %v3905, %v3905
        %v3914 = vshrl.u32 %v3906, 16
        %v3916 = vrot.slane %v3914, 3
        %v3917 = vshll.u32 %v3906, 16
        %v3919 = vrot.slane %v3917, 4
        %v3920 = vor.u32 %v3916, %v3919
        %v3922 = vshrl.u32 %v3907, 16
        %v3924 = vrot.slane %v3922, 3
        %v3925 = vshll.u32 %v3907, 16
        %v3927 = vrot.slane %v3925, 4
        %v3928 = vor.u32 %v3924, %v3927
        %v3929 = vsel %vm612, %v3920, %v3928
        %v3931 = vshrl.u32 %v3908, 16
        %v3933 = vrot.slane %v3931, 3
        %v3934 = vshll.u32 %v3908, 16
        %v3936 = vrot.slane %v3934, 4
        %v3937 = vor.u32 %v3933, %v3936
        %v3938 = vsel %vm612, %v3928, %v3937
        %v3940 = vshrl.u32 %v3909, 16
        %v3942 = vrot.slane %v3940, 3
        %v3943 = vshll.u32 %v3909, 16
        %v3945 = vrot.slane %v3943, 4
        %v3946 = vor.u32 %v3942, %v3945
        %v3947 = vsel %vm612, %v3937, %v3946
        %v3949 = vshrl.u32 %v3910, 16
        %v3951 = vrot.slane %v3949, 3
        %v3952 = vshll.u32 %v3910, 16
        %v3954 = vrot.slane %v3952, 4
        %v3955 = vor.u32 %v3951, %v3954
        %v3956 = vsel %vm612, %v3946, %v3955
        %v3958 = vshrl.u32 %v3911, 16
        %v3960 = vrot.slane %v3958, 3
        %v3961 = vshll.u32 %v3911, 16
        %v3963 = vrot.slane %v3961, 4
        %v3964 = vor.u32 %v3960, %v3963
        %v3965 = vsel %vm612, %v3955, %v3964
        %v3967 = vshrl.u32 %v3912, 16
        %v3969 = vrot.slane %v3967, 3
        %v3970 = vshll.u32 %v3912, 16
        %v3972 = vrot.slane %v3970, 4
        %v3973 = vor.u32 %v3969, %v3972
        %v3974 = vsel %vm612, %v3964, %v3973
        %v3997 = vunpack.c.l.b16 %v3864
        %v3998 = vunpack.c.l.b16 %v3865
        %v3999 = vunpack.c.l.b16 %v3866
        %v4000 = vunpack.c.l.b16 %v3867
        %v4001 = vunpack.c.l.b16 %v3868
        %v4002 = vunpack.c.l.b16 %v3869
        %v4003 = vunpack.c.l.b16 %v3870
        %v4004 = vunpack.c.l.b16 %v3871
        %v4005 = vunpack.c.l.b16 %v3872
        %v4006 = vunpack.c.l.b16 %v3873
        %v4007 = vunpack.c.l.b16 %v3874
        %v4008 = vunpack.c.l.b16 %v3875
        %v4009 = vunpack.c.l.b16 %v3876
        %v4010 = vunpack.c.l.b16 %v3877
        %v4011 = vunpack.c.l.b16 %v3878
        %v4012 = vunpack.c.l.b16 %v3879
        %v4013 = vpack.c.b16 %v3998, %v3997
        %v4014 = vpack.c.b16 %v4000, %v3999
        %v4015 = vpack.c.b16 %v4002, %v4001
        %v4016 = vpack.c.b16 %v4004, %v4003
        %v4017 = vpack.c.b16 %v4006, %v4005
        %v4018 = vpack.c.b16 %v4008, %v4007
        %v4019 = vpack.c.b16 %v4010, %v4009
        %v4020 = vpack.c.b16 %v4012, %v4011
        %4029 = vmatpush.bf16.msra.mxu0 %v4020
        %4030 = vmatpush.bf16.msra.mxu0 %v4019
        %4031 = vmatpush.bf16.msra.mxu0 %v4018
        %4032 = vmatpush.bf16.msra.mxu0 %v4017
        %4033 = vmatpush.bf16.msra.mxu0 %v4016
        %4034 = vmatpush.bf16.msra.mxu0 %v4015
        %4035 = vmatpush.bf16.msra.mxu0 %v4014
        %4036 = vmatpush.bf16.msra.mxu0 %v4013
        %4037 = vmatmul.bf16.gmra.mxu0 %v3929
        %v4038 = vpop.f32.mrf.mxu0
        %v4039 = vadd.f32 0.0, %v4038
        %v4040 = vpop.f32.mrf.mxu0
        %v4041 = vadd.f32 0.0, %v4040
        %4042 = vmatmul.bf16.gmra.mxu0 %v3938
        %v4043 = vpop.f32.mrf.mxu0
        %v4044 = vadd.f32 0.0, %v4043
        %v4045 = vpop.f32.mrf.mxu0
        %v4046 = vadd.f32 0.0, %v4045
        %4047 = vmatmul.bf16.gmra.mxu0 %v3947
        %v4048 = vpop.f32.mrf.mxu0
        %v4049 = vadd.f32 0.0, %v4048
        %v4050 = vpop.f32.mrf.mxu0
        %v4051 = vadd.f32 0.0, %v4050
        %4052 = vmatmul.bf16.gmra.mxu0 %v3956
        %v4053 = vpop.f32.mrf.mxu0
        %v4054 = vadd.f32 0.0, %v4053
        %v4055 = vpop.f32.mrf.mxu0
        %v4056 = vadd.f32 0.0, %v4055
        %4057 = vmatmul.bf16.gmra.mxu0 %v3965
        %v4058 = vpop.f32.mrf.mxu0
        %v4059 = vadd.f32 0.0, %v4058
        %v4060 = vpop.f32.mrf.mxu0
        %v4061 = vadd.f32 0.0, %v4060
        %4062 = vmatmul.bf16.gmra.mxu0 %v3974
        %v4063 = vpop.f32.mrf.mxu0
        %v4064 = vadd.f32 0.0, %v4063
        %v4065 = vpop.f32.mrf.mxu0
        %v4066 = vadd.f32 0.0, %v4065
        %4067 = vdwg.mxu0
        %v4068 = vadd.f32 %v3838, %v4039
        %v4069 = vadd.f32 %v3839, %v4041
        %v4070 = vadd.f32 %v3840, %v4044
        %v4071 = vadd.f32 %v3841, %v4046
        %v4072 = vadd.f32 %v3842, %v4049
        %v4073 = vadd.f32 %v3843, %v4051
        %v4074 = vadd.f32 %v3844, %v4054
        %v4075 = vadd.f32 %v3845, %v4056
        %v4076 = vadd.f32 %v3846, %v4059
        %v4077 = vadd.f32 %v3847, %v4061
        %v4078 = vadd.f32 %v3848, %v4064
        %v4079 = vadd.f32 %v3849, %v4066
        %s4080 = scalar_lea.vmem [#allocation8], 1024
        %v4081 = vld [vmem:[%s4080] sm:$0xf]
        %v4082 = vld [vmem:[%s4080 + $0x4] sm:$0xf]
        %v4083 = vld [vmem:[%s4080 + $0x8] sm:$0xf]
        %v4084 = vld [vmem:[%s4080 + $0xc] sm:$0xf]
        %v4085 = vld [vmem:[%s4080 + $0x10] sm:$0xf]
        %v4086 = vld [vmem:[%s4080 + $0x14] sm:$0xf]
        %v4087 = vld [vmem:[%s4080 + $0x18] sm:$0xf]
        %v4088 = vld [vmem:[%s4080 + $0x1c] sm:$0xf]
        %v4089 = vld [vmem:[%s4080 + $0x20] sm:$0xf]
        %v4090 = vld [vmem:[%s4080 + $0x24] sm:$0xf]
        %v4091 = vld [vmem:[%s4080 + $0x28] sm:$0xf]
        %v4092 = vld [vmem:[%s4080 + $0x2c] sm:$0xf]
        %v4093 = vld [vmem:[%s4080 + $0x30] sm:$0xf]
        %v4094 = vld [vmem:[%s4080 + $0x34] sm:$0xf]
        %v4095 = vld [vmem:[%s4080 + $0x38] sm:$0xf]
        %v4096 = vld [vmem:[%s4080 + $0x3c] sm:$0xf]
        %v4097 = vpack.c.b16 %v3895, %v3894
        %v4098 = vpack.c.b16 %v3897, %v3896
        %v4099 = vpack.c.b16 %v3899, %v3898
        %v4100 = vpack.c.b16 %v3901, %v3900
        %v4101 = vpack.c.b16 %v3903, %v3902
        %v4102 = vpack.c.b16 %v3905, %v3904
        %v4125 = vunpack.c.l.b16 %v4081
        %v4126 = vunpack.c.l.b16 %v4082
        %v4127 = vunpack.c.l.b16 %v4083
        %v4128 = vunpack.c.l.b16 %v4084
        %v4129 = vunpack.c.l.b16 %v4085
        %v4130 = vunpack.c.l.b16 %v4086
        %v4131 = vunpack.c.l.b16 %v4087
        %v4132 = vunpack.c.l.b16 %v4088
        %v4133 = vunpack.c.l.b16 %v4089
        %v4134 = vunpack.c.l.b16 %v4090
        %v4135 = vunpack.c.l.b16 %v4091
        %v4136 = vunpack.c.l.b16 %v4092
        %v4137 = vunpack.c.l.b16 %v4093
        %v4138 = vunpack.c.l.b16 %v4094
        %v4139 = vunpack.c.l.b16 %v4095
        %v4140 = vunpack.c.l.b16 %v4096
        %v4141 = vpack.c.b16 %v4126, %v4125
        %v4142 = vpack.c.b16 %v4128, %v4127
        %v4143 = vpack.c.b16 %v4130, %v4129
        %v4144 = vpack.c.b16 %v4132, %v4131
        %v4145 = vpack.c.b16 %v4134, %v4133
        %v4146 = vpack.c.b16 %v4136, %v4135
        %v4147 = vpack.c.b16 %v4138, %v4137
        %v4148 = vpack.c.b16 %v4140, %v4139
        %4157 = vmatpush.bf16.msra.mxu0 %v4148
        %4158 = vmatpush.bf16.msra.mxu0 %v4147
        %4159 = vmatpush.bf16.msra.mxu0 %v4146
        %4160 = vmatpush.bf16.msra.mxu0 %v4145
        %4161 = vmatpush.bf16.msra.mxu0 %v4144
        %4162 = vmatpush.bf16.msra.mxu0 %v4143
        %4163 = vmatpush.bf16.msra.mxu0 %v4142
        %4164 = vmatpush.bf16.msra.mxu0 %v4141
        %4165 = vmatmul.bf16.gmra.mxu0 %v4097
        %v4166 = vpop.f32.mrf.mxu0
        %v4167 = vadd.f32 0.0, %v4166
        %v4168 = vpop.f32.mrf.mxu0
        %v4169 = vadd.f32 0.0, %v4168
        %4170 = vmatmul.bf16.gmra.mxu0 %v4098
        %v4171 = vpop.f32.mrf.mxu0
        %v4172 = vadd.f32 0.0, %v4171
        %v4173 = vpop.f32.mrf.mxu0
        %v4174 = vadd.f32 0.0, %v4173
        %4175 = vmatmul.bf16.gmra.mxu0 %v4099
        %v4176 = vpop.f32.mrf.mxu0
        %v4177 = vadd.f32 0.0, %v4176
        %v4178 = vpop.f32.mrf.mxu0
        %v4179 = vadd.f32 0.0, %v4178
        %4180 = vmatmul.bf16.gmra.mxu0 %v4100
        %v4181 = vpop.f32.mrf.mxu0
        %v4182 = vadd.f32 0.0, %v4181
        %v4183 = vpop.f32.mrf.mxu0
        %v4184 = vadd.f32 0.0, %v4183
        %4185 = vmatmul.bf16.gmra.mxu0 %v4101
        %v4186 = vpop.f32.mrf.mxu0
        %v4187 = vadd.f32 0.0, %v4186
        %v4188 = vpop.f32.mrf.mxu0
        %v4189 = vadd.f32 0.0, %v4188
        %4190 = vmatmul.bf16.gmra.mxu0 %v4102
        %v4191 = vpop.f32.mrf.mxu0
        %v4192 = vadd.f32 0.0, %v4191
        %v4193 = vpop.f32.mrf.mxu0
        %v4194 = vadd.f32 0.0, %v4193
        %4195 = vdwg.mxu0
        %v4196 = vadd.f32 %v4068, %v4167
        %v4197 = vadd.f32 %v4069, %v4169
        %v4198 = vadd.f32 %v4070, %v4172
        %v4199 = vadd.f32 %v4071, %v4174
        %v4200 = vadd.f32 %v4072, %v4177
        %v4201 = vadd.f32 %v4073, %v4179
        %v4202 = vadd.f32 %v4074, %v4182
        %v4203 = vadd.f32 %v4075, %v4184
        %v4204 = vadd.f32 %v4076, %v4187
        %v4205 = vadd.f32 %v4077, %v4189
        %v4206 = vadd.f32 %v4078, %v4192
        %v4207 = vadd.f32 %v4079, %v4194
        %v4208 = vld [vmem:[#allocation2 + $0x24] sm:$0xf]
        %v4209 = vld [vmem:[#allocation2 + $0x28] sm:$0xf]
        %v4210 = vld [vmem:[#allocation2 + $0x2c] sm:$0xf]
        %v4211 = vld [vmem:[#allocation2 + $0x30] sm:$0xf]
        %v4212 = vld [vmem:[#allocation2 + $0x34] sm:$0xf]
        %v4213 = vld [vmem:[#allocation2 + $0x38] sm:$0xf]
        %v4214 = vld [vmem:[#allocation2 + $0x3c] sm:$0xf]
        %v4215 = vld [vmem:[#allocation2 + $0x40] sm:$0xf]
        %v4216 = vld [vmem:[#allocation2 + $0x44] sm:$0xf]
        %v4217 = vld [vmem:[#allocation2 + $0x48] sm:$0xf]
        %v4218 = vld [vmem:[#allocation2 + $0x4c] sm:$0xf]
        %v4219 = vld [vmem:[#allocation2 + $0x50] sm:$0xf]
        %v4220 = vld [vmem:[#allocation2 + $0x54] sm:$0x1]
        %s4221 = scalar_lea.vmem [#allocation8], 1088
        %v4222 = vld [vmem:[%s4221] sm:$0xf]
        %v4223 = vld [vmem:[%s4221 + $0x4] sm:$0xf]
        %v4224 = vld [vmem:[%s4221 + $0x8] sm:$0xf]
        %v4225 = vld [vmem:[%s4221 + $0xc] sm:$0xf]
        %v4226 = vld [vmem:[%s4221 + $0x10] sm:$0xf]
        %v4227 = vld [vmem:[%s4221 + $0x14] sm:$0xf]
        %v4228 = vld [vmem:[%s4221 + $0x18] sm:$0xf]
        %v4229 = vld [vmem:[%s4221 + $0x1c] sm:$0xf]
        %v4230 = vld [vmem:[%s4221 + $0x20] sm:$0xf]
        %v4231 = vld [vmem:[%s4221 + $0x24] sm:$0xf]
        %v4232 = vld [vmem:[%s4221 + $0x28] sm:$0xf]
        %v4233 = vld [vmem:[%s4221 + $0x2c] sm:$0xf]
        %v4234 = vld [vmem:[%s4221 + $0x30] sm:$0xf]
        %v4235 = vld [vmem:[%s4221 + $0x34] sm:$0xf]
        %v4236 = vld [vmem:[%s4221 + $0x38] sm:$0xf]
        %v4237 = vld [vmem:[%s4221 + $0x3c] sm:$0xf]
        %v4251 = vunpack.c.l.b16 %v4208
        %v4252 = vunpack.c.l.b16 %v4209
        %v4253 = vunpack.c.l.b16 %v4210
        %v4254 = vunpack.c.l.b16 %v4211
        %v4255 = vunpack.c.l.b16 %v4212
        %v4256 = vunpack.c.l.b16 %v4213
        %v4257 = vunpack.c.l.b16 %v4214
        %v4258 = vunpack.c.l.b16 %v4215
        %v4259 = vunpack.c.l.b16 %v4216
        %v4260 = vunpack.c.l.b16 %v4217
        %v4261 = vunpack.c.l.b16 %v4218
        %v4262 = vunpack.c.l.b16 %v4219
        %v4263 = vunpack.c.l.b16 %v4220
        %v4264 = vpack.c.b16 %v4252, %v4251
        %v4265 = vpack.c.b16 %v4254, %v4253
        %v4266 = vpack.c.b16 %v4256, %v4255
        %v4267 = vpack.c.b16 %v4258, %v4257
        %v4268 = vpack.c.b16 %v4260, %v4259
        %v4269 = vpack.c.b16 %v4262, %v4261
        %v4270 = vpack.c.b16 %v4263, %v4263
        %v4272 = vshrl.u32 %v4264, 16
        %v4274 = vshll.u32 %v4264, 16
        %v4276 = vrot.slane %v4274, 1
        %v4277 = vor.u32 %v4272, %v4276
        %v4279 = vshll.u32 %v4265, 16
        %v4281 = vrot.slane %v4279, 1
        %v4282 = vsel %vm897, %v4277, %v4281
        %v4283 = vshrl.u32 %v4265, 16
        %v4285 = vor.u32 %v4283, %v4281
        %v4287 = vshll.u32 %v4266, 16
        %v4289 = vrot.slane %v4287, 1
        %v4290 = vsel %vm897, %v4285, %v4289
        %v4291 = vshrl.u32 %v4266, 16
        %v4293 = vor.u32 %v4291, %v4289
        %v4295 = vshll.u32 %v4267, 16
        %v4297 = vrot.slane %v4295, 1
        %v4298 = vsel %vm897, %v4293, %v4297
        %v4299 = vshrl.u32 %v4267, 16
        %v4301 = vor.u32 %v4299, %v4297
        %v4303 = vshll.u32 %v4268, 16
        %v4305 = vrot.slane %v4303, 1
        %v4306 = vsel %vm897, %v4301, %v4305
        %v4307 = vshrl.u32 %v4268, 16
        %v4309 = vor.u32 %v4307, %v4305
        %v4311 = vshll.u32 %v4269, 16
        %v4313 = vrot.slane %v4311, 1
        %v4314 = vsel %vm897, %v4309, %v4313
        %v4315 = vshrl.u32 %v4269, 16
        %v4317 = vor.u32 %v4315, %v4313
        %v4319 = vshll.u32 %v4270, 16
        %v4321 = vrot.slane %v4319, 1
        %v4322 = vsel %vm897, %v4317, %v4321
        %v4345 = vunpack.c.l.b16 %v4222
        %v4346 = vunpack.c.l.b16 %v4223
        %v4347 = vunpack.c.l.b16 %v4224
        %v4348 = vunpack.c.l.b16 %v4225
        %v4349 = vunpack.c.l.b16 %v4226
        %v4350 = vunpack.c.l.b16 %v4227
        %v4351 = vunpack.c.l.b16 %v4228
        %v4352 = vunpack.c.l.b16 %v4229
        %v4353 = vunpack.c.l.b16 %v4230
        %v4354 = vunpack.c.l.b16 %v4231
        %v4355 = vunpack.c.l.b16 %v4232
        %v4356 = vunpack.c.l.b16 %v4233
        %v4357 = vunpack.c.l.b16 %v4234
        %v4358 = vunpack.c.l.b16 %v4235
        %v4359 = vunpack.c.l.b16 %v4236
        %v4360 = vunpack.c.l.b16 %v4237
        %v4361 = vpack.c.b16 %v4346, %v4345
        %v4362 = vpack.c.b16 %v4348, %v4347
        %v4363 = vpack.c.b16 %v4350, %v4349
        %v4364 = vpack.c.b16 %v4352, %v4351
        %v4365 = vpack.c.b16 %v4354, %v4353
        %v4366 = vpack.c.b16 %v4356, %v4355
        %v4367 = vpack.c.b16 %v4358, %v4357
        %v4368 = vpack.c.b16 %v4360, %v4359
        %4377 = vmatpush.bf16.msra.mxu0 %v4368
        %4378 = vmatpush.bf16.msra.mxu0 %v4367
        %4379 = vmatpush.bf16.msra.mxu0 %v4366
        %4380 = vmatpush.bf16.msra.mxu0 %v4365
        %4381 = vmatpush.bf16.msra.mxu0 %v4364
        %4382 = vmatpush.bf16.msra.mxu0 %v4363
        %4383 = vmatpush.bf16.msra.mxu0 %v4362
        %4384 = vmatpush.bf16.msra.mxu0 %v4361
        %4385 = vmatmul.bf16.gmra.mxu0 %v4282
        %v4386 = vpop.f32.mrf.mxu0
        %v4387 = vadd.f32 0.0, %v4386
        %v4388 = vpop.f32.mrf.mxu0
        %v4389 = vadd.f32 0.0, %v4388
        %4390 = vmatmul.bf16.gmra.mxu0 %v4290
        %v4391 = vpop.f32.mrf.mxu0
        %v4392 = vadd.f32 0.0, %v4391
        %v4393 = vpop.f32.mrf.mxu0
        %v4394 = vadd.f32 0.0, %v4393
        %4395 = vmatmul.bf16.gmra.mxu0 %v4298
        %v4396 = vpop.f32.mrf.mxu0
        %v4397 = vadd.f32 0.0, %v4396
        %v4398 = vpop.f32.mrf.mxu0
        %v4399 = vadd.f32 0.0, %v4398
        %4400 = vmatmul.bf16.gmra.mxu0 %v4306
        %v4401 = vpop.f32.mrf.mxu0
        %v4402 = vadd.f32 0.0, %v4401
        %v4403 = vpop.f32.mrf.mxu0
        %v4404 = vadd.f32 0.0, %v4403
        %4405 = vmatmul.bf16.gmra.mxu0 %v4314
        %v4406 = vpop.f32.mrf.mxu0
        %v4407 = vadd.f32 0.0, %v4406
        %v4408 = vpop.f32.mrf.mxu0
        %v4409 = vadd.f32 0.0, %v4408
        %4410 = vmatmul.bf16.gmra.mxu0 %v4322
        %v4411 = vpop.f32.mrf.mxu0
        %v4412 = vadd.f32 0.0, %v4411
        %v4413 = vpop.f32.mrf.mxu0
        %v4414 = vadd.f32 0.0, %v4413
        %4415 = vdwg.mxu0
        %v4416 = vadd.f32 %v4196, %v4387
        %v4417 = vadd.f32 %v4197, %v4389
        %v4418 = vadd.f32 %v4198, %v4392
        %v4419 = vadd.f32 %v4199, %v4394
        %v4420 = vadd.f32 %v4200, %v4397
        %v4421 = vadd.f32 %v4201, %v4399
        %v4422 = vadd.f32 %v4202, %v4402
        %v4423 = vadd.f32 %v4203, %v4404
        %v4424 = vadd.f32 %v4204, %v4407
        %v4425 = vadd.f32 %v4205, %v4409
        %v4426 = vadd.f32 %v4206, %v4412
        %v4427 = vadd.f32 %v4207, %v4414
        %v4428 = vmul.f32 %v4416, 0.2
        %v4429 = vmul.f32 %v4417, 0.2
        %v4430 = vmul.f32 %v4418, 0.2
        %v4431 = vmul.f32 %v4419, 0.2
        %v4432 = vmul.f32 %v4420, 0.2
        %v4433 = vmul.f32 %v4421, 0.2
        %v4434 = vmul.f32 %v4422, 0.2
        %v4435 = vmul.f32 %v4423, 0.2
        %v4436 = vmul.f32 %v4424, 0.2
        %v4437 = vmul.f32 %v4425, 0.2
        %v4438 = vmul.f32 %v4426, 0.2
        %v4439 = vmul.f32 %v4427, 0.2
        %v4440 = vld [vmem:[%s227] sm:$0xff]
        %v4441 = vld [vmem:[%s227 + $0x8] sm:$0xff]
        %v4442 = vld [vmem:[%s227 + $0x10] sm:$0xff]
        %v4443 = vld [vmem:[%s227 + $0x18] sm:$0xff]
        %v4444 = vld [vmem:[%s227 + $0x20] sm:$0xff]
        %v4445 = vld [vmem:[%s227 + $0x28] sm:$0xff]
        %v4446 = vld [vmem:[%s227 + $0x30] sm:$0xff]
        %v4447 = vld [vmem:[%s227 + $0x38] sm:$0xff]
        %v4448 = vld [vmem:[%s227 + $0x40] sm:$0xff]
        %v4449 = vld [vmem:[%s227 + $0x48] sm:$0xff]
        %v4450 = vld [vmem:[%s227 + $0x50] sm:$0xff]
        %v4451 = vld [vmem:[%s227 + $0x58] sm:$0xff]
        %v4452 = vadd.f32 %v4428, %v4440
        %v4453 = vadd.f32 %v4429, %v4441
        %v4454 = vadd.f32 %v4430, %v4442
        %v4455 = vadd.f32 %v4431, %v4443
        %v4456 = vadd.f32 %v4432, %v4444
        %v4457 = vadd.f32 %v4433, %v4445
        %v4458 = vadd.f32 %v4434, %v4446
        %v4459 = vadd.f32 %v4435, %v4447
        %v4460 = vadd.f32 %v4436, %v4448
        %v4461 = vadd.f32 %v4437, %v4449
        %v4462 = vadd.f32 %v4438, %v4450
        %v4463 = vadd.f32 %v4439, %v4451
        %4464 = vst [vmem:[%s270] sm:$0xff] %v4452
        %4465 = vst [vmem:[%s270 + $0x8] sm:$0xff] %v4453
        %4466 = vst [vmem:[%s270 + $0x10] sm:$0xff] %v4454
        %4467 = vst [vmem:[%s270 + $0x18] sm:$0xff] %v4455
        %4468 = vst [vmem:[%s270 + $0x20] sm:$0xff] %v4456
        %4469 = vst [vmem:[%s270 + $0x28] sm:$0xff] %v4457
        %4470 = vst [vmem:[%s270 + $0x30] sm:$0xff] %v4458
        %4471 = vst [vmem:[%s270 + $0x38] sm:$0xff] %v4459
        %4472 = vst [vmem:[%s270 + $0x40] sm:$0xff] %v4460
        %4473 = vst [vmem:[%s270 + $0x48] sm:$0xff] %v4461
        %4474 = vst [vmem:[%s270 + $0x50] sm:$0xff] %v4462
        %4475 = vst [vmem:[%s270 + $0x58] sm:$0xff] %v4463
        %s4476 = sand.u32 %s122, 1
        %s4477 = scalar_lea.sflag [#allocation5], %s4476
        %s4478 = sand.u32 %s122, 1
        %s4479 = smul.addr %s4478, 96
        %s4480 = scalar_lea.vmem [#allocation9], %s4479
        // Predicated region
        $region53: #{tpu_custom_call.1} parent=31 // pred_check
          %p4481 = pneg %p132
        $region54: #{tpu_custom_call.1} parent=31 // pred_check_branch
          %4483 = sbr.rel (%p4481) target = $region56
        $region55: #{tpu_custom_call.1} parent=31 // pred_region
          %4485 = vsyncadd %s4477, 0
          %s4486 = smul.addr %s28, 12
          %s4487 = smul.addr %s27, 48
          %s4488 = sadd.s32 %s4486, %s4487
          %s4489 = smul.addr %s4488, 8
          %s4490 = scalar_lea.hbm %s3, %s4489
          %s4491 = sshll.u32 %s4480, 4
          %s4492 = int_to_ptr.vmem [resolvable:$true] %s4491
          %s4493 = sshll.u32 %s4490, 4
          %s4494 = int_to_ptr.hbm [resolvable:$true] %s4493
          %4499 = dma.vmem_to_hbm [thread:$0]  %s4492, 1536, %s4494, %s4477, 128, 128, 8
        $region56: #{tpu_custom_call.1} parent=31 // pred_fallthru
          _
      $region32: #{tpu_custom_call.1} parent=5 // pred_fallthru
        _
      %p4500 = scmp.le.s32.totalorder 2, %s18
      // Predicated region
      $region57: #{tpu_custom_call.1} parent=5 // pred_check
        %p4501 = pneg %p4500
      $region58: #{tpu_custom_call.1} parent=5 // pred_check_branch
        %4503 = sbr.rel (%p4501) target = $region60
      $region59: #{tpu_custom_call.1} parent=5 // pred_region
        %s4504 = ssub.s32 %s18, 2
        // Predicated region
        $region61: #{tpu_custom_call.1} parent=59 // pred_check
          %p4505 = pneg %p138
        $region62: #{tpu_custom_call.1} parent=59 // pred_check_branch
          %4507 = sbr.rel (%p4505) target = $region64
        $region63: #{tpu_custom_call.1} parent=59 // pred_region
          %s4508 = sand.u32 %s123, 1
          %s4509 = scalar_lea.sflag [#allocation5], %s4508
          %s4510 = sand.u32 %s123, 1
          %s4511 = smul.addr %s4510, 96
          %s4512 = scalar_lea.vmem [#allocation9], %s4511
          %4514 = dma.done %s4509, 1536
        $region64: #{tpu_custom_call.1} parent=59 // pred_fallthru
          _
      $region60: #{tpu_custom_call.1} parent=5 // pred_fallthru
        _
    $region6: #{tpu_custom_call.1} parent=1 // loop_footer
      %s22 = sadd.s32 1, %s18
    $region7: #{tpu_custom_call.1} parent=1 // loop_footer_branch
      %17 = sbr.rel target = $region3
    $region8: #{tpu_custom_call.1} parent=1 // loop_exit
      _
    %4515 = vsyncpa [#allocation4], 1
    %s4516 = scalar_lea.sflag [#allocation4], 1
    %4517 = vsyncpa %s4516, 1
    %4518 = vsyncpa [#allocation7], 1
    %s4519 = scalar_lea.sflag [#allocation7], 1
    %4520 = vsyncpa %s4519, 1
    %4521 = vsyncpa [#allocation5], 1
    %s4522 = scalar_lea.sflag [#allocation5], 1
    %4523 = vsyncpa %s4522, 1

</llo_original>
